<compile_context>
chip_gen: v5e
topology: v5e:2x2
jax: 0.10.0
libtpu: 0.0.40
codegen_flags: <defaults>
</compile_context>

<pallas_src>
import functools

import numpy as np
import jax
import jax.numpy as jnp
from jax.experimental import pallas as pl
from jax.experimental.pallas import tpu as pltpu


# ----------------------------- Pallas kernel --------------------------------
def fno1d_kernel(x_ref,                      # (1, Bblk, S*C)        f32
                 l0h_ref, l0l_ref, b0_ref,   # (S*C, SW) bf16 x2, (1, SW) f32
                 lmh_ref, lml_ref, bm_ref,   # (2, SW, SW) bf16 x2, (2, 1, SW) f32
                 l3_ref, b3_ref,             # (SW, SH) bf16, (1, SH) f32
                 p2_ref, p2b_ref,            # (SH, S) bf16, (1, 1) f32
                 out_ref):                   # (1, Bblk, S)          f32
    f32, bf16 = jnp.float32, jnp.bfloat16

    # ---- layer 0 (fc0 lift folded into the composite) -----------------------
    x = x_ref[0].astype(bf16)                                  # (Bblk, S*C)
    v = (jnp.dot(x, l0h_ref[...], preferred_element_type=f32)
         + jnp.dot(x, l0l_ref[...], preferred_element_type=f32)
         + b0_ref[...])                                        # (Bblk, SW)
    v = jnp.maximum(v, 0.0)

    # ---- layers 1 and 2: one composite (SW, SW) matmul each ------------------
    for l in range(2):
        vb = v.astype(bf16)
        v = (jnp.dot(vb, lmh_ref[l], preferred_element_type=f32)
             + jnp.dot(vb, lml_ref[l], preferred_element_type=f32)
             + bm_ref[l])
        v = jnp.maximum(v, 0.0)

    # ---- layer 3 with fc1 folded in (no relu between them in the model) -----
    vb = v.astype(bf16)
    h = jnp.dot(vb, l3_ref[...], preferred_element_type=f32) + b3_ref[...]
    h = jnp.maximum(h, 0.0)                                    # (Bblk, S*H)

    # ---- fc2 as a block-diagonal projection back to (Bblk, S) ----------------
    out = (jnp.dot(h.astype(bf16), p2_ref[...], preferred_element_type=f32)
           + p2b_ref[...])                                     # (Bblk, S)
    out_ref[0] = out.astype(out_ref.dtype)


# ------------------------------ wrapper --------------------------------------
def _full_spec(a):
    nd = a.ndim
    return pl.BlockSpec(a.shape, lambda b, nd=nd: (0,) * nd)


@functools.partial(jax.jit, static_argnames=("bblk",))
def fno1d_forward(x, kparams, bblk):
    """x: (B, S, 2) float32 -> (B, S, 1) float32."""
    B, S, C = x.shape
    assert B % bblk == 0
    nblk = B // bblk
    xb = x.reshape(nblk, bblk, S * C)         # flat per-point input per grid step
    plist = list(kparams)
    in_specs = [pl.BlockSpec((1, bblk, S * C), lambda b: (b, 0, 0))]
    in_specs += [_full_spec(p) for p in plist]
    out = pl.pallas_call(
        fno1d_kernel,
        out_shape=jax.ShapeDtypeStruct((nblk, bblk, S), jnp.float32),
        grid=(nblk,),
        in_specs=in_specs,
        out_specs=pl.BlockSpec((1, bblk, S), lambda b: (b, 0, 0)),
        compiler_params=pltpu.CompilerParams(
            dimension_semantics=("parallel",)),
    )(xb, *plist)
    return out.reshape(B, S, 1)


# --------------------------- parameter setup ---------------------------------
def make_params(key, s, modes, width, hidden=128):
    ks = jax.random.split(key, 10)
    u = jax.random.uniform
    f32, bf16 = jnp.float32, jnp.bfloat16
    # bf16 round-trip so kernel-side bf16 storage and the f32 reference share values
    rt = lambda a: a.astype(bf16).astype(f32)

    # ---- logical (torch-equivalent) weights ----------------------------------
    bnd0 = 1.0 / float(np.sqrt(2.0))
    fc0_w = rt(u(ks[0], (2, width), f32, -bnd0, bnd0))
    fc0_b = u(ks[1], (width,), f32, -bnd0, bnd0)

    scale = 1.0 / (width * width)
    swr = rt(scale * u(ks[2], (4, modes, width, width), f32))   # (layer, mode, in, out)
    swi = rt(scale * u(ks[3], (4, modes, width, width), f32))

    bw = 1.0 / float(np.sqrt(width))
    cw = rt(u(ks[4], (4, width, width), f32, -bw, bw))          # 1x1 convs, (in, out)
    cb = u(ks[5], (4, width), f32, -bw, bw)

    fc1_w = rt(u(ks[6], (width, hidden), f32, -bw, bw))
    fc1_b = u(ks[7], (hidden,), f32, -bw, bw)
    bh = 1.0 / float(np.sqrt(hidden))
    fc2_w = rt(u(ks[8], (hidden, 1), f32, -bh, bh))
    fc2_b = u(ks[9], (1,), f32, -bh, bh)

    ref_params = (fc0_w, fc0_b, swr, swi, cw, cb, fc1_w, fc1_b, fc2_w, fc2_b)

    # ---- composite per-layer operators, built on the host in float64 ---------
    f64 = np.float64
    fc0_w_n, fc0_b_n = np.asarray(fc0_w, f64), np.asarray(fc0_b, f64)
    swr_n, swi_n = np.asarray(swr, f64), np.asarray(swi, f64)
    cw_n, cb_n = np.asarray(cw, f64), np.asarray(cb, f64)
    fc1_w_n, fc1_b_n = np.asarray(fc1_w, f64), np.asarray(fc1_b, f64)
    fc2_w_n, fc2_b_n = np.asarray(fc2_w, f64), np.asarray(fc2_b, f64)

    # truncated real-DFT (rfft) rows and inverse (irfft) columns
    kk = np.arange(modes, dtype=f64)[:, None]                  # (M, 1)
    nn = np.arange(s, dtype=f64)[None, :]                      # (1, S)
    ang = 2.0 * np.pi * kk * nn / s                            # (M, S)
    Fr, Fi = np.cos(ang), -np.sin(ang)
    ck = np.where((np.arange(modes) == 0) | (np.arange(modes) == s // 2),
                  1.0, 2.0).astype(f64)[:, None]
    Gr, Gi = (ck / s) * np.cos(ang), -(ck / s) * np.sin(ang)

    eyeS = np.eye(s, dtype=f64)
    SW, SH = s * width, s * hidden

    Ls, bs_ = [], []
    for l in range(4):
        # L_spec[(n,i),(t,o)] : iDFT o per-mode complex mixing o DFT
        Lspec = (np.einsum("kn,kt,kio->nito", Fr, Gr, swr_n[l])
                 - np.einsum("kn,kt,kio->nito", Fi, Gr, swi_n[l])
                 + np.einsum("kn,kt,kio->nito", Fr, Gi, swi_n[l])
                 + np.einsum("kn,kt,kio->nito", Fi, Gi, swr_n[l]))
        # 1x1 conv: I_S (x) cw[l]
        Lconv = np.einsum("nt,io->nito", eyeS, cw_n[l])
        Ls.append((Lspec + Lconv).reshape(SW, SW))
        bs_.append(np.tile(cb_n[l], s))                        # (SW,)

    # fold the fc0 lift into layer 0:  layer0(fc0(x)) = x @ (Lf L0) + (bf L0 + b0)
    Lf = np.einsum("nt,cw->nctw", eyeS, fc0_w_n).reshape(s * 2, SW)
    bf_ = np.tile(fc0_b_n, s)
    L0c = Lf @ Ls[0]                                           # (S*2, SW)
    b0c = bf_ @ Ls[0] + bs_[0]                                 # (SW,)

    # fold fc1 into layer 3 (no relu between them); fc2 as block-diag projection
    BD1 = np.einsum("nt,wh->nwth", eyeS, fc1_w_n).reshape(SW, SH)
    L3c = Ls[3] @ BD1                                          # (SW, SH)
    b3c = bs_[3] @ BD1 + np.tile(fc1_b_n, s)                   # (SH,)
    BD2 = np.einsum("nt,h->nht", eyeS, fc2_w_n[:, 0]).reshape(SH, s)   # (SH, S)

    def split_bf16(a):
        a32 = jnp.asarray(a, jnp.float32)
        hi = a32.astype(bf16)
        lo = (a32 - hi.astype(jnp.float32)).astype(bf16)
        return hi, lo

    L0h, L0l = split_bf16(L0c)
    Lmid = np.stack([Ls[1], Ls[2]])                            # (2, SW, SW)
    Lmh, Lml = split_bf16(Lmid)
    bmid = np.stack([bs_[1], bs_[2]]).reshape(2, 1, SW)

    kernel_params = (
        L0h, L0l, jnp.asarray(b0c, jnp.float32).reshape(1, SW),
        Lmh, Lml, jnp.asarray(bmid, jnp.float32),
        jnp.asarray(L3c, jnp.float32).astype(bf16),
        jnp.asarray(b3c, jnp.float32).reshape(1, SH),
        jnp.asarray(BD2, jnp.float32).astype(bf16),
        jnp.asarray(fc2_b_n, jnp.float32).reshape(1, 1),
    )
    return kernel_params, ref_params


# ---------------------------- pure-JAX reference ------------------------------
def ref_forward(x, params):
    (fc0_w, fc0_b, swr, swi, cw, cb, fc1_w, fc1_b, fc2_w, fc2_b) = params
    hp = jax.lax.Precision.HIGHEST
    B, S, _ = x.shape
    modes = swr.shape[1]

    v = jnp.einsum("bsc,cw->bsw", x, fc0_w, precision=hp) + fc0_b     # (B, S, W)
    v = jnp.transpose(v, (0, 2, 1))                                   # (B, W, S) NCL
    for l in range(4):
        vft = jnp.fft.rfft(v, axis=-1)[:, :, :modes]
        wcplx = (swr[l] + 1j * swi[l]).astype(jnp.complex64)          # (M, in, out)
        y = jnp.einsum("bik,kio->bok", vft, wcplx, precision=hp)
        out_ft = jnp.zeros((B, v.shape[1], S // 2 + 1), jnp.complex64
                           ).at[:, :, :modes].set(y)
        x1 = jnp.fft.irfft(out_ft, n=S, axis=-1)
        x2 = jnp.einsum("bix,io->box", v, cw[l], precision=hp) + cb[l][None, :, None]
        v = x1 + x2
        if l < 3:
            v = jax.nn.relu(v)
    v = jnp.transpose(v, (0, 2, 1))                                   # (B, S, W)
    h = jax.nn.relu(jnp.einsum("bsw,wh->bsh", v, fc1_w, precision=hp) + fc1_b)
    return jnp.einsum("bsh,ho->bso", h, fc2_w, precision=hp) + fc2_b


# --------------------------------- main ---------------------------------------
if __name__ == "__main__":
    # B=16, BBLK=8 -> grid=(2,): both v7x TensorCores get a "parallel" step.
    # On single-TC v5e/v6e, BBLK = B (grid=(1,)) is marginally better.
    B, S, MODES, WIDTH, BBLK = 16, 16, 8, 32, 8

    key = jax.random.PRNGKey(0)
    kx, kp = jax.random.split(key)
    # input: (a(x), x) pairs -> shape (batch, s, 2)
    x = jax.random.uniform(kx, (B, S, 2), jnp.float32)

    kparams, rparams = make_params(kp, S, MODES, WIDTH)

    out = jax.block_until_ready(fno1d_forward(x, kparams, bblk=BBLK))
    ref = jax.block_until_ready(ref_forward(x, rparams))

    assert out.shape == (B, S, 1)
    max_err = float(jnp.max(jnp.abs(out - ref)))
    assert jnp.allclose(out, ref, atol=1e-2, rtol=1e-2), max_err
    print("KERNEL_OK")
</pallas_src>

<mosaic_0001>
module attributes {stable_mosaic.version = 11 : i64} {
  func.func @fno1d_kernel(%arg0: i32, %arg1: memref<1x8x32xf32, #tpu.memory_space<vmem>>, %arg2: memref<32x512xbf16, #tpu.memory_space<vmem>>, %arg3: memref<32x512xbf16, #tpu.memory_space<vmem>>, %arg4: memref<1x512xf32, #tpu.memory_space<vmem>>, %arg5: memref<2x512x512xbf16, #tpu.memory_space<vmem>>, %arg6: memref<2x512x512xbf16, #tpu.memory_space<vmem>>, %arg7: memref<2x1x512xf32, #tpu.memory_space<vmem>>, %arg8: memref<512x2048xbf16, #tpu.memory_space<vmem>>, %arg9: memref<1x2048xf32, #tpu.memory_space<vmem>>, %arg10: memref<2048x16xbf16, #tpu.memory_space<vmem>>, %arg11: memref<1x1xf32, #tpu.memory_space<vmem>>, %arg12: memref<1x8x16xf32, #tpu.memory_space<vmem>>) attributes {dimension_semantics = [#tpu.dimension_semantics<parallel>], iteration_bounds = array<i64: 2>, scalar_prefetch = 0 : i64, scratch_operands = 0 : i64, tpu.core_type = #tpu.core_type<tc>, window_params = [{transform_indices = @transform_0, window_bounds = array<i64: 1, 8, 32>}, {pipeline_mode = #tpu.pipeline_mode<synchronous>, transform_indices = @transform_1, window_bounds = array<i64: 32, 512>}, {pipeline_mode = #tpu.pipeline_mode<synchronous>, transform_indices = @transform_2, window_bounds = array<i64: 32, 512>}, {pipeline_mode = #tpu.pipeline_mode<synchronous>, transform_indices = @transform_3, window_bounds = array<i64: 1, 512>}, {pipeline_mode = #tpu.pipeline_mode<synchronous>, transform_indices = @transform_4, window_bounds = array<i64: 2, 512, 512>}, {pipeline_mode = #tpu.pipeline_mode<synchronous>, transform_indices = @transform_5, window_bounds = array<i64: 2, 512, 512>}, {pipeline_mode = #tpu.pipeline_mode<synchronous>, transform_indices = @transform_6, window_bounds = array<i64: 2, 1, 512>}, {pipeline_mode = #tpu.pipeline_mode<synchronous>, transform_indices = @transform_7, window_bounds = array<i64: 512, 2048>}, {pipeline_mode = #tpu.pipeline_mode<synchronous>, transform_indices = @transform_8, window_bounds = array<i64: 1, 2048>}, {pipeline_mode = #tpu.pipeline_mode<synchronous>, transform_indices = @transform_9, window_bounds = array<i64: 2048, 16>}, {pipeline_mode = #tpu.pipeline_mode<synchronous>, transform_indices = @transform_10, window_bounds = array<i64: 1, 1>}, {transform_indices = @transform_11, window_bounds = array<i64: 1, 8, 16>}]} {
    %c0 = arith.constant 0 : index
    %c0_0 = arith.constant 0 : index
    %c0_1 = arith.constant 0 : index
    %0 = vector.load %arg1[%c0, %c0_0, %c0_1] : memref<1x8x32xf32, #tpu.memory_space<vmem>>, vector<1x8x32xf32>
    %1 = vector.shape_cast %0 : vector<1x8x32xf32> to vector<8x32xf32>
    %2 = arith.truncf %1 : vector<8x32xf32> to vector<8x32xbf16>
    %c0_2 = arith.constant 0 : index
    %c0_3 = arith.constant 0 : index
    %3 = vector.load %arg2[%c0_2, %c0_3] : memref<32x512xbf16, #tpu.memory_space<vmem>>, vector<32x512xbf16>
    %cst = arith.constant dense<0.000000e+00> : vector<8x512xf32>
    %4 = tpu.matmul %2, %3, %cst {dimension_numbers = #tpu.dot_dimension_numbers<[1], [0], [0], [1], [0, 0, 1, 1], [], []>} : vector<8x32xbf16>, vector<32x512xbf16>, vector<8x512xf32> -> vector<8x512xf32>
    %c0_4 = arith.constant 0 : index
    %c0_5 = arith.constant 0 : index
    %5 = vector.load %arg3[%c0_4, %c0_5] : memref<32x512xbf16, #tpu.memory_space<vmem>>, vector<32x512xbf16>
    %cst_6 = arith.constant dense<0.000000e+00> : vector<8x512xf32>
    %6 = tpu.matmul %2, %5, %cst_6 {dimension_numbers = #tpu.dot_dimension_numbers<[1], [0], [0], [1], [0, 0, 1, 1], [], []>} : vector<8x32xbf16>, vector<32x512xbf16>, vector<8x512xf32> -> vector<8x512xf32>
    %7 = arith.addf %4, %6 : vector<8x512xf32>
    %c0_7 = arith.constant 0 : index
    %c0_8 = arith.constant 0 : index
    %8 = vector.load %arg4[%c0_7, %c0_8] : memref<1x512xf32, #tpu.memory_space<vmem>>, vector<1x512xf32>
    %9 = vector.broadcast %8 : vector<1x512xf32> to vector<8x512xf32>
    %10 = arith.addf %7, %9 : vector<8x512xf32>
    %cst_9 = arith.constant 0.000000e+00 : f32
    %11 = vector.broadcast %cst_9 : f32 to vector<8x512xf32>
    %12 = arith.maximumf %10, %11 : vector<8x512xf32>
    %13 = arith.truncf %12 : vector<8x512xf32> to vector<8x512xbf16>
    %c0_10 = arith.constant 0 : index
    %c0_11 = arith.constant 0 : index
    %c0_12 = arith.constant 0 : index
    %14 = vector.load %arg5[%c0_10, %c0_11, %c0_12] : memref<2x512x512xbf16, #tpu.memory_space<vmem>>, vector<1x512x512xbf16>
    %15 = vector.shape_cast %14 : vector<1x512x512xbf16> to vector<512x512xbf16>
    %cst_13 = arith.constant dense<0.000000e+00> : vector<8x512xf32>
    %16 = tpu.matmul %13, %15, %cst_13 {dimension_numbers = #tpu.dot_dimension_numbers<[1], [0], [0], [1], [0, 0, 1, 1], [], []>} : vector<8x512xbf16>, vector<512x512xbf16>, vector<8x512xf32> -> vector<8x512xf32>
    %c0_14 = arith.constant 0 : index
    %c0_15 = arith.constant 0 : index
    %c0_16 = arith.constant 0 : index
    %17 = vector.load %arg6[%c0_14, %c0_15, %c0_16] : memref<2x512x512xbf16, #tpu.memory_space<vmem>>, vector<1x512x512xbf16>
    %18 = vector.shape_cast %17 : vector<1x512x512xbf16> to vector<512x512xbf16>
    %cst_17 = arith.constant dense<0.000000e+00> : vector<8x512xf32>
    %19 = tpu.matmul %13, %18, %cst_17 {dimension_numbers = #tpu.dot_dimension_numbers<[1], [0], [0], [1], [0, 0, 1, 1], [], []>} : vector<8x512xbf16>, vector<512x512xbf16>, vector<8x512xf32> -> vector<8x512xf32>
    %20 = arith.addf %16, %19 : vector<8x512xf32>
    %c0_18 = arith.constant 0 : index
    %c0_19 = arith.constant 0 : index
    %c0_20 = arith.constant 0 : index
    %21 = vector.load %arg7[%c0_18, %c0_19, %c0_20] : memref<2x1x512xf32, #tpu.memory_space<vmem>>, vector<1x1x512xf32>
    %22 = vector.shape_cast %21 : vector<1x1x512xf32> to vector<1x512xf32>
    %23 = vector.broadcast %22 : vector<1x512xf32> to vector<8x512xf32>
    %24 = arith.addf %20, %23 : vector<8x512xf32>
    %cst_21 = arith.constant 0.000000e+00 : f32
    %25 = vector.broadcast %cst_21 : f32 to vector<8x512xf32>
    %26 = arith.maximumf %24, %25 : vector<8x512xf32>
    %27 = arith.truncf %26 : vector<8x512xf32> to vector<8x512xbf16>
    %c1 = arith.constant 1 : index
    %c0_22 = arith.constant 0 : index
    %c0_23 = arith.constant 0 : index
    %28 = vector.load %arg5[%c1, %c0_22, %c0_23] : memref<2x512x512xbf16, #tpu.memory_space<vmem>>, vector<1x512x512xbf16>
    %29 = vector.shape_cast %28 : vector<1x512x512xbf16> to vector<512x512xbf16>
    %cst_24 = arith.constant dense<0.000000e+00> : vector<8x512xf32>
    %30 = tpu.matmul %27, %29, %cst_24 {dimension_numbers = #tpu.dot_dimension_numbers<[1], [0], [0], [1], [0, 0, 1, 1], [], []>} : vector<8x512xbf16>, vector<512x512xbf16>, vector<8x512xf32> -> vector<8x512xf32>
    %c1_25 = arith.constant 1 : index
    %c0_26 = arith.constant 0 : index
    %c0_27 = arith.constant 0 : index
    %31 = vector.load %arg6[%c1_25, %c0_26, %c0_27] : memref<2x512x512xbf16, #tpu.memory_space<vmem>>, vector<1x512x512xbf16>
    %32 = vector.shape_cast %31 : vector<1x512x512xbf16> to vector<512x512xbf16>
    %cst_28 = arith.constant dense<0.000000e+00> : vector<8x512xf32>
    %33 = tpu.matmul %27, %32, %cst_28 {dimension_numbers = #tpu.dot_dimension_numbers<[1], [0], [0], [1], [0, 0, 1, 1], [], []>} : vector<8x512xbf16>, vector<512x512xbf16>, vector<8x512xf32> -> vector<8x512xf32>
    %34 = arith.addf %30, %33 : vector<8x512xf32>
    %c1_29 = arith.constant 1 : index
    %c0_30 = arith.constant 0 : index
    %c0_31 = arith.constant 0 : index
    %35 = vector.load %arg7[%c1_29, %c0_30, %c0_31] : memref<2x1x512xf32, #tpu.memory_space<vmem>>, vector<1x1x512xf32>
    %36 = vector.shape_cast %35 : vector<1x1x512xf32> to vector<1x512xf32>
    %37 = vector.broadcast %36 : vector<1x512xf32> to vector<8x512xf32>
    %38 = arith.addf %34, %37 : vector<8x512xf32>
    %cst_32 = arith.constant 0.000000e+00 : f32
    %39 = vector.broadcast %cst_32 : f32 to vector<8x512xf32>
    %40 = arith.maximumf %38, %39 : vector<8x512xf32>
    %41 = arith.truncf %40 : vector<8x512xf32> to vector<8x512xbf16>
    %c0_33 = arith.constant 0 : index
    %c0_34 = arith.constant 0 : index
    %42 = vector.load %arg8[%c0_33, %c0_34] : memref<512x2048xbf16, #tpu.memory_space<vmem>>, vector<512x2048xbf16>
    %cst_35 = arith.constant dense<0.000000e+00> : vector<8x2048xf32>
    %43 = tpu.matmul %41, %42, %cst_35 {dimension_numbers = #tpu.dot_dimension_numbers<[1], [0], [0], [1], [0, 0, 1, 1], [], []>} : vector<8x512xbf16>, vector<512x2048xbf16>, vector<8x2048xf32> -> vector<8x2048xf32>
    %c0_36 = arith.constant 0 : index
    %c0_37 = arith.constant 0 : index
    %44 = vector.load %arg9[%c0_36, %c0_37] : memref<1x2048xf32, #tpu.memory_space<vmem>>, vector<1x2048xf32>
    %45 = vector.broadcast %44 : vector<1x2048xf32> to vector<8x2048xf32>
    %46 = arith.addf %43, %45 : vector<8x2048xf32>
    %cst_38 = arith.constant 0.000000e+00 : f32
    %47 = vector.broadcast %cst_38 : f32 to vector<8x2048xf32>
    %48 = arith.maximumf %46, %47 : vector<8x2048xf32>
    %49 = arith.truncf %48 : vector<8x2048xf32> to vector<8x2048xbf16>
    %c0_39 = arith.constant 0 : index
    %c0_40 = arith.constant 0 : index
    %50 = vector.load %arg10[%c0_39, %c0_40] : memref<2048x16xbf16, #tpu.memory_space<vmem>>, vector<2048x16xbf16>
    %cst_41 = arith.constant dense<0.000000e+00> : vector<8x16xf32>
    %51 = tpu.matmul %49, %50, %cst_41 {dimension_numbers = #tpu.dot_dimension_numbers<[1], [0], [0], [1], [0, 0, 1, 1], [], []>} : vector<8x2048xbf16>, vector<2048x16xbf16>, vector<8x16xf32> -> vector<8x16xf32>
    %c0_42 = arith.constant 0 : index
    %c0_43 = arith.constant 0 : index
    %52 = vector.load %arg11[%c0_42, %c0_43] : memref<1x1xf32, #tpu.memory_space<vmem>>, vector<1x1xf32>
    %53 = vector.broadcast %52 : vector<1x1xf32> to vector<8x16xf32>
    %54 = arith.addf %51, %53 : vector<8x16xf32>
    %c0_44 = arith.constant 0 : index
    %c0_45 = arith.constant 0 : index
    %c0_46 = arith.constant 0 : index
    %55 = vector.load %arg12[%c0_44, %c0_45, %c0_46] : memref<1x8x16xf32, #tpu.memory_space<vmem>>, vector<1x8x16xf32>
    %56 = vector.shape_cast %55 : vector<1x8x16xf32> to vector<8x16xf32>
    %57 = vector.shape_cast %54 : vector<8x16xf32> to vector<1x8x16xf32>
    tpu.vector_store %arg12[%c0_44, %c0_45, %c0_46], %57 {strides = array<i32>} : memref<1x8x16xf32, #tpu.memory_space<vmem>>, vector<1x8x16xf32>,
    return
  }
  func.func @transform_0(%arg0: i32) -> (i32, i32, i32) {
    %c0_i32 = arith.constant 0 : i32
    %c0_i32_0 = arith.constant 0 : i32
    %c0_i32_1 = arith.constant 0 : i32
    return %arg0, %c0_i32, %c0_i32_0 : i32, i32, i32
  }
  func.func @transform_1(%arg0: i32) -> (i32, i32) {
    %c0_i32 = arith.constant 0 : i32
    %c0_i32_0 = arith.constant 0 : i32
    %c0_i32_1 = arith.constant 0 : i32
    return %c0_i32, %c0_i32_0 : i32, i32
  }
  func.func @transform_2(%arg0: i32) -> (i32, i32) {
    %c0_i32 = arith.constant 0 : i32
    %c0_i32_0 = arith.constant 0 : i32
    %c0_i32_1 = arith.constant 0 : i32
    return %c0_i32, %c0_i32_0 : i32, i32
  }
  func.func @transform_3(%arg0: i32) -> (i32, i32) {
    %c0_i32 = arith.constant 0 : i32
    %c0_i32_0 = arith.constant 0 : i32
    %c0_i32_1 = arith.constant 0 : i32
    return %c0_i32, %c0_i32_0 : i32, i32
  }
  func.func @transform_4(%arg0: i32) -> (i32, i32, i32) {
    %c0_i32 = arith.constant 0 : i32
    %c0_i32_0 = arith.constant 0 : i32
    %c0_i32_1 = arith.constant 0 : i32
    %c0_i32_2 = arith.constant 0 : i32
    return %c0_i32, %c0_i32_0, %c0_i32_1 : i32, i32, i32
  }
  func.func @transform_5(%arg0: i32) -> (i32, i32, i32) {
    %c0_i32 = arith.constant 0 : i32
    %c0_i32_0 = arith.constant 0 : i32
    %c0_i32_1 = arith.constant 0 : i32
    %c0_i32_2 = arith.constant 0 : i32
    return %c0_i32, %c0_i32_0, %c0_i32_1 : i32, i32, i32
  }
  func.func @transform_6(%arg0: i32) -> (i32, i32, i32) {
    %c0_i32 = arith.constant 0 : i32
    %c0_i32_0 = arith.constant 0 : i32
    %c0_i32_1 = arith.constant 0 : i32
    %c0_i32_2 = arith.constant 0 : i32
    return %c0_i32, %c0_i32_0, %c0_i32_1 : i32, i32, i32
  }
  func.func @transform_7(%arg0: i32) -> (i32, i32) {
    %c0_i32 = arith.constant 0 : i32
    %c0_i32_0 = arith.constant 0 : i32
    %c0_i32_1 = arith.constant 0 : i32
    return %c0_i32, %c0_i32_0 : i32, i32
  }
  func.func @transform_8(%arg0: i32) -> (i32, i32) {
    %c0_i32 = arith.constant 0 : i32
    %c0_i32_0 = arith.constant 0 : i32
    %c0_i32_1 = arith.constant 0 : i32
    return %c0_i32, %c0_i32_0 : i32, i32
  }
  func.func @transform_9(%arg0: i32) -> (i32, i32) {
    %c0_i32 = arith.constant 0 : i32
    %c0_i32_0 = arith.constant 0 : i32
    %c0_i32_1 = arith.constant 0 : i32
    return %c0_i32, %c0_i32_0 : i32, i32
  }
  func.func @transform_10(%arg0: i32) -> (i32, i32) {
    %c0_i32 = arith.constant 0 : i32
    %c0_i32_0 = arith.constant 0 : i32
    %c0_i32_1 = arith.constant 0 : i32
    return %c0_i32, %c0_i32_0 : i32, i32
  }
  func.func @transform_11(%arg0: i32) -> (i32, i32, i32) {
    %c0_i32 = arith.constant 0 : i32
    %c0_i32_0 = arith.constant 0 : i32
    %c0_i32_1 = arith.constant 0 : i32
    return %arg0, %c0_i32, %c0_i32_0 : i32, i32, i32
  }
}

</mosaic_0001>

<llo_original>
// kernel: fno1d_forward.1
$region0: #{fno1d_forward.1}
  #allocation0 [shape = 'u32[]', space=smem, size = 0x4, offset = 0x4, fixed_abs, tag = 'smem constant byte address 0x4 - core index']
  #allocation1 [shape = 'u32[72,128]{1,0:T(1,128)}', space=vmem, size = 0x9000, scoped, tag = 'internal scratch']
  #allocation2 [shape = 'f32[1,1]{1,0:T(1,128)S(1)}', space=vmem, size = 0x200, scoped, tag = 'scoped memory for fno1d_forward.1']
  %s0 = inlined_call_operand.vmem [shape: f32[2,8,32], index: 0, kind: input, shape index: {}]
  %s1 = inlined_call_operand.hbm [shape: bf16[32,512], index: 1, kind: input, shape index: {}]
  %s2 = inlined_call_operand.hbm [shape: bf16[32,512], index: 2, kind: input, shape index: {}]
  %s3 = inlined_call_operand.hbm [shape: f32[1,512], index: 3, kind: input, shape index: {}]
  %s4 = inlined_call_operand.hbm [shape: bf16[2,512,512], index: 4, kind: input, shape index: {}]
  %s5 = inlined_call_operand.hbm [shape: bf16[2,512,512], index: 5, kind: input, shape index: {}]
  %s6 = inlined_call_operand.hbm [shape: f32[2,1,512], index: 6, kind: input, shape index: {}]
  %s7 = inlined_call_operand.hbm [shape: bf16[512,2048], index: 7, kind: input, shape index: {}]
  %s8 = inlined_call_operand.hbm [shape: f32[1,2048], index: 8, kind: input, shape index: {}]
  %s9 = inlined_call_operand.vmem [shape: bf16[2048,16], index: 9, kind: input, shape index: {}]
  %s10 = inlined_call_operand.<no memory space> [shape: f32[1,1], index: 10, kind: input, shape index: {}]
  %s11 = inlined_call_operand.hbm [shape: f32[2,8,16], index: 11, kind: output, shape index: {}]
  %s12 = sld [smem:[#allocation0]]
  $region109: #{fno1d_forward.1} parent=0
    _
  %s14 = ssub.s32 1, %s12
  %s15 = scalar_select 0, %s14, %s12
  %v16 = vstv %s10
  %17 = vst [vmem:[#allocation2] sm:$0x1] %v16
  $region1: #{fno1d_forward.1} parent=0
    #allocation3 [shape = 'u8[32768]{0}', space=vmem, size = 0x8000, scoped, tag = 'input window, operand 1, single buffered']
    #allocation4 [shape = 's32[2]{0}', space=sflag, size = 0x8, scoped, tag = 'scoped memory for fno1d_forward.1']
    #allocation5 [shape = 's32[2]{0}', space=sflag, size = 0x8, scoped, tag = 'scoped memory for fno1d_forward.1']
    #allocation6 [shape = 'u8[32768]{0}', space=vmem, size = 0x8000, scoped, tag = 'input window, operand 2, single buffered']
    #allocation7 [shape = 's32[1]{0}', space=sflag, size = 0x4, scoped, tag = 'scoped memory for fno1d_forward.1']
    #allocation8 [shape = 'u8[2048]{0}', space=vmem, size = 0x800, scoped, tag = 'input window, operand 3, single buffered']
    #allocation9 [shape = 'u8[1048576]{0}', space=vmem, size = 0x100000, scoped, tag = 'input window, operand 4, single buffered']
    #allocation10 [shape = 's32[1]{0}', space=sflag, size = 0x4, scoped, tag = 'scoped memory for fno1d_forward.1']
    #allocation11 [shape = 'u8[1048576]{0}', space=vmem, size = 0x100000, scoped, tag = 'input window, operand 5, single buffered']
    #allocation12 [shape = 'u8[4096]{0}', space=vmem, size = 0x1000, scoped, tag = 'input window, operand 6, single buffered']
    #allocation13 [shape = 's32[1]{0}', space=sflag, size = 0x4, scoped, tag = 'scoped memory for fno1d_forward.1']
    #allocation14 [shape = 'u8[2097152]{0}', space=vmem, size = 0x200000, scoped, tag = 'input window, operand 7, single buffered']
    #allocation15 [shape = 'u8[8192]{0}', space=vmem, size = 0x2000, scoped, tag = 'input window, operand 8, single buffered']
    #allocation16 [shape = 's32[1]{0}', space=sflag, size = 0x4, scoped, tag = 'scoped memory for fno1d_forward.1']
    #allocation17 [shape = 'u8[8192]{0}', space=vmem, size = 0x2000, scoped, tag = 'output window, operand 0']
    %18 = vsyncpa [#allocation4], 0
    %19 = vsyncpa [#allocation7], 0
    %20 = vsyncpa [#allocation10], 0
    %21 = vsyncpa [#allocation13], 0
    %22 = vsyncpa [#allocation16], 0
    %23 = vsyncpa [#allocation5], 0
    %s24 = scalar_lea.sflag [#allocation5], 1
    %25 = vsyncpa %s24, 0
    loop: start=0, step=1, limit=4
    $region2: #{fno1d_forward.1} parent=1 // loop_pre_header
      _
    $region3: #{fno1d_forward.1} parent=1 // loop_header
      %s27 = sphi 0, %s31
      %p28 = scmp.ge.s32.totalorder %s27, 4
      %s37 = sphi 0, %s39
      %s40 = sphi 0, %s37
      %s41 = sphi 0, %s40
      %s57 = sphi 0, %s41
      %s61 = sphi 0, %s61
      %s63 = sphi 0, %s61
      %s64 = sphi 0, %s63
      %s78 = sphi 0, %s64
      %s82 = sphi 0, %s82
      %s84 = sphi 0, %s82
      %s85 = sphi 0, %s84
      %s99 = sphi 0, %s85
      %s103 = sphi 0, %s103
      %s105 = sphi 0, %s103
      %s106 = sphi 0, %s105
      %s120 = sphi 0, %s106
      %s124 = sphi 0, %s124
      %s126 = sphi 0, %s124
      %s127 = sphi 0, %s126
      %s141 = sphi 0, %s127
      %s145 = sphi 0, %s145
      %s147 = sphi 0, %s145
      %s148 = sphi 0, %s147
      %s162 = sphi 0, %s148
      %s166 = sphi 0, %s166
      %s168 = sphi 0, %s166
      %s169 = sphi 0, %s168
      %s183 = sphi 0, %s169
      %s187 = sphi 0, %s187
      %s189 = sphi 0, %s187
      %s190 = sphi 0, %s189
      %s204 = sphi 0, %s190
      %s208 = sphi 0, %s208
      %s210 = sphi 0, %s208
      %s211 = sphi 0, %s210
      %s225 = sphi 0, %s211
      %s229 = sphi 0, %s229
      %s231 = sphi 0, %s229
      %s232 = sphi 0, %s231
      %s246 = sphi 0, %s232
      %s250 = sphi 0, %s250
      %s252 = sphi 0, %s250
      %s253 = sphi 0, %s252
      %s267 = sphi 0, %s253
      %s273 = sphi 0, %s275
      %s276 = sphi 0, %s273
      %s277 = sphi 0, %s276
      %s293 = sphi 0, %s277
    $region4: #{fno1d_forward.1} parent=1 // loop_header_branch
      %30 = sbr.rel (%p28) target = $region8
    $region5: #{fno1d_forward.1} parent=1 // loop_body
      %s32 = ssub.s32 %s27, 1
      %s33 = ssub.s32 %s27, 2
      %s34 = sadd.s32 %s27, 1
      %s35 = ssub.s32 %s27, %s34
      %p36 = scmp.eq.s32.totalorder %s35, 0
      %s38 = sadd.s32 %s37, 1
      %s39 = scalar_select %p36, %s37, %s38
      %p42 = pneg %p36
      %p43 = scmp.eq.s32.totalorder %s27, 1
      %p44 = por %p42, %p43
      %p45 = scmp.ne.s32.totalorder %s37, %s40
      %p46 = scmp.eq.s32.totalorder %s27, 0
      %p47 = por %p45, %p46
      %p48 = scmp.ne.s32.totalorder %s37, %s40
      %p49 = scmp.eq.s32.totalorder %s32, 1
      %p50 = por %p48, %p49
      %p51 = scmp.ne.s32.totalorder %s40, %s41
      %p52 = scmp.eq.s32.totalorder %s32, 0
      %p53 = por %p51, %p52
      %p54 = scmp.ne.s32.totalorder %s40, %s41
      %p55 = scmp.eq.s32.totalorder %s33, 1
      %p56 = por %p54, %p55
      %p58 = scmp.ne.s32.totalorder %s41, %s57
      %p59 = scmp.eq.s32.totalorder %s33, 0
      %p60 = por %p58, %p59
      %s62 = sadd.s32 %s61, 1
      %p65 = scmp.eq.s32.totalorder %s27, 1
      %p66 = scmp.ne.s32.totalorder %s61, %s63
      %p67 = scmp.eq.s32.totalorder %s27, 0
      %p68 = por %p66, %p67
      %p69 = scmp.ne.s32.totalorder %s61, %s63
      %p70 = scmp.eq.s32.totalorder %s32, 1
      %p71 = por %p69, %p70
      %p72 = scmp.ne.s32.totalorder %s63, %s64
      %p73 = scmp.eq.s32.totalorder %s32, 0
      %p74 = por %p72, %p73
      %p75 = scmp.ne.s32.totalorder %s63, %s64
      %p76 = scmp.eq.s32.totalorder %s33, 1
      %p77 = por %p75, %p76
      %p79 = scmp.ne.s32.totalorder %s64, %s78
      %p80 = scmp.eq.s32.totalorder %s33, 0
      %p81 = por %p79, %p80
      %s83 = sadd.s32 %s82, 1
      %p86 = scmp.eq.s32.totalorder %s27, 1
      %p87 = scmp.ne.s32.totalorder %s82, %s84
      %p88 = scmp.eq.s32.totalorder %s27, 0
      %p89 = por %p87, %p88
      %p90 = scmp.ne.s32.totalorder %s82, %s84
      %p91 = scmp.eq.s32.totalorder %s32, 1
      %p92 = por %p90, %p91
      %p93 = scmp.ne.s32.totalorder %s84, %s85
      %p94 = scmp.eq.s32.totalorder %s32, 0
      %p95 = por %p93, %p94
      %p96 = scmp.ne.s32.totalorder %s84, %s85
      %p97 = scmp.eq.s32.totalorder %s33, 1
      %p98 = por %p96, %p97
      %p100 = scmp.ne.s32.totalorder %s85, %s99
      %p101 = scmp.eq.s32.totalorder %s33, 0
      %p102 = por %p100, %p101
      %s104 = sadd.s32 %s103, 1
      %p107 = scmp.eq.s32.totalorder %s27, 1
      %p108 = scmp.ne.s32.totalorder %s103, %s105
      %p109 = scmp.eq.s32.totalorder %s27, 0
      %p110 = por %p108, %p109
      %p111 = scmp.ne.s32.totalorder %s103, %s105
      %p112 = scmp.eq.s32.totalorder %s32, 1
      %p113 = por %p111, %p112
      %p114 = scmp.ne.s32.totalorder %s105, %s106
      %p115 = scmp.eq.s32.totalorder %s32, 0
      %p116 = por %p114, %p115
      %p117 = scmp.ne.s32.totalorder %s105, %s106
      %p118 = scmp.eq.s32.totalorder %s33, 1
      %p119 = por %p117, %p118
      %p121 = scmp.ne.s32.totalorder %s106, %s120
      %p122 = scmp.eq.s32.totalorder %s33, 0
      %p123 = por %p121, %p122
      %s125 = sadd.s32 %s124, 1
      %p128 = scmp.eq.s32.totalorder %s27, 1
      %p129 = scmp.ne.s32.totalorder %s124, %s126
      %p130 = scmp.eq.s32.totalorder %s27, 0
      %p131 = por %p129, %p130
      %p132 = scmp.ne.s32.totalorder %s124, %s126
      %p133 = scmp.eq.s32.totalorder %s32, 1
      %p134 = por %p132, %p133
      %p135 = scmp.ne.s32.totalorder %s126, %s127
      %p136 = scmp.eq.s32.totalorder %s32, 0
      %p137 = por %p135, %p136
      %p138 = scmp.ne.s32.totalorder %s126, %s127
      %p139 = scmp.eq.s32.totalorder %s33, 1
      %p140 = por %p138, %p139
      %p142 = scmp.ne.s32.totalorder %s127, %s141
      %p143 = scmp.eq.s32.totalorder %s33, 0
      %p144 = por %p142, %p143
      %s146 = sadd.s32 %s145, 1
      %p149 = scmp.eq.s32.totalorder %s27, 1
      %p150 = scmp.ne.s32.totalorder %s145, %s147
      %p151 = scmp.eq.s32.totalorder %s27, 0
      %p152 = por %p150, %p151
      %p153 = scmp.ne.s32.totalorder %s145, %s147
      %p154 = scmp.eq.s32.totalorder %s32, 1
      %p155 = por %p153, %p154
      %p156 = scmp.ne.s32.totalorder %s147, %s148
      %p157 = scmp.eq.s32.totalorder %s32, 0
      %p158 = por %p156, %p157
      %p159 = scmp.ne.s32.totalorder %s147, %s148
      %p160 = scmp.eq.s32.totalorder %s33, 1
      %p161 = por %p159, %p160
      %p163 = scmp.ne.s32.totalorder %s148, %s162
      %p164 = scmp.eq.s32.totalorder %s33, 0
      %p165 = por %p163, %p164
      %s167 = sadd.s32 %s166, 1
      %p170 = scmp.eq.s32.totalorder %s27, 1
      %p171 = scmp.ne.s32.totalorder %s166, %s168
      %p172 = scmp.eq.s32.totalorder %s27, 0
      %p173 = por %p171, %p172
      %p174 = scmp.ne.s32.totalorder %s166, %s168
      %p175 = scmp.eq.s32.totalorder %s32, 1
      %p176 = por %p174, %p175
      %p177 = scmp.ne.s32.totalorder %s168, %s169
      %p178 = scmp.eq.s32.totalorder %s32, 0
      %p179 = por %p177, %p178
      %p180 = scmp.ne.s32.totalorder %s168, %s169
      %p181 = scmp.eq.s32.totalorder %s33, 1
      %p182 = por %p180, %p181
      %p184 = scmp.ne.s32.totalorder %s169, %s183
      %p185 = scmp.eq.s32.totalorder %s33, 0
      %p186 = por %p184, %p185
      %s188 = sadd.s32 %s187, 1
      %p191 = scmp.eq.s32.totalorder %s27, 1
      %p192 = scmp.ne.s32.totalorder %s187, %s189
      %p193 = scmp.eq.s32.totalorder %s27, 0
      %p194 = por %p192, %p193
      %p195 = scmp.ne.s32.totalorder %s187, %s189
      %p196 = scmp.eq.s32.totalorder %s32, 1
      %p197 = por %p195, %p196
      %p198 = scmp.ne.s32.totalorder %s189, %s190
      %p199 = scmp.eq.s32.totalorder %s32, 0
      %p200 = por %p198, %p199
      %p201 = scmp.ne.s32.totalorder %s189, %s190
      %p202 = scmp.eq.s32.totalorder %s33, 1
      %p203 = por %p201, %p202
      %p205 = scmp.ne.s32.totalorder %s190, %s204
      %p206 = scmp.eq.s32.totalorder %s33, 0
      %p207 = por %p205, %p206
      %s209 = sadd.s32 %s208, 1
      %p212 = scmp.eq.s32.totalorder %s27, 1
      %p213 = scmp.ne.s32.totalorder %s208, %s210
      %p214 = scmp.eq.s32.totalorder %s27, 0
      %p215 = por %p213, %p214
      %p216 = scmp.ne.s32.totalorder %s208, %s210
      %p217 = scmp.eq.s32.totalorder %s32, 1
      %p218 = por %p216, %p217
      %p219 = scmp.ne.s32.totalorder %s210, %s211
      %p220 = scmp.eq.s32.totalorder %s32, 0
      %p221 = por %p219, %p220
      %p222 = scmp.ne.s32.totalorder %s210, %s211
      %p223 = scmp.eq.s32.totalorder %s33, 1
      %p224 = por %p222, %p223
      %p226 = scmp.ne.s32.totalorder %s211, %s225
      %p227 = scmp.eq.s32.totalorder %s33, 0
      %p228 = por %p226, %p227
      %s230 = sadd.s32 %s229, 1
      %p233 = scmp.eq.s32.totalorder %s27, 1
      %p234 = scmp.ne.s32.totalorder %s229, %s231
      %p235 = scmp.eq.s32.totalorder %s27, 0
      %p236 = por %p234, %p235
      %p237 = scmp.ne.s32.totalorder %s229, %s231
      %p238 = scmp.eq.s32.totalorder %s32, 1
      %p239 = por %p237, %p238
      %p240 = scmp.ne.s32.totalorder %s231, %s232
      %p241 = scmp.eq.s32.totalorder %s32, 0
      %p242 = por %p240, %p241
      %p243 = scmp.ne.s32.totalorder %s231, %s232
      %p244 = scmp.eq.s32.totalorder %s33, 1
      %p245 = por %p243, %p244
      %p247 = scmp.ne.s32.totalorder %s232, %s246
      %p248 = scmp.eq.s32.totalorder %s33, 0
      %p249 = por %p247, %p248
      %s251 = sadd.s32 %s250, 1
      %p254 = scmp.eq.s32.totalorder %s27, 1
      %p255 = scmp.ne.s32.totalorder %s250, %s252
      %p256 = scmp.eq.s32.totalorder %s27, 0
      %p257 = por %p255, %p256
      %p258 = scmp.ne.s32.totalorder %s250, %s252
      %p259 = scmp.eq.s32.totalorder %s32, 1
      %p260 = por %p258, %p259
      %p261 = scmp.ne.s32.totalorder %s252, %s253
      %p262 = scmp.eq.s32.totalorder %s32, 0
      %p263 = por %p261, %p262
      %p264 = scmp.ne.s32.totalorder %s252, %s253
      %p265 = scmp.eq.s32.totalorder %s33, 1
      %p266 = por %p264, %p265
      %p268 = scmp.ne.s32.totalorder %s253, %s267
      %p269 = scmp.eq.s32.totalorder %s33, 0
      %p270 = por %p268, %p269
      %s271 = ssub.s32 %s27, %s34
      %p272 = scmp.eq.s32.totalorder %s271, 0
      %s274 = sadd.s32 %s273, 1
      %s275 = scalar_select %p272, %s273, %s274
      %p278 = pneg %p272
      %p279 = scmp.eq.s32.totalorder %s27, 1
      %p280 = por %p278, %p279
      %p281 = scmp.ne.s32.totalorder %s273, %s276
      %p282 = scmp.eq.s32.totalorder %s27, 0
      %p283 = por %p281, %p282
      %p284 = scmp.ne.s32.totalorder %s273, %s276
      %p285 = scmp.eq.s32.totalorder %s32, 1
      %p286 = por %p284, %p285
      %p287 = scmp.ne.s32.totalorder %s276, %s277
      %p288 = scmp.eq.s32.totalorder %s32, 0
      %p289 = por %p287, %p288
      %p290 = scmp.ne.s32.totalorder %s276, %s277
      %p291 = scmp.eq.s32.totalorder %s33, 1
      %p292 = por %p290, %p291
      %p294 = scmp.ne.s32.totalorder %s277, %s293
      %p295 = scmp.eq.s32.totalorder %s33, 0
      %p296 = por %p294, %p295
      %p297 = scmp.le.s32.totalorder 1, %s27
      %p298 = scmp.lt.s32.totalorder %s27, 3
      %p299 = pnand %p297, %p298
      %p300 = pneg %p299
      // Predicated region
      $region9: #{fno1d_forward.1} parent=5 // pred_check
        _
      $region10: #{fno1d_forward.1} parent=5 // pred_check_branch
        %302 = sbr.rel (%p299) target = $region12
      $region11: #{fno1d_forward.1} parent=5 // pred_region
        %s303 = ssub.s32 %s27, 1
        // Predicated region
        $region13: #{fno1d_forward.1} parent=11 // pred_check
          %p304 = pneg %p74
        $region14: #{fno1d_forward.1} parent=11 // pred_check_branch
          %306 = sbr.rel (%p304) target = $region16
        $region15: #{fno1d_forward.1} parent=11 // pred_region
          %308 = vsyncadd [#allocation4], 0
          %s309 = sshll.u32 %s1, 4
          %s310 = int_to_ptr.hbm [resolvable:$true] %s309
          %s311 = sshll.u32 [#allocation3], 4
          %s312 = int_to_ptr.vmem [resolvable:$true] %s311
          %317 = dma.hbm_to_vmem [thread:$0]  %s310, 1024, %s312, [#allocation4], 256, 256, 16
        $region16: #{fno1d_forward.1} parent=11 // pred_fallthru
          _
        // Predicated region
        $region17: #{fno1d_forward.1} parent=11 // pred_check
          %p318 = pneg %p95
        $region18: #{fno1d_forward.1} parent=11 // pred_check_branch
          %320 = sbr.rel (%p318) target = $region20
        $region19: #{fno1d_forward.1} parent=11 // pred_region
          %322 = vsyncadd [#allocation7], 0
          %s323 = sshll.u32 %s2, 4
          %s324 = int_to_ptr.hbm [resolvable:$true] %s323
          %s325 = sshll.u32 [#allocation6], 4
          %s326 = int_to_ptr.vmem [resolvable:$true] %s325
          %331 = dma.hbm_to_vmem [thread:$0]  %s324, 1024, %s326, [#allocation7], 256, 256, 16
        $region20: #{fno1d_forward.1} parent=11 // pred_fallthru
          _
        // Predicated region
        $region21: #{fno1d_forward.1} parent=11 // pred_check
          %p332 = pneg %p116
        $region22: #{fno1d_forward.1} parent=11 // pred_check_branch
          %334 = sbr.rel (%p332) target = $region24
        $region23: #{fno1d_forward.1} parent=11 // pred_region
          %336 = vsyncadd [#allocation7], 0
          %s338 = sshll.u32 %s3, 4
          %s339 = int_to_ptr.hbm [resolvable:$true] %s338
          %s340 = sshll.u32 [#allocation8], 4
          %s341 = int_to_ptr.vmem [resolvable:$true] %s340
          %343 = dma.hbm_to_vmem [thread:$0]  %s339, 64, %s341, [#allocation7]
        $region24: #{fno1d_forward.1} parent=11 // pred_fallthru
          _
        // Predicated region
        $region25: #{fno1d_forward.1} parent=11 // pred_check
          %p344 = pneg %p137
        $region26: #{fno1d_forward.1} parent=11 // pred_check_branch
          %346 = sbr.rel (%p344) target = $region28
        $region27: #{fno1d_forward.1} parent=11 // pred_region
          %348 = vsyncadd [#allocation10], 0
          %s349 = sshll.u32 %s4, 4
          %s350 = int_to_ptr.hbm [resolvable:$true] %s349
          %s351 = sshll.u32 [#allocation9], 4
          %s352 = int_to_ptr.vmem [resolvable:$true] %s351
          %357 = dma.hbm_to_vmem [thread:$0]  %s350, 32768, %s352, [#allocation10], 256, 256, 16
        $region28: #{fno1d_forward.1} parent=11 // pred_fallthru
          _
        // Predicated region
        $region29: #{fno1d_forward.1} parent=11 // pred_check
          %p358 = pneg %p158
        $region30: #{fno1d_forward.1} parent=11 // pred_check_branch
          %360 = sbr.rel (%p358) target = $region32
        $region31: #{fno1d_forward.1} parent=11 // pred_region
          %362 = vsyncadd [#allocation10], 0
          %s363 = sshll.u32 %s5, 4
          %s364 = int_to_ptr.hbm [resolvable:$true] %s363
          %s365 = sshll.u32 [#allocation11], 4
          %s366 = int_to_ptr.vmem [resolvable:$true] %s365
          %371 = dma.hbm_to_vmem [thread:$0]  %s364, 32768, %s366, [#allocation10], 256, 256, 16
        $region32: #{fno1d_forward.1} parent=11 // pred_fallthru
          _
        // Predicated region
        $region33: #{fno1d_forward.1} parent=11 // pred_check
          %p372 = pneg %p179
        $region34: #{fno1d_forward.1} parent=11 // pred_check_branch
          %374 = sbr.rel (%p372) target = $region36
        $region35: #{fno1d_forward.1} parent=11 // pred_region
          %376 = vsyncadd [#allocation13], 0
          %s377 = sshll.u32 %s6, 4
          %s378 = int_to_ptr.hbm [resolvable:$true] %s377
          %s379 = sshll.u32 [#allocation12], 4
          %s380 = int_to_ptr.vmem [resolvable:$true] %s379
          %385 = dma.hbm_to_vmem [thread:$0]  %s378, 128, %s380, [#allocation13], 64, 64, 4
        $region36: #{fno1d_forward.1} parent=11 // pred_fallthru
          _
        // Predicated region
        $region37: #{fno1d_forward.1} parent=11 // pred_check
          %p386 = pneg %p200
        $region38: #{fno1d_forward.1} parent=11 // pred_check_branch
          %388 = sbr.rel (%p386) target = $region40
        $region39: #{fno1d_forward.1} parent=11 // pred_region
          %390 = vsyncadd [#allocation13], 0
          %s391 = sshll.u32 %s7, 4
          %s392 = int_to_ptr.hbm [resolvable:$true] %s391
          %s393 = sshll.u32 [#allocation14], 4
          %s394 = int_to_ptr.vmem [resolvable:$true] %s393
          %399 = dma.hbm_to_vmem [thread:$0]  %s392, 65536, %s394, [#allocation13], 1024, 1024, 64
        $region40: #{fno1d_forward.1} parent=11 // pred_fallthru
          _
        // Predicated region
        $region41: #{fno1d_forward.1} parent=11 // pred_check
          %p400 = pneg %p221
        $region42: #{fno1d_forward.1} parent=11 // pred_check_branch
          %402 = sbr.rel (%p400) target = $region44
        $region43: #{fno1d_forward.1} parent=11 // pred_region
          %404 = vsyncadd [#allocation16], 0
          %s406 = sshll.u32 %s8, 4
          %s407 = int_to_ptr.hbm [resolvable:$true] %s406
          %s408 = sshll.u32 [#allocation15], 4
          %s409 = int_to_ptr.vmem [resolvable:$true] %s408
          %411 = dma.hbm_to_vmem [thread:$0]  %s407, 256, %s409, [#allocation16]
        $region44: #{fno1d_forward.1} parent=11 // pred_fallthru
          _
        // Predicated region
        $region45: #{fno1d_forward.1} parent=11 // pred_check
          %p412 = pneg %p242
        $region46: #{fno1d_forward.1} parent=11 // pred_check_branch
          %414 = sbr.rel (%p412) target = $region48
        $region47: #{fno1d_forward.1} parent=11 // pred_region
          _
        $region48: #{fno1d_forward.1} parent=11 // pred_fallthru
          _
        // Predicated region
        $region49: #{fno1d_forward.1} parent=11 // pred_check
          %p415 = pneg %p263
        $region50: #{fno1d_forward.1} parent=11 // pred_check_branch
          %417 = sbr.rel (%p415) target = $region52
        $region51: #{fno1d_forward.1} parent=11 // pred_region
          _
        $region52: #{fno1d_forward.1} parent=11 // pred_fallthru
          _
      $region12: #{fno1d_forward.1} parent=5 // pred_fallthru
        _
      %p418 = scmp.lt.s32.totalorder %s27, 2
      // Predicated region
      $region53: #{fno1d_forward.1} parent=5 // pred_check
        %p419 = pneg %p418
      $region54: #{fno1d_forward.1} parent=5 // pred_check_branch
        %421 = sbr.rel (%p419) target = $region56
      $region55: #{fno1d_forward.1} parent=5 // pred_region
        // Predicated region
        $region57: #{fno1d_forward.1} parent=55 // pred_check
          %p422 = pneg %p47
        $region58: #{fno1d_forward.1} parent=55 // pred_check_branch
          %424 = sbr.rel (%p422) target = $region60
        $region59: #{fno1d_forward.1} parent=55 // pred_region
          %p425 = scmp.lt.s32.totalorder %s27, 1
          %s426 = scalar_select %p425, %s27, 1
          %s427 = smul.addr %s426, 8
          %s428 = scalar_lea.vmem %s0, %s427
        $region60: #{fno1d_forward.1} parent=55 // pred_fallthru
          _
      $region56: #{fno1d_forward.1} parent=5 // pred_fallthru
        _
      %p429 = scmp.le.s32.totalorder 1, %s27
      %p430 = scmp.lt.s32.totalorder %s27, 3
      %p431 = pnand %p429, %p430
      %p432 = pneg %p431
      // Predicated region
      $region61: #{fno1d_forward.1} parent=5 // pred_check
        _
      $region62: #{fno1d_forward.1} parent=5 // pred_check_branch
        %434 = sbr.rel (%p431) target = $region64
      $region63: #{fno1d_forward.1} parent=5 // pred_region
        %s435 = ssub.s32 %s27, 1
        // Predicated region
        $region65: #{fno1d_forward.1} parent=63 // pred_check
          %p436 = pneg %p74
        $region66: #{fno1d_forward.1} parent=63 // pred_check_branch
          %438 = sbr.rel (%p436) target = $region68
        $region67: #{fno1d_forward.1} parent=63 // pred_region
          %440 = dma.done [#allocation4], 1024
        $region68: #{fno1d_forward.1} parent=63 // pred_fallthru
          _
        // Predicated region
        $region69: #{fno1d_forward.1} parent=63 // pred_check
          %p441 = pneg %p95
        $region70: #{fno1d_forward.1} parent=63 // pred_check_branch
          %443 = sbr.rel (%p441) target = $region72
        $region71: #{fno1d_forward.1} parent=63 // pred_region
          %445 = dma.done [#allocation7], 1024
        $region72: #{fno1d_forward.1} parent=63 // pred_fallthru
          _
        // Predicated region
        $region73: #{fno1d_forward.1} parent=63 // pred_check
          %p446 = pneg %p116
        $region74: #{fno1d_forward.1} parent=63 // pred_check_branch
          %448 = sbr.rel (%p446) target = $region76
        $region75: #{fno1d_forward.1} parent=63 // pred_region
          %450 = dma.done [#allocation7], 64
        $region76: #{fno1d_forward.1} parent=63 // pred_fallthru
          _
        // Predicated region
        $region77: #{fno1d_forward.1} parent=63 // pred_check
          %p451 = pneg %p137
        $region78: #{fno1d_forward.1} parent=63 // pred_check_branch
          %453 = sbr.rel (%p451) target = $region80
        $region79: #{fno1d_forward.1} parent=63 // pred_region
          %455 = dma.done [#allocation10], 32768
        $region80: #{fno1d_forward.1} parent=63 // pred_fallthru
          _
        // Predicated region
        $region81: #{fno1d_forward.1} parent=63 // pred_check
          %p456 = pneg %p158
        $region82: #{fno1d_forward.1} parent=63 // pred_check_branch
          %458 = sbr.rel (%p456) target = $region84
        $region83: #{fno1d_forward.1} parent=63 // pred_region
          %460 = dma.done [#allocation10], 32768
        $region84: #{fno1d_forward.1} parent=63 // pred_fallthru
          _
        // Predicated region
        $region85: #{fno1d_forward.1} parent=63 // pred_check
          %p461 = pneg %p179
        $region86: #{fno1d_forward.1} parent=63 // pred_check_branch
          %463 = sbr.rel (%p461) target = $region88
        $region87: #{fno1d_forward.1} parent=63 // pred_region
          %465 = dma.done [#allocation13], 128
        $region88: #{fno1d_forward.1} parent=63 // pred_fallthru
          _
        // Predicated region
        $region89: #{fno1d_forward.1} parent=63 // pred_check
          %p466 = pneg %p200
        $region90: #{fno1d_forward.1} parent=63 // pred_check_branch
          %468 = sbr.rel (%p466) target = $region92
        $region91: #{fno1d_forward.1} parent=63 // pred_region
          %470 = dma.done [#allocation13], 65536
        $region92: #{fno1d_forward.1} parent=63 // pred_fallthru
          _
        // Predicated region
        $region93: #{fno1d_forward.1} parent=63 // pred_check
          %p471 = pneg %p221
        $region94: #{fno1d_forward.1} parent=63 // pred_check_branch
          %473 = sbr.rel (%p471) target = $region96
        $region95: #{fno1d_forward.1} parent=63 // pred_region
          %475 = dma.done [#allocation16], 256
        $region96: #{fno1d_forward.1} parent=63 // pred_fallthru
          _
        %p476 = scmp.lt.s32.totalorder %s32, 1
        %s477 = scalar_select %p476, %s32, 1
        %s478 = smul.addr %s477, 8
        %s479 = scalar_lea.vmem %s0, %s478
        %p480 = pneg %p53
        %p481 = pneg %p50
        %p482 = pneg %p74
        %p483 = pneg %p71
        %p484 = pneg %p95
        %p485 = pneg %p92
        %p486 = pneg %p116
        %p487 = pneg %p113
        %p488 = pneg %p137
        %p489 = pneg %p134
        %p490 = pneg %p158
        %p491 = pneg %p155
        %p492 = pneg %p179
        %p493 = pneg %p176
        %p494 = pneg %p200
        %p495 = pneg %p197
        %p496 = pneg %p221
        %p497 = pneg %p218
        %p498 = pneg %p242
        %p499 = pneg %p239
        %p500 = pneg %p263
        %p501 = pneg %p260
        %p502 = pneg %p289
        %p503 = pneg %p286
        %s504 = sand.u32 %s276, 1
        %s505 = scalar_lea.sflag [#allocation5], %s504
        %s506 = sand.u32 %s276, 1
        %s507 = smul.addr %s506, 8
        %s508 = scalar_lea.vmem [#allocation17], %s507
        %p509 = scmp.lt.s32.totalorder %s32, 1
        %s510 = scalar_select %p509, %s32, 1
        %s511 = smul.addr %s510, 8
        %s512 = scalar_lea.vmem %s0, %s511
        %v514 = vld [vmem:[%s512] sm:$0xff]
        %v515 = vpack.c.bf16 %v514, %v514
        %v516 = vld [vmem:[#allocation3] sm:$0xff]
        %v517 = vld [vmem:[#allocation3 + $0x8] sm:$0xff]
        %v518 = vld [vmem:[#allocation3 + $0x10] sm:$0xff]
        %v519 = vld [vmem:[#allocation3 + $0x18] sm:$0xff]
        %v520 = vld [vmem:[#allocation3 + $0x20] sm:$0xff]
        %v521 = vld [vmem:[#allocation3 + $0x28] sm:$0xff]
        %v522 = vld [vmem:[#allocation3 + $0x30] sm:$0xff]
        %v523 = vld [vmem:[#allocation3 + $0x38] sm:$0xff]
        %v524 = vld [vmem:[#allocation6] sm:$0xff]
        %v525 = vld [vmem:[#allocation6 + $0x8] sm:$0xff]
        %v526 = vld [vmem:[#allocation6 + $0x10] sm:$0xff]
        %v527 = vld [vmem:[#allocation6 + $0x18] sm:$0xff]
        %v528 = vld [vmem:[#allocation6 + $0x20] sm:$0xff]
        %v529 = vld [vmem:[#allocation6 + $0x28] sm:$0xff]
        %v530 = vld [vmem:[#allocation6 + $0x30] sm:$0xff]
        %v531 = vld [vmem:[#allocation6 + $0x38] sm:$0xff]
        %v540 = vunpack.c.l.b16 %v524
        %v541 = vunpack.c.h.b16 %v524
        %v542 = vunpack.c.l.b16 %v525
        %v543 = vunpack.c.h.b16 %v525
        %v544 = vunpack.c.l.b16 %v526
        %v545 = vunpack.c.h.b16 %v526
        %v546 = vunpack.c.l.b16 %v527
        %v547 = vunpack.c.h.b16 %v527
        %v548 = vunpack.c.l.b16 %v528
        %v549 = vunpack.c.h.b16 %v528
        %v550 = vunpack.c.l.b16 %v529
        %v551 = vunpack.c.h.b16 %v529
        %v552 = vunpack.c.l.b16 %v530
        %v553 = vunpack.c.h.b16 %v530
        %v554 = vunpack.c.l.b16 %v531
        %v555 = vunpack.c.h.b16 %v531
        %v556 = vpack.c.b16 %v544, %v540
        %v557 = vpack.c.b16 %v545, %v541
        %v558 = vpack.c.b16 %v546, %v542
        %v559 = vpack.c.b16 %v547, %v543
        %v560 = vpack.c.b16 %v552, %v548
        %v561 = vpack.c.b16 %v553, %v549
        %v562 = vpack.c.b16 %v554, %v550
        %v563 = vpack.c.b16 %v555, %v551
        %vm572 = vcmask 261120
        %v574 = vsel %vm572, %v515, 0
        %576 = vmatpush.bf16.msra.mxu0 0
        %577 = vmatpush.bf16.msra.mxu0 0
        %578 = vmatpush.bf16.msra.mxu0 0
        %579 = vmatpush.bf16.msra.mxu0 0
        %580 = vmatpush.bf16.msra.mxu0 0
        %581 = vmatpush.bf16.msra.mxu0 0
        %582 = vmatpush.bf16.msra.mxu0 %v560
        %583 = vmatpush.bf16.msra.mxu0 %v556
        %584 = vmatmul.bf16.gmra.mxu0 %v574
        %v585 = vpop.f32.mrf.mxu0
        %v586 = vadd.f32 0.0, %v585
        %v587 = vpop.f32.mrf.mxu0
        %588 = vdwg.mxu0
        %589 = vmatpush.bf16.msra.mxu0 0
        %590 = vmatpush.bf16.msra.mxu0 0
        %591 = vmatpush.bf16.msra.mxu0 0
        %592 = vmatpush.bf16.msra.mxu0 0
        %593 = vmatpush.bf16.msra.mxu0 0
        %594 = vmatpush.bf16.msra.mxu0 0
        %595 = vmatpush.bf16.msra.mxu0 %v561
        %596 = vmatpush.bf16.msra.mxu0 %v557
        %597 = vmatmul.bf16.gmra.mxu0 %v574
        %v598 = vpop.f32.mrf.mxu0
        %v599 = vadd.f32 0.0, %v598
        %v600 = vpop.f32.mrf.mxu0
        %601 = vdwg.mxu0
        %602 = vmatpush.bf16.msra.mxu0 0
        %603 = vmatpush.bf16.msra.mxu0 0
        %604 = vmatpush.bf16.msra.mxu0 0
        %605 = vmatpush.bf16.msra.mxu0 0
        %606 = vmatpush.bf16.msra.mxu0 0
        %607 = vmatpush.bf16.msra.mxu0 0
        %608 = vmatpush.bf16.msra.mxu0 %v562
        %609 = vmatpush.bf16.msra.mxu0 %v558
        %610 = vmatmul.bf16.gmra.mxu0 %v574
        %v611 = vpop.f32.mrf.mxu0
        %v612 = vadd.f32 0.0, %v611
        %v613 = vpop.f32.mrf.mxu0
        %614 = vdwg.mxu0
        %615 = vmatpush.bf16.msra.mxu0 0
        %616 = vmatpush.bf16.msra.mxu0 0
        %617 = vmatpush.bf16.msra.mxu0 0
        %618 = vmatpush.bf16.msra.mxu0 0
        %619 = vmatpush.bf16.msra.mxu0 0
        %620 = vmatpush.bf16.msra.mxu0 0
        %621 = vmatpush.bf16.msra.mxu0 %v563
        %622 = vmatpush.bf16.msra.mxu0 %v559
        %623 = vmatmul.bf16.gmra.mxu0 %v574
        %v624 = vpop.f32.mrf.mxu0
        %v625 = vadd.f32 0.0, %v624
        %v626 = vpop.f32.mrf.mxu0
        %627 = vdwg.mxu0
        %v636 = vunpack.c.l.b16 %v516
        %v637 = vunpack.c.h.b16 %v516
        %v638 = vunpack.c.l.b16 %v517
        %v639 = vunpack.c.h.b16 %v517
        %v640 = vunpack.c.l.b16 %v518
        %v641 = vunpack.c.h.b16 %v518
        %v642 = vunpack.c.l.b16 %v519
        %v643 = vunpack.c.h.b16 %v519
        %v644 = vunpack.c.l.b16 %v520
        %v645 = vunpack.c.h.b16 %v520
        %v646 = vunpack.c.l.b16 %v521
        %v647 = vunpack.c.h.b16 %v521
        %v648 = vunpack.c.l.b16 %v522
        %v649 = vunpack.c.h.b16 %v522
        %v650 = vunpack.c.l.b16 %v523
        %v651 = vunpack.c.h.b16 %v523
        %v652 = vpack.c.b16 %v640, %v636
        %v653 = vpack.c.b16 %v641, %v637
        %v654 = vpack.c.b16 %v642, %v638
        %v655 = vpack.c.b16 %v643, %v639
        %v656 = vpack.c.b16 %v648, %v644
        %v657 = vpack.c.b16 %v649, %v645
        %v658 = vpack.c.b16 %v650, %v646
        %v659 = vpack.c.b16 %v651, %v647
        %668 = vmatpush.bf16.msra.mxu0 0
        %669 = vmatpush.bf16.msra.mxu0 0
        %670 = vmatpush.bf16.msra.mxu0 0
        %671 = vmatpush.bf16.msra.mxu0 0
        %672 = vmatpush.bf16.msra.mxu0 0
        %673 = vmatpush.bf16.msra.mxu0 0
        %674 = vmatpush.bf16.msra.mxu0 %v656
        %675 = vmatpush.bf16.msra.mxu0 %v652
        %676 = vmatmul.bf16.gmra.mxu0 %v574
        %v677 = vpop.f32.mrf.mxu0
        %v678 = vadd.f32 %v586, %v677
        %v679 = vpop.f32.mrf.mxu0
        %680 = vdwg.mxu0
        %681 = vmatpush.bf16.msra.mxu0 0
        %682 = vmatpush.bf16.msra.mxu0 0
        %683 = vmatpush.bf16.msra.mxu0 0
        %684 = vmatpush.bf16.msra.mxu0 0
        %685 = vmatpush.bf16.msra.mxu0 0
        %686 = vmatpush.bf16.msra.mxu0 0
        %687 = vmatpush.bf16.msra.mxu0 %v657
        %688 = vmatpush.bf16.msra.mxu0 %v653
        %689 = vmatmul.bf16.gmra.mxu0 %v574
        %v690 = vpop.f32.mrf.mxu0
        %v691 = vadd.f32 %v599, %v690
        %v692 = vpop.f32.mrf.mxu0
        %693 = vdwg.mxu0
        %694 = vmatpush.bf16.msra.mxu0 0
        %695 = vmatpush.bf16.msra.mxu0 0
        %696 = vmatpush.bf16.msra.mxu0 0
        %697 = vmatpush.bf16.msra.mxu0 0
        %698 = vmatpush.bf16.msra.mxu0 0
        %699 = vmatpush.bf16.msra.mxu0 0
        %700 = vmatpush.bf16.msra.mxu0 %v658
        %701 = vmatpush.bf16.msra.mxu0 %v654
        %702 = vmatmul.bf16.gmra.mxu0 %v574
        %v703 = vpop.f32.mrf.mxu0
        %v704 = vadd.f32 %v612, %v703
        %v705 = vpop.f32.mrf.mxu0
        %706 = vdwg.mxu0
        %707 = vmatpush.bf16.msra.mxu0 0
        %708 = vmatpush.bf16.msra.mxu0 0
        %709 = vmatpush.bf16.msra.mxu0 0
        %710 = vmatpush.bf16.msra.mxu0 0
        %711 = vmatpush.bf16.msra.mxu0 0
        %712 = vmatpush.bf16.msra.mxu0 0
        %713 = vmatpush.bf16.msra.mxu0 %v659
        %714 = vmatpush.bf16.msra.mxu0 %v655
        %715 = vmatmul.bf16.gmra.mxu0 %v574
        %v716 = vpop.f32.mrf.mxu0
        %v717 = vadd.f32 %v625, %v716
        %v718 = vpop.f32.mrf.mxu0
        %719 = vdwg.mxu0
        %v720 = vld [vmem:[#allocation8] sm:$0xf]
        %v722 = vperm.slane %v720, 0
        %v723 = vperm.slane %v720, 1
        %v724 = vperm.slane %v720, 2
        %v725 = vperm.slane %v720, 3
        %v730 = vadd.f32 %v678, %v722
        %v731 = vadd.f32 %v691, %v723
        %v732 = vadd.f32 %v704, %v724
        %v733 = vadd.f32 %v717, %v725
        %v734 = vmax.f32 %v730, 0.0
        %v735 = vmax.f32 %v731, 0.0
        %v736 = vmax.f32 %v732, 0.0
        %v737 = vmax.f32 %v733, 0.0
        %v738 = vpack.c.bf16 %v734, %v734
        %v739 = vpack.c.bf16 %v735, %v735
        %v740 = vpack.c.bf16 %v736, %v736
        %v741 = vpack.c.bf16 %v737, %v737
        %v742 = vld [vmem:[#allocation9] sm:$0xff]
        %v743 = vld [vmem:[#allocation9 + $0x8] sm:$0xff]
        %v744 = vld [vmem:[#allocation9 + $0x10] sm:$0xff]
        %v745 = vld [vmem:[#allocation9 + $0x18] sm:$0xff]
        %v746 = vld [vmem:[#allocation9 + $0x20] sm:$0xff]
        %v747 = vld [vmem:[#allocation9 + $0x28] sm:$0xff]
        %v748 = vld [vmem:[#allocation9 + $0x30] sm:$0xff]
        %v749 = vld [vmem:[#allocation9 + $0x38] sm:$0xff]
        %v750 = vld [vmem:[#allocation9 + $0x40] sm:$0xff]
        %v751 = vld [vmem:[#allocation9 + $0x48] sm:$0xff]
        %v752 = vld [vmem:[#allocation9 + $0x50] sm:$0xff]
        %v753 = vld [vmem:[#allocation9 + $0x58] sm:$0xff]
        %v754 = vld [vmem:[#allocation9 + $0x60] sm:$0xff]
        %v755 = vld [vmem:[#allocation9 + $0x68] sm:$0xff]
        %v756 = vld [vmem:[#allocation9 + $0x70] sm:$0xff]
        %v757 = vld [vmem:[#allocation9 + $0x78] sm:$0xff]
        %v758 = vld [vmem:[#allocation9 + $0x80] sm:$0xff]
        %v759 = vld [vmem:[#allocation9 + $0x88] sm:$0xff]
        %v760 = vld [vmem:[#allocation9 + $0x90] sm:$0xff]
        %v761 = vld [vmem:[#allocation9 + $0x98] sm:$0xff]
        %v762 = vld [vmem:[#allocation9 + $0xa0] sm:$0xff]
        %v763 = vld [vmem:[#allocation9 + $0xa8] sm:$0xff]
        %v764 = vld [vmem:[#allocation9 + $0xb0] sm:$0xff]
        %v765 = vld [vmem:[#allocation9 + $0xb8] sm:$0xff]
        %v766 = vld [vmem:[#allocation9 + $0xc0] sm:$0xff]
        %v767 = vld [vmem:[#allocation9 + $0xc8] sm:$0xff]
        %v768 = vld [vmem:[#allocation9 + $0xd0] sm:$0xff]
        %v769 = vld [vmem:[#allocation9 + $0xd8] sm:$0xff]
        %v770 = vld [vmem:[#allocation9 + $0xe0] sm:$0xff]
        %v771 = vld [vmem:[#allocation9 + $0xe8] sm:$0xff]
        %v772 = vld [vmem:[#allocation9 + $0xf0] sm:$0xff]
        %v773 = vld [vmem:[#allocation9 + $0xf8] sm:$0xff]
        %v774 = vld [vmem:[#allocation9 + $0x100] sm:$0xff]
        %v775 = vld [vmem:[#allocation9 + $0x108] sm:$0xff]
        %v776 = vld [vmem:[#allocation9 + $0x110] sm:$0xff]
        %v777 = vld [vmem:[#allocation9 + $0x118] sm:$0xff]
        %v778 = vld [vmem:[#allocation9 + $0x120] sm:$0xff]
        %v779 = vld [vmem:[#allocation9 + $0x128] sm:$0xff]
        %v780 = vld [vmem:[#allocation9 + $0x130] sm:$0xff]
        %v781 = vld [vmem:[#allocation9 + $0x138] sm:$0xff]
        %v782 = vld [vmem:[#allocation9 + $0x140] sm:$0xff]
        %v783 = vld [vmem:[#allocation9 + $0x148] sm:$0xff]
        %v784 = vld [vmem:[#allocation9 + $0x150] sm:$0xff]
        %v785 = vld [vmem:[#allocation9 + $0x158] sm:$0xff]
        %v786 = vld [vmem:[#allocation9 + $0x160] sm:$0xff]
        %v787 = vld [vmem:[#allocation9 + $0x168] sm:$0xff]
        %v788 = vld [vmem:[#allocation9 + $0x170] sm:$0xff]
        %v789 = vld [vmem:[#allocation9 + $0x178] sm:$0xff]
        %v790 = vld [vmem:[#allocation9 + $0x180] sm:$0xff]
        %v791 = vld [vmem:[#allocation9 + $0x188] sm:$0xff]
        %v792 = vld [vmem:[#allocation9 + $0x190] sm:$0xff]
        %v793 = vld [vmem:[#allocation9 + $0x198] sm:$0xff]
        %v794 = vld [vmem:[#allocation9 + $0x1a0] sm:$0xff]
        %v795 = vld [vmem:[#allocation9 + $0x1a8] sm:$0xff]
        %v796 = vld [vmem:[#allocation9 + $0x1b0] sm:$0xff]
        %v797 = vld [vmem:[#allocation9 + $0x1b8] sm:$0xff]
        %v798 = vld [vmem:[#allocation9 + $0x1c0] sm:$0xff]
        %v799 = vld [vmem:[#allocation9 + $0x1c8] sm:$0xff]
        %v800 = vld [vmem:[#allocation9 + $0x1d0] sm:$0xff]
        %v801 = vld [vmem:[#allocation9 + $0x1d8] sm:$0xff]
        %v802 = vld [vmem:[#allocation9 + $0x1e0] sm:$0xff]
        %v803 = vld [vmem:[#allocation9 + $0x1e8] sm:$0xff]
        %v804 = vld [vmem:[#allocation9 + $0x1f0] sm:$0xff]
        %v805 = vld [vmem:[#allocation9 + $0x1f8] sm:$0xff]
        %v806 = vld [vmem:[#allocation9 + $0x200] sm:$0xff]
        %v807 = vld [vmem:[#allocation9 + $0x208] sm:$0xff]
        %v808 = vld [vmem:[#allocation9 + $0x210] sm:$0xff]
        %v809 = vld [vmem:[#allocation9 + $0x218] sm:$0xff]
        %v810 = vld [vmem:[#allocation9 + $0x220] sm:$0xff]
        %v811 = vld [vmem:[#allocation9 + $0x228] sm:$0xff]
        %v812 = vld [vmem:[#allocation9 + $0x230] sm:$0xff]
        %v813 = vld [vmem:[#allocation9 + $0x238] sm:$0xff]
        %v814 = vld [vmem:[#allocation9 + $0x240] sm:$0xff]
        %v815 = vld [vmem:[#allocation9 + $0x248] sm:$0xff]
        %v816 = vld [vmem:[#allocation9 + $0x250] sm:$0xff]
        %v817 = vld [vmem:[#allocation9 + $0x258] sm:$0xff]
        %v818 = vld [vmem:[#allocation9 + $0x260] sm:$0xff]
        %v819 = vld [vmem:[#allocation9 + $0x268] sm:$0xff]
        %v820 = vld [vmem:[#allocation9 + $0x270] sm:$0xff]
        %v821 = vld [vmem:[#allocation9 + $0x278] sm:$0xff]
        %v822 = vld [vmem:[#allocation9 + $0x280] sm:$0xff]
        %v823 = vld [vmem:[#allocation9 + $0x288] sm:$0xff]
        %v824 = vld [vmem:[#allocation9 + $0x290] sm:$0xff]
        %v825 = vld [vmem:[#allocation9 + $0x298] sm:$0xff]
        %v826 = vld [vmem:[#allocation9 + $0x2a0] sm:$0xff]
        %v827 = vld [vmem:[#allocation9 + $0x2a8] sm:$0xff]
        %v828 = vld [vmem:[#allocation9 + $0x2b0] sm:$0xff]
        %v829 = vld [vmem:[#allocation9 + $0x2b8] sm:$0xff]
        %v830 = vld [vmem:[#allocation9 + $0x2c0] sm:$0xff]
        %v831 = vld [vmem:[#allocation9 + $0x2c8] sm:$0xff]
        %v832 = vld [vmem:[#allocation9 + $0x2d0] sm:$0xff]
        %v833 = vld [vmem:[#allocation9 + $0x2d8] sm:$0xff]
        %v834 = vld [vmem:[#allocation9 + $0x2e0] sm:$0xff]
        %v835 = vld [vmem:[#allocation9 + $0x2e8] sm:$0xff]
        %v836 = vld [vmem:[#allocation9 + $0x2f0] sm:$0xff]
        %v837 = vld [vmem:[#allocation9 + $0x2f8] sm:$0xff]
        %v838 = vld [vmem:[#allocation9 + $0x300] sm:$0xff]
        %v839 = vld [vmem:[#allocation9 + $0x308] sm:$0xff]
        %v840 = vld [vmem:[#allocation9 + $0x310] sm:$0xff]
        %v841 = vld [vmem:[#allocation9 + $0x318] sm:$0xff]
        %v842 = vld [vmem:[#allocation9 + $0x320] sm:$0xff]
        %v843 = vld [vmem:[#allocation9 + $0x328] sm:$0xff]
        %v844 = vld [vmem:[#allocation9 + $0x330] sm:$0xff]
        %v845 = vld [vmem:[#allocation9 + $0x338] sm:$0xff]
        %v846 = vld [vmem:[#allocation9 + $0x340] sm:$0xff]
        %v847 = vld [vmem:[#allocation9 + $0x348] sm:$0xff]
        %v848 = vld [vmem:[#allocation9 + $0x350] sm:$0xff]
        %v849 = vld [vmem:[#allocation9 + $0x358] sm:$0xff]
        %v850 = vld [vmem:[#allocation9 + $0x360] sm:$0xff]
        %v851 = vld [vmem:[#allocation9 + $0x368] sm:$0xff]
        %v852 = vld [vmem:[#allocation9 + $0x370] sm:$0xff]
        %v853 = vld [vmem:[#allocation9 + $0x378] sm:$0xff]
        %v854 = vld [vmem:[#allocation9 + $0x380] sm:$0xff]
        %v855 = vld [vmem:[#allocation9 + $0x388] sm:$0xff]
        %v856 = vld [vmem:[#allocation9 + $0x390] sm:$0xff]
        %v857 = vld [vmem:[#allocation9 + $0x398] sm:$0xff]
        %v858 = vld [vmem:[#allocation9 + $0x3a0] sm:$0xff]
        %v859 = vld [vmem:[#allocation9 + $0x3a8] sm:$0xff]
        %v860 = vld [vmem:[#allocation9 + $0x3b0] sm:$0xff]
        %v861 = vld [vmem:[#allocation9 + $0x3b8] sm:$0xff]
        %v862 = vld [vmem:[#allocation9 + $0x3c0] sm:$0xff]
        %v863 = vld [vmem:[#allocation9 + $0x3c8] sm:$0xff]
        %v864 = vld [vmem:[#allocation9 + $0x3d0] sm:$0xff]
        %v865 = vld [vmem:[#allocation9 + $0x3d8] sm:$0xff]
        %v866 = vld [vmem:[#allocation9 + $0x3e0] sm:$0xff]
        %v867 = vld [vmem:[#allocation9 + $0x3e8] sm:$0xff]
        %v868 = vld [vmem:[#allocation9 + $0x3f0] sm:$0xff]
        %v869 = vld [vmem:[#allocation9 + $0x3f8] sm:$0xff]
        %v870 = vld [vmem:[#allocation11] sm:$0xff]
        %v871 = vld [vmem:[#allocation11 + $0x8] sm:$0xff]
        %v872 = vld [vmem:[#allocation11 + $0x10] sm:$0xff]
        %v873 = vld [vmem:[#allocation11 + $0x18] sm:$0xff]
        %v874 = vld [vmem:[#allocation11 + $0x20] sm:$0xff]
        %v875 = vld [vmem:[#allocation11 + $0x28] sm:$0xff]
        %v876 = vld [vmem:[#allocation11 + $0x30] sm:$0xff]
        %v877 = vld [vmem:[#allocation11 + $0x38] sm:$0xff]
        %v878 = vld [vmem:[#allocation11 + $0x40] sm:$0xff]
        %v879 = vld [vmem:[#allocation11 + $0x48] sm:$0xff]
        %v880 = vld [vmem:[#allocation11 + $0x50] sm:$0xff]
        %v881 = vld [vmem:[#allocation11 + $0x58] sm:$0xff]
        %v882 = vld [vmem:[#allocation11 + $0x60] sm:$0xff]
        %v883 = vld [vmem:[#allocation11 + $0x68] sm:$0xff]
        %v884 = vld [vmem:[#allocation11 + $0x70] sm:$0xff]
        %v885 = vld [vmem:[#allocation11 + $0x78] sm:$0xff]
        %v886 = vld [vmem:[#allocation11 + $0x80] sm:$0xff]
        %v887 = vld [vmem:[#allocation11 + $0x88] sm:$0xff]
        %v888 = vld [vmem:[#allocation11 + $0x90] sm:$0xff]
        %v889 = vld [vmem:[#allocation11 + $0x98] sm:$0xff]
        %v890 = vld [vmem:[#allocation11 + $0xa0] sm:$0xff]
        %v891 = vld [vmem:[#allocation11 + $0xa8] sm:$0xff]
        %v892 = vld [vmem:[#allocation11 + $0xb0] sm:$0xff]
        %v893 = vld [vmem:[#allocation11 + $0xb8] sm:$0xff]
        %v894 = vld [vmem:[#allocation11 + $0xc0] sm:$0xff]
        %v895 = vld [vmem:[#allocation11 + $0xc8] sm:$0xff]
        %v896 = vld [vmem:[#allocation11 + $0xd0] sm:$0xff]
        %v897 = vld [vmem:[#allocation11 + $0xd8] sm:$0xff]
        %v898 = vld [vmem:[#allocation11 + $0xe0] sm:$0xff]
        %v899 = vld [vmem:[#allocation11 + $0xe8] sm:$0xff]
        %v900 = vld [vmem:[#allocation11 + $0xf0] sm:$0xff]
        %v901 = vld [vmem:[#allocation11 + $0xf8] sm:$0xff]
        %v902 = vld [vmem:[#allocation11 + $0x100] sm:$0xff]
        %v903 = vld [vmem:[#allocation11 + $0x108] sm:$0xff]
        %v904 = vld [vmem:[#allocation11 + $0x110] sm:$0xff]
        %v905 = vld [vmem:[#allocation11 + $0x118] sm:$0xff]
        %v906 = vld [vmem:[#allocation11 + $0x120] sm:$0xff]
        %v907 = vld [vmem:[#allocation11 + $0x128] sm:$0xff]
        %v908 = vld [vmem:[#allocation11 + $0x130] sm:$0xff]
        %v909 = vld [vmem:[#allocation11 + $0x138] sm:$0xff]
        %v910 = vld [vmem:[#allocation11 + $0x140] sm:$0xff]
        %v911 = vld [vmem:[#allocation11 + $0x148] sm:$0xff]
        %v912 = vld [vmem:[#allocation11 + $0x150] sm:$0xff]
        %v913 = vld [vmem:[#allocation11 + $0x158] sm:$0xff]
        %v914 = vld [vmem:[#allocation11 + $0x160] sm:$0xff]
        %v915 = vld [vmem:[#allocation11 + $0x168] sm:$0xff]
        %v916 = vld [vmem:[#allocation11 + $0x170] sm:$0xff]
        %v917 = vld [vmem:[#allocation11 + $0x178] sm:$0xff]
        %v918 = vld [vmem:[#allocation11 + $0x180] sm:$0xff]
        %v919 = vld [vmem:[#allocation11 + $0x188] sm:$0xff]
        %v920 = vld [vmem:[#allocation11 + $0x190] sm:$0xff]
        %v921 = vld [vmem:[#allocation11 + $0x198] sm:$0xff]
        %v922 = vld [vmem:[#allocation11 + $0x1a0] sm:$0xff]
        %v923 = vld [vmem:[#allocation11 + $0x1a8] sm:$0xff]
        %v924 = vld [vmem:[#allocation11 + $0x1b0] sm:$0xff]
        %v925 = vld [vmem:[#allocation11 + $0x1b8] sm:$0xff]
        %v926 = vld [vmem:[#allocation11 + $0x1c0] sm:$0xff]
        %v927 = vld [vmem:[#allocation11 + $0x1c8] sm:$0xff]
        %v928 = vld [vmem:[#allocation11 + $0x1d0] sm:$0xff]
        %v929 = vld [vmem:[#allocation11 + $0x1d8] sm:$0xff]
        %v930 = vld [vmem:[#allocation11 + $0x1e0] sm:$0xff]
        %v931 = vld [vmem:[#allocation11 + $0x1e8] sm:$0xff]
        %v932 = vld [vmem:[#allocation11 + $0x1f0] sm:$0xff]
        %v933 = vld [vmem:[#allocation11 + $0x1f8] sm:$0xff]
        %v934 = vld [vmem:[#allocation11 + $0x200] sm:$0xff]
        %v935 = vld [vmem:[#allocation11 + $0x208] sm:$0xff]
        %v936 = vld [vmem:[#allocation11 + $0x210] sm:$0xff]
        %v937 = vld [vmem:[#allocation11 + $0x218] sm:$0xff]
        %v938 = vld [vmem:[#allocation11 + $0x220] sm:$0xff]
        %v939 = vld [vmem:[#allocation11 + $0x228] sm:$0xff]
        %v940 = vld [vmem:[#allocation11 + $0x230] sm:$0xff]
        %v941 = vld [vmem:[#allocation11 + $0x238] sm:$0xff]
        %v942 = vld [vmem:[#allocation11 + $0x240] sm:$0xff]
        %v943 = vld [vmem:[#allocation11 + $0x248] sm:$0xff]
        %v944 = vld [vmem:[#allocation11 + $0x250] sm:$0xff]
        %v945 = vld [vmem:[#allocation11 + $0x258] sm:$0xff]
        %v946 = vld [vmem:[#allocation11 + $0x260] sm:$0xff]
        %v947 = vld [vmem:[#allocation11 + $0x268] sm:$0xff]
        %v948 = vld [vmem:[#allocation11 + $0x270] sm:$0xff]
        %v949 = vld [vmem:[#allocation11 + $0x278] sm:$0xff]
        %v950 = vld [vmem:[#allocation11 + $0x280] sm:$0xff]
        %v951 = vld [vmem:[#allocation11 + $0x288] sm:$0xff]
        %v952 = vld [vmem:[#allocation11 + $0x290] sm:$0xff]
        %v953 = vld [vmem:[#allocation11 + $0x298] sm:$0xff]
        %v954 = vld [vmem:[#allocation11 + $0x2a0] sm:$0xff]
        %v955 = vld [vmem:[#allocation11 + $0x2a8] sm:$0xff]
        %v956 = vld [vmem:[#allocation11 + $0x2b0] sm:$0xff]
        %v957 = vld [vmem:[#allocation11 + $0x2b8] sm:$0xff]
        %v958 = vld [vmem:[#allocation11 + $0x2c0] sm:$0xff]
        %v959 = vld [vmem:[#allocation11 + $0x2c8] sm:$0xff]
        %v960 = vld [vmem:[#allocation11 + $0x2d0] sm:$0xff]
        %v961 = vld [vmem:[#allocation11 + $0x2d8] sm:$0xff]
        %v962 = vld [vmem:[#allocation11 + $0x2e0] sm:$0xff]
        %v963 = vld [vmem:[#allocation11 + $0x2e8] sm:$0xff]
        %v964 = vld [vmem:[#allocation11 + $0x2f0] sm:$0xff]
        %v965 = vld [vmem:[#allocation11 + $0x2f8] sm:$0xff]
        %v966 = vld [vmem:[#allocation11 + $0x300] sm:$0xff]
        %v967 = vld [vmem:[#allocation11 + $0x308] sm:$0xff]
        %v968 = vld [vmem:[#allocation11 + $0x310] sm:$0xff]
        %v969 = vld [vmem:[#allocation11 + $0x318] sm:$0xff]
        %v970 = vld [vmem:[#allocation11 + $0x320] sm:$0xff]
        %v971 = vld [vmem:[#allocation11 + $0x328] sm:$0xff]
        %v972 = vld [vmem:[#allocation11 + $0x330] sm:$0xff]
        %v973 = vld [vmem:[#allocation11 + $0x338] sm:$0xff]
        %v974 = vld [vmem:[#allocation11 + $0x340] sm:$0xff]
        %v975 = vld [vmem:[#allocation11 + $0x348] sm:$0xff]
        %v976 = vld [vmem:[#allocation11 + $0x350] sm:$0xff]
        %v977 = vld [vmem:[#allocation11 + $0x358] sm:$0xff]
        %v978 = vld [vmem:[#allocation11 + $0x360] sm:$0xff]
        %v979 = vld [vmem:[#allocation11 + $0x368] sm:$0xff]
        %v980 = vld [vmem:[#allocation11 + $0x370] sm:$0xff]
        %v981 = vld [vmem:[#allocation11 + $0x378] sm:$0xff]
        %v982 = vld [vmem:[#allocation11 + $0x380] sm:$0xff]
        %v983 = vld [vmem:[#allocation11 + $0x388] sm:$0xff]
        %v984 = vld [vmem:[#allocation11 + $0x390] sm:$0xff]
        %v985 = vld [vmem:[#allocation11 + $0x398] sm:$0xff]
        %v986 = vld [vmem:[#allocation11 + $0x3a0] sm:$0xff]
        %v987 = vld [vmem:[#allocation11 + $0x3a8] sm:$0xff]
        %v988 = vld [vmem:[#allocation11 + $0x3b0] sm:$0xff]
        %v989 = vld [vmem:[#allocation11 + $0x3b8] sm:$0xff]
        %v990 = vld [vmem:[#allocation11 + $0x3c0] sm:$0xff]
        %v991 = vld [vmem:[#allocation11 + $0x3c8] sm:$0xff]
        %v992 = vld [vmem:[#allocation11 + $0x3d0] sm:$0xff]
        %v993 = vld [vmem:[#allocation11 + $0x3d8] sm:$0xff]
        %v994 = vld [vmem:[#allocation11 + $0x3e0] sm:$0xff]
        %v995 = vld [vmem:[#allocation11 + $0x3e8] sm:$0xff]
        %v996 = vld [vmem:[#allocation11 + $0x3f0] sm:$0xff]
        %v997 = vld [vmem:[#allocation11 + $0x3f8] sm:$0xff]
        %v1126 = vunpack.c.l.b16 %v870
        %v1127 = vunpack.c.h.b16 %v870
        %v1128 = vunpack.c.l.b16 %v871
        %v1129 = vunpack.c.h.b16 %v871
        %v1130 = vunpack.c.l.b16 %v872
        %v1131 = vunpack.c.h.b16 %v872
        %v1132 = vunpack.c.l.b16 %v873
        %v1133 = vunpack.c.h.b16 %v873
        %v1134 = vunpack.c.l.b16 %v874
        %v1135 = vunpack.c.h.b16 %v874
        %v1136 = vunpack.c.l.b16 %v875
        %v1137 = vunpack.c.h.b16 %v875
        %v1138 = vunpack.c.l.b16 %v876
        %v1139 = vunpack.c.h.b16 %v876
        %v1140 = vunpack.c.l.b16 %v877
        %v1141 = vunpack.c.h.b16 %v877
        %v1142 = vunpack.c.l.b16 %v878
        %v1143 = vunpack.c.h.b16 %v878
        %v1144 = vunpack.c.l.b16 %v879
        %v1145 = vunpack.c.h.b16 %v879
        %v1146 = vunpack.c.l.b16 %v880
        %v1147 = vunpack.c.h.b16 %v880
        %v1148 = vunpack.c.l.b16 %v881
        %v1149 = vunpack.c.h.b16 %v881
        %v1150 = vunpack.c.l.b16 %v882
        %v1151 = vunpack.c.h.b16 %v882
        %v1152 = vunpack.c.l.b16 %v883
        %v1153 = vunpack.c.h.b16 %v883
        %v1154 = vunpack.c.l.b16 %v884
        %v1155 = vunpack.c.h.b16 %v884
        %v1156 = vunpack.c.l.b16 %v885
        %v1157 = vunpack.c.h.b16 %v885
        %v1158 = vunpack.c.l.b16 %v886
        %v1159 = vunpack.c.h.b16 %v886
        %v1160 = vunpack.c.l.b16 %v887
        %v1161 = vunpack.c.h.b16 %v887
        %v1162 = vunpack.c.l.b16 %v888
        %v1163 = vunpack.c.h.b16 %v888
        %v1164 = vunpack.c.l.b16 %v889
        %v1165 = vunpack.c.h.b16 %v889
        %v1166 = vunpack.c.l.b16 %v890
        %v1167 = vunpack.c.h.b16 %v890
        %v1168 = vunpack.c.l.b16 %v891
        %v1169 = vunpack.c.h.b16 %v891
        %v1170 = vunpack.c.l.b16 %v892
        %v1171 = vunpack.c.h.b16 %v892
        %v1172 = vunpack.c.l.b16 %v893
        %v1173 = vunpack.c.h.b16 %v893
        %v1174 = vunpack.c.l.b16 %v894
        %v1175 = vunpack.c.h.b16 %v894
        %v1176 = vunpack.c.l.b16 %v895
        %v1177 = vunpack.c.h.b16 %v895
        %v1178 = vunpack.c.l.b16 %v896
        %v1179 = vunpack.c.h.b16 %v896
        %v1180 = vunpack.c.l.b16 %v897
        %v1181 = vunpack.c.h.b16 %v897
        %v1182 = vunpack.c.l.b16 %v898
        %v1183 = vunpack.c.h.b16 %v898
        %v1184 = vunpack.c.l.b16 %v899
        %v1185 = vunpack.c.h.b16 %v899
        %v1186 = vunpack.c.l.b16 %v900
        %v1187 = vunpack.c.h.b16 %v900
        %v1188 = vunpack.c.l.b16 %v901
        %v1189 = vunpack.c.h.b16 %v901
        %v1190 = vunpack.c.l.b16 %v902
        %v1191 = vunpack.c.h.b16 %v902
        %v1192 = vunpack.c.l.b16 %v903
        %v1193 = vunpack.c.h.b16 %v903
        %v1194 = vunpack.c.l.b16 %v904
        %v1195 = vunpack.c.h.b16 %v904
        %v1196 = vunpack.c.l.b16 %v905
        %v1197 = vunpack.c.h.b16 %v905
        %v1198 = vunpack.c.l.b16 %v906
        %v1199 = vunpack.c.h.b16 %v906
        %v1200 = vunpack.c.l.b16 %v907
        %v1201 = vunpack.c.h.b16 %v907
        %v1202 = vunpack.c.l.b16 %v908
        %v1203 = vunpack.c.h.b16 %v908
        %v1204 = vunpack.c.l.b16 %v909
        %v1205 = vunpack.c.h.b16 %v909
        %v1206 = vunpack.c.l.b16 %v910
        %v1207 = vunpack.c.h.b16 %v910
        %v1208 = vunpack.c.l.b16 %v911
        %v1209 = vunpack.c.h.b16 %v911
        %v1210 = vunpack.c.l.b16 %v912
        %v1211 = vunpack.c.h.b16 %v912
        %v1212 = vunpack.c.l.b16 %v913
        %v1213 = vunpack.c.h.b16 %v913
        %v1214 = vunpack.c.l.b16 %v914
        %v1215 = vunpack.c.h.b16 %v914
        %v1216 = vunpack.c.l.b16 %v915
        %v1217 = vunpack.c.h.b16 %v915
        %v1218 = vunpack.c.l.b16 %v916
        %v1219 = vunpack.c.h.b16 %v916
        %v1220 = vunpack.c.l.b16 %v917
        %v1221 = vunpack.c.h.b16 %v917
        %v1222 = vunpack.c.l.b16 %v918
        %v1223 = vunpack.c.h.b16 %v918
        %v1224 = vunpack.c.l.b16 %v919
        %v1225 = vunpack.c.h.b16 %v919
        %v1226 = vunpack.c.l.b16 %v920
        %v1227 = vunpack.c.h.b16 %v920
        %v1228 = vunpack.c.l.b16 %v921
        %v1229 = vunpack.c.h.b16 %v921
        %v1230 = vunpack.c.l.b16 %v922
        %v1231 = vunpack.c.h.b16 %v922
        %v1232 = vunpack.c.l.b16 %v923
        %v1233 = vunpack.c.h.b16 %v923
        %v1234 = vunpack.c.l.b16 %v924
        %v1235 = vunpack.c.h.b16 %v924
        %v1236 = vunpack.c.l.b16 %v925
        %v1237 = vunpack.c.h.b16 %v925
        %v1238 = vunpack.c.l.b16 %v926
        %v1239 = vunpack.c.h.b16 %v926
        %v1240 = vunpack.c.l.b16 %v927
        %v1241 = vunpack.c.h.b16 %v927
        %v1242 = vunpack.c.l.b16 %v928
        %v1243 = vunpack.c.h.b16 %v928
        %v1244 = vunpack.c.l.b16 %v929
        %v1245 = vunpack.c.h.b16 %v929
        %v1246 = vunpack.c.l.b16 %v930
        %v1247 = vunpack.c.h.b16 %v930
        %v1248 = vunpack.c.l.b16 %v931
        %v1249 = vunpack.c.h.b16 %v931
        %v1250 = vunpack.c.l.b16 %v932
        %v1251 = vunpack.c.h.b16 %v932
        %v1252 = vunpack.c.l.b16 %v933
        %v1253 = vunpack.c.h.b16 %v933
        %v1254 = vunpack.c.l.b16 %v934
        %v1255 = vunpack.c.h.b16 %v934
        %v1256 = vunpack.c.l.b16 %v935
        %v1257 = vunpack.c.h.b16 %v935
        %v1258 = vunpack.c.l.b16 %v936
        %v1259 = vunpack.c.h.b16 %v936
        %v1260 = vunpack.c.l.b16 %v937
        %v1261 = vunpack.c.h.b16 %v937
        %v1262 = vunpack.c.l.b16 %v938
        %v1263 = vunpack.c.h.b16 %v938
        %v1264 = vunpack.c.l.b16 %v939
        %v1265 = vunpack.c.h.b16 %v939
        %v1266 = vunpack.c.l.b16 %v940
        %v1267 = vunpack.c.h.b16 %v940
        %v1268 = vunpack.c.l.b16 %v941
        %v1269 = vunpack.c.h.b16 %v941
        %v1270 = vunpack.c.l.b16 %v942
        %v1271 = vunpack.c.h.b16 %v942
        %v1272 = vunpack.c.l.b16 %v943
        %v1273 = vunpack.c.h.b16 %v943
        %v1274 = vunpack.c.l.b16 %v944
        %v1275 = vunpack.c.h.b16 %v944
        %v1276 = vunpack.c.l.b16 %v945
        %v1277 = vunpack.c.h.b16 %v945
        %v1278 = vunpack.c.l.b16 %v946
        %v1279 = vunpack.c.h.b16 %v946
        %v1280 = vunpack.c.l.b16 %v947
        %v1281 = vunpack.c.h.b16 %v947
        %v1282 = vunpack.c.l.b16 %v948
        %v1283 = vunpack.c.h.b16 %v948
        %v1284 = vunpack.c.l.b16 %v949
        %v1285 = vunpack.c.h.b16 %v949
        %v1286 = vunpack.c.l.b16 %v950
        %v1287 = vunpack.c.h.b16 %v950
        %v1288 = vunpack.c.l.b16 %v951
        %v1289 = vunpack.c.h.b16 %v951
        %v1290 = vunpack.c.l.b16 %v952
        %v1291 = vunpack.c.h.b16 %v952
        %v1292 = vunpack.c.l.b16 %v953
        %v1293 = vunpack.c.h.b16 %v953
        %v1294 = vunpack.c.l.b16 %v954
        %v1295 = vunpack.c.h.b16 %v954
        %v1296 = vunpack.c.l.b16 %v955
        %v1297 = vunpack.c.h.b16 %v955
        %v1298 = vunpack.c.l.b16 %v956
        %v1299 = vunpack.c.h.b16 %v956
        %v1300 = vunpack.c.l.b16 %v957
        %v1301 = vunpack.c.h.b16 %v957
        %v1302 = vunpack.c.l.b16 %v958
        %v1303 = vunpack.c.h.b16 %v958
        %v1304 = vunpack.c.l.b16 %v959
        %v1305 = vunpack.c.h.b16 %v959
        %v1306 = vunpack.c.l.b16 %v960
        %v1307 = vunpack.c.h.b16 %v960
        %v1308 = vunpack.c.l.b16 %v961
        %v1309 = vunpack.c.h.b16 %v961
        %v1310 = vunpack.c.l.b16 %v962
        %v1311 = vunpack.c.h.b16 %v962
        %v1312 = vunpack.c.l.b16 %v963
        %v1313 = vunpack.c.h.b16 %v963
        %v1314 = vunpack.c.l.b16 %v964
        %v1315 = vunpack.c.h.b16 %v964
        %v1316 = vunpack.c.l.b16 %v965
        %v1317 = vunpack.c.h.b16 %v965
        %v1318 = vunpack.c.l.b16 %v966
        %v1319 = vunpack.c.h.b16 %v966
        %v1320 = vunpack.c.l.b16 %v967
        %v1321 = vunpack.c.h.b16 %v967
        %v1322 = vunpack.c.l.b16 %v968
        %v1323 = vunpack.c.h.b16 %v968
        %v1324 = vunpack.c.l.b16 %v969
        %v1325 = vunpack.c.h.b16 %v969
        %v1326 = vunpack.c.l.b16 %v970
        %v1327 = vunpack.c.h.b16 %v970
        %v1328 = vunpack.c.l.b16 %v971
        %v1329 = vunpack.c.h.b16 %v971
        %v1330 = vunpack.c.l.b16 %v972
        %v1331 = vunpack.c.h.b16 %v972
        %v1332 = vunpack.c.l.b16 %v973
        %v1333 = vunpack.c.h.b16 %v973
        %v1334 = vunpack.c.l.b16 %v974
        %v1335 = vunpack.c.h.b16 %v974
        %v1336 = vunpack.c.l.b16 %v975
        %v1337 = vunpack.c.h.b16 %v975
        %v1338 = vunpack.c.l.b16 %v976
        %v1339 = vunpack.c.h.b16 %v976
        %v1340 = vunpack.c.l.b16 %v977
        %v1341 = vunpack.c.h.b16 %v977
        %v1342 = vunpack.c.l.b16 %v978
        %v1343 = vunpack.c.h.b16 %v978
        %v1344 = vunpack.c.l.b16 %v979
        %v1345 = vunpack.c.h.b16 %v979
        %v1346 = vunpack.c.l.b16 %v980
        %v1347 = vunpack.c.h.b16 %v980
        %v1348 = vunpack.c.l.b16 %v981
        %v1349 = vunpack.c.h.b16 %v981
        %v1350 = vunpack.c.l.b16 %v982
        %v1351 = vunpack.c.h.b16 %v982
        %v1352 = vunpack.c.l.b16 %v983
        %v1353 = vunpack.c.h.b16 %v983
        %v1354 = vunpack.c.l.b16 %v984
        %v1355 = vunpack.c.h.b16 %v984
        %v1356 = vunpack.c.l.b16 %v985
        %v1357 = vunpack.c.h.b16 %v985
        %v1358 = vunpack.c.l.b16 %v986
        %v1359 = vunpack.c.h.b16 %v986
        %v1360 = vunpack.c.l.b16 %v987
        %v1361 = vunpack.c.h.b16 %v987
        %v1362 = vunpack.c.l.b16 %v988
        %v1363 = vunpack.c.h.b16 %v988
        %v1364 = vunpack.c.l.b16 %v989
        %v1365 = vunpack.c.h.b16 %v989
        %v1366 = vunpack.c.l.b16 %v990
        %v1367 = vunpack.c.h.b16 %v990
        %v1368 = vunpack.c.l.b16 %v991
        %v1369 = vunpack.c.h.b16 %v991
        %v1370 = vunpack.c.l.b16 %v992
        %v1371 = vunpack.c.h.b16 %v992
        %v1372 = vunpack.c.l.b16 %v993
        %v1373 = vunpack.c.h.b16 %v993
        %v1374 = vunpack.c.l.b16 %v994
        %v1375 = vunpack.c.h.b16 %v994
        %v1376 = vunpack.c.l.b16 %v995
        %v1377 = vunpack.c.h.b16 %v995
        %v1378 = vunpack.c.l.b16 %v996
        %v1379 = vunpack.c.h.b16 %v996
        %v1380 = vunpack.c.l.b16 %v997
        %v1381 = vunpack.c.h.b16 %v997
        %v1382 = vpack.c.b16 %v1130, %v1126
        %v1383 = vpack.c.b16 %v1131, %v1127
        %v1384 = vpack.c.b16 %v1132, %v1128
        %v1385 = vpack.c.b16 %v1133, %v1129
        %v1386 = vpack.c.b16 %v1138, %v1134
        %v1387 = vpack.c.b16 %v1139, %v1135
        %v1388 = vpack.c.b16 %v1140, %v1136
        %v1389 = vpack.c.b16 %v1141, %v1137
        %v1390 = vpack.c.b16 %v1146, %v1142
        %v1391 = vpack.c.b16 %v1147, %v1143
        %v1392 = vpack.c.b16 %v1148, %v1144
        %v1393 = vpack.c.b16 %v1149, %v1145
        %v1394 = vpack.c.b16 %v1154, %v1150
        %v1395 = vpack.c.b16 %v1155, %v1151
        %v1396 = vpack.c.b16 %v1156, %v1152
        %v1397 = vpack.c.b16 %v1157, %v1153
        %v1398 = vpack.c.b16 %v1162, %v1158
        %v1399 = vpack.c.b16 %v1163, %v1159
        %v1400 = vpack.c.b16 %v1164, %v1160
        %v1401 = vpack.c.b16 %v1165, %v1161
        %v1402 = vpack.c.b16 %v1170, %v1166
        %v1403 = vpack.c.b16 %v1171, %v1167
        %v1404 = vpack.c.b16 %v1172, %v1168
        %v1405 = vpack.c.b16 %v1173, %v1169
        %v1406 = vpack.c.b16 %v1178, %v1174
        %v1407 = vpack.c.b16 %v1179, %v1175
        %v1408 = vpack.c.b16 %v1180, %v1176
        %v1409 = vpack.c.b16 %v1181, %v1177
        %v1410 = vpack.c.b16 %v1186, %v1182
        %v1411 = vpack.c.b16 %v1187, %v1183
        %v1412 = vpack.c.b16 %v1188, %v1184
        %v1413 = vpack.c.b16 %v1189, %v1185
        %v1414 = vpack.c.b16 %v1194, %v1190
        %v1415 = vpack.c.b16 %v1195, %v1191
        %v1416 = vpack.c.b16 %v1196, %v1192
        %v1417 = vpack.c.b16 %v1197, %v1193
        %v1418 = vpack.c.b16 %v1202, %v1198
        %v1419 = vpack.c.b16 %v1203, %v1199
        %v1420 = vpack.c.b16 %v1204, %v1200
        %v1421 = vpack.c.b16 %v1205, %v1201
        %v1422 = vpack.c.b16 %v1210, %v1206
        %v1423 = vpack.c.b16 %v1211, %v1207
        %v1424 = vpack.c.b16 %v1212, %v1208
        %v1425 = vpack.c.b16 %v1213, %v1209
        %v1426 = vpack.c.b16 %v1218, %v1214
        %v1427 = vpack.c.b16 %v1219, %v1215
        %v1428 = vpack.c.b16 %v1220, %v1216
        %v1429 = vpack.c.b16 %v1221, %v1217
        %v1430 = vpack.c.b16 %v1226, %v1222
        %v1431 = vpack.c.b16 %v1227, %v1223
        %v1432 = vpack.c.b16 %v1228, %v1224
        %v1433 = vpack.c.b16 %v1229, %v1225
        %v1434 = vpack.c.b16 %v1234, %v1230
        %v1435 = vpack.c.b16 %v1235, %v1231
        %v1436 = vpack.c.b16 %v1236, %v1232
        %v1437 = vpack.c.b16 %v1237, %v1233
        %v1438 = vpack.c.b16 %v1242, %v1238
        %v1439 = vpack.c.b16 %v1243, %v1239
        %v1440 = vpack.c.b16 %v1244, %v1240
        %v1441 = vpack.c.b16 %v1245, %v1241
        %v1442 = vpack.c.b16 %v1250, %v1246
        %v1443 = vpack.c.b16 %v1251, %v1247
        %v1444 = vpack.c.b16 %v1252, %v1248
        %v1445 = vpack.c.b16 %v1253, %v1249
        %v1446 = vpack.c.b16 %v1258, %v1254
        %v1447 = vpack.c.b16 %v1259, %v1255
        %v1448 = vpack.c.b16 %v1260, %v1256
        %v1449 = vpack.c.b16 %v1261, %v1257
        %v1450 = vpack.c.b16 %v1266, %v1262
        %v1451 = vpack.c.b16 %v1267, %v1263
        %v1452 = vpack.c.b16 %v1268, %v1264
        %v1453 = vpack.c.b16 %v1269, %v1265
        %v1454 = vpack.c.b16 %v1274, %v1270
        %v1455 = vpack.c.b16 %v1275, %v1271
        %v1456 = vpack.c.b16 %v1276, %v1272
        %v1457 = vpack.c.b16 %v1277, %v1273
        %v1458 = vpack.c.b16 %v1282, %v1278
        %v1459 = vpack.c.b16 %v1283, %v1279
        %v1460 = vpack.c.b16 %v1284, %v1280
        %v1461 = vpack.c.b16 %v1285, %v1281
        %v1462 = vpack.c.b16 %v1290, %v1286
        %v1463 = vpack.c.b16 %v1291, %v1287
        %v1464 = vpack.c.b16 %v1292, %v1288
        %v1465 = vpack.c.b16 %v1293, %v1289
        %v1466 = vpack.c.b16 %v1298, %v1294
        %v1467 = vpack.c.b16 %v1299, %v1295
        %v1468 = vpack.c.b16 %v1300, %v1296
        %v1469 = vpack.c.b16 %v1301, %v1297
        %v1470 = vpack.c.b16 %v1306, %v1302
        %v1471 = vpack.c.b16 %v1307, %v1303
        %v1472 = vpack.c.b16 %v1308, %v1304
        %v1473 = vpack.c.b16 %v1309, %v1305
        %v1474 = vpack.c.b16 %v1314, %v1310
        %v1475 = vpack.c.b16 %v1315, %v1311
        %v1476 = vpack.c.b16 %v1316, %v1312
        %v1477 = vpack.c.b16 %v1317, %v1313
        %v1478 = vpack.c.b16 %v1322, %v1318
        %v1479 = vpack.c.b16 %v1323, %v1319
        %v1480 = vpack.c.b16 %v1324, %v1320
        %v1481 = vpack.c.b16 %v1325, %v1321
        %v1482 = vpack.c.b16 %v1330, %v1326
        %v1483 = vpack.c.b16 %v1331, %v1327
        %v1484 = vpack.c.b16 %v1332, %v1328
        %v1485 = vpack.c.b16 %v1333, %v1329
        %v1486 = vpack.c.b16 %v1338, %v1334
        %v1487 = vpack.c.b16 %v1339, %v1335
        %v1488 = vpack.c.b16 %v1340, %v1336
        %v1489 = vpack.c.b16 %v1341, %v1337
        %v1490 = vpack.c.b16 %v1346, %v1342
        %v1491 = vpack.c.b16 %v1347, %v1343
        %v1492 = vpack.c.b16 %v1348, %v1344
        %v1493 = vpack.c.b16 %v1349, %v1345
        %v1494 = vpack.c.b16 %v1354, %v1350
        %v1495 = vpack.c.b16 %v1355, %v1351
        %v1496 = vpack.c.b16 %v1356, %v1352
        %v1497 = vpack.c.b16 %v1357, %v1353
        %v1498 = vpack.c.b16 %v1362, %v1358
        %v1499 = vpack.c.b16 %v1363, %v1359
        %v1500 = vpack.c.b16 %v1364, %v1360
        %v1501 = vpack.c.b16 %v1365, %v1361
        %v1502 = vpack.c.b16 %v1370, %v1366
        %v1503 = vpack.c.b16 %v1371, %v1367
        %v1504 = vpack.c.b16 %v1372, %v1368
        %v1505 = vpack.c.b16 %v1373, %v1369
        %v1506 = vpack.c.b16 %v1378, %v1374
        %v1507 = vpack.c.b16 %v1379, %v1375
        %v1508 = vpack.c.b16 %v1380, %v1376
        %v1509 = vpack.c.b16 %v1381, %v1377
        %1638 = vmatpush.bf16.msra.mxu0 %v1410
        %1639 = vmatpush.bf16.msra.mxu0 %v1406
        %1640 = vmatpush.bf16.msra.mxu0 %v1402
        %1641 = vmatpush.bf16.msra.mxu0 %v1398
        %1642 = vmatpush.bf16.msra.mxu0 %v1394
        %1643 = vmatpush.bf16.msra.mxu0 %v1390
        %1644 = vmatpush.bf16.msra.mxu0 %v1386
        %1645 = vmatpush.bf16.msra.mxu0 %v1382
        %1646 = vmatmul.bf16.gmra.mxu0 %v738
        %v1647 = vpop.f32.mrf.mxu0
        %v1648 = vadd.f32 0.0, %v1647
        %v1649 = vpop.f32.mrf.mxu0
        %1650 = vdwg.mxu0
        %1651 = vmatpush.bf16.msra.mxu0 %v1442
        %1652 = vmatpush.bf16.msra.mxu0 %v1438
        %1653 = vmatpush.bf16.msra.mxu0 %v1434
        %1654 = vmatpush.bf16.msra.mxu0 %v1430
        %1655 = vmatpush.bf16.msra.mxu0 %v1426
        %1656 = vmatpush.bf16.msra.mxu0 %v1422
        %1657 = vmatpush.bf16.msra.mxu0 %v1418
        %1658 = vmatpush.bf16.msra.mxu0 %v1414
        %1659 = vmatmul.bf16.gmra.mxu0 %v739
        %v1660 = vpop.f32.mrf.mxu0
        %v1661 = vadd.f32 %v1648, %v1660
        %v1662 = vpop.f32.mrf.mxu0
        %1663 = vdwg.mxu0
        %1664 = vmatpush.bf16.msra.mxu0 %v1474
        %1665 = vmatpush.bf16.msra.mxu0 %v1470
        %1666 = vmatpush.bf16.msra.mxu0 %v1466
        %1667 = vmatpush.bf16.msra.mxu0 %v1462
        %1668 = vmatpush.bf16.msra.mxu0 %v1458
        %1669 = vmatpush.bf16.msra.mxu0 %v1454
        %1670 = vmatpush.bf16.msra.mxu0 %v1450
        %1671 = vmatpush.bf16.msra.mxu0 %v1446
        %1672 = vmatmul.bf16.gmra.mxu0 %v740
        %v1673 = vpop.f32.mrf.mxu0
        %v1674 = vadd.f32 %v1661, %v1673
        %v1675 = vpop.f32.mrf.mxu0
        %1676 = vdwg.mxu0
        %1677 = vmatpush.bf16.msra.mxu0 %v1506
        %1678 = vmatpush.bf16.msra.mxu0 %v1502
        %1679 = vmatpush.bf16.msra.mxu0 %v1498
        %1680 = vmatpush.bf16.msra.mxu0 %v1494
        %1681 = vmatpush.bf16.msra.mxu0 %v1490
        %1682 = vmatpush.bf16.msra.mxu0 %v1486
        %1683 = vmatpush.bf16.msra.mxu0 %v1482
        %1684 = vmatpush.bf16.msra.mxu0 %v1478
        %1685 = vmatmul.bf16.gmra.mxu0 %v741
        %v1686 = vpop.f32.mrf.mxu0
        %v1687 = vadd.f32 %v1674, %v1686
        %v1688 = vpop.f32.mrf.mxu0
        %1689 = vdwg.mxu0
        %1690 = vmatpush.bf16.msra.mxu0 %v1411
        %1691 = vmatpush.bf16.msra.mxu0 %v1407
        %1692 = vmatpush.bf16.msra.mxu0 %v1403
        %1693 = vmatpush.bf16.msra.mxu0 %v1399
        %1694 = vmatpush.bf16.msra.mxu0 %v1395
        %1695 = vmatpush.bf16.msra.mxu0 %v1391
        %1696 = vmatpush.bf16.msra.mxu0 %v1387
        %1697 = vmatpush.bf16.msra.mxu0 %v1383
        %1698 = vmatmul.bf16.gmra.mxu0 %v738
        %v1699 = vpop.f32.mrf.mxu0
        %v1700 = vadd.f32 0.0, %v1699
        %v1701 = vpop.f32.mrf.mxu0
        %1702 = vdwg.mxu0
        %1703 = vmatpush.bf16.msra.mxu0 %v1443
        %1704 = vmatpush.bf16.msra.mxu0 %v1439
        %1705 = vmatpush.bf16.msra.mxu0 %v1435
        %1706 = vmatpush.bf16.msra.mxu0 %v1431
        %1707 = vmatpush.bf16.msra.mxu0 %v1427
        %1708 = vmatpush.bf16.msra.mxu0 %v1423
        %1709 = vmatpush.bf16.msra.mxu0 %v1419
        %1710 = vmatpush.bf16.msra.mxu0 %v1415
        %1711 = vmatmul.bf16.gmra.mxu0 %v739
        %v1712 = vpop.f32.mrf.mxu0
        %v1713 = vadd.f32 %v1700, %v1712
        %v1714 = vpop.f32.mrf.mxu0
        %1715 = vdwg.mxu0
        %1716 = vmatpush.bf16.msra.mxu0 %v1475
        %1717 = vmatpush.bf16.msra.mxu0 %v1471
        %1718 = vmatpush.bf16.msra.mxu0 %v1467
        %1719 = vmatpush.bf16.msra.mxu0 %v1463
        %1720 = vmatpush.bf16.msra.mxu0 %v1459
        %1721 = vmatpush.bf16.msra.mxu0 %v1455
        %1722 = vmatpush.bf16.msra.mxu0 %v1451
        %1723 = vmatpush.bf16.msra.mxu0 %v1447
        %1724 = vmatmul.bf16.gmra.mxu0 %v740
        %v1725 = vpop.f32.mrf.mxu0
        %v1726 = vadd.f32 %v1713, %v1725
        %v1727 = vpop.f32.mrf.mxu0
        %1728 = vdwg.mxu0
        %1729 = vmatpush.bf16.msra.mxu0 %v1507
        %1730 = vmatpush.bf16.msra.mxu0 %v1503
        %1731 = vmatpush.bf16.msra.mxu0 %v1499
        %1732 = vmatpush.bf16.msra.mxu0 %v1495
        %1733 = vmatpush.bf16.msra.mxu0 %v1491
        %1734 = vmatpush.bf16.msra.mxu0 %v1487
        %1735 = vmatpush.bf16.msra.mxu0 %v1483
        %1736 = vmatpush.bf16.msra.mxu0 %v1479
        %1737 = vmatmul.bf16.gmra.mxu0 %v741
        %v1738 = vpop.f32.mrf.mxu0
        %v1739 = vadd.f32 %v1726, %v1738
        %v1740 = vpop.f32.mrf.mxu0
        %1741 = vdwg.mxu0
        %1742 = vmatpush.bf16.msra.mxu0 %v1412
        %1743 = vmatpush.bf16.msra.mxu0 %v1408
        %1744 = vmatpush.bf16.msra.mxu0 %v1404
        %1745 = vmatpush.bf16.msra.mxu0 %v1400
        %1746 = vmatpush.bf16.msra.mxu0 %v1396
        %1747 = vmatpush.bf16.msra.mxu0 %v1392
        %1748 = vmatpush.bf16.msra.mxu0 %v1388
        %1749 = vmatpush.bf16.msra.mxu0 %v1384
        %1750 = vmatmul.bf16.gmra.mxu0 %v738
        %v1751 = vpop.f32.mrf.mxu0
        %v1752 = vadd.f32 0.0, %v1751
        %v1753 = vpop.f32.mrf.mxu0
        %1754 = vdwg.mxu0
        %1755 = vmatpush.bf16.msra.mxu0 %v1444
        %1756 = vmatpush.bf16.msra.mxu0 %v1440
        %1757 = vmatpush.bf16.msra.mxu0 %v1436
        %1758 = vmatpush.bf16.msra.mxu0 %v1432
        %1759 = vmatpush.bf16.msra.mxu0 %v1428
        %1760 = vmatpush.bf16.msra.mxu0 %v1424
        %1761 = vmatpush.bf16.msra.mxu0 %v1420
        %1762 = vmatpush.bf16.msra.mxu0 %v1416
        %1763 = vmatmul.bf16.gmra.mxu0 %v739
        %v1764 = vpop.f32.mrf.mxu0
        %v1765 = vadd.f32 %v1752, %v1764
        %v1766 = vpop.f32.mrf.mxu0
        %1767 = vdwg.mxu0
        %1768 = vmatpush.bf16.msra.mxu0 %v1476
        %1769 = vmatpush.bf16.msra.mxu0 %v1472
        %1770 = vmatpush.bf16.msra.mxu0 %v1468
        %1771 = vmatpush.bf16.msra.mxu0 %v1464
        %1772 = vmatpush.bf16.msra.mxu0 %v1460
        %1773 = vmatpush.bf16.msra.mxu0 %v1456
        %1774 = vmatpush.bf16.msra.mxu0 %v1452
        %1775 = vmatpush.bf16.msra.mxu0 %v1448
        %1776 = vmatmul.bf16.gmra.mxu0 %v740
        %v1777 = vpop.f32.mrf.mxu0
        %v1778 = vadd.f32 %v1765, %v1777
        %v1779 = vpop.f32.mrf.mxu0
        %1780 = vdwg.mxu0
        %1781 = vmatpush.bf16.msra.mxu0 %v1508
        %1782 = vmatpush.bf16.msra.mxu0 %v1504
        %1783 = vmatpush.bf16.msra.mxu0 %v1500
        %1784 = vmatpush.bf16.msra.mxu0 %v1496
        %1785 = vmatpush.bf16.msra.mxu0 %v1492
        %1786 = vmatpush.bf16.msra.mxu0 %v1488
        %1787 = vmatpush.bf16.msra.mxu0 %v1484
        %1788 = vmatpush.bf16.msra.mxu0 %v1480
        %1789 = vmatmul.bf16.gmra.mxu0 %v741
        %v1790 = vpop.f32.mrf.mxu0
        %v1791 = vadd.f32 %v1778, %v1790
        %v1792 = vpop.f32.mrf.mxu0
        %1793 = vdwg.mxu0
        %1794 = vmatpush.bf16.msra.mxu0 %v1413
        %1795 = vmatpush.bf16.msra.mxu0 %v1409
        %1796 = vmatpush.bf16.msra.mxu0 %v1405
        %1797 = vmatpush.bf16.msra.mxu0 %v1401
        %1798 = vmatpush.bf16.msra.mxu0 %v1397
        %1799 = vmatpush.bf16.msra.mxu0 %v1393
        %1800 = vmatpush.bf16.msra.mxu0 %v1389
        %1801 = vmatpush.bf16.msra.mxu0 %v1385
        %1802 = vmatmul.bf16.gmra.mxu0 %v738
        %v1803 = vpop.f32.mrf.mxu0
        %v1804 = vadd.f32 0.0, %v1803
        %v1805 = vpop.f32.mrf.mxu0
        %1806 = vdwg.mxu0
        %1807 = vmatpush.bf16.msra.mxu0 %v1445
        %1808 = vmatpush.bf16.msra.mxu0 %v1441
        %1809 = vmatpush.bf16.msra.mxu0 %v1437
        %1810 = vmatpush.bf16.msra.mxu0 %v1433
        %1811 = vmatpush.bf16.msra.mxu0 %v1429
        %1812 = vmatpush.bf16.msra.mxu0 %v1425
        %1813 = vmatpush.bf16.msra.mxu0 %v1421
        %1814 = vmatpush.bf16.msra.mxu0 %v1417
        %1815 = vmatmul.bf16.gmra.mxu0 %v739
        %v1816 = vpop.f32.mrf.mxu0
        %v1817 = vadd.f32 %v1804, %v1816
        %v1818 = vpop.f32.mrf.mxu0
        %1819 = vdwg.mxu0
        %1820 = vmatpush.bf16.msra.mxu0 %v1477
        %1821 = vmatpush.bf16.msra.mxu0 %v1473
        %1822 = vmatpush.bf16.msra.mxu0 %v1469
        %1823 = vmatpush.bf16.msra.mxu0 %v1465
        %1824 = vmatpush.bf16.msra.mxu0 %v1461
        %1825 = vmatpush.bf16.msra.mxu0 %v1457
        %1826 = vmatpush.bf16.msra.mxu0 %v1453
        %1827 = vmatpush.bf16.msra.mxu0 %v1449
        %1828 = vmatmul.bf16.gmra.mxu0 %v740
        %v1829 = vpop.f32.mrf.mxu0
        %v1830 = vadd.f32 %v1817, %v1829
        %v1831 = vpop.f32.mrf.mxu0
        %1832 = vdwg.mxu0
        %1833 = vmatpush.bf16.msra.mxu0 %v1509
        %1834 = vmatpush.bf16.msra.mxu0 %v1505
        %1835 = vmatpush.bf16.msra.mxu0 %v1501
        %1836 = vmatpush.bf16.msra.mxu0 %v1497
        %1837 = vmatpush.bf16.msra.mxu0 %v1493
        %1838 = vmatpush.bf16.msra.mxu0 %v1489
        %1839 = vmatpush.bf16.msra.mxu0 %v1485
        %1840 = vmatpush.bf16.msra.mxu0 %v1481
        %1841 = vmatmul.bf16.gmra.mxu0 %v741
        %v1842 = vpop.f32.mrf.mxu0
        %v1843 = vadd.f32 %v1830, %v1842
        %v1844 = vpop.f32.mrf.mxu0
        %1845 = vdwg.mxu0
        %v1974 = vunpack.c.l.b16 %v742
        %v1975 = vunpack.c.h.b16 %v742
        %v1976 = vunpack.c.l.b16 %v743
        %v1977 = vunpack.c.h.b16 %v743
        %v1978 = vunpack.c.l.b16 %v744
        %v1979 = vunpack.c.h.b16 %v744
        %v1980 = vunpack.c.l.b16 %v745
        %v1981 = vunpack.c.h.b16 %v745
        %v1982 = vunpack.c.l.b16 %v746
        %v1983 = vunpack.c.h.b16 %v746
        %v1984 = vunpack.c.l.b16 %v747
        %v1985 = vunpack.c.h.b16 %v747
        %v1986 = vunpack.c.l.b16 %v748
        %v1987 = vunpack.c.h.b16 %v748
        %v1988 = vunpack.c.l.b16 %v749
        %v1989 = vunpack.c.h.b16 %v749
        %v1990 = vunpack.c.l.b16 %v750
        %v1991 = vunpack.c.h.b16 %v750
        %v1992 = vunpack.c.l.b16 %v751
        %v1993 = vunpack.c.h.b16 %v751
        %v1994 = vunpack.c.l.b16 %v752
        %v1995 = vunpack.c.h.b16 %v752
        %v1996 = vunpack.c.l.b16 %v753
        %v1997 = vunpack.c.h.b16 %v753
        %v1998 = vunpack.c.l.b16 %v754
        %v1999 = vunpack.c.h.b16 %v754
        %v2000 = vunpack.c.l.b16 %v755
        %v2001 = vunpack.c.h.b16 %v755
        %v2002 = vunpack.c.l.b16 %v756
        %v2003 = vunpack.c.h.b16 %v756
        %v2004 = vunpack.c.l.b16 %v757
        %v2005 = vunpack.c.h.b16 %v757
        %v2006 = vunpack.c.l.b16 %v758
        %v2007 = vunpack.c.h.b16 %v758
        %v2008 = vunpack.c.l.b16 %v759
        %v2009 = vunpack.c.h.b16 %v759
        %v2010 = vunpack.c.l.b16 %v760
        %v2011 = vunpack.c.h.b16 %v760
        %v2012 = vunpack.c.l.b16 %v761
        %v2013 = vunpack.c.h.b16 %v761
        %v2014 = vunpack.c.l.b16 %v762
        %v2015 = vunpack.c.h.b16 %v762
        %v2016 = vunpack.c.l.b16 %v763
        %v2017 = vunpack.c.h.b16 %v763
        %v2018 = vunpack.c.l.b16 %v764
        %v2019 = vunpack.c.h.b16 %v764
        %v2020 = vunpack.c.l.b16 %v765
        %v2021 = vunpack.c.h.b16 %v765
        %v2022 = vunpack.c.l.b16 %v766
        %v2023 = vunpack.c.h.b16 %v766
        %v2024 = vunpack.c.l.b16 %v767
        %v2025 = vunpack.c.h.b16 %v767
        %v2026 = vunpack.c.l.b16 %v768
        %v2027 = vunpack.c.h.b16 %v768
        %v2028 = vunpack.c.l.b16 %v769
        %v2029 = vunpack.c.h.b16 %v769
        %v2030 = vunpack.c.l.b16 %v770
        %v2031 = vunpack.c.h.b16 %v770
        %v2032 = vunpack.c.l.b16 %v771
        %v2033 = vunpack.c.h.b16 %v771
        %v2034 = vunpack.c.l.b16 %v772
        %v2035 = vunpack.c.h.b16 %v772
        %v2036 = vunpack.c.l.b16 %v773
        %v2037 = vunpack.c.h.b16 %v773
        %v2038 = vunpack.c.l.b16 %v774
        %v2039 = vunpack.c.h.b16 %v774
        %v2040 = vunpack.c.l.b16 %v775
        %v2041 = vunpack.c.h.b16 %v775
        %v2042 = vunpack.c.l.b16 %v776
        %v2043 = vunpack.c.h.b16 %v776
        %v2044 = vunpack.c.l.b16 %v777
        %v2045 = vunpack.c.h.b16 %v777
        %v2046 = vunpack.c.l.b16 %v778
        %v2047 = vunpack.c.h.b16 %v778
        %v2048 = vunpack.c.l.b16 %v779
        %v2049 = vunpack.c.h.b16 %v779
        %v2050 = vunpack.c.l.b16 %v780
        %v2051 = vunpack.c.h.b16 %v780
        %v2052 = vunpack.c.l.b16 %v781
        %v2053 = vunpack.c.h.b16 %v781
        %v2054 = vunpack.c.l.b16 %v782
        %v2055 = vunpack.c.h.b16 %v782
        %v2056 = vunpack.c.l.b16 %v783
        %v2057 = vunpack.c.h.b16 %v783
        %v2058 = vunpack.c.l.b16 %v784
        %v2059 = vunpack.c.h.b16 %v784
        %v2060 = vunpack.c.l.b16 %v785
        %v2061 = vunpack.c.h.b16 %v785
        %v2062 = vunpack.c.l.b16 %v786
        %v2063 = vunpack.c.h.b16 %v786
        %v2064 = vunpack.c.l.b16 %v787
        %v2065 = vunpack.c.h.b16 %v787
        %v2066 = vunpack.c.l.b16 %v788
        %v2067 = vunpack.c.h.b16 %v788
        %v2068 = vunpack.c.l.b16 %v789
        %v2069 = vunpack.c.h.b16 %v789
        %v2070 = vunpack.c.l.b16 %v790
        %v2071 = vunpack.c.h.b16 %v790
        %v2072 = vunpack.c.l.b16 %v791
        %v2073 = vunpack.c.h.b16 %v791
        %v2074 = vunpack.c.l.b16 %v792
        %v2075 = vunpack.c.h.b16 %v792
        %v2076 = vunpack.c.l.b16 %v793
        %v2077 = vunpack.c.h.b16 %v793
        %v2078 = vunpack.c.l.b16 %v794
        %v2079 = vunpack.c.h.b16 %v794
        %v2080 = vunpack.c.l.b16 %v795
        %v2081 = vunpack.c.h.b16 %v795
        %v2082 = vunpack.c.l.b16 %v796
        %v2083 = vunpack.c.h.b16 %v796
        %v2084 = vunpack.c.l.b16 %v797
        %v2085 = vunpack.c.h.b16 %v797
        %v2086 = vunpack.c.l.b16 %v798
        %v2087 = vunpack.c.h.b16 %v798
        %v2088 = vunpack.c.l.b16 %v799
        %v2089 = vunpack.c.h.b16 %v799
        %v2090 = vunpack.c.l.b16 %v800
        %v2091 = vunpack.c.h.b16 %v800
        %v2092 = vunpack.c.l.b16 %v801
        %v2093 = vunpack.c.h.b16 %v801
        %v2094 = vunpack.c.l.b16 %v802
        %v2095 = vunpack.c.h.b16 %v802
        %v2096 = vunpack.c.l.b16 %v803
        %v2097 = vunpack.c.h.b16 %v803
        %v2098 = vunpack.c.l.b16 %v804
        %v2099 = vunpack.c.h.b16 %v804
        %v2100 = vunpack.c.l.b16 %v805
        %v2101 = vunpack.c.h.b16 %v805
        %v2102 = vunpack.c.l.b16 %v806
        %v2103 = vunpack.c.h.b16 %v806
        %v2104 = vunpack.c.l.b16 %v807
        %v2105 = vunpack.c.h.b16 %v807
        %v2106 = vunpack.c.l.b16 %v808
        %v2107 = vunpack.c.h.b16 %v808
        %v2108 = vunpack.c.l.b16 %v809
        %v2109 = vunpack.c.h.b16 %v809
        %v2110 = vunpack.c.l.b16 %v810
        %v2111 = vunpack.c.h.b16 %v810
        %v2112 = vunpack.c.l.b16 %v811
        %v2113 = vunpack.c.h.b16 %v811
        %v2114 = vunpack.c.l.b16 %v812
        %v2115 = vunpack.c.h.b16 %v812
        %v2116 = vunpack.c.l.b16 %v813
        %v2117 = vunpack.c.h.b16 %v813
        %v2118 = vunpack.c.l.b16 %v814
        %v2119 = vunpack.c.h.b16 %v814
        %v2120 = vunpack.c.l.b16 %v815
        %v2121 = vunpack.c.h.b16 %v815
        %v2122 = vunpack.c.l.b16 %v816
        %v2123 = vunpack.c.h.b16 %v816
        %v2124 = vunpack.c.l.b16 %v817
        %v2125 = vunpack.c.h.b16 %v817
        %v2126 = vunpack.c.l.b16 %v818
        %v2127 = vunpack.c.h.b16 %v818
        %v2128 = vunpack.c.l.b16 %v819
        %v2129 = vunpack.c.h.b16 %v819
        %v2130 = vunpack.c.l.b16 %v820
        %v2131 = vunpack.c.h.b16 %v820
        %v2132 = vunpack.c.l.b16 %v821
        %v2133 = vunpack.c.h.b16 %v821
        %v2134 = vunpack.c.l.b16 %v822
        %v2135 = vunpack.c.h.b16 %v822
        %v2136 = vunpack.c.l.b16 %v823
        %v2137 = vunpack.c.h.b16 %v823
        %v2138 = vunpack.c.l.b16 %v824
        %v2139 = vunpack.c.h.b16 %v824
        %v2140 = vunpack.c.l.b16 %v825
        %v2141 = vunpack.c.h.b16 %v825
        %v2142 = vunpack.c.l.b16 %v826
        %v2143 = vunpack.c.h.b16 %v826
        %v2144 = vunpack.c.l.b16 %v827
        %v2145 = vunpack.c.h.b16 %v827
        %v2146 = vunpack.c.l.b16 %v828
        %v2147 = vunpack.c.h.b16 %v828
        %v2148 = vunpack.c.l.b16 %v829
        %v2149 = vunpack.c.h.b16 %v829
        %v2150 = vunpack.c.l.b16 %v830
        %v2151 = vunpack.c.h.b16 %v830
        %v2152 = vunpack.c.l.b16 %v831
        %v2153 = vunpack.c.h.b16 %v831
        %v2154 = vunpack.c.l.b16 %v832
        %v2155 = vunpack.c.h.b16 %v832
        %v2156 = vunpack.c.l.b16 %v833
        %v2157 = vunpack.c.h.b16 %v833
        %v2158 = vunpack.c.l.b16 %v834
        %v2159 = vunpack.c.h.b16 %v834
        %v2160 = vunpack.c.l.b16 %v835
        %v2161 = vunpack.c.h.b16 %v835
        %v2162 = vunpack.c.l.b16 %v836
        %v2163 = vunpack.c.h.b16 %v836
        %v2164 = vunpack.c.l.b16 %v837
        %v2165 = vunpack.c.h.b16 %v837
        %v2166 = vunpack.c.l.b16 %v838
        %v2167 = vunpack.c.h.b16 %v838
        %v2168 = vunpack.c.l.b16 %v839
        %v2169 = vunpack.c.h.b16 %v839
        %v2170 = vunpack.c.l.b16 %v840
        %v2171 = vunpack.c.h.b16 %v840
        %v2172 = vunpack.c.l.b16 %v841
        %v2173 = vunpack.c.h.b16 %v841
        %v2174 = vunpack.c.l.b16 %v842
        %v2175 = vunpack.c.h.b16 %v842
        %v2176 = vunpack.c.l.b16 %v843
        %v2177 = vunpack.c.h.b16 %v843
        %v2178 = vunpack.c.l.b16 %v844
        %v2179 = vunpack.c.h.b16 %v844
        %v2180 = vunpack.c.l.b16 %v845
        %v2181 = vunpack.c.h.b16 %v845
        %v2182 = vunpack.c.l.b16 %v846
        %v2183 = vunpack.c.h.b16 %v846
        %v2184 = vunpack.c.l.b16 %v847
        %v2185 = vunpack.c.h.b16 %v847
        %v2186 = vunpack.c.l.b16 %v848
        %v2187 = vunpack.c.h.b16 %v848
        %v2188 = vunpack.c.l.b16 %v849
        %v2189 = vunpack.c.h.b16 %v849
        %v2190 = vunpack.c.l.b16 %v850
        %v2191 = vunpack.c.h.b16 %v850
        %v2192 = vunpack.c.l.b16 %v851
        %v2193 = vunpack.c.h.b16 %v851
        %v2194 = vunpack.c.l.b16 %v852
        %v2195 = vunpack.c.h.b16 %v852
        %v2196 = vunpack.c.l.b16 %v853
        %v2197 = vunpack.c.h.b16 %v853
        %v2198 = vunpack.c.l.b16 %v854
        %v2199 = vunpack.c.h.b16 %v854
        %v2200 = vunpack.c.l.b16 %v855
        %v2201 = vunpack.c.h.b16 %v855
        %v2202 = vunpack.c.l.b16 %v856
        %v2203 = vunpack.c.h.b16 %v856
        %v2204 = vunpack.c.l.b16 %v857
        %v2205 = vunpack.c.h.b16 %v857
        %v2206 = vunpack.c.l.b16 %v858
        %v2207 = vunpack.c.h.b16 %v858
        %v2208 = vunpack.c.l.b16 %v859
        %v2209 = vunpack.c.h.b16 %v859
        %v2210 = vunpack.c.l.b16 %v860
        %v2211 = vunpack.c.h.b16 %v860
        %v2212 = vunpack.c.l.b16 %v861
        %v2213 = vunpack.c.h.b16 %v861
        %v2214 = vunpack.c.l.b16 %v862
        %v2215 = vunpack.c.h.b16 %v862
        %v2216 = vunpack.c.l.b16 %v863
        %v2217 = vunpack.c.h.b16 %v863
        %v2218 = vunpack.c.l.b16 %v864
        %v2219 = vunpack.c.h.b16 %v864
        %v2220 = vunpack.c.l.b16 %v865
        %v2221 = vunpack.c.h.b16 %v865
        %v2222 = vunpack.c.l.b16 %v866
        %v2223 = vunpack.c.h.b16 %v866
        %v2224 = vunpack.c.l.b16 %v867
        %v2225 = vunpack.c.h.b16 %v867
        %v2226 = vunpack.c.l.b16 %v868
        %v2227 = vunpack.c.h.b16 %v868
        %v2228 = vunpack.c.l.b16 %v869
        %v2229 = vunpack.c.h.b16 %v869
        %v2230 = vpack.c.b16 %v1978, %v1974
        %v2231 = vpack.c.b16 %v1979, %v1975
        %v2232 = vpack.c.b16 %v1980, %v1976
        %v2233 = vpack.c.b16 %v1981, %v1977
        %v2234 = vpack.c.b16 %v1986, %v1982
        %v2235 = vpack.c.b16 %v1987, %v1983
        %v2236 = vpack.c.b16 %v1988, %v1984
        %v2237 = vpack.c.b16 %v1989, %v1985
        %v2238 = vpack.c.b16 %v1994, %v1990
        %v2239 = vpack.c.b16 %v1995, %v1991
        %v2240 = vpack.c.b16 %v1996, %v1992
        %v2241 = vpack.c.b16 %v1997, %v1993
        %v2242 = vpack.c.b16 %v2002, %v1998
        %v2243 = vpack.c.b16 %v2003, %v1999
        %v2244 = vpack.c.b16 %v2004, %v2000
        %v2245 = vpack.c.b16 %v2005, %v2001
        %v2246 = vpack.c.b16 %v2010, %v2006
        %v2247 = vpack.c.b16 %v2011, %v2007
        %v2248 = vpack.c.b16 %v2012, %v2008
        %v2249 = vpack.c.b16 %v2013, %v2009
        %v2250 = vpack.c.b16 %v2018, %v2014
        %v2251 = vpack.c.b16 %v2019, %v2015
        %v2252 = vpack.c.b16 %v2020, %v2016
        %v2253 = vpack.c.b16 %v2021, %v2017
        %v2254 = vpack.c.b16 %v2026, %v2022
        %v2255 = vpack.c.b16 %v2027, %v2023
        %v2256 = vpack.c.b16 %v2028, %v2024
        %v2257 = vpack.c.b16 %v2029, %v2025
        %v2258 = vpack.c.b16 %v2034, %v2030
        %v2259 = vpack.c.b16 %v2035, %v2031
        %v2260 = vpack.c.b16 %v2036, %v2032
        %v2261 = vpack.c.b16 %v2037, %v2033
        %v2262 = vpack.c.b16 %v2042, %v2038
        %v2263 = vpack.c.b16 %v2043, %v2039
        %v2264 = vpack.c.b16 %v2044, %v2040
        %v2265 = vpack.c.b16 %v2045, %v2041
        %v2266 = vpack.c.b16 %v2050, %v2046
        %v2267 = vpack.c.b16 %v2051, %v2047
        %v2268 = vpack.c.b16 %v2052, %v2048
        %v2269 = vpack.c.b16 %v2053, %v2049
        %v2270 = vpack.c.b16 %v2058, %v2054
        %v2271 = vpack.c.b16 %v2059, %v2055
        %v2272 = vpack.c.b16 %v2060, %v2056
        %v2273 = vpack.c.b16 %v2061, %v2057
        %v2274 = vpack.c.b16 %v2066, %v2062
        %v2275 = vpack.c.b16 %v2067, %v2063
        %v2276 = vpack.c.b16 %v2068, %v2064
        %v2277 = vpack.c.b16 %v2069, %v2065
        %v2278 = vpack.c.b16 %v2074, %v2070
        %v2279 = vpack.c.b16 %v2075, %v2071
        %v2280 = vpack.c.b16 %v2076, %v2072
        %v2281 = vpack.c.b16 %v2077, %v2073
        %v2282 = vpack.c.b16 %v2082, %v2078
        %v2283 = vpack.c.b16 %v2083, %v2079
        %v2284 = vpack.c.b16 %v2084, %v2080
        %v2285 = vpack.c.b16 %v2085, %v2081
        %v2286 = vpack.c.b16 %v2090, %v2086
        %v2287 = vpack.c.b16 %v2091, %v2087
        %v2288 = vpack.c.b16 %v2092, %v2088
        %v2289 = vpack.c.b16 %v2093, %v2089
        %v2290 = vpack.c.b16 %v2098, %v2094
        %v2291 = vpack.c.b16 %v2099, %v2095
        %v2292 = vpack.c.b16 %v2100, %v2096
        %v2293 = vpack.c.b16 %v2101, %v2097
        %v2294 = vpack.c.b16 %v2106, %v2102
        %v2295 = vpack.c.b16 %v2107, %v2103
        %v2296 = vpack.c.b16 %v2108, %v2104
        %v2297 = vpack.c.b16 %v2109, %v2105
        %v2298 = vpack.c.b16 %v2114, %v2110
        %v2299 = vpack.c.b16 %v2115, %v2111
        %v2300 = vpack.c.b16 %v2116, %v2112
        %v2301 = vpack.c.b16 %v2117, %v2113
        %v2302 = vpack.c.b16 %v2122, %v2118
        %v2303 = vpack.c.b16 %v2123, %v2119
        %v2304 = vpack.c.b16 %v2124, %v2120
        %v2305 = vpack.c.b16 %v2125, %v2121
        %v2306 = vpack.c.b16 %v2130, %v2126
        %v2307 = vpack.c.b16 %v2131, %v2127
        %v2308 = vpack.c.b16 %v2132, %v2128
        %v2309 = vpack.c.b16 %v2133, %v2129
        %v2310 = vpack.c.b16 %v2138, %v2134
        %v2311 = vpack.c.b16 %v2139, %v2135
        %v2312 = vpack.c.b16 %v2140, %v2136
        %v2313 = vpack.c.b16 %v2141, %v2137
        %v2314 = vpack.c.b16 %v2146, %v2142
        %v2315 = vpack.c.b16 %v2147, %v2143
        %v2316 = vpack.c.b16 %v2148, %v2144
        %v2317 = vpack.c.b16 %v2149, %v2145
        %v2318 = vpack.c.b16 %v2154, %v2150
        %v2319 = vpack.c.b16 %v2155, %v2151
        %v2320 = vpack.c.b16 %v2156, %v2152
        %v2321 = vpack.c.b16 %v2157, %v2153
        %v2322 = vpack.c.b16 %v2162, %v2158
        %v2323 = vpack.c.b16 %v2163, %v2159
        %v2324 = vpack.c.b16 %v2164, %v2160
        %v2325 = vpack.c.b16 %v2165, %v2161
        %v2326 = vpack.c.b16 %v2170, %v2166
        %v2327 = vpack.c.b16 %v2171, %v2167
        %v2328 = vpack.c.b16 %v2172, %v2168
        %v2329 = vpack.c.b16 %v2173, %v2169
        %v2330 = vpack.c.b16 %v2178, %v2174
        %v2331 = vpack.c.b16 %v2179, %v2175
        %v2332 = vpack.c.b16 %v2180, %v2176
        %v2333 = vpack.c.b16 %v2181, %v2177
        %v2334 = vpack.c.b16 %v2186, %v2182
        %v2335 = vpack.c.b16 %v2187, %v2183
        %v2336 = vpack.c.b16 %v2188, %v2184
        %v2337 = vpack.c.b16 %v2189, %v2185
        %v2338 = vpack.c.b16 %v2194, %v2190
        %v2339 = vpack.c.b16 %v2195, %v2191
        %v2340 = vpack.c.b16 %v2196, %v2192
        %v2341 = vpack.c.b16 %v2197, %v2193
        %v2342 = vpack.c.b16 %v2202, %v2198
        %v2343 = vpack.c.b16 %v2203, %v2199
        %v2344 = vpack.c.b16 %v2204, %v2200
        %v2345 = vpack.c.b16 %v2205, %v2201
        %v2346 = vpack.c.b16 %v2210, %v2206
        %v2347 = vpack.c.b16 %v2211, %v2207
        %v2348 = vpack.c.b16 %v2212, %v2208
        %v2349 = vpack.c.b16 %v2213, %v2209
        %v2350 = vpack.c.b16 %v2218, %v2214
        %v2351 = vpack.c.b16 %v2219, %v2215
        %v2352 = vpack.c.b16 %v2220, %v2216
        %v2353 = vpack.c.b16 %v2221, %v2217
        %v2354 = vpack.c.b16 %v2226, %v2222
        %v2355 = vpack.c.b16 %v2227, %v2223
        %v2356 = vpack.c.b16 %v2228, %v2224
        %v2357 = vpack.c.b16 %v2229, %v2225
        %2486 = vmatpush.bf16.msra.mxu0 %v2258
        %2487 = vmatpush.bf16.msra.mxu0 %v2254
        %2488 = vmatpush.bf16.msra.mxu0 %v2250
        %2489 = vmatpush.bf16.msra.mxu0 %v2246
        %2490 = vmatpush.bf16.msra.mxu0 %v2242
        %2491 = vmatpush.bf16.msra.mxu0 %v2238
        %2492 = vmatpush.bf16.msra.mxu0 %v2234
        %2493 = vmatpush.bf16.msra.mxu0 %v2230
        %2494 = vmatmul.bf16.gmra.mxu0 %v738
        %v2495 = vpop.f32.mrf.mxu0
        %v2496 = vadd.f32 %v1687, %v2495
        %v2497 = vpop.f32.mrf.mxu0
        %2498 = vdwg.mxu0
        %2499 = vmatpush.bf16.msra.mxu0 %v2290
        %2500 = vmatpush.bf16.msra.mxu0 %v2286
        %2501 = vmatpush.bf16.msra.mxu0 %v2282
        %2502 = vmatpush.bf16.msra.mxu0 %v2278
        %2503 = vmatpush.bf16.msra.mxu0 %v2274
        %2504 = vmatpush.bf16.msra.mxu0 %v2270
        %2505 = vmatpush.bf16.msra.mxu0 %v2266
        %2506 = vmatpush.bf16.msra.mxu0 %v2262
        %2507 = vmatmul.bf16.gmra.mxu0 %v739
        %v2508 = vpop.f32.mrf.mxu0
        %v2509 = vadd.f32 %v2496, %v2508
        %v2510 = vpop.f32.mrf.mxu0
        %2511 = vdwg.mxu0
        %2512 = vmatpush.bf16.msra.mxu0 %v2322
        %2513 = vmatpush.bf16.msra.mxu0 %v2318
        %2514 = vmatpush.bf16.msra.mxu0 %v2314
        %2515 = vmatpush.bf16.msra.mxu0 %v2310
        %2516 = vmatpush.bf16.msra.mxu0 %v2306
        %2517 = vmatpush.bf16.msra.mxu0 %v2302
        %2518 = vmatpush.bf16.msra.mxu0 %v2298
        %2519 = vmatpush.bf16.msra.mxu0 %v2294
        %2520 = vmatmul.bf16.gmra.mxu0 %v740
        %v2521 = vpop.f32.mrf.mxu0
        %v2522 = vadd.f32 %v2509, %v2521
        %v2523 = vpop.f32.mrf.mxu0
        %2524 = vdwg.mxu0
        %2525 = vmatpush.bf16.msra.mxu0 %v2354
        %2526 = vmatpush.bf16.msra.mxu0 %v2350
        %2527 = vmatpush.bf16.msra.mxu0 %v2346
        %2528 = vmatpush.bf16.msra.mxu0 %v2342
        %2529 = vmatpush.bf16.msra.mxu0 %v2338
        %2530 = vmatpush.bf16.msra.mxu0 %v2334
        %2531 = vmatpush.bf16.msra.mxu0 %v2330
        %2532 = vmatpush.bf16.msra.mxu0 %v2326
        %2533 = vmatmul.bf16.gmra.mxu0 %v741
        %v2534 = vpop.f32.mrf.mxu0
        %v2535 = vadd.f32 %v2522, %v2534
        %v2536 = vpop.f32.mrf.mxu0
        %2537 = vdwg.mxu0
        %2538 = vmatpush.bf16.msra.mxu0 %v2259
        %2539 = vmatpush.bf16.msra.mxu0 %v2255
        %2540 = vmatpush.bf16.msra.mxu0 %v2251
        %2541 = vmatpush.bf16.msra.mxu0 %v2247
        %2542 = vmatpush.bf16.msra.mxu0 %v2243
        %2543 = vmatpush.bf16.msra.mxu0 %v2239
        %2544 = vmatpush.bf16.msra.mxu0 %v2235
        %2545 = vmatpush.bf16.msra.mxu0 %v2231
        %2546 = vmatmul.bf16.gmra.mxu0 %v738
        %v2547 = vpop.f32.mrf.mxu0
        %v2548 = vadd.f32 %v1739, %v2547
        %v2549 = vpop.f32.mrf.mxu0
        %2550 = vdwg.mxu0
        %2551 = vmatpush.bf16.msra.mxu0 %v2291
        %2552 = vmatpush.bf16.msra.mxu0 %v2287
        %2553 = vmatpush.bf16.msra.mxu0 %v2283
        %2554 = vmatpush.bf16.msra.mxu0 %v2279
        %2555 = vmatpush.bf16.msra.mxu0 %v2275
        %2556 = vmatpush.bf16.msra.mxu0 %v2271
        %2557 = vmatpush.bf16.msra.mxu0 %v2267
        %2558 = vmatpush.bf16.msra.mxu0 %v2263
        %2559 = vmatmul.bf16.gmra.mxu0 %v739
        %v2560 = vpop.f32.mrf.mxu0
        %v2561 = vadd.f32 %v2548, %v2560
        %v2562 = vpop.f32.mrf.mxu0
        %2563 = vdwg.mxu0
        %2564 = vmatpush.bf16.msra.mxu0 %v2323
        %2565 = vmatpush.bf16.msra.mxu0 %v2319
        %2566 = vmatpush.bf16.msra.mxu0 %v2315
        %2567 = vmatpush.bf16.msra.mxu0 %v2311
        %2568 = vmatpush.bf16.msra.mxu0 %v2307
        %2569 = vmatpush.bf16.msra.mxu0 %v2303
        %2570 = vmatpush.bf16.msra.mxu0 %v2299
        %2571 = vmatpush.bf16.msra.mxu0 %v2295
        %2572 = vmatmul.bf16.gmra.mxu0 %v740
        %v2573 = vpop.f32.mrf.mxu0
        %v2574 = vadd.f32 %v2561, %v2573
        %v2575 = vpop.f32.mrf.mxu0
        %2576 = vdwg.mxu0
        %2577 = vmatpush.bf16.msra.mxu0 %v2355
        %2578 = vmatpush.bf16.msra.mxu0 %v2351
        %2579 = vmatpush.bf16.msra.mxu0 %v2347
        %2580 = vmatpush.bf16.msra.mxu0 %v2343
        %2581 = vmatpush.bf16.msra.mxu0 %v2339
        %2582 = vmatpush.bf16.msra.mxu0 %v2335
        %2583 = vmatpush.bf16.msra.mxu0 %v2331
        %2584 = vmatpush.bf16.msra.mxu0 %v2327
        %2585 = vmatmul.bf16.gmra.mxu0 %v741
        %v2586 = vpop.f32.mrf.mxu0
        %v2587 = vadd.f32 %v2574, %v2586
        %v2588 = vpop.f32.mrf.mxu0
        %2589 = vdwg.mxu0
        %2590 = vmatpush.bf16.msra.mxu0 %v2260
        %2591 = vmatpush.bf16.msra.mxu0 %v2256
        %2592 = vmatpush.bf16.msra.mxu0 %v2252
        %2593 = vmatpush.bf16.msra.mxu0 %v2248
        %2594 = vmatpush.bf16.msra.mxu0 %v2244
        %2595 = vmatpush.bf16.msra.mxu0 %v2240
        %2596 = vmatpush.bf16.msra.mxu0 %v2236
        %2597 = vmatpush.bf16.msra.mxu0 %v2232
        %2598 = vmatmul.bf16.gmra.mxu0 %v738
        %v2599 = vpop.f32.mrf.mxu0
        %v2600 = vadd.f32 %v1791, %v2599
        %v2601 = vpop.f32.mrf.mxu0
        %2602 = vdwg.mxu0
        %2603 = vmatpush.bf16.msra.mxu0 %v2292
        %2604 = vmatpush.bf16.msra.mxu0 %v2288
        %2605 = vmatpush.bf16.msra.mxu0 %v2284
        %2606 = vmatpush.bf16.msra.mxu0 %v2280
        %2607 = vmatpush.bf16.msra.mxu0 %v2276
        %2608 = vmatpush.bf16.msra.mxu0 %v2272
        %2609 = vmatpush.bf16.msra.mxu0 %v2268
        %2610 = vmatpush.bf16.msra.mxu0 %v2264
        %2611 = vmatmul.bf16.gmra.mxu0 %v739
        %v2612 = vpop.f32.mrf.mxu0
        %v2613 = vadd.f32 %v2600, %v2612
        %v2614 = vpop.f32.mrf.mxu0
        %2615 = vdwg.mxu0
        %2616 = vmatpush.bf16.msra.mxu0 %v2324
        %2617 = vmatpush.bf16.msra.mxu0 %v2320
        %2618 = vmatpush.bf16.msra.mxu0 %v2316
        %2619 = vmatpush.bf16.msra.mxu0 %v2312
        %2620 = vmatpush.bf16.msra.mxu0 %v2308
        %2621 = vmatpush.bf16.msra.mxu0 %v2304
        %2622 = vmatpush.bf16.msra.mxu0 %v2300
        %2623 = vmatpush.bf16.msra.mxu0 %v2296
        %2624 = vmatmul.bf16.gmra.mxu0 %v740
        %v2625 = vpop.f32.mrf.mxu0
        %v2626 = vadd.f32 %v2613, %v2625
        %v2627 = vpop.f32.mrf.mxu0
        %2628 = vdwg.mxu0
        %2629 = vmatpush.bf16.msra.mxu0 %v2356
        %2630 = vmatpush.bf16.msra.mxu0 %v2352
        %2631 = vmatpush.bf16.msra.mxu0 %v2348
        %2632 = vmatpush.bf16.msra.mxu0 %v2344
        %2633 = vmatpush.bf16.msra.mxu0 %v2340
        %2634 = vmatpush.bf16.msra.mxu0 %v2336
        %2635 = vmatpush.bf16.msra.mxu0 %v2332
        %2636 = vmatpush.bf16.msra.mxu0 %v2328
        %2637 = vmatmul.bf16.gmra.mxu0 %v741
        %v2638 = vpop.f32.mrf.mxu0
        %v2639 = vadd.f32 %v2626, %v2638
        %v2640 = vpop.f32.mrf.mxu0
        %2641 = vdwg.mxu0
        %2642 = vmatpush.bf16.msra.mxu0 %v2261
        %2643 = vmatpush.bf16.msra.mxu0 %v2257
        %2644 = vmatpush.bf16.msra.mxu0 %v2253
        %2645 = vmatpush.bf16.msra.mxu0 %v2249
        %2646 = vmatpush.bf16.msra.mxu0 %v2245
        %2647 = vmatpush.bf16.msra.mxu0 %v2241
        %2648 = vmatpush.bf16.msra.mxu0 %v2237
        %2649 = vmatpush.bf16.msra.mxu0 %v2233
        %2650 = vmatmul.bf16.gmra.mxu0 %v738
        %v2651 = vpop.f32.mrf.mxu0
        %v2652 = vadd.f32 %v1843, %v2651
        %v2653 = vpop.f32.mrf.mxu0
        %2654 = vdwg.mxu0
        %2655 = vmatpush.bf16.msra.mxu0 %v2293
        %2656 = vmatpush.bf16.msra.mxu0 %v2289
        %2657 = vmatpush.bf16.msra.mxu0 %v2285
        %2658 = vmatpush.bf16.msra.mxu0 %v2281
        %2659 = vmatpush.bf16.msra.mxu0 %v2277
        %2660 = vmatpush.bf16.msra.mxu0 %v2273
        %2661 = vmatpush.bf16.msra.mxu0 %v2269
        %2662 = vmatpush.bf16.msra.mxu0 %v2265
        %2663 = vmatmul.bf16.gmra.mxu0 %v739
        %v2664 = vpop.f32.mrf.mxu0
        %v2665 = vadd.f32 %v2652, %v2664
        %v2666 = vpop.f32.mrf.mxu0
        %2667 = vdwg.mxu0
        %2668 = vmatpush.bf16.msra.mxu0 %v2325
        %2669 = vmatpush.bf16.msra.mxu0 %v2321
        %2670 = vmatpush.bf16.msra.mxu0 %v2317
        %2671 = vmatpush.bf16.msra.mxu0 %v2313
        %2672 = vmatpush.bf16.msra.mxu0 %v2309
        %2673 = vmatpush.bf16.msra.mxu0 %v2305
        %2674 = vmatpush.bf16.msra.mxu0 %v2301
        %2675 = vmatpush.bf16.msra.mxu0 %v2297
        %2676 = vmatmul.bf16.gmra.mxu0 %v740
        %v2677 = vpop.f32.mrf.mxu0
        %v2678 = vadd.f32 %v2665, %v2677
        %v2679 = vpop.f32.mrf.mxu0
        %2680 = vdwg.mxu0
        %2681 = vmatpush.bf16.msra.mxu0 %v2357
        %2682 = vmatpush.bf16.msra.mxu0 %v2353
        %2683 = vmatpush.bf16.msra.mxu0 %v2349
        %2684 = vmatpush.bf16.msra.mxu0 %v2345
        %2685 = vmatpush.bf16.msra.mxu0 %v2341
        %2686 = vmatpush.bf16.msra.mxu0 %v2337
        %2687 = vmatpush.bf16.msra.mxu0 %v2333
        %2688 = vmatpush.bf16.msra.mxu0 %v2329
        %2689 = vmatmul.bf16.gmra.mxu0 %v741
        %v2690 = vpop.f32.mrf.mxu0
        %v2691 = vadd.f32 %v2678, %v2690
        %v2692 = vpop.f32.mrf.mxu0
        %2693 = vdwg.mxu0
        %v2694 = vld [vmem:[#allocation12] sm:$0xf]
        %v2696 = vperm.slane %v2694, 0
        %v2697 = vperm.slane %v2694, 1
        %v2698 = vperm.slane %v2694, 2
        %v2699 = vperm.slane %v2694, 3
        %v2704 = vadd.f32 %v2535, %v2696
        %v2705 = vadd.f32 %v2587, %v2697
        %v2706 = vadd.f32 %v2639, %v2698
        %v2707 = vadd.f32 %v2691, %v2699
        %v2708 = vmax.f32 %v2704, 0.0
        %v2709 = vmax.f32 %v2705, 0.0
        %v2710 = vmax.f32 %v2706, 0.0
        %v2711 = vmax.f32 %v2707, 0.0
        %v2712 = vpack.c.bf16 %v2708, %v2708
        %v2713 = vpack.c.bf16 %v2709, %v2709
        %v2714 = vpack.c.bf16 %v2710, %v2710
        %v2715 = vpack.c.bf16 %v2711, %v2711
        %s2716 = scalar_lea.vmem [#allocation9], 1024
        %v2717 = vld [vmem:[%s2716] sm:$0xff]
        %v2718 = vld [vmem:[%s2716 + $0x8] sm:$0xff]
        %v2719 = vld [vmem:[%s2716 + $0x10] sm:$0xff]
        %v2720 = vld [vmem:[%s2716 + $0x18] sm:$0xff]
        %v2721 = vld [vmem:[%s2716 + $0x20] sm:$0xff]
        %v2722 = vld [vmem:[%s2716 + $0x28] sm:$0xff]
        %v2723 = vld [vmem:[%s2716 + $0x30] sm:$0xff]
        %v2724 = vld [vmem:[%s2716 + $0x38] sm:$0xff]
        %v2725 = vld [vmem:[%s2716 + $0x40] sm:$0xff]
        %v2726 = vld [vmem:[%s2716 + $0x48] sm:$0xff]
        %v2727 = vld [vmem:[%s2716 + $0x50] sm:$0xff]
        %v2728 = vld [vmem:[%s2716 + $0x58] sm:$0xff]
        %v2729 = vld [vmem:[%s2716 + $0x60] sm:$0xff]
        %v2730 = vld [vmem:[%s2716 + $0x68] sm:$0xff]
        %v2731 = vld [vmem:[%s2716 + $0x70] sm:$0xff]
        %v2732 = vld [vmem:[%s2716 + $0x78] sm:$0xff]
        %v2733 = vld [vmem:[%s2716 + $0x80] sm:$0xff]
        %v2734 = vld [vmem:[%s2716 + $0x88] sm:$0xff]
        %v2735 = vld [vmem:[%s2716 + $0x90] sm:$0xff]
        %v2736 = vld [vmem:[%s2716 + $0x98] sm:$0xff]
        %v2737 = vld [vmem:[%s2716 + $0xa0] sm:$0xff]
        %v2738 = vld [vmem:[%s2716 + $0xa8] sm:$0xff]
        %v2739 = vld [vmem:[%s2716 + $0xb0] sm:$0xff]
        %v2740 = vld [vmem:[%s2716 + $0xb8] sm:$0xff]
        %v2741 = vld [vmem:[%s2716 + $0xc0] sm:$0xff]
        %v2742 = vld [vmem:[%s2716 + $0xc8] sm:$0xff]
        %v2743 = vld [vmem:[%s2716 + $0xd0] sm:$0xff]
        %v2744 = vld [vmem:[%s2716 + $0xd8] sm:$0xff]
        %v2745 = vld [vmem:[%s2716 + $0xe0] sm:$0xff]
        %v2746 = vld [vmem:[%s2716 + $0xe8] sm:$0xff]
        %v2747 = vld [vmem:[%s2716 + $0xf0] sm:$0xff]
        %v2748 = vld [vmem:[%s2716 + $0xf8] sm:$0xff]
        %v2749 = vld [vmem:[%s2716 + $0x100] sm:$0xff]
        %v2750 = vld [vmem:[%s2716 + $0x108] sm:$0xff]
        %v2751 = vld [vmem:[%s2716 + $0x110] sm:$0xff]
        %v2752 = vld [vmem:[%s2716 + $0x118] sm:$0xff]
        %v2753 = vld [vmem:[%s2716 + $0x120] sm:$0xff]
        %v2754 = vld [vmem:[%s2716 + $0x128] sm:$0xff]
        %v2755 = vld [vmem:[%s2716 + $0x130] sm:$0xff]
        %v2756 = vld [vmem:[%s2716 + $0x138] sm:$0xff]
        %v2757 = vld [vmem:[%s2716 + $0x140] sm:$0xff]
        %v2758 = vld [vmem:[%s2716 + $0x148] sm:$0xff]
        %v2759 = vld [vmem:[%s2716 + $0x150] sm:$0xff]
        %v2760 = vld [vmem:[%s2716 + $0x158] sm:$0xff]
        %v2761 = vld [vmem:[%s2716 + $0x160] sm:$0xff]
        %v2762 = vld [vmem:[%s2716 + $0x168] sm:$0xff]
        %v2763 = vld [vmem:[%s2716 + $0x170] sm:$0xff]
        %v2764 = vld [vmem:[%s2716 + $0x178] sm:$0xff]
        %v2765 = vld [vmem:[%s2716 + $0x180] sm:$0xff]
        %v2766 = vld [vmem:[%s2716 + $0x188] sm:$0xff]
        %v2767 = vld [vmem:[%s2716 + $0x190] sm:$0xff]
        %v2768 = vld [vmem:[%s2716 + $0x198] sm:$0xff]
        %v2769 = vld [vmem:[%s2716 + $0x1a0] sm:$0xff]
        %v2770 = vld [vmem:[%s2716 + $0x1a8] sm:$0xff]
        %v2771 = vld [vmem:[%s2716 + $0x1b0] sm:$0xff]
        %v2772 = vld [vmem:[%s2716 + $0x1b8] sm:$0xff]
        %v2773 = vld [vmem:[%s2716 + $0x1c0] sm:$0xff]
        %v2774 = vld [vmem:[%s2716 + $0x1c8] sm:$0xff]
        %v2775 = vld [vmem:[%s2716 + $0x1d0] sm:$0xff]
        %v2776 = vld [vmem:[%s2716 + $0x1d8] sm:$0xff]
        %v2777 = vld [vmem:[%s2716 + $0x1e0] sm:$0xff]
        %v2778 = vld [vmem:[%s2716 + $0x1e8] sm:$0xff]
        %v2779 = vld [vmem:[%s2716 + $0x1f0] sm:$0xff]
        %v2780 = vld [vmem:[%s2716 + $0x1f8] sm:$0xff]
        %v2781 = vld [vmem:[%s2716 + $0x200] sm:$0xff]
        %v2782 = vld [vmem:[%s2716 + $0x208] sm:$0xff]
        %v2783 = vld [vmem:[%s2716 + $0x210] sm:$0xff]
        %v2784 = vld [vmem:[%s2716 + $0x218] sm:$0xff]
        %v2785 = vld [vmem:[%s2716 + $0x220] sm:$0xff]
        %v2786 = vld [vmem:[%s2716 + $0x228] sm:$0xff]
        %v2787 = vld [vmem:[%s2716 + $0x230] sm:$0xff]
        %v2788 = vld [vmem:[%s2716 + $0x238] sm:$0xff]
        %v2789 = vld [vmem:[%s2716 + $0x240] sm:$0xff]
        %v2790 = vld [vmem:[%s2716 + $0x248] sm:$0xff]
        %v2791 = vld [vmem:[%s2716 + $0x250] sm:$0xff]
        %v2792 = vld [vmem:[%s2716 + $0x258] sm:$0xff]
        %v2793 = vld [vmem:[%s2716 + $0x260] sm:$0xff]
        %v2794 = vld [vmem:[%s2716 + $0x268] sm:$0xff]
        %v2795 = vld [vmem:[%s2716 + $0x270] sm:$0xff]
        %v2796 = vld [vmem:[%s2716 + $0x278] sm:$0xff]
        %v2797 = vld [vmem:[%s2716 + $0x280] sm:$0xff]
        %v2798 = vld [vmem:[%s2716 + $0x288] sm:$0xff]
        %v2799 = vld [vmem:[%s2716 + $0x290] sm:$0xff]
        %v2800 = vld [vmem:[%s2716 + $0x298] sm:$0xff]
        %v2801 = vld [vmem:[%s2716 + $0x2a0] sm:$0xff]
        %v2802 = vld [vmem:[%s2716 + $0x2a8] sm:$0xff]
        %v2803 = vld [vmem:[%s2716 + $0x2b0] sm:$0xff]
        %v2804 = vld [vmem:[%s2716 + $0x2b8] sm:$0xff]
        %v2805 = vld [vmem:[%s2716 + $0x2c0] sm:$0xff]
        %v2806 = vld [vmem:[%s2716 + $0x2c8] sm:$0xff]
        %v2807 = vld [vmem:[%s2716 + $0x2d0] sm:$0xff]
        %v2808 = vld [vmem:[%s2716 + $0x2d8] sm:$0xff]
        %v2809 = vld [vmem:[%s2716 + $0x2e0] sm:$0xff]
        %v2810 = vld [vmem:[%s2716 + $0x2e8] sm:$0xff]
        %v2811 = vld [vmem:[%s2716 + $0x2f0] sm:$0xff]
        %v2812 = vld [vmem:[%s2716 + $0x2f8] sm:$0xff]
        %v2813 = vld [vmem:[%s2716 + $0x300] sm:$0xff]
        %v2814 = vld [vmem:[%s2716 + $0x308] sm:$0xff]
        %v2815 = vld [vmem:[%s2716 + $0x310] sm:$0xff]
        %v2816 = vld [vmem:[%s2716 + $0x318] sm:$0xff]
        %v2817 = vld [vmem:[%s2716 + $0x320] sm:$0xff]
        %v2818 = vld [vmem:[%s2716 + $0x328] sm:$0xff]
        %v2819 = vld [vmem:[%s2716 + $0x330] sm:$0xff]
        %v2820 = vld [vmem:[%s2716 + $0x338] sm:$0xff]
        %v2821 = vld [vmem:[%s2716 + $0x340] sm:$0xff]
        %v2822 = vld [vmem:[%s2716 + $0x348] sm:$0xff]
        %v2823 = vld [vmem:[%s2716 + $0x350] sm:$0xff]
        %v2824 = vld [vmem:[%s2716 + $0x358] sm:$0xff]
        %v2825 = vld [vmem:[%s2716 + $0x360] sm:$0xff]
        %v2826 = vld [vmem:[%s2716 + $0x368] sm:$0xff]
        %v2827 = vld [vmem:[%s2716 + $0x370] sm:$0xff]
        %v2828 = vld [vmem:[%s2716 + $0x378] sm:$0xff]
        %v2829 = vld [vmem:[%s2716 + $0x380] sm:$0xff]
        %v2830 = vld [vmem:[%s2716 + $0x388] sm:$0xff]
        %v2831 = vld [vmem:[%s2716 + $0x390] sm:$0xff]
        %v2832 = vld [vmem:[%s2716 + $0x398] sm:$0xff]
        %v2833 = vld [vmem:[%s2716 + $0x3a0] sm:$0xff]
        %v2834 = vld [vmem:[%s2716 + $0x3a8] sm:$0xff]
        %v2835 = vld [vmem:[%s2716 + $0x3b0] sm:$0xff]
        %v2836 = vld [vmem:[%s2716 + $0x3b8] sm:$0xff]
        %v2837 = vld [vmem:[%s2716 + $0x3c0] sm:$0xff]
        %v2838 = vld [vmem:[%s2716 + $0x3c8] sm:$0xff]
        %v2839 = vld [vmem:[%s2716 + $0x3d0] sm:$0xff]
        %v2840 = vld [vmem:[%s2716 + $0x3d8] sm:$0xff]
        %v2841 = vld [vmem:[%s2716 + $0x3e0] sm:$0xff]
        %v2842 = vld [vmem:[%s2716 + $0x3e8] sm:$0xff]
        %v2843 = vld [vmem:[%s2716 + $0x3f0] sm:$0xff]
        %v2844 = vld [vmem:[%s2716 + $0x3f8] sm:$0xff]
        %s2845 = scalar_lea.vmem [#allocation11], 1024
        %v2846 = vld [vmem:[%s2845] sm:$0xff]
        %v2847 = vld [vmem:[%s2845 + $0x8] sm:$0xff]
        %v2848 = vld [vmem:[%s2845 + $0x10] sm:$0xff]
        %v2849 = vld [vmem:[%s2845 + $0x18] sm:$0xff]
        %v2850 = vld [vmem:[%s2845 + $0x20] sm:$0xff]
        %v2851 = vld [vmem:[%s2845 + $0x28] sm:$0xff]
        %v2852 = vld [vmem:[%s2845 + $0x30] sm:$0xff]
        %v2853 = vld [vmem:[%s2845 + $0x38] sm:$0xff]
        %v2854 = vld [vmem:[%s2845 + $0x40] sm:$0xff]
        %v2855 = vld [vmem:[%s2845 + $0x48] sm:$0xff]
        %v2856 = vld [vmem:[%s2845 + $0x50] sm:$0xff]
        %v2857 = vld [vmem:[%s2845 + $0x58] sm:$0xff]
        %v2858 = vld [vmem:[%s2845 + $0x60] sm:$0xff]
        %v2859 = vld [vmem:[%s2845 + $0x68] sm:$0xff]
        %v2860 = vld [vmem:[%s2845 + $0x70] sm:$0xff]
        %v2861 = vld [vmem:[%s2845 + $0x78] sm:$0xff]
        %v2862 = vld [vmem:[%s2845 + $0x80] sm:$0xff]
        %v2863 = vld [vmem:[%s2845 + $0x88] sm:$0xff]
        %v2864 = vld [vmem:[%s2845 + $0x90] sm:$0xff]
        %v2865 = vld [vmem:[%s2845 + $0x98] sm:$0xff]
        %v2866 = vld [vmem:[%s2845 + $0xa0] sm:$0xff]
        %v2867 = vld [vmem:[%s2845 + $0xa8] sm:$0xff]
        %v2868 = vld [vmem:[%s2845 + $0xb0] sm:$0xff]
        %v2869 = vld [vmem:[%s2845 + $0xb8] sm:$0xff]
        %v2870 = vld [vmem:[%s2845 + $0xc0] sm:$0xff]
        %v2871 = vld [vmem:[%s2845 + $0xc8] sm:$0xff]
        %v2872 = vld [vmem:[%s2845 + $0xd0] sm:$0xff]
        %v2873 = vld [vmem:[%s2845 + $0xd8] sm:$0xff]
        %v2874 = vld [vmem:[%s2845 + $0xe0] sm:$0xff]
        %v2875 = vld [vmem:[%s2845 + $0xe8] sm:$0xff]
        %v2876 = vld [vmem:[%s2845 + $0xf0] sm:$0xff]
        %v2877 = vld [vmem:[%s2845 + $0xf8] sm:$0xff]
        %v2878 = vld [vmem:[%s2845 + $0x100] sm:$0xff]
        %v2879 = vld [vmem:[%s2845 + $0x108] sm:$0xff]
        %v2880 = vld [vmem:[%s2845 + $0x110] sm:$0xff]
        %v2881 = vld [vmem:[%s2845 + $0x118] sm:$0xff]
        %v2882 = vld [vmem:[%s2845 + $0x120] sm:$0xff]
        %v2883 = vld [vmem:[%s2845 + $0x128] sm:$0xff]
        %v2884 = vld [vmem:[%s2845 + $0x130] sm:$0xff]
        %v2885 = vld [vmem:[%s2845 + $0x138] sm:$0xff]
        %v2886 = vld [vmem:[%s2845 + $0x140] sm:$0xff]
        %v2887 = vld [vmem:[%s2845 + $0x148] sm:$0xff]
        %v2888 = vld [vmem:[%s2845 + $0x150] sm:$0xff]
        %v2889 = vld [vmem:[%s2845 + $0x158] sm:$0xff]
        %v2890 = vld [vmem:[%s2845 + $0x160] sm:$0xff]
        %v2891 = vld [vmem:[%s2845 + $0x168] sm:$0xff]
        %v2892 = vld [vmem:[%s2845 + $0x170] sm:$0xff]
        %v2893 = vld [vmem:[%s2845 + $0x178] sm:$0xff]
        %v2894 = vld [vmem:[%s2845 + $0x180] sm:$0xff]
        %v2895 = vld [vmem:[%s2845 + $0x188] sm:$0xff]
        %v2896 = vld [vmem:[%s2845 + $0x190] sm:$0xff]
        %v2897 = vld [vmem:[%s2845 + $0x198] sm:$0xff]
        %v2898 = vld [vmem:[%s2845 + $0x1a0] sm:$0xff]
        %v2899 = vld [vmem:[%s2845 + $0x1a8] sm:$0xff]
        %v2900 = vld [vmem:[%s2845 + $0x1b0] sm:$0xff]
        %v2901 = vld [vmem:[%s2845 + $0x1b8] sm:$0xff]
        %v2902 = vld [vmem:[%s2845 + $0x1c0] sm:$0xff]
        %v2903 = vld [vmem:[%s2845 + $0x1c8] sm:$0xff]
        %v2904 = vld [vmem:[%s2845 + $0x1d0] sm:$0xff]
        %v2905 = vld [vmem:[%s2845 + $0x1d8] sm:$0xff]
        %v2906 = vld [vmem:[%s2845 + $0x1e0] sm:$0xff]
        %v2907 = vld [vmem:[%s2845 + $0x1e8] sm:$0xff]
        %v2908 = vld [vmem:[%s2845 + $0x1f0] sm:$0xff]
        %v2909 = vld [vmem:[%s2845 + $0x1f8] sm:$0xff]
        %v2910 = vld [vmem:[%s2845 + $0x200] sm:$0xff]
        %v2911 = vld [vmem:[%s2845 + $0x208] sm:$0xff]
        %v2912 = vld [vmem:[%s2845 + $0x210] sm:$0xff]
        %v2913 = vld [vmem:[%s2845 + $0x218] sm:$0xff]
        %v2914 = vld [vmem:[%s2845 + $0x220] sm:$0xff]
        %v2915 = vld [vmem:[%s2845 + $0x228] sm:$0xff]
        %v2916 = vld [vmem:[%s2845 + $0x230] sm:$0xff]
        %v2917 = vld [vmem:[%s2845 + $0x238] sm:$0xff]
        %v2918 = vld [vmem:[%s2845 + $0x240] sm:$0xff]
        %v2919 = vld [vmem:[%s2845 + $0x248] sm:$0xff]
        %v2920 = vld [vmem:[%s2845 + $0x250] sm:$0xff]
        %v2921 = vld [vmem:[%s2845 + $0x258] sm:$0xff]
        %v2922 = vld [vmem:[%s2845 + $0x260] sm:$0xff]
        %v2923 = vld [vmem:[%s2845 + $0x268] sm:$0xff]
        %v2924 = vld [vmem:[%s2845 + $0x270] sm:$0xff]
        %v2925 = vld [vmem:[%s2845 + $0x278] sm:$0xff]
        %v2926 = vld [vmem:[%s2845 + $0x280] sm:$0xff]
        %v2927 = vld [vmem:[%s2845 + $0x288] sm:$0xff]
        %v2928 = vld [vmem:[%s2845 + $0x290] sm:$0xff]
        %v2929 = vld [vmem:[%s2845 + $0x298] sm:$0xff]
        %v2930 = vld [vmem:[%s2845 + $0x2a0] sm:$0xff]
        %v2931 = vld [vmem:[%s2845 + $0x2a8] sm:$0xff]
        %v2932 = vld [vmem:[%s2845 + $0x2b0] sm:$0xff]
        %v2933 = vld [vmem:[%s2845 + $0x2b8] sm:$0xff]
        %v2934 = vld [vmem:[%s2845 + $0x2c0] sm:$0xff]
        %v2935 = vld [vmem:[%s2845 + $0x2c8] sm:$0xff]
        %v2936 = vld [vmem:[%s2845 + $0x2d0] sm:$0xff]
        %v2937 = vld [vmem:[%s2845 + $0x2d8] sm:$0xff]
        %v2938 = vld [vmem:[%s2845 + $0x2e0] sm:$0xff]
        %v2939 = vld [vmem:[%s2845 + $0x2e8] sm:$0xff]
        %v2940 = vld [vmem:[%s2845 + $0x2f0] sm:$0xff]
        %v2941 = vld [vmem:[%s2845 + $0x2f8] sm:$0xff]
        %v2942 = vld [vmem:[%s2845 + $0x300] sm:$0xff]
        %v2943 = vld [vmem:[%s2845 + $0x308] sm:$0xff]
        %v2944 = vld [vmem:[%s2845 + $0x310] sm:$0xff]
        %v2945 = vld [vmem:[%s2845 + $0x318] sm:$0xff]
        %v2946 = vld [vmem:[%s2845 + $0x320] sm:$0xff]
        %v2947 = vld [vmem:[%s2845 + $0x328] sm:$0xff]
        %v2948 = vld [vmem:[%s2845 + $0x330] sm:$0xff]
        %v2949 = vld [vmem:[%s2845 + $0x338] sm:$0xff]
        %v2950 = vld [vmem:[%s2845 + $0x340] sm:$0xff]
        %v2951 = vld [vmem:[%s2845 + $0x348] sm:$0xff]
        %v2952 = vld [vmem:[%s2845 + $0x350] sm:$0xff]
        %v2953 = vld [vmem:[%s2845 + $0x358] sm:$0xff]
        %v2954 = vld [vmem:[%s2845 + $0x360] sm:$0xff]
        %v2955 = vld [vmem:[%s2845 + $0x368] sm:$0xff]
        %v2956 = vld [vmem:[%s2845 + $0x370] sm:$0xff]
        %v2957 = vld [vmem:[%s2845 + $0x378] sm:$0xff]
        %v2958 = vld [vmem:[%s2845 + $0x380] sm:$0xff]
        %v2959 = vld [vmem:[%s2845 + $0x388] sm:$0xff]
        %v2960 = vld [vmem:[%s2845 + $0x390] sm:$0xff]
        %v2961 = vld [vmem:[%s2845 + $0x398] sm:$0xff]
        %v2962 = vld [vmem:[%s2845 + $0x3a0] sm:$0xff]
        %v2963 = vld [vmem:[%s2845 + $0x3a8] sm:$0xff]
        %v2964 = vld [vmem:[%s2845 + $0x3b0] sm:$0xff]
        %v2965 = vld [vmem:[%s2845 + $0x3b8] sm:$0xff]
        %v2966 = vld [vmem:[%s2845 + $0x3c0] sm:$0xff]
        %v2967 = vld [vmem:[%s2845 + $0x3c8] sm:$0xff]
        %v2968 = vld [vmem:[%s2845 + $0x3d0] sm:$0xff]
        %v2969 = vld [vmem:[%s2845 + $0x3d8] sm:$0xff]
        %v2970 = vld [vmem:[%s2845 + $0x3e0] sm:$0xff]
        %v2971 = vld [vmem:[%s2845 + $0x3e8] sm:$0xff]
        %v2972 = vld [vmem:[%s2845 + $0x3f0] sm:$0xff]
        %v2973 = vld [vmem:[%s2845 + $0x3f8] sm:$0xff]
        %v3102 = vunpack.c.l.b16 %v2846
        %v3103 = vunpack.c.h.b16 %v2846
        %v3104 = vunpack.c.l.b16 %v2847
        %v3105 = vunpack.c.h.b16 %v2847
        %v3106 = vunpack.c.l.b16 %v2848
        %v3107 = vunpack.c.h.b16 %v2848
        %v3108 = vunpack.c.l.b16 %v2849
        %v3109 = vunpack.c.h.b16 %v2849
        %v3110 = vunpack.c.l.b16 %v2850
        %v3111 = vunpack.c.h.b16 %v2850
        %v3112 = vunpack.c.l.b16 %v2851
        %v3113 = vunpack.c.h.b16 %v2851
        %v3114 = vunpack.c.l.b16 %v2852
        %v3115 = vunpack.c.h.b16 %v2852
        %v3116 = vunpack.c.l.b16 %v2853
        %v3117 = vunpack.c.h.b16 %v2853
        %v3118 = vunpack.c.l.b16 %v2854
        %v3119 = vunpack.c.h.b16 %v2854
        %v3120 = vunpack.c.l.b16 %v2855
        %v3121 = vunpack.c.h.b16 %v2855
        %v3122 = vunpack.c.l.b16 %v2856
        %v3123 = vunpack.c.h.b16 %v2856
        %v3124 = vunpack.c.l.b16 %v2857
        %v3125 = vunpack.c.h.b16 %v2857
        %v3126 = vunpack.c.l.b16 %v2858
        %v3127 = vunpack.c.h.b16 %v2858
        %v3128 = vunpack.c.l.b16 %v2859
        %v3129 = vunpack.c.h.b16 %v2859
        %v3130 = vunpack.c.l.b16 %v2860
        %v3131 = vunpack.c.h.b16 %v2860
        %v3132 = vunpack.c.l.b16 %v2861
        %v3133 = vunpack.c.h.b16 %v2861
        %v3134 = vunpack.c.l.b16 %v2862
        %v3135 = vunpack.c.h.b16 %v2862
        %v3136 = vunpack.c.l.b16 %v2863
        %v3137 = vunpack.c.h.b16 %v2863
        %v3138 = vunpack.c.l.b16 %v2864
        %v3139 = vunpack.c.h.b16 %v2864
        %v3140 = vunpack.c.l.b16 %v2865
        %v3141 = vunpack.c.h.b16 %v2865
        %v3142 = vunpack.c.l.b16 %v2866
        %v3143 = vunpack.c.h.b16 %v2866
        %v3144 = vunpack.c.l.b16 %v2867
        %v3145 = vunpack.c.h.b16 %v2867
        %v3146 = vunpack.c.l.b16 %v2868
        %v3147 = vunpack.c.h.b16 %v2868
        %v3148 = vunpack.c.l.b16 %v2869
        %v3149 = vunpack.c.h.b16 %v2869
        %v3150 = vunpack.c.l.b16 %v2870
        %v3151 = vunpack.c.h.b16 %v2870
        %v3152 = vunpack.c.l.b16 %v2871
        %v3153 = vunpack.c.h.b16 %v2871
        %v3154 = vunpack.c.l.b16 %v2872
        %v3155 = vunpack.c.h.b16 %v2872
        %v3156 = vunpack.c.l.b16 %v2873
        %v3157 = vunpack.c.h.b16 %v2873
        %v3158 = vunpack.c.l.b16 %v2874
        %v3159 = vunpack.c.h.b16 %v2874
        %v3160 = vunpack.c.l.b16 %v2875
        %v3161 = vunpack.c.h.b16 %v2875
        %v3162 = vunpack.c.l.b16 %v2876
        %v3163 = vunpack.c.h.b16 %v2876
        %v3164 = vunpack.c.l.b16 %v2877
        %v3165 = vunpack.c.h.b16 %v2877
        %v3166 = vunpack.c.l.b16 %v2878
        %v3167 = vunpack.c.h.b16 %v2878
        %v3168 = vunpack.c.l.b16 %v2879
        %v3169 = vunpack.c.h.b16 %v2879
        %v3170 = vunpack.c.l.b16 %v2880
        %v3171 = vunpack.c.h.b16 %v2880
        %v3172 = vunpack.c.l.b16 %v2881
        %v3173 = vunpack.c.h.b16 %v2881
        %v3174 = vunpack.c.l.b16 %v2882
        %v3175 = vunpack.c.h.b16 %v2882
        %v3176 = vunpack.c.l.b16 %v2883
        %v3177 = vunpack.c.h.b16 %v2883
        %v3178 = vunpack.c.l.b16 %v2884
        %v3179 = vunpack.c.h.b16 %v2884
        %v3180 = vunpack.c.l.b16 %v2885
        %v3181 = vunpack.c.h.b16 %v2885
        %v3182 = vunpack.c.l.b16 %v2886
        %v3183 = vunpack.c.h.b16 %v2886
        %v3184 = vunpack.c.l.b16 %v2887
        %v3185 = vunpack.c.h.b16 %v2887
        %v3186 = vunpack.c.l.b16 %v2888
        %v3187 = vunpack.c.h.b16 %v2888
        %v3188 = vunpack.c.l.b16 %v2889
        %v3189 = vunpack.c.h.b16 %v2889
        %v3190 = vunpack.c.l.b16 %v2890
        %v3191 = vunpack.c.h.b16 %v2890
        %v3192 = vunpack.c.l.b16 %v2891
        %v3193 = vunpack.c.h.b16 %v2891
        %v3194 = vunpack.c.l.b16 %v2892
        %v3195 = vunpack.c.h.b16 %v2892
        %v3196 = vunpack.c.l.b16 %v2893
        %v3197 = vunpack.c.h.b16 %v2893
        %v3198 = vunpack.c.l.b16 %v2894
        %v3199 = vunpack.c.h.b16 %v2894
        %v3200 = vunpack.c.l.b16 %v2895
        %v3201 = vunpack.c.h.b16 %v2895
        %v3202 = vunpack.c.l.b16 %v2896
        %v3203 = vunpack.c.h.b16 %v2896
        %v3204 = vunpack.c.l.b16 %v2897
        %v3205 = vunpack.c.h.b16 %v2897
        %v3206 = vunpack.c.l.b16 %v2898
        %v3207 = vunpack.c.h.b16 %v2898
        %v3208 = vunpack.c.l.b16 %v2899
        %v3209 = vunpack.c.h.b16 %v2899
        %v3210 = vunpack.c.l.b16 %v2900
        %v3211 = vunpack.c.h.b16 %v2900
        %v3212 = vunpack.c.l.b16 %v2901
        %v3213 = vunpack.c.h.b16 %v2901
        %v3214 = vunpack.c.l.b16 %v2902
        %v3215 = vunpack.c.h.b16 %v2902
        %v3216 = vunpack.c.l.b16 %v2903
        %v3217 = vunpack.c.h.b16 %v2903
        %v3218 = vunpack.c.l.b16 %v2904
        %v3219 = vunpack.c.h.b16 %v2904
        %v3220 = vunpack.c.l.b16 %v2905
        %v3221 = vunpack.c.h.b16 %v2905
        %v3222 = vunpack.c.l.b16 %v2906
        %v3223 = vunpack.c.h.b16 %v2906
        %v3224 = vunpack.c.l.b16 %v2907
        %v3225 = vunpack.c.h.b16 %v2907
        %v3226 = vunpack.c.l.b16 %v2908
        %v3227 = vunpack.c.h.b16 %v2908
        %v3228 = vunpack.c.l.b16 %v2909
        %v3229 = vunpack.c.h.b16 %v2909
        %v3230 = vunpack.c.l.b16 %v2910
        %v3231 = vunpack.c.h.b16 %v2910
        %v3232 = vunpack.c.l.b16 %v2911
        %v3233 = vunpack.c.h.b16 %v2911
        %v3234 = vunpack.c.l.b16 %v2912
        %v3235 = vunpack.c.h.b16 %v2912
        %v3236 = vunpack.c.l.b16 %v2913
        %v3237 = vunpack.c.h.b16 %v2913
        %v3238 = vunpack.c.l.b16 %v2914
        %v3239 = vunpack.c.h.b16 %v2914
        %v3240 = vunpack.c.l.b16 %v2915
        %v3241 = vunpack.c.h.b16 %v2915
        %v3242 = vunpack.c.l.b16 %v2916
        %v3243 = vunpack.c.h.b16 %v2916
        %v3244 = vunpack.c.l.b16 %v2917
        %v3245 = vunpack.c.h.b16 %v2917
        %v3246 = vunpack.c.l.b16 %v2918
        %v3247 = vunpack.c.h.b16 %v2918
        %v3248 = vunpack.c.l.b16 %v2919
        %v3249 = vunpack.c.h.b16 %v2919
        %v3250 = vunpack.c.l.b16 %v2920
        %v3251 = vunpack.c.h.b16 %v2920
        %v3252 = vunpack.c.l.b16 %v2921
        %v3253 = vunpack.c.h.b16 %v2921
        %v3254 = vunpack.c.l.b16 %v2922
        %v3255 = vunpack.c.h.b16 %v2922
        %v3256 = vunpack.c.l.b16 %v2923
        %v3257 = vunpack.c.h.b16 %v2923
        %v3258 = vunpack.c.l.b16 %v2924
        %v3259 = vunpack.c.h.b16 %v2924
        %v3260 = vunpack.c.l.b16 %v2925
        %v3261 = vunpack.c.h.b16 %v2925
        %v3262 = vunpack.c.l.b16 %v2926
        %v3263 = vunpack.c.h.b16 %v2926
        %v3264 = vunpack.c.l.b16 %v2927
        %v3265 = vunpack.c.h.b16 %v2927
        %v3266 = vunpack.c.l.b16 %v2928
        %v3267 = vunpack.c.h.b16 %v2928
        %v3268 = vunpack.c.l.b16 %v2929
        %v3269 = vunpack.c.h.b16 %v2929
        %v3270 = vunpack.c.l.b16 %v2930
        %v3271 = vunpack.c.h.b16 %v2930
        %v3272 = vunpack.c.l.b16 %v2931
        %v3273 = vunpack.c.h.b16 %v2931
        %v3274 = vunpack.c.l.b16 %v2932
        %v3275 = vunpack.c.h.b16 %v2932
        %v3276 = vunpack.c.l.b16 %v2933
        %v3277 = vunpack.c.h.b16 %v2933
        %v3278 = vunpack.c.l.b16 %v2934
        %v3279 = vunpack.c.h.b16 %v2934
        %v3280 = vunpack.c.l.b16 %v2935
        %v3281 = vunpack.c.h.b16 %v2935
        %v3282 = vunpack.c.l.b16 %v2936
        %v3283 = vunpack.c.h.b16 %v2936
        %v3284 = vunpack.c.l.b16 %v2937
        %v3285 = vunpack.c.h.b16 %v2937
        %v3286 = vunpack.c.l.b16 %v2938
        %v3287 = vunpack.c.h.b16 %v2938
        %v3288 = vunpack.c.l.b16 %v2939
        %v3289 = vunpack.c.h.b16 %v2939
        %v3290 = vunpack.c.l.b16 %v2940
        %v3291 = vunpack.c.h.b16 %v2940
        %v3292 = vunpack.c.l.b16 %v2941
        %v3293 = vunpack.c.h.b16 %v2941
        %v3294 = vunpack.c.l.b16 %v2942
        %v3295 = vunpack.c.h.b16 %v2942
        %v3296 = vunpack.c.l.b16 %v2943
        %v3297 = vunpack.c.h.b16 %v2943
        %v3298 = vunpack.c.l.b16 %v2944
        %v3299 = vunpack.c.h.b16 %v2944
        %v3300 = vunpack.c.l.b16 %v2945
        %v3301 = vunpack.c.h.b16 %v2945
        %v3302 = vunpack.c.l.b16 %v2946
        %v3303 = vunpack.c.h.b16 %v2946
        %v3304 = vunpack.c.l.b16 %v2947
        %v3305 = vunpack.c.h.b16 %v2947
        %v3306 = vunpack.c.l.b16 %v2948
        %v3307 = vunpack.c.h.b16 %v2948
        %v3308 = vunpack.c.l.b16 %v2949
        %v3309 = vunpack.c.h.b16 %v2949
        %v3310 = vunpack.c.l.b16 %v2950
        %v3311 = vunpack.c.h.b16 %v2950
        %v3312 = vunpack.c.l.b16 %v2951
        %v3313 = vunpack.c.h.b16 %v2951
        %v3314 = vunpack.c.l.b16 %v2952
        %v3315 = vunpack.c.h.b16 %v2952
        %v3316 = vunpack.c.l.b16 %v2953
        %v3317 = vunpack.c.h.b16 %v2953
        %v3318 = vunpack.c.l.b16 %v2954
        %v3319 = vunpack.c.h.b16 %v2954
        %v3320 = vunpack.c.l.b16 %v2955
        %v3321 = vunpack.c.h.b16 %v2955
        %v3322 = vunpack.c.l.b16 %v2956
        %v3323 = vunpack.c.h.b16 %v2956
        %v3324 = vunpack.c.l.b16 %v2957
        %v3325 = vunpack.c.h.b16 %v2957
        %v3326 = vunpack.c.l.b16 %v2958
        %v3327 = vunpack.c.h.b16 %v2958
        %v3328 = vunpack.c.l.b16 %v2959
        %v3329 = vunpack.c.h.b16 %v2959
        %v3330 = vunpack.c.l.b16 %v2960
        %v3331 = vunpack.c.h.b16 %v2960
        %v3332 = vunpack.c.l.b16 %v2961
        %v3333 = vunpack.c.h.b16 %v2961
        %v3334 = vunpack.c.l.b16 %v2962
        %v3335 = vunpack.c.h.b16 %v2962
        %v3336 = vunpack.c.l.b16 %v2963
        %v3337 = vunpack.c.h.b16 %v2963
        %v3338 = vunpack.c.l.b16 %v2964
        %v3339 = vunpack.c.h.b16 %v2964
        %v3340 = vunpack.c.l.b16 %v2965
        %v3341 = vunpack.c.h.b16 %v2965
        %v3342 = vunpack.c.l.b16 %v2966
        %v3343 = vunpack.c.h.b16 %v2966
        %v3344 = vunpack.c.l.b16 %v2967
        %v3345 = vunpack.c.h.b16 %v2967
        %v3346 = vunpack.c.l.b16 %v2968
        %v3347 = vunpack.c.h.b16 %v2968
        %v3348 = vunpack.c.l.b16 %v2969
        %v3349 = vunpack.c.h.b16 %v2969
        %v3350 = vunpack.c.l.b16 %v2970
        %v3351 = vunpack.c.h.b16 %v2970
        %v3352 = vunpack.c.l.b16 %v2971
        %v3353 = vunpack.c.h.b16 %v2971
        %v3354 = vunpack.c.l.b16 %v2972
        %v3355 = vunpack.c.h.b16 %v2972
        %v3356 = vunpack.c.l.b16 %v2973
        %v3357 = vunpack.c.h.b16 %v2973
        %v3358 = vpack.c.b16 %v3106, %v3102
        %v3359 = vpack.c.b16 %v3107, %v3103
        %v3360 = vpack.c.b16 %v3108, %v3104
        %v3361 = vpack.c.b16 %v3109, %v3105
        %v3362 = vpack.c.b16 %v3114, %v3110
        %v3363 = vpack.c.b16 %v3115, %v3111
        %v3364 = vpack.c.b16 %v3116, %v3112
        %v3365 = vpack.c.b16 %v3117, %v3113
        %v3366 = vpack.c.b16 %v3122, %v3118
        %v3367 = vpack.c.b16 %v3123, %v3119
        %v3368 = vpack.c.b16 %v3124, %v3120
        %v3369 = vpack.c.b16 %v3125, %v3121
        %v3370 = vpack.c.b16 %v3130, %v3126
        %v3371 = vpack.c.b16 %v3131, %v3127
        %v3372 = vpack.c.b16 %v3132, %v3128
        %v3373 = vpack.c.b16 %v3133, %v3129
        %v3374 = vpack.c.b16 %v3138, %v3134
        %v3375 = vpack.c.b16 %v3139, %v3135
        %v3376 = vpack.c.b16 %v3140, %v3136
        %v3377 = vpack.c.b16 %v3141, %v3137
        %v3378 = vpack.c.b16 %v3146, %v3142
        %v3379 = vpack.c.b16 %v3147, %v3143
        %v3380 = vpack.c.b16 %v3148, %v3144
        %v3381 = vpack.c.b16 %v3149, %v3145
        %v3382 = vpack.c.b16 %v3154, %v3150
        %v3383 = vpack.c.b16 %v3155, %v3151
        %v3384 = vpack.c.b16 %v3156, %v3152
        %v3385 = vpack.c.b16 %v3157, %v3153
        %v3386 = vpack.c.b16 %v3162, %v3158
        %v3387 = vpack.c.b16 %v3163, %v3159
        %v3388 = vpack.c.b16 %v3164, %v3160
        %v3389 = vpack.c.b16 %v3165, %v3161
        %v3390 = vpack.c.b16 %v3170, %v3166
        %v3391 = vpack.c.b16 %v3171, %v3167
        %v3392 = vpack.c.b16 %v3172, %v3168
        %v3393 = vpack.c.b16 %v3173, %v3169
        %v3394 = vpack.c.b16 %v3178, %v3174
        %v3395 = vpack.c.b16 %v3179, %v3175
        %v3396 = vpack.c.b16 %v3180, %v3176
        %v3397 = vpack.c.b16 %v3181, %v3177
        %v3398 = vpack.c.b16 %v3186, %v3182
        %v3399 = vpack.c.b16 %v3187, %v3183
        %v3400 = vpack.c.b16 %v3188, %v3184
        %v3401 = vpack.c.b16 %v3189, %v3185
        %v3402 = vpack.c.b16 %v3194, %v3190
        %v3403 = vpack.c.b16 %v3195, %v3191
        %v3404 = vpack.c.b16 %v3196, %v3192
        %v3405 = vpack.c.b16 %v3197, %v3193
        %v3406 = vpack.c.b16 %v3202, %v3198
        %v3407 = vpack.c.b16 %v3203, %v3199
        %v3408 = vpack.c.b16 %v3204, %v3200
        %v3409 = vpack.c.b16 %v3205, %v3201
        %v3410 = vpack.c.b16 %v3210, %v3206
        %v3411 = vpack.c.b16 %v3211, %v3207
        %v3412 = vpack.c.b16 %v3212, %v3208
        %v3413 = vpack.c.b16 %v3213, %v3209
        %v3414 = vpack.c.b16 %v3218, %v3214
        %v3415 = vpack.c.b16 %v3219, %v3215
        %v3416 = vpack.c.b16 %v3220, %v3216
        %v3417 = vpack.c.b16 %v3221, %v3217
        %v3418 = vpack.c.b16 %v3226, %v3222
        %v3419 = vpack.c.b16 %v3227, %v3223
        %v3420 = vpack.c.b16 %v3228, %v3224
        %v3421 = vpack.c.b16 %v3229, %v3225
        %v3422 = vpack.c.b16 %v3234, %v3230
        %v3423 = vpack.c.b16 %v3235, %v3231
        %v3424 = vpack.c.b16 %v3236, %v3232
        %v3425 = vpack.c.b16 %v3237, %v3233
        %v3426 = vpack.c.b16 %v3242, %v3238
        %v3427 = vpack.c.b16 %v3243, %v3239
        %v3428 = vpack.c.b16 %v3244, %v3240
        %v3429 = vpack.c.b16 %v3245, %v3241
        %v3430 = vpack.c.b16 %v3250, %v3246
        %v3431 = vpack.c.b16 %v3251, %v3247
        %v3432 = vpack.c.b16 %v3252, %v3248
        %v3433 = vpack.c.b16 %v3253, %v3249
        %v3434 = vpack.c.b16 %v3258, %v3254
        %v3435 = vpack.c.b16 %v3259, %v3255
        %v3436 = vpack.c.b16 %v3260, %v3256
        %v3437 = vpack.c.b16 %v3261, %v3257
        %v3438 = vpack.c.b16 %v3266, %v3262
        %v3439 = vpack.c.b16 %v3267, %v3263
        %v3440 = vpack.c.b16 %v3268, %v3264
        %v3441 = vpack.c.b16 %v3269, %v3265
        %v3442 = vpack.c.b16 %v3274, %v3270
        %v3443 = vpack.c.b16 %v3275, %v3271
        %v3444 = vpack.c.b16 %v3276, %v3272
        %v3445 = vpack.c.b16 %v3277, %v3273
        %v3446 = vpack.c.b16 %v3282, %v3278
        %v3447 = vpack.c.b16 %v3283, %v3279
        %v3448 = vpack.c.b16 %v3284, %v3280
        %v3449 = vpack.c.b16 %v3285, %v3281
        %v3450 = vpack.c.b16 %v3290, %v3286
        %v3451 = vpack.c.b16 %v3291, %v3287
        %v3452 = vpack.c.b16 %v3292, %v3288
        %v3453 = vpack.c.b16 %v3293, %v3289
        %v3454 = vpack.c.b16 %v3298, %v3294
        %v3455 = vpack.c.b16 %v3299, %v3295
        %v3456 = vpack.c.b16 %v3300, %v3296
        %v3457 = vpack.c.b16 %v3301, %v3297
        %v3458 = vpack.c.b16 %v3306, %v3302
        %v3459 = vpack.c.b16 %v3307, %v3303
        %v3460 = vpack.c.b16 %v3308, %v3304
        %v3461 = vpack.c.b16 %v3309, %v3305
        %v3462 = vpack.c.b16 %v3314, %v3310
        %v3463 = vpack.c.b16 %v3315, %v3311
        %v3464 = vpack.c.b16 %v3316, %v3312
        %v3465 = vpack.c.b16 %v3317, %v3313
        %v3466 = vpack.c.b16 %v3322, %v3318
        %v3467 = vpack.c.b16 %v3323, %v3319
        %v3468 = vpack.c.b16 %v3324, %v3320
        %v3469 = vpack.c.b16 %v3325, %v3321
        %v3470 = vpack.c.b16 %v3330, %v3326
        %v3471 = vpack.c.b16 %v3331, %v3327
        %v3472 = vpack.c.b16 %v3332, %v3328
        %v3473 = vpack.c.b16 %v3333, %v3329
        %v3474 = vpack.c.b16 %v3338, %v3334
        %v3475 = vpack.c.b16 %v3339, %v3335
        %v3476 = vpack.c.b16 %v3340, %v3336
        %v3477 = vpack.c.b16 %v3341, %v3337
        %v3478 = vpack.c.b16 %v3346, %v3342
        %v3479 = vpack.c.b16 %v3347, %v3343
        %v3480 = vpack.c.b16 %v3348, %v3344
        %v3481 = vpack.c.b16 %v3349, %v3345
        %v3482 = vpack.c.b16 %v3354, %v3350
        %v3483 = vpack.c.b16 %v3355, %v3351
        %v3484 = vpack.c.b16 %v3356, %v3352
        %v3485 = vpack.c.b16 %v3357, %v3353
        %3614 = vmatpush.bf16.msra.mxu0 %v3386
        %3615 = vmatpush.bf16.msra.mxu0 %v3382
        %3616 = vmatpush.bf16.msra.mxu0 %v3378
        %3617 = vmatpush.bf16.msra.mxu0 %v3374
        %3618 = vmatpush.bf16.msra.mxu0 %v3370
        %3619 = vmatpush.bf16.msra.mxu0 %v3366
        %3620 = vmatpush.bf16.msra.mxu0 %v3362
        %3621 = vmatpush.bf16.msra.mxu0 %v3358
        %3622 = vmatmul.bf16.gmra.mxu0 %v2712
        %v3623 = vpop.f32.mrf.mxu0
        %v3624 = vadd.f32 0.0, %v3623
        %v3625 = vpop.f32.mrf.mxu0
        %3626 = vdwg.mxu0
        %3627 = vmatpush.bf16.msra.mxu0 %v3418
        %3628 = vmatpush.bf16.msra.mxu0 %v3414
        %3629 = vmatpush.bf16.msra.mxu0 %v3410
        %3630 = vmatpush.bf16.msra.mxu0 %v3406
        %3631 = vmatpush.bf16.msra.mxu0 %v3402
        %3632 = vmatpush.bf16.msra.mxu0 %v3398
        %3633 = vmatpush.bf16.msra.mxu0 %v3394
        %3634 = vmatpush.bf16.msra.mxu0 %v3390
        %3635 = vmatmul.bf16.gmra.mxu0 %v2713
        %v3636 = vpop.f32.mrf.mxu0
        %v3637 = vadd.f32 %v3624, %v3636
        %v3638 = vpop.f32.mrf.mxu0
        %3639 = vdwg.mxu0
        %3640 = vmatpush.bf16.msra.mxu0 %v3450
        %3641 = vmatpush.bf16.msra.mxu0 %v3446
        %3642 = vmatpush.bf16.msra.mxu0 %v3442
        %3643 = vmatpush.bf16.msra.mxu0 %v3438
        %3644 = vmatpush.bf16.msra.mxu0 %v3434
        %3645 = vmatpush.bf16.msra.mxu0 %v3430
        %3646 = vmatpush.bf16.msra.mxu0 %v3426
        %3647 = vmatpush.bf16.msra.mxu0 %v3422
        %3648 = vmatmul.bf16.gmra.mxu0 %v2714
        %v3649 = vpop.f32.mrf.mxu0
        %v3650 = vadd.f32 %v3637, %v3649
        %v3651 = vpop.f32.mrf.mxu0
        %3652 = vdwg.mxu0
        %3653 = vmatpush.bf16.msra.mxu0 %v3482
        %3654 = vmatpush.bf16.msra.mxu0 %v3478
        %3655 = vmatpush.bf16.msra.mxu0 %v3474
        %3656 = vmatpush.bf16.msra.mxu0 %v3470
        %3657 = vmatpush.bf16.msra.mxu0 %v3466
        %3658 = vmatpush.bf16.msra.mxu0 %v3462
        %3659 = vmatpush.bf16.msra.mxu0 %v3458
        %3660 = vmatpush.bf16.msra.mxu0 %v3454
        %3661 = vmatmul.bf16.gmra.mxu0 %v2715
        %v3662 = vpop.f32.mrf.mxu0
        %v3663 = vadd.f32 %v3650, %v3662
        %v3664 = vpop.f32.mrf.mxu0
        %3665 = vdwg.mxu0
        %3666 = vmatpush.bf16.msra.mxu0 %v3387
        %3667 = vmatpush.bf16.msra.mxu0 %v3383
        %3668 = vmatpush.bf16.msra.mxu0 %v3379
        %3669 = vmatpush.bf16.msra.mxu0 %v3375
        %3670 = vmatpush.bf16.msra.mxu0 %v3371
        %3671 = vmatpush.bf16.msra.mxu0 %v3367
        %3672 = vmatpush.bf16.msra.mxu0 %v3363
        %3673 = vmatpush.bf16.msra.mxu0 %v3359
        %3674 = vmatmul.bf16.gmra.mxu0 %v2712
        %v3675 = vpop.f32.mrf.mxu0
        %v3676 = vadd.f32 0.0, %v3675
        %v3677 = vpop.f32.mrf.mxu0
        %3678 = vdwg.mxu0
        %3679 = vmatpush.bf16.msra.mxu0 %v3419
        %3680 = vmatpush.bf16.msra.mxu0 %v3415
        %3681 = vmatpush.bf16.msra.mxu0 %v3411
        %3682 = vmatpush.bf16.msra.mxu0 %v3407
        %3683 = vmatpush.bf16.msra.mxu0 %v3403
        %3684 = vmatpush.bf16.msra.mxu0 %v3399
        %3685 = vmatpush.bf16.msra.mxu0 %v3395
        %3686 = vmatpush.bf16.msra.mxu0 %v3391
        %3687 = vmatmul.bf16.gmra.mxu0 %v2713
        %v3688 = vpop.f32.mrf.mxu0
        %v3689 = vadd.f32 %v3676, %v3688
        %v3690 = vpop.f32.mrf.mxu0
        %3691 = vdwg.mxu0
        %3692 = vmatpush.bf16.msra.mxu0 %v3451
        %3693 = vmatpush.bf16.msra.mxu0 %v3447
        %3694 = vmatpush.bf16.msra.mxu0 %v3443
        %3695 = vmatpush.bf16.msra.mxu0 %v3439
        %3696 = vmatpush.bf16.msra.mxu0 %v3435
        %3697 = vmatpush.bf16.msra.mxu0 %v3431
        %3698 = vmatpush.bf16.msra.mxu0 %v3427
        %3699 = vmatpush.bf16.msra.mxu0 %v3423
        %3700 = vmatmul.bf16.gmra.mxu0 %v2714
        %v3701 = vpop.f32.mrf.mxu0
        %v3702 = vadd.f32 %v3689, %v3701
        %v3703 = vpop.f32.mrf.mxu0
        %3704 = vdwg.mxu0
        %3705 = vmatpush.bf16.msra.mxu0 %v3483
        %3706 = vmatpush.bf16.msra.mxu0 %v3479
        %3707 = vmatpush.bf16.msra.mxu0 %v3475
        %3708 = vmatpush.bf16.msra.mxu0 %v3471
        %3709 = vmatpush.bf16.msra.mxu0 %v3467
        %3710 = vmatpush.bf16.msra.mxu0 %v3463
        %3711 = vmatpush.bf16.msra.mxu0 %v3459
        %3712 = vmatpush.bf16.msra.mxu0 %v3455
        %3713 = vmatmul.bf16.gmra.mxu0 %v2715
        %v3714 = vpop.f32.mrf.mxu0
        %v3715 = vadd.f32 %v3702, %v3714
        %v3716 = vpop.f32.mrf.mxu0
        %3717 = vdwg.mxu0
        %3718 = vmatpush.bf16.msra.mxu0 %v3388
        %3719 = vmatpush.bf16.msra.mxu0 %v3384
        %3720 = vmatpush.bf16.msra.mxu0 %v3380
        %3721 = vmatpush.bf16.msra.mxu0 %v3376
        %3722 = vmatpush.bf16.msra.mxu0 %v3372
        %3723 = vmatpush.bf16.msra.mxu0 %v3368
        %3724 = vmatpush.bf16.msra.mxu0 %v3364
        %3725 = vmatpush.bf16.msra.mxu0 %v3360
        %3726 = vmatmul.bf16.gmra.mxu0 %v2712
        %v3727 = vpop.f32.mrf.mxu0
        %v3728 = vadd.f32 0.0, %v3727
        %v3729 = vpop.f32.mrf.mxu0
        %3730 = vdwg.mxu0
        %3731 = vmatpush.bf16.msra.mxu0 %v3420
        %3732 = vmatpush.bf16.msra.mxu0 %v3416
        %3733 = vmatpush.bf16.msra.mxu0 %v3412
        %3734 = vmatpush.bf16.msra.mxu0 %v3408
        %3735 = vmatpush.bf16.msra.mxu0 %v3404
        %3736 = vmatpush.bf16.msra.mxu0 %v3400
        %3737 = vmatpush.bf16.msra.mxu0 %v3396
        %3738 = vmatpush.bf16.msra.mxu0 %v3392
        %3739 = vmatmul.bf16.gmra.mxu0 %v2713
        %v3740 = vpop.f32.mrf.mxu0
        %v3741 = vadd.f32 %v3728, %v3740
        %v3742 = vpop.f32.mrf.mxu0
        %3743 = vdwg.mxu0
        %3744 = vmatpush.bf16.msra.mxu0 %v3452
        %3745 = vmatpush.bf16.msra.mxu0 %v3448
        %3746 = vmatpush.bf16.msra.mxu0 %v3444
        %3747 = vmatpush.bf16.msra.mxu0 %v3440
        %3748 = vmatpush.bf16.msra.mxu0 %v3436
        %3749 = vmatpush.bf16.msra.mxu0 %v3432
        %3750 = vmatpush.bf16.msra.mxu0 %v3428
        %3751 = vmatpush.bf16.msra.mxu0 %v3424
        %3752 = vmatmul.bf16.gmra.mxu0 %v2714
        %v3753 = vpop.f32.mrf.mxu0
        %v3754 = vadd.f32 %v3741, %v3753
        %v3755 = vpop.f32.mrf.mxu0
        %3756 = vdwg.mxu0
        %3757 = vmatpush.bf16.msra.mxu0 %v3484
        %3758 = vmatpush.bf16.msra.mxu0 %v3480
        %3759 = vmatpush.bf16.msra.mxu0 %v3476
        %3760 = vmatpush.bf16.msra.mxu0 %v3472
        %3761 = vmatpush.bf16.msra.mxu0 %v3468
        %3762 = vmatpush.bf16.msra.mxu0 %v3464
        %3763 = vmatpush.bf16.msra.mxu0 %v3460
        %3764 = vmatpush.bf16.msra.mxu0 %v3456
        %3765 = vmatmul.bf16.gmra.mxu0 %v2715
        %v3766 = vpop.f32.mrf.mxu0
        %v3767 = vadd.f32 %v3754, %v3766
        %v3768 = vpop.f32.mrf.mxu0
        %3769 = vdwg.mxu0
        %3770 = vmatpush.bf16.msra.mxu0 %v3389
        %3771 = vmatpush.bf16.msra.mxu0 %v3385
        %3772 = vmatpush.bf16.msra.mxu0 %v3381
        %3773 = vmatpush.bf16.msra.mxu0 %v3377
        %3774 = vmatpush.bf16.msra.mxu0 %v3373
        %3775 = vmatpush.bf16.msra.mxu0 %v3369
        %3776 = vmatpush.bf16.msra.mxu0 %v3365
        %3777 = vmatpush.bf16.msra.mxu0 %v3361
        %3778 = vmatmul.bf16.gmra.mxu0 %v2712
        %v3779 = vpop.f32.mrf.mxu0
        %v3780 = vadd.f32 0.0, %v3779
        %v3781 = vpop.f32.mrf.mxu0
        %3782 = vdwg.mxu0
        %3783 = vmatpush.bf16.msra.mxu0 %v3421
        %3784 = vmatpush.bf16.msra.mxu0 %v3417
        %3785 = vmatpush.bf16.msra.mxu0 %v3413
        %3786 = vmatpush.bf16.msra.mxu0 %v3409
        %3787 = vmatpush.bf16.msra.mxu0 %v3405
        %3788 = vmatpush.bf16.msra.mxu0 %v3401
        %3789 = vmatpush.bf16.msra.mxu0 %v3397
        %3790 = vmatpush.bf16.msra.mxu0 %v3393
        %3791 = vmatmul.bf16.gmra.mxu0 %v2713
        %v3792 = vpop.f32.mrf.mxu0
        %v3793 = vadd.f32 %v3780, %v3792
        %v3794 = vpop.f32.mrf.mxu0
        %3795 = vdwg.mxu0
        %3796 = vmatpush.bf16.msra.mxu0 %v3453
        %3797 = vmatpush.bf16.msra.mxu0 %v3449
        %3798 = vmatpush.bf16.msra.mxu0 %v3445
        %3799 = vmatpush.bf16.msra.mxu0 %v3441
        %3800 = vmatpush.bf16.msra.mxu0 %v3437
        %3801 = vmatpush.bf16.msra.mxu0 %v3433
        %3802 = vmatpush.bf16.msra.mxu0 %v3429
        %3803 = vmatpush.bf16.msra.mxu0 %v3425
        %3804 = vmatmul.bf16.gmra.mxu0 %v2714
        %v3805 = vpop.f32.mrf.mxu0
        %v3806 = vadd.f32 %v3793, %v3805
        %v3807 = vpop.f32.mrf.mxu0
        %3808 = vdwg.mxu0
        %3809 = vmatpush.bf16.msra.mxu0 %v3485
        %3810 = vmatpush.bf16.msra.mxu0 %v3481
        %3811 = vmatpush.bf16.msra.mxu0 %v3477
        %3812 = vmatpush.bf16.msra.mxu0 %v3473
        %3813 = vmatpush.bf16.msra.mxu0 %v3469
        %3814 = vmatpush.bf16.msra.mxu0 %v3465
        %3815 = vmatpush.bf16.msra.mxu0 %v3461
        %3816 = vmatpush.bf16.msra.mxu0 %v3457
        %3817 = vmatmul.bf16.gmra.mxu0 %v2715
        %v3818 = vpop.f32.mrf.mxu0
        %v3819 = vadd.f32 %v3806, %v3818
        %v3820 = vpop.f32.mrf.mxu0
        %3821 = vdwg.mxu0
        %v3950 = vunpack.c.l.b16 %v2717
        %v3951 = vunpack.c.h.b16 %v2717
        %v3952 = vunpack.c.l.b16 %v2718
        %v3953 = vunpack.c.h.b16 %v2718
        %v3954 = vunpack.c.l.b16 %v2719
        %v3955 = vunpack.c.h.b16 %v2719
        %v3956 = vunpack.c.l.b16 %v2720
        %v3957 = vunpack.c.h.b16 %v2720
        %v3958 = vunpack.c.l.b16 %v2721
        %v3959 = vunpack.c.h.b16 %v2721
        %v3960 = vunpack.c.l.b16 %v2722
        %v3961 = vunpack.c.h.b16 %v2722
        %v3962 = vunpack.c.l.b16 %v2723
        %v3963 = vunpack.c.h.b16 %v2723
        %v3964 = vunpack.c.l.b16 %v2724
        %v3965 = vunpack.c.h.b16 %v2724
        %v3966 = vunpack.c.l.b16 %v2725
        %v3967 = vunpack.c.h.b16 %v2725
        %v3968 = vunpack.c.l.b16 %v2726
        %v3969 = vunpack.c.h.b16 %v2726
        %v3970 = vunpack.c.l.b16 %v2727
        %v3971 = vunpack.c.h.b16 %v2727
        %v3972 = vunpack.c.l.b16 %v2728
        %v3973 = vunpack.c.h.b16 %v2728
        %v3974 = vunpack.c.l.b16 %v2729
        %v3975 = vunpack.c.h.b16 %v2729
        %v3976 = vunpack.c.l.b16 %v2730
        %v3977 = vunpack.c.h.b16 %v2730
        %v3978 = vunpack.c.l.b16 %v2731
        %v3979 = vunpack.c.h.b16 %v2731
        %v3980 = vunpack.c.l.b16 %v2732
        %v3981 = vunpack.c.h.b16 %v2732
        %v3982 = vunpack.c.l.b16 %v2733
        %v3983 = vunpack.c.h.b16 %v2733
        %v3984 = vunpack.c.l.b16 %v2734
        %v3985 = vunpack.c.h.b16 %v2734
        %v3986 = vunpack.c.l.b16 %v2735
        %v3987 = vunpack.c.h.b16 %v2735
        %v3988 = vunpack.c.l.b16 %v2736
        %v3989 = vunpack.c.h.b16 %v2736
        %v3990 = vunpack.c.l.b16 %v2737
        %v3991 = vunpack.c.h.b16 %v2737
        %v3992 = vunpack.c.l.b16 %v2738
        %v3993 = vunpack.c.h.b16 %v2738
        %v3994 = vunpack.c.l.b16 %v2739
        %v3995 = vunpack.c.h.b16 %v2739
        %v3996 = vunpack.c.l.b16 %v2740
        %v3997 = vunpack.c.h.b16 %v2740
        %v3998 = vunpack.c.l.b16 %v2741
        %v3999 = vunpack.c.h.b16 %v2741
        %v4000 = vunpack.c.l.b16 %v2742
        %v4001 = vunpack.c.h.b16 %v2742
        %v4002 = vunpack.c.l.b16 %v2743
        %v4003 = vunpack.c.h.b16 %v2743
        %v4004 = vunpack.c.l.b16 %v2744
        %v4005 = vunpack.c.h.b16 %v2744
        %v4006 = vunpack.c.l.b16 %v2745
        %v4007 = vunpack.c.h.b16 %v2745
        %v4008 = vunpack.c.l.b16 %v2746
        %v4009 = vunpack.c.h.b16 %v2746
        %v4010 = vunpack.c.l.b16 %v2747
        %v4011 = vunpack.c.h.b16 %v2747
        %v4012 = vunpack.c.l.b16 %v2748
        %v4013 = vunpack.c.h.b16 %v2748
        %v4014 = vunpack.c.l.b16 %v2749
        %v4015 = vunpack.c.h.b16 %v2749
        %v4016 = vunpack.c.l.b16 %v2750
        %v4017 = vunpack.c.h.b16 %v2750
        %v4018 = vunpack.c.l.b16 %v2751
        %v4019 = vunpack.c.h.b16 %v2751
        %v4020 = vunpack.c.l.b16 %v2752
        %v4021 = vunpack.c.h.b16 %v2752
        %v4022 = vunpack.c.l.b16 %v2753
        %v4023 = vunpack.c.h.b16 %v2753
        %v4024 = vunpack.c.l.b16 %v2754
        %v4025 = vunpack.c.h.b16 %v2754
        %v4026 = vunpack.c.l.b16 %v2755
        %v4027 = vunpack.c.h.b16 %v2755
        %v4028 = vunpack.c.l.b16 %v2756
        %v4029 = vunpack.c.h.b16 %v2756
        %v4030 = vunpack.c.l.b16 %v2757
        %v4031 = vunpack.c.h.b16 %v2757
        %v4032 = vunpack.c.l.b16 %v2758
        %v4033 = vunpack.c.h.b16 %v2758
        %v4034 = vunpack.c.l.b16 %v2759
        %v4035 = vunpack.c.h.b16 %v2759
        %v4036 = vunpack.c.l.b16 %v2760
        %v4037 = vunpack.c.h.b16 %v2760
        %v4038 = vunpack.c.l.b16 %v2761
        %v4039 = vunpack.c.h.b16 %v2761
        %v4040 = vunpack.c.l.b16 %v2762
        %v4041 = vunpack.c.h.b16 %v2762
        %v4042 = vunpack.c.l.b16 %v2763
        %v4043 = vunpack.c.h.b16 %v2763
        %v4044 = vunpack.c.l.b16 %v2764
        %v4045 = vunpack.c.h.b16 %v2764
        %v4046 = vunpack.c.l.b16 %v2765
        %v4047 = vunpack.c.h.b16 %v2765
        %v4048 = vunpack.c.l.b16 %v2766
        %v4049 = vunpack.c.h.b16 %v2766
        %v4050 = vunpack.c.l.b16 %v2767
        %v4051 = vunpack.c.h.b16 %v2767
        %v4052 = vunpack.c.l.b16 %v2768
        %v4053 = vunpack.c.h.b16 %v2768
        %v4054 = vunpack.c.l.b16 %v2769
        %v4055 = vunpack.c.h.b16 %v2769
        %v4056 = vunpack.c.l.b16 %v2770
        %v4057 = vunpack.c.h.b16 %v2770
        %v4058 = vunpack.c.l.b16 %v2771
        %v4059 = vunpack.c.h.b16 %v2771
        %v4060 = vunpack.c.l.b16 %v2772
        %v4061 = vunpack.c.h.b16 %v2772
        %v4062 = vunpack.c.l.b16 %v2773
        %v4063 = vunpack.c.h.b16 %v2773
        %v4064 = vunpack.c.l.b16 %v2774
        %v4065 = vunpack.c.h.b16 %v2774
        %v4066 = vunpack.c.l.b16 %v2775
        %v4067 = vunpack.c.h.b16 %v2775
        %v4068 = vunpack.c.l.b16 %v2776
        %v4069 = vunpack.c.h.b16 %v2776
        %v4070 = vunpack.c.l.b16 %v2777
        %v4071 = vunpack.c.h.b16 %v2777
        %v4072 = vunpack.c.l.b16 %v2778
        %v4073 = vunpack.c.h.b16 %v2778
        %v4074 = vunpack.c.l.b16 %v2779
        %v4075 = vunpack.c.h.b16 %v2779
        %v4076 = vunpack.c.l.b16 %v2780
        %v4077 = vunpack.c.h.b16 %v2780
        %v4078 = vunpack.c.l.b16 %v2781
        %v4079 = vunpack.c.h.b16 %v2781
        %v4080 = vunpack.c.l.b16 %v2782
        %v4081 = vunpack.c.h.b16 %v2782
        %v4082 = vunpack.c.l.b16 %v2783
        %v4083 = vunpack.c.h.b16 %v2783
        %v4084 = vunpack.c.l.b16 %v2784
        %v4085 = vunpack.c.h.b16 %v2784
        %v4086 = vunpack.c.l.b16 %v2785
        %v4087 = vunpack.c.h.b16 %v2785
        %v4088 = vunpack.c.l.b16 %v2786
        %v4089 = vunpack.c.h.b16 %v2786
        %v4090 = vunpack.c.l.b16 %v2787
        %v4091 = vunpack.c.h.b16 %v2787
        %v4092 = vunpack.c.l.b16 %v2788
        %v4093 = vunpack.c.h.b16 %v2788
        %v4094 = vunpack.c.l.b16 %v2789
        %v4095 = vunpack.c.h.b16 %v2789
        %v4096 = vunpack.c.l.b16 %v2790
        %v4097 = vunpack.c.h.b16 %v2790
        %v4098 = vunpack.c.l.b16 %v2791
        %v4099 = vunpack.c.h.b16 %v2791
        %v4100 = vunpack.c.l.b16 %v2792
        %v4101 = vunpack.c.h.b16 %v2792
        %v4102 = vunpack.c.l.b16 %v2793
        %v4103 = vunpack.c.h.b16 %v2793
        %v4104 = vunpack.c.l.b16 %v2794
        %v4105 = vunpack.c.h.b16 %v2794
        %v4106 = vunpack.c.l.b16 %v2795
        %v4107 = vunpack.c.h.b16 %v2795
        %v4108 = vunpack.c.l.b16 %v2796
        %v4109 = vunpack.c.h.b16 %v2796
        %v4110 = vunpack.c.l.b16 %v2797
        %v4111 = vunpack.c.h.b16 %v2797
        %v4112 = vunpack.c.l.b16 %v2798
        %v4113 = vunpack.c.h.b16 %v2798
        %v4114 = vunpack.c.l.b16 %v2799
        %v4115 = vunpack.c.h.b16 %v2799
        %v4116 = vunpack.c.l.b16 %v2800
        %v4117 = vunpack.c.h.b16 %v2800
        %v4118 = vunpack.c.l.b16 %v2801
        %v4119 = vunpack.c.h.b16 %v2801
        %v4120 = vunpack.c.l.b16 %v2802
        %v4121 = vunpack.c.h.b16 %v2802
        %v4122 = vunpack.c.l.b16 %v2803
        %v4123 = vunpack.c.h.b16 %v2803
        %v4124 = vunpack.c.l.b16 %v2804
        %v4125 = vunpack.c.h.b16 %v2804
        %v4126 = vunpack.c.l.b16 %v2805
        %v4127 = vunpack.c.h.b16 %v2805
        %v4128 = vunpack.c.l.b16 %v2806
        %v4129 = vunpack.c.h.b16 %v2806
        %v4130 = vunpack.c.l.b16 %v2807
        %v4131 = vunpack.c.h.b16 %v2807
        %v4132 = vunpack.c.l.b16 %v2808
        %v4133 = vunpack.c.h.b16 %v2808
        %v4134 = vunpack.c.l.b16 %v2809
        %v4135 = vunpack.c.h.b16 %v2809
        %v4136 = vunpack.c.l.b16 %v2810
        %v4137 = vunpack.c.h.b16 %v2810
        %v4138 = vunpack.c.l.b16 %v2811
        %v4139 = vunpack.c.h.b16 %v2811
        %v4140 = vunpack.c.l.b16 %v2812
        %v4141 = vunpack.c.h.b16 %v2812
        %v4142 = vunpack.c.l.b16 %v2813
        %v4143 = vunpack.c.h.b16 %v2813
        %v4144 = vunpack.c.l.b16 %v2814
        %v4145 = vunpack.c.h.b16 %v2814
        %v4146 = vunpack.c.l.b16 %v2815
        %v4147 = vunpack.c.h.b16 %v2815
        %v4148 = vunpack.c.l.b16 %v2816
        %v4149 = vunpack.c.h.b16 %v2816
        %v4150 = vunpack.c.l.b16 %v2817
        %v4151 = vunpack.c.h.b16 %v2817
        %v4152 = vunpack.c.l.b16 %v2818
        %v4153 = vunpack.c.h.b16 %v2818
        %v4154 = vunpack.c.l.b16 %v2819
        %v4155 = vunpack.c.h.b16 %v2819
        %v4156 = vunpack.c.l.b16 %v2820
        %v4157 = vunpack.c.h.b16 %v2820
        %v4158 = vunpack.c.l.b16 %v2821
        %v4159 = vunpack.c.h.b16 %v2821
        %v4160 = vunpack.c.l.b16 %v2822
        %v4161 = vunpack.c.h.b16 %v2822
        %v4162 = vunpack.c.l.b16 %v2823
        %v4163 = vunpack.c.h.b16 %v2823
        %v4164 = vunpack.c.l.b16 %v2824
        %v4165 = vunpack.c.h.b16 %v2824
        %v4166 = vunpack.c.l.b16 %v2825
        %v4167 = vunpack.c.h.b16 %v2825
        %v4168 = vunpack.c.l.b16 %v2826
        %v4169 = vunpack.c.h.b16 %v2826
        %v4170 = vunpack.c.l.b16 %v2827
        %v4171 = vunpack.c.h.b16 %v2827
        %v4172 = vunpack.c.l.b16 %v2828
        %v4173 = vunpack.c.h.b16 %v2828
        %v4174 = vunpack.c.l.b16 %v2829
        %v4175 = vunpack.c.h.b16 %v2829
        %v4176 = vunpack.c.l.b16 %v2830
        %v4177 = vunpack.c.h.b16 %v2830
        %v4178 = vunpack.c.l.b16 %v2831
        %v4179 = vunpack.c.h.b16 %v2831
        %v4180 = vunpack.c.l.b16 %v2832
        %v4181 = vunpack.c.h.b16 %v2832
        %v4182 = vunpack.c.l.b16 %v2833
        %v4183 = vunpack.c.h.b16 %v2833
        %v4184 = vunpack.c.l.b16 %v2834
        %v4185 = vunpack.c.h.b16 %v2834
        %v4186 = vunpack.c.l.b16 %v2835
        %v4187 = vunpack.c.h.b16 %v2835
        %v4188 = vunpack.c.l.b16 %v2836
        %v4189 = vunpack.c.h.b16 %v2836
        %v4190 = vunpack.c.l.b16 %v2837
        %v4191 = vunpack.c.h.b16 %v2837
        %v4192 = vunpack.c.l.b16 %v2838
        %v4193 = vunpack.c.h.b16 %v2838
        %v4194 = vunpack.c.l.b16 %v2839
        %v4195 = vunpack.c.h.b16 %v2839
        %v4196 = vunpack.c.l.b16 %v2840
        %v4197 = vunpack.c.h.b16 %v2840
        %v4198 = vunpack.c.l.b16 %v2841
        %v4199 = vunpack.c.h.b16 %v2841
        %v4200 = vunpack.c.l.b16 %v2842
        %v4201 = vunpack.c.h.b16 %v2842
        %v4202 = vunpack.c.l.b16 %v2843
        %v4203 = vunpack.c.h.b16 %v2843
        %v4204 = vunpack.c.l.b16 %v2844
        %v4205 = vunpack.c.h.b16 %v2844
        %v4206 = vpack.c.b16 %v3954, %v3950
        %v4207 = vpack.c.b16 %v3955, %v3951
        %v4208 = vpack.c.b16 %v3956, %v3952
        %v4209 = vpack.c.b16 %v3957, %v3953
        %v4210 = vpack.c.b16 %v3962, %v3958
        %v4211 = vpack.c.b16 %v3963, %v3959
        %v4212 = vpack.c.b16 %v3964, %v3960
        %v4213 = vpack.c.b16 %v3965, %v3961
        %v4214 = vpack.c.b16 %v3970, %v3966
        %v4215 = vpack.c.b16 %v3971, %v3967
        %v4216 = vpack.c.b16 %v3972, %v3968
        %v4217 = vpack.c.b16 %v3973, %v3969
        %v4218 = vpack.c.b16 %v3978, %v3974
        %v4219 = vpack.c.b16 %v3979, %v3975
        %v4220 = vpack.c.b16 %v3980, %v3976
        %v4221 = vpack.c.b16 %v3981, %v3977
        %v4222 = vpack.c.b16 %v3986, %v3982
        %v4223 = vpack.c.b16 %v3987, %v3983
        %v4224 = vpack.c.b16 %v3988, %v3984
        %v4225 = vpack.c.b16 %v3989, %v3985
        %v4226 = vpack.c.b16 %v3994, %v3990
        %v4227 = vpack.c.b16 %v3995, %v3991
        %v4228 = vpack.c.b16 %v3996, %v3992
        %v4229 = vpack.c.b16 %v3997, %v3993
        %v4230 = vpack.c.b16 %v4002, %v3998
        %v4231 = vpack.c.b16 %v4003, %v3999
        %v4232 = vpack.c.b16 %v4004, %v4000
        %v4233 = vpack.c.b16 %v4005, %v4001
        %v4234 = vpack.c.b16 %v4010, %v4006
        %v4235 = vpack.c.b16 %v4011, %v4007
        %v4236 = vpack.c.b16 %v4012, %v4008
        %v4237 = vpack.c.b16 %v4013, %v4009
        %v4238 = vpack.c.b16 %v4018, %v4014
        %v4239 = vpack.c.b16 %v4019, %v4015
        %v4240 = vpack.c.b16 %v4020, %v4016
        %v4241 = vpack.c.b16 %v4021, %v4017
        %v4242 = vpack.c.b16 %v4026, %v4022
        %v4243 = vpack.c.b16 %v4027, %v4023
        %v4244 = vpack.c.b16 %v4028, %v4024
        %v4245 = vpack.c.b16 %v4029, %v4025
        %v4246 = vpack.c.b16 %v4034, %v4030
        %v4247 = vpack.c.b16 %v4035, %v4031
        %v4248 = vpack.c.b16 %v4036, %v4032
        %v4249 = vpack.c.b16 %v4037, %v4033
        %v4250 = vpack.c.b16 %v4042, %v4038
        %v4251 = vpack.c.b16 %v4043, %v4039
        %v4252 = vpack.c.b16 %v4044, %v4040
        %v4253 = vpack.c.b16 %v4045, %v4041
        %v4254 = vpack.c.b16 %v4050, %v4046
        %v4255 = vpack.c.b16 %v4051, %v4047
        %v4256 = vpack.c.b16 %v4052, %v4048
        %v4257 = vpack.c.b16 %v4053, %v4049
        %v4258 = vpack.c.b16 %v4058, %v4054
        %v4259 = vpack.c.b16 %v4059, %v4055
        %v4260 = vpack.c.b16 %v4060, %v4056
        %v4261 = vpack.c.b16 %v4061, %v4057
        %v4262 = vpack.c.b16 %v4066, %v4062
        %v4263 = vpack.c.b16 %v4067, %v4063
        %v4264 = vpack.c.b16 %v4068, %v4064
        %v4265 = vpack.c.b16 %v4069, %v4065
        %v4266 = vpack.c.b16 %v4074, %v4070
        %v4267 = vpack.c.b16 %v4075, %v4071
        %v4268 = vpack.c.b16 %v4076, %v4072
        %v4269 = vpack.c.b16 %v4077, %v4073
        %v4270 = vpack.c.b16 %v4082, %v4078
        %v4271 = vpack.c.b16 %v4083, %v4079
        %v4272 = vpack.c.b16 %v4084, %v4080
        %v4273 = vpack.c.b16 %v4085, %v4081
        %v4274 = vpack.c.b16 %v4090, %v4086
        %v4275 = vpack.c.b16 %v4091, %v4087
        %v4276 = vpack.c.b16 %v4092, %v4088
        %v4277 = vpack.c.b16 %v4093, %v4089
        %v4278 = vpack.c.b16 %v4098, %v4094
        %v4279 = vpack.c.b16 %v4099, %v4095
        %v4280 = vpack.c.b16 %v4100, %v4096
        %v4281 = vpack.c.b16 %v4101, %v4097
        %v4282 = vpack.c.b16 %v4106, %v4102
        %v4283 = vpack.c.b16 %v4107, %v4103
        %v4284 = vpack.c.b16 %v4108, %v4104
        %v4285 = vpack.c.b16 %v4109, %v4105
        %v4286 = vpack.c.b16 %v4114, %v4110
        %v4287 = vpack.c.b16 %v4115, %v4111
        %v4288 = vpack.c.b16 %v4116, %v4112
        %v4289 = vpack.c.b16 %v4117, %v4113
        %v4290 = vpack.c.b16 %v4122, %v4118
        %v4291 = vpack.c.b16 %v4123, %v4119
        %v4292 = vpack.c.b16 %v4124, %v4120
        %v4293 = vpack.c.b16 %v4125, %v4121
        %v4294 = vpack.c.b16 %v4130, %v4126
        %v4295 = vpack.c.b16 %v4131, %v4127
        %v4296 = vpack.c.b16 %v4132, %v4128
        %v4297 = vpack.c.b16 %v4133, %v4129
        %v4298 = vpack.c.b16 %v4138, %v4134
        %v4299 = vpack.c.b16 %v4139, %v4135
        %v4300 = vpack.c.b16 %v4140, %v4136
        %v4301 = vpack.c.b16 %v4141, %v4137
        %v4302 = vpack.c.b16 %v4146, %v4142
        %v4303 = vpack.c.b16 %v4147, %v4143
        %v4304 = vpack.c.b16 %v4148, %v4144
        %v4305 = vpack.c.b16 %v4149, %v4145
        %v4306 = vpack.c.b16 %v4154, %v4150
        %v4307 = vpack.c.b16 %v4155, %v4151
        %v4308 = vpack.c.b16 %v4156, %v4152
        %v4309 = vpack.c.b16 %v4157, %v4153
        %v4310 = vpack.c.b16 %v4162, %v4158
        %v4311 = vpack.c.b16 %v4163, %v4159
        %v4312 = vpack.c.b16 %v4164, %v4160
        %v4313 = vpack.c.b16 %v4165, %v4161
        %v4314 = vpack.c.b16 %v4170, %v4166
        %v4315 = vpack.c.b16 %v4171, %v4167
        %v4316 = vpack.c.b16 %v4172, %v4168
        %v4317 = vpack.c.b16 %v4173, %v4169
        %v4318 = vpack.c.b16 %v4178, %v4174
        %v4319 = vpack.c.b16 %v4179, %v4175
        %v4320 = vpack.c.b16 %v4180, %v4176
        %v4321 = vpack.c.b16 %v4181, %v4177
        %v4322 = vpack.c.b16 %v4186, %v4182
        %v4323 = vpack.c.b16 %v4187, %v4183
        %v4324 = vpack.c.b16 %v4188, %v4184
        %v4325 = vpack.c.b16 %v4189, %v4185
        %v4326 = vpack.c.b16 %v4194, %v4190
        %v4327 = vpack.c.b16 %v4195, %v4191
        %v4328 = vpack.c.b16 %v4196, %v4192
        %v4329 = vpack.c.b16 %v4197, %v4193
        %v4330 = vpack.c.b16 %v4202, %v4198
        %v4331 = vpack.c.b16 %v4203, %v4199
        %v4332 = vpack.c.b16 %v4204, %v4200
        %v4333 = vpack.c.b16 %v4205, %v4201
        %4462 = vmatpush.bf16.msra.mxu0 %v4234
        %4463 = vmatpush.bf16.msra.mxu0 %v4230
        %4464 = vmatpush.bf16.msra.mxu0 %v4226
        %4465 = vmatpush.bf16.msra.mxu0 %v4222
        %4466 = vmatpush.bf16.msra.mxu0 %v4218
        %4467 = vmatpush.bf16.msra.mxu0 %v4214
        %4468 = vmatpush.bf16.msra.mxu0 %v4210
        %4469 = vmatpush.bf16.msra.mxu0 %v4206
        %4470 = vmatmul.bf16.gmra.mxu0 %v2712
        %v4471 = vpop.f32.mrf.mxu0
        %v4472 = vadd.f32 %v3663, %v4471
        %v4473 = vpop.f32.mrf.mxu0
        %4474 = vdwg.mxu0
        %4475 = vmatpush.bf16.msra.mxu0 %v4266
        %4476 = vmatpush.bf16.msra.mxu0 %v4262
        %4477 = vmatpush.bf16.msra.mxu0 %v4258
        %4478 = vmatpush.bf16.msra.mxu0 %v4254
        %4479 = vmatpush.bf16.msra.mxu0 %v4250
        %4480 = vmatpush.bf16.msra.mxu0 %v4246
        %4481 = vmatpush.bf16.msra.mxu0 %v4242
        %4482 = vmatpush.bf16.msra.mxu0 %v4238
        %4483 = vmatmul.bf16.gmra.mxu0 %v2713
        %v4484 = vpop.f32.mrf.mxu0
        %v4485 = vadd.f32 %v4472, %v4484
        %v4486 = vpop.f32.mrf.mxu0
        %4487 = vdwg.mxu0
        %4488 = vmatpush.bf16.msra.mxu0 %v4298
        %4489 = vmatpush.bf16.msra.mxu0 %v4294
        %4490 = vmatpush.bf16.msra.mxu0 %v4290
        %4491 = vmatpush.bf16.msra.mxu0 %v4286
        %4492 = vmatpush.bf16.msra.mxu0 %v4282
        %4493 = vmatpush.bf16.msra.mxu0 %v4278
        %4494 = vmatpush.bf16.msra.mxu0 %v4274
        %4495 = vmatpush.bf16.msra.mxu0 %v4270
        %4496 = vmatmul.bf16.gmra.mxu0 %v2714
        %v4497 = vpop.f32.mrf.mxu0
        %v4498 = vadd.f32 %v4485, %v4497
        %v4499 = vpop.f32.mrf.mxu0
        %4500 = vdwg.mxu0
        %4501 = vmatpush.bf16.msra.mxu0 %v4330
        %4502 = vmatpush.bf16.msra.mxu0 %v4326
        %4503 = vmatpush.bf16.msra.mxu0 %v4322
        %4504 = vmatpush.bf16.msra.mxu0 %v4318
        %4505 = vmatpush.bf16.msra.mxu0 %v4314
        %4506 = vmatpush.bf16.msra.mxu0 %v4310
        %4507 = vmatpush.bf16.msra.mxu0 %v4306
        %4508 = vmatpush.bf16.msra.mxu0 %v4302
        %4509 = vmatmul.bf16.gmra.mxu0 %v2715
        %v4510 = vpop.f32.mrf.mxu0
        %v4511 = vadd.f32 %v4498, %v4510
        %v4512 = vpop.f32.mrf.mxu0
        %4513 = vdwg.mxu0
        %4514 = vmatpush.bf16.msra.mxu0 %v4235
        %4515 = vmatpush.bf16.msra.mxu0 %v4231
        %4516 = vmatpush.bf16.msra.mxu0 %v4227
        %4517 = vmatpush.bf16.msra.mxu0 %v4223
        %4518 = vmatpush.bf16.msra.mxu0 %v4219
        %4519 = vmatpush.bf16.msra.mxu0 %v4215
        %4520 = vmatpush.bf16.msra.mxu0 %v4211
        %4521 = vmatpush.bf16.msra.mxu0 %v4207
        %4522 = vmatmul.bf16.gmra.mxu0 %v2712
        %v4523 = vpop.f32.mrf.mxu0
        %v4524 = vadd.f32 %v3715, %v4523
        %v4525 = vpop.f32.mrf.mxu0
        %4526 = vdwg.mxu0
        %4527 = vmatpush.bf16.msra.mxu0 %v4267
        %4528 = vmatpush.bf16.msra.mxu0 %v4263
        %4529 = vmatpush.bf16.msra.mxu0 %v4259
        %4530 = vmatpush.bf16.msra.mxu0 %v4255
        %4531 = vmatpush.bf16.msra.mxu0 %v4251
        %4532 = vmatpush.bf16.msra.mxu0 %v4247
        %4533 = vmatpush.bf16.msra.mxu0 %v4243
        %4534 = vmatpush.bf16.msra.mxu0 %v4239
        %4535 = vmatmul.bf16.gmra.mxu0 %v2713
        %v4536 = vpop.f32.mrf.mxu0
        %v4537 = vadd.f32 %v4524, %v4536
        %v4538 = vpop.f32.mrf.mxu0
        %4539 = vdwg.mxu0
        %4540 = vmatpush.bf16.msra.mxu0 %v4299
        %4541 = vmatpush.bf16.msra.mxu0 %v4295
        %4542 = vmatpush.bf16.msra.mxu0 %v4291
        %4543 = vmatpush.bf16.msra.mxu0 %v4287
        %4544 = vmatpush.bf16.msra.mxu0 %v4283
        %4545 = vmatpush.bf16.msra.mxu0 %v4279
        %4546 = vmatpush.bf16.msra.mxu0 %v4275
        %4547 = vmatpush.bf16.msra.mxu0 %v4271
        %4548 = vmatmul.bf16.gmra.mxu0 %v2714
        %v4549 = vpop.f32.mrf.mxu0
        %v4550 = vadd.f32 %v4537, %v4549
        %v4551 = vpop.f32.mrf.mxu0
        %4552 = vdwg.mxu0
        %4553 = vmatpush.bf16.msra.mxu0 %v4331
        %4554 = vmatpush.bf16.msra.mxu0 %v4327
        %4555 = vmatpush.bf16.msra.mxu0 %v4323
        %4556 = vmatpush.bf16.msra.mxu0 %v4319
        %4557 = vmatpush.bf16.msra.mxu0 %v4315
        %4558 = vmatpush.bf16.msra.mxu0 %v4311
        %4559 = vmatpush.bf16.msra.mxu0 %v4307
        %4560 = vmatpush.bf16.msra.mxu0 %v4303
        %4561 = vmatmul.bf16.gmra.mxu0 %v2715
        %v4562 = vpop.f32.mrf.mxu0
        %v4563 = vadd.f32 %v4550, %v4562
        %v4564 = vpop.f32.mrf.mxu0
        %4565 = vdwg.mxu0
        %4566 = vmatpush.bf16.msra.mxu0 %v4236
        %4567 = vmatpush.bf16.msra.mxu0 %v4232
        %4568 = vmatpush.bf16.msra.mxu0 %v4228
        %4569 = vmatpush.bf16.msra.mxu0 %v4224
        %4570 = vmatpush.bf16.msra.mxu0 %v4220
        %4571 = vmatpush.bf16.msra.mxu0 %v4216
        %4572 = vmatpush.bf16.msra.mxu0 %v4212
        %4573 = vmatpush.bf16.msra.mxu0 %v4208
        %4574 = vmatmul.bf16.gmra.mxu0 %v2712
        %v4575 = vpop.f32.mrf.mxu0
        %v4576 = vadd.f32 %v3767, %v4575
        %v4577 = vpop.f32.mrf.mxu0
        %4578 = vdwg.mxu0
        %4579 = vmatpush.bf16.msra.mxu0 %v4268
        %4580 = vmatpush.bf16.msra.mxu0 %v4264
        %4581 = vmatpush.bf16.msra.mxu0 %v4260
        %4582 = vmatpush.bf16.msra.mxu0 %v4256
        %4583 = vmatpush.bf16.msra.mxu0 %v4252
        %4584 = vmatpush.bf16.msra.mxu0 %v4248
        %4585 = vmatpush.bf16.msra.mxu0 %v4244
        %4586 = vmatpush.bf16.msra.mxu0 %v4240
        %4587 = vmatmul.bf16.gmra.mxu0 %v2713
        %v4588 = vpop.f32.mrf.mxu0
        %v4589 = vadd.f32 %v4576, %v4588
        %v4590 = vpop.f32.mrf.mxu0
        %4591 = vdwg.mxu0
        %4592 = vmatpush.bf16.msra.mxu0 %v4300
        %4593 = vmatpush.bf16.msra.mxu0 %v4296
        %4594 = vmatpush.bf16.msra.mxu0 %v4292
        %4595 = vmatpush.bf16.msra.mxu0 %v4288
        %4596 = vmatpush.bf16.msra.mxu0 %v4284
        %4597 = vmatpush.bf16.msra.mxu0 %v4280
        %4598 = vmatpush.bf16.msra.mxu0 %v4276
        %4599 = vmatpush.bf16.msra.mxu0 %v4272
        %4600 = vmatmul.bf16.gmra.mxu0 %v2714
        %v4601 = vpop.f32.mrf.mxu0
        %v4602 = vadd.f32 %v4589, %v4601
        %v4603 = vpop.f32.mrf.mxu0
        %4604 = vdwg.mxu0
        %4605 = vmatpush.bf16.msra.mxu0 %v4332
        %4606 = vmatpush.bf16.msra.mxu0 %v4328
        %4607 = vmatpush.bf16.msra.mxu0 %v4324
        %4608 = vmatpush.bf16.msra.mxu0 %v4320
        %4609 = vmatpush.bf16.msra.mxu0 %v4316
        %4610 = vmatpush.bf16.msra.mxu0 %v4312
        %4611 = vmatpush.bf16.msra.mxu0 %v4308
        %4612 = vmatpush.bf16.msra.mxu0 %v4304
        %4613 = vmatmul.bf16.gmra.mxu0 %v2715
        %v4614 = vpop.f32.mrf.mxu0
        %v4615 = vadd.f32 %v4602, %v4614
        %v4616 = vpop.f32.mrf.mxu0
        %4617 = vdwg.mxu0
        %4618 = vmatpush.bf16.msra.mxu0 %v4237
        %4619 = vmatpush.bf16.msra.mxu0 %v4233
        %4620 = vmatpush.bf16.msra.mxu0 %v4229
        %4621 = vmatpush.bf16.msra.mxu0 %v4225
        %4622 = vmatpush.bf16.msra.mxu0 %v4221
        %4623 = vmatpush.bf16.msra.mxu0 %v4217
        %4624 = vmatpush.bf16.msra.mxu0 %v4213
        %4625 = vmatpush.bf16.msra.mxu0 %v4209
        %4626 = vmatmul.bf16.gmra.mxu0 %v2712
        %v4627 = vpop.f32.mrf.mxu0
        %v4628 = vadd.f32 %v3819, %v4627
        %v4629 = vpop.f32.mrf.mxu0
        %4630 = vdwg.mxu0
        %4631 = vmatpush.bf16.msra.mxu0 %v4269
        %4632 = vmatpush.bf16.msra.mxu0 %v4265
        %4633 = vmatpush.bf16.msra.mxu0 %v4261
        %4634 = vmatpush.bf16.msra.mxu0 %v4257
        %4635 = vmatpush.bf16.msra.mxu0 %v4253
        %4636 = vmatpush.bf16.msra.mxu0 %v4249
        %4637 = vmatpush.bf16.msra.mxu0 %v4245
        %4638 = vmatpush.bf16.msra.mxu0 %v4241
        %4639 = vmatmul.bf16.gmra.mxu0 %v2713
        %v4640 = vpop.f32.mrf.mxu0
        %v4641 = vadd.f32 %v4628, %v4640
        %v4642 = vpop.f32.mrf.mxu0
        %4643 = vdwg.mxu0
        %4644 = vmatpush.bf16.msra.mxu0 %v4301
        %4645 = vmatpush.bf16.msra.mxu0 %v4297
        %4646 = vmatpush.bf16.msra.mxu0 %v4293
        %4647 = vmatpush.bf16.msra.mxu0 %v4289
        %4648 = vmatpush.bf16.msra.mxu0 %v4285
        %4649 = vmatpush.bf16.msra.mxu0 %v4281
        %4650 = vmatpush.bf16.msra.mxu0 %v4277
        %4651 = vmatpush.bf16.msra.mxu0 %v4273
        %4652 = vmatmul.bf16.gmra.mxu0 %v2714
        %v4653 = vpop.f32.mrf.mxu0
        %v4654 = vadd.f32 %v4641, %v4653
        %v4655 = vpop.f32.mrf.mxu0
        %4656 = vdwg.mxu0
        %4657 = vmatpush.bf16.msra.mxu0 %v4333
        %4658 = vmatpush.bf16.msra.mxu0 %v4329
        %4659 = vmatpush.bf16.msra.mxu0 %v4325
        %4660 = vmatpush.bf16.msra.mxu0 %v4321
        %4661 = vmatpush.bf16.msra.mxu0 %v4317
        %4662 = vmatpush.bf16.msra.mxu0 %v4313
        %4663 = vmatpush.bf16.msra.mxu0 %v4309
        %4664 = vmatpush.bf16.msra.mxu0 %v4305
        %4665 = vmatmul.bf16.gmra.mxu0 %v2715
        %v4666 = vpop.f32.mrf.mxu0
        %v4667 = vadd.f32 %v4654, %v4666
        %v4668 = vpop.f32.mrf.mxu0
        %4669 = vdwg.mxu0
        %s4670 = scalar_lea.vmem [#allocation12], 4
        %v4671 = vld [vmem:[%s4670] sm:$0xf]
        %v4673 = vperm.slane %v4671, 0
        %v4674 = vperm.slane %v4671, 1
        %v4675 = vperm.slane %v4671, 2
        %v4676 = vperm.slane %v4671, 3
        %v4681 = vadd.f32 %v4511, %v4673
        %v4682 = vadd.f32 %v4563, %v4674
        %v4683 = vadd.f32 %v4615, %v4675
        %v4684 = vadd.f32 %v4667, %v4676
        %v4685 = vmax.f32 %v4681, 0.0
        %v4686 = vmax.f32 %v4682, 0.0
        %v4687 = vmax.f32 %v4683, 0.0
        %v4688 = vmax.f32 %v4684, 0.0
        %v4689 = vpack.c.bf16 %v4685, %v4685
        %v4690 = vpack.c.bf16 %v4686, %v4686
        %v4691 = vpack.c.bf16 %v4687, %v4687
        %v4692 = vpack.c.bf16 %v4688, %v4688
        %v4693 = vld [vmem:[#allocation14] sm:$0xff]
        %v4694 = vld [vmem:[#allocation14 + $0x8] sm:$0xff]
        %v4695 = vld [vmem:[#allocation14 + $0x10] sm:$0xff]
        %v4696 = vld [vmem:[#allocation14 + $0x18] sm:$0xff]
        %v4697 = vld [vmem:[#allocation14 + $0x20] sm:$0xff]
        %v4698 = vld [vmem:[#allocation14 + $0x28] sm:$0xff]
        %v4699 = vld [vmem:[#allocation14 + $0x30] sm:$0xff]
        %v4700 = vld [vmem:[#allocation14 + $0x38] sm:$0xff]
        %v4701 = vld [vmem:[#allocation14 + $0x40] sm:$0xff]
        %v4702 = vld [vmem:[#allocation14 + $0x48] sm:$0xff]
        %v4703 = vld [vmem:[#allocation14 + $0x50] sm:$0xff]
        %v4704 = vld [vmem:[#allocation14 + $0x58] sm:$0xff]
        %v4705 = vld [vmem:[#allocation14 + $0x60] sm:$0xff]
        %v4706 = vld [vmem:[#allocation14 + $0x68] sm:$0xff]
        %v4707 = vld [vmem:[#allocation14 + $0x70] sm:$0xff]
        %v4708 = vld [vmem:[#allocation14 + $0x78] sm:$0xff]
        %v4709 = vld [vmem:[#allocation14 + $0x80] sm:$0xff]
        %v4710 = vld [vmem:[#allocation14 + $0x88] sm:$0xff]
        %v4711 = vld [vmem:[#allocation14 + $0x90] sm:$0xff]
        %v4712 = vld [vmem:[#allocation14 + $0x98] sm:$0xff]
        %v4713 = vld [vmem:[#allocation14 + $0xa0] sm:$0xff]
        %v4714 = vld [vmem:[#allocation14 + $0xa8] sm:$0xff]
        %v4715 = vld [vmem:[#allocation14 + $0xb0] sm:$0xff]
        %v4716 = vld [vmem:[#allocation14 + $0xb8] sm:$0xff]
        %v4717 = vld [vmem:[#allocation14 + $0xc0] sm:$0xff]
        %v4718 = vld [vmem:[#allocation14 + $0xc8] sm:$0xff]
        %v4719 = vld [vmem:[#allocation14 + $0xd0] sm:$0xff]
        %v4720 = vld [vmem:[#allocation14 + $0xd8] sm:$0xff]
        %v4721 = vld [vmem:[#allocation14 + $0xe0] sm:$0xff]
        %v4722 = vld [vmem:[#allocation14 + $0xe8] sm:$0xff]
        %v4723 = vld [vmem:[#allocation14 + $0xf0] sm:$0xff]
        %v4724 = vld [vmem:[#allocation14 + $0xf8] sm:$0xff]
        %v4725 = vld [vmem:[#allocation14 + $0x100] sm:$0xff]
        %v4726 = vld [vmem:[#allocation14 + $0x108] sm:$0xff]
        %v4727 = vld [vmem:[#allocation14 + $0x110] sm:$0xff]
        %v4728 = vld [vmem:[#allocation14 + $0x118] sm:$0xff]
        %v4729 = vld [vmem:[#allocation14 + $0x120] sm:$0xff]
        %v4730 = vld [vmem:[#allocation14 + $0x128] sm:$0xff]
        %v4731 = vld [vmem:[#allocation14 + $0x130] sm:$0xff]
        %v4732 = vld [vmem:[#allocation14 + $0x138] sm:$0xff]
        %v4733 = vld [vmem:[#allocation14 + $0x140] sm:$0xff]
        %v4734 = vld [vmem:[#allocation14 + $0x148] sm:$0xff]
        %v4735 = vld [vmem:[#allocation14 + $0x150] sm:$0xff]
        %v4736 = vld [vmem:[#allocation14 + $0x158] sm:$0xff]
        %v4737 = vld [vmem:[#allocation14 + $0x160] sm:$0xff]
        %v4738 = vld [vmem:[#allocation14 + $0x168] sm:$0xff]
        %v4739 = vld [vmem:[#allocation14 + $0x170] sm:$0xff]
        %v4740 = vld [vmem:[#allocation14 + $0x178] sm:$0xff]
        %v4741 = vld [vmem:[#allocation14 + $0x180] sm:$0xff]
        %v4742 = vld [vmem:[#allocation14 + $0x188] sm:$0xff]
        %v4743 = vld [vmem:[#allocation14 + $0x190] sm:$0xff]
        %v4744 = vld [vmem:[#allocation14 + $0x198] sm:$0xff]
        %v4745 = vld [vmem:[#allocation14 + $0x1a0] sm:$0xff]
        %v4746 = vld [vmem:[#allocation14 + $0x1a8] sm:$0xff]
        %v4747 = vld [vmem:[#allocation14 + $0x1b0] sm:$0xff]
        %v4748 = vld [vmem:[#allocation14 + $0x1b8] sm:$0xff]
        %v4749 = vld [vmem:[#allocation14 + $0x1c0] sm:$0xff]
        %v4750 = vld [vmem:[#allocation14 + $0x1c8] sm:$0xff]
        %v4751 = vld [vmem:[#allocation14 + $0x1d0] sm:$0xff]
        %v4752 = vld [vmem:[#allocation14 + $0x1d8] sm:$0xff]
        %v4753 = vld [vmem:[#allocation14 + $0x1e0] sm:$0xff]
        %v4754 = vld [vmem:[#allocation14 + $0x1e8] sm:$0xff]
        %v4755 = vld [vmem:[#allocation14 + $0x1f0] sm:$0xff]
        %v4756 = vld [vmem:[#allocation14 + $0x1f8] sm:$0xff]
        %v4757 = vld [vmem:[#allocation14 + $0x200] sm:$0xff]
        %v4758 = vld [vmem:[#allocation14 + $0x208] sm:$0xff]
        %v4759 = vld [vmem:[#allocation14 + $0x210] sm:$0xff]
        %v4760 = vld [vmem:[#allocation14 + $0x218] sm:$0xff]
        %v4761 = vld [vmem:[#allocation14 + $0x220] sm:$0xff]
        %v4762 = vld [vmem:[#allocation14 + $0x228] sm:$0xff]
        %v4763 = vld [vmem:[#allocation14 + $0x230] sm:$0xff]
        %v4764 = vld [vmem:[#allocation14 + $0x238] sm:$0xff]
        %v4765 = vld [vmem:[#allocation14 + $0x240] sm:$0xff]
        %v4766 = vld [vmem:[#allocation14 + $0x248] sm:$0xff]
        %v4767 = vld [vmem:[#allocation14 + $0x250] sm:$0xff]
        %v4768 = vld [vmem:[#allocation14 + $0x258] sm:$0xff]
        %v4769 = vld [vmem:[#allocation14 + $0x260] sm:$0xff]
        %v4770 = vld [vmem:[#allocation14 + $0x268] sm:$0xff]
        %v4771 = vld [vmem:[#allocation14 + $0x270] sm:$0xff]
        %v4772 = vld [vmem:[#allocation14 + $0x278] sm:$0xff]
        %v4773 = vld [vmem:[#allocation14 + $0x280] sm:$0xff]
        %v4774 = vld [vmem:[#allocation14 + $0x288] sm:$0xff]
        %v4775 = vld [vmem:[#allocation14 + $0x290] sm:$0xff]
        %v4776 = vld [vmem:[#allocation14 + $0x298] sm:$0xff]
        %v4777 = vld [vmem:[#allocation14 + $0x2a0] sm:$0xff]
        %v4778 = vld [vmem:[#allocation14 + $0x2a8] sm:$0xff]
        %v4779 = vld [vmem:[#allocation14 + $0x2b0] sm:$0xff]
        %v4780 = vld [vmem:[#allocation14 + $0x2b8] sm:$0xff]
        %v4781 = vld [vmem:[#allocation14 + $0x2c0] sm:$0xff]
        %v4782 = vld [vmem:[#allocation14 + $0x2c8] sm:$0xff]
        %v4783 = vld [vmem:[#allocation14 + $0x2d0] sm:$0xff]
        %v4784 = vld [vmem:[#allocation14 + $0x2d8] sm:$0xff]
        %v4785 = vld [vmem:[#allocation14 + $0x2e0] sm:$0xff]
        %v4786 = vld [vmem:[#allocation14 + $0x2e8] sm:$0xff]
        %v4787 = vld [vmem:[#allocation14 + $0x2f0] sm:$0xff]
        %v4788 = vld [vmem:[#allocation14 + $0x2f8] sm:$0xff]
        %v4789 = vld [vmem:[#allocation14 + $0x300] sm:$0xff]
        %v4790 = vld [vmem:[#allocation14 + $0x308] sm:$0xff]
        %v4791 = vld [vmem:[#allocation14 + $0x310] sm:$0xff]
        %v4792 = vld [vmem:[#allocation14 + $0x318] sm:$0xff]
        %v4793 = vld [vmem:[#allocation14 + $0x320] sm:$0xff]
        %v4794 = vld [vmem:[#allocation14 + $0x328] sm:$0xff]
        %v4795 = vld [vmem:[#allocation14 + $0x330] sm:$0xff]
        %v4796 = vld [vmem:[#allocation14 + $0x338] sm:$0xff]
        %v4797 = vld [vmem:[#allocation14 + $0x340] sm:$0xff]
        %v4798 = vld [vmem:[#allocation14 + $0x348] sm:$0xff]
        %v4799 = vld [vmem:[#allocation14 + $0x350] sm:$0xff]
        %v4800 = vld [vmem:[#allocation14 + $0x358] sm:$0xff]
        %v4801 = vld [vmem:[#allocation14 + $0x360] sm:$0xff]
        %v4802 = vld [vmem:[#allocation14 + $0x368] sm:$0xff]
        %v4803 = vld [vmem:[#allocation14 + $0x370] sm:$0xff]
        %v4804 = vld [vmem:[#allocation14 + $0x378] sm:$0xff]
        %v4805 = vld [vmem:[#allocation14 + $0x380] sm:$0xff]
        %v4806 = vld [vmem:[#allocation14 + $0x388] sm:$0xff]
        %v4807 = vld [vmem:[#allocation14 + $0x390] sm:$0xff]
        %v4808 = vld [vmem:[#allocation14 + $0x398] sm:$0xff]
        %v4809 = vld [vmem:[#allocation14 + $0x3a0] sm:$0xff]
        %v4810 = vld [vmem:[#allocation14 + $0x3a8] sm:$0xff]
        %v4811 = vld [vmem:[#allocation14 + $0x3b0] sm:$0xff]
        %v4812 = vld [vmem:[#allocation14 + $0x3b8] sm:$0xff]
        %v4813 = vld [vmem:[#allocation14 + $0x3c0] sm:$0xff]
        %v4814 = vld [vmem:[#allocation14 + $0x3c8] sm:$0xff]
        %v4815 = vld [vmem:[#allocation14 + $0x3d0] sm:$0xff]
        %v4816 = vld [vmem:[#allocation14 + $0x3d8] sm:$0xff]
        %v4817 = vld [vmem:[#allocation14 + $0x3e0] sm:$0xff]
        %v4818 = vld [vmem:[#allocation14 + $0x3e8] sm:$0xff]
        %v4819 = vld [vmem:[#allocation14 + $0x3f0] sm:$0xff]
        %v4820 = vld [vmem:[#allocation14 + $0x3f8] sm:$0xff]
        %v4821 = vld [vmem:[#allocation14 + $0x400] sm:$0xff]
        %v4822 = vld [vmem:[#allocation14 + $0x408] sm:$0xff]
        %v4823 = vld [vmem:[#allocation14 + $0x410] sm:$0xff]
        %v4824 = vld [vmem:[#allocation14 + $0x418] sm:$0xff]
        %v4825 = vld [vmem:[#allocation14 + $0x420] sm:$0xff]
        %v4826 = vld [vmem:[#allocation14 + $0x428] sm:$0xff]
        %v4827 = vld [vmem:[#allocation14 + $0x430] sm:$0xff]
        %v4828 = vld [vmem:[#allocation14 + $0x438] sm:$0xff]
        %v4829 = vld [vmem:[#allocation14 + $0x440] sm:$0xff]
        %v4830 = vld [vmem:[#allocation14 + $0x448] sm:$0xff]
        %v4831 = vld [vmem:[#allocation14 + $0x450] sm:$0xff]
        %v4832 = vld [vmem:[#allocation14 + $0x458] sm:$0xff]
        %v4833 = vld [vmem:[#allocation14 + $0x460] sm:$0xff]
        %v4834 = vld [vmem:[#allocation14 + $0x468] sm:$0xff]
        %v4835 = vld [vmem:[#allocation14 + $0x470] sm:$0xff]
        %v4836 = vld [vmem:[#allocation14 + $0x478] sm:$0xff]
        %v4837 = vld [vmem:[#allocation14 + $0x480] sm:$0xff]
        %v4838 = vld [vmem:[#allocation14 + $0x488] sm:$0xff]
        %v4839 = vld [vmem:[#allocation14 + $0x490] sm:$0xff]
        %v4840 = vld [vmem:[#allocation14 + $0x498] sm:$0xff]
        %v4841 = vld [vmem:[#allocation14 + $0x4a0] sm:$0xff]
        %v4842 = vld [vmem:[#allocation14 + $0x4a8] sm:$0xff]
        %v4843 = vld [vmem:[#allocation14 + $0x4b0] sm:$0xff]
        %v4844 = vld [vmem:[#allocation14 + $0x4b8] sm:$0xff]
        %v4845 = vld [vmem:[#allocation14 + $0x4c0] sm:$0xff]
        %v4846 = vld [vmem:[#allocation14 + $0x4c8] sm:$0xff]
        %v4847 = vld [vmem:[#allocation14 + $0x4d0] sm:$0xff]
        %v4848 = vld [vmem:[#allocation14 + $0x4d8] sm:$0xff]
        %v4849 = vld [vmem:[#allocation14 + $0x4e0] sm:$0xff]
        %v4850 = vld [vmem:[#allocation14 + $0x4e8] sm:$0xff]
        %v4851 = vld [vmem:[#allocation14 + $0x4f0] sm:$0xff]
        %v4852 = vld [vmem:[#allocation14 + $0x4f8] sm:$0xff]
        %v4853 = vld [vmem:[#allocation14 + $0x500] sm:$0xff]
        %v4854 = vld [vmem:[#allocation14 + $0x508] sm:$0xff]
        %v4855 = vld [vmem:[#allocation14 + $0x510] sm:$0xff]
        %v4856 = vld [vmem:[#allocation14 + $0x518] sm:$0xff]
        %v4857 = vld [vmem:[#allocation14 + $0x520] sm:$0xff]
        %v4858 = vld [vmem:[#allocation14 + $0x528] sm:$0xff]
        %v4859 = vld [vmem:[#allocation14 + $0x530] sm:$0xff]
        %v4860 = vld [vmem:[#allocation14 + $0x538] sm:$0xff]
        %v4861 = vld [vmem:[#allocation14 + $0x540] sm:$0xff]
        %v4862 = vld [vmem:[#allocation14 + $0x548] sm:$0xff]
        %v4863 = vld [vmem:[#allocation14 + $0x550] sm:$0xff]
        %v4864 = vld [vmem:[#allocation14 + $0x558] sm:$0xff]
        %v4865 = vld [vmem:[#allocation14 + $0x560] sm:$0xff]
        %v4866 = vld [vmem:[#allocation14 + $0x568] sm:$0xff]
        %v4867 = vld [vmem:[#allocation14 + $0x570] sm:$0xff]
        %v4868 = vld [vmem:[#allocation14 + $0x578] sm:$0xff]
        %v4869 = vld [vmem:[#allocation14 + $0x580] sm:$0xff]
        %v4870 = vld [vmem:[#allocation14 + $0x588] sm:$0xff]
        %v4871 = vld [vmem:[#allocation14 + $0x590] sm:$0xff]
        %v4872 = vld [vmem:[#allocation14 + $0x598] sm:$0xff]
        %v4873 = vld [vmem:[#allocation14 + $0x5a0] sm:$0xff]
        %v4874 = vld [vmem:[#allocation14 + $0x5a8] sm:$0xff]
        %v4875 = vld [vmem:[#allocation14 + $0x5b0] sm:$0xff]
        %v4876 = vld [vmem:[#allocation14 + $0x5b8] sm:$0xff]
        %v4877 = vld [vmem:[#allocation14 + $0x5c0] sm:$0xff]
        %v4878 = vld [vmem:[#allocation14 + $0x5c8] sm:$0xff]
        %v4879 = vld [vmem:[#allocation14 + $0x5d0] sm:$0xff]
        %v4880 = vld [vmem:[#allocation14 + $0x5d8] sm:$0xff]
        %v4881 = vld [vmem:[#allocation14 + $0x5e0] sm:$0xff]
        %v4882 = vld [vmem:[#allocation14 + $0x5e8] sm:$0xff]
        %v4883 = vld [vmem:[#allocation14 + $0x5f0] sm:$0xff]
        %v4884 = vld [vmem:[#allocation14 + $0x5f8] sm:$0xff]
        %v4885 = vld [vmem:[#allocation14 + $0x600] sm:$0xff]
        %v4886 = vld [vmem:[#allocation14 + $0x608] sm:$0xff]
        %v4887 = vld [vmem:[#allocation14 + $0x610] sm:$0xff]
        %v4888 = vld [vmem:[#allocation14 + $0x618] sm:$0xff]
        %v4889 = vld [vmem:[#allocation14 + $0x620] sm:$0xff]
        %v4890 = vld [vmem:[#allocation14 + $0x628] sm:$0xff]
        %v4891 = vld [vmem:[#allocation14 + $0x630] sm:$0xff]
        %v4892 = vld [vmem:[#allocation14 + $0x638] sm:$0xff]
        %v4893 = vld [vmem:[#allocation14 + $0x640] sm:$0xff]
        %v4894 = vld [vmem:[#allocation14 + $0x648] sm:$0xff]
        %v4895 = vld [vmem:[#allocation14 + $0x650] sm:$0xff]
        %v4896 = vld [vmem:[#allocation14 + $0x658] sm:$0xff]
        %v4897 = vld [vmem:[#allocation14 + $0x660] sm:$0xff]
        %v4898 = vld [vmem:[#allocation14 + $0x668] sm:$0xff]
        %v4899 = vld [vmem:[#allocation14 + $0x670] sm:$0xff]
        %v4900 = vld [vmem:[#allocation14 + $0x678] sm:$0xff]
        %v4901 = vld [vmem:[#allocation14 + $0x680] sm:$0xff]
        %v4902 = vld [vmem:[#allocation14 + $0x688] sm:$0xff]
        %v4903 = vld [vmem:[#allocation14 + $0x690] sm:$0xff]
        %v4904 = vld [vmem:[#allocation14 + $0x698] sm:$0xff]
        %v4905 = vld [vmem:[#allocation14 + $0x6a0] sm:$0xff]
        %v4906 = vld [vmem:[#allocation14 + $0x6a8] sm:$0xff]
        %v4907 = vld [vmem:[#allocation14 + $0x6b0] sm:$0xff]
        %v4908 = vld [vmem:[#allocation14 + $0x6b8] sm:$0xff]
        %v4909 = vld [vmem:[#allocation14 + $0x6c0] sm:$0xff]
        %v4910 = vld [vmem:[#allocation14 + $0x6c8] sm:$0xff]
        %v4911 = vld [vmem:[#allocation14 + $0x6d0] sm:$0xff]
        %v4912 = vld [vmem:[#allocation14 + $0x6d8] sm:$0xff]
        %v4913 = vld [vmem:[#allocation14 + $0x6e0] sm:$0xff]
        %v4914 = vld [vmem:[#allocation14 + $0x6e8] sm:$0xff]
        %v4915 = vld [vmem:[#allocation14 + $0x6f0] sm:$0xff]
        %v4916 = vld [vmem:[#allocation14 + $0x6f8] sm:$0xff]
        %v4917 = vld [vmem:[#allocation14 + $0x700] sm:$0xff]
        %v4918 = vld [vmem:[#allocation14 + $0x708] sm:$0xff]
        %v4919 = vld [vmem:[#allocation14 + $0x710] sm:$0xff]
        %v4920 = vld [vmem:[#allocation14 + $0x718] sm:$0xff]
        %v4921 = vld [vmem:[#allocation14 + $0x720] sm:$0xff]
        %v4922 = vld [vmem:[#allocation14 + $0x728] sm:$0xff]
        %v4923 = vld [vmem:[#allocation14 + $0x730] sm:$0xff]
        %v4924 = vld [vmem:[#allocation14 + $0x738] sm:$0xff]
        %v4925 = vld [vmem:[#allocation14 + $0x740] sm:$0xff]
        %v4926 = vld [vmem:[#allocation14 + $0x748] sm:$0xff]
        %v4927 = vld [vmem:[#allocation14 + $0x750] sm:$0xff]
        %v4928 = vld [vmem:[#allocation14 + $0x758] sm:$0xff]
        %v4929 = vld [vmem:[#allocation14 + $0x760] sm:$0xff]
        %v4930 = vld [vmem:[#allocation14 + $0x768] sm:$0xff]
        %v4931 = vld [vmem:[#allocation14 + $0x770] sm:$0xff]
        %v4932 = vld [vmem:[#allocation14 + $0x778] sm:$0xff]
        %v4933 = vld [vmem:[#allocation14 + $0x780] sm:$0xff]
        %v4934 = vld [vmem:[#allocation14 + $0x788] sm:$0xff]
        %v4935 = vld [vmem:[#allocation14 + $0x790] sm:$0xff]
        %v4936 = vld [vmem:[#allocation14 + $0x798] sm:$0xff]
        %v4937 = vld [vmem:[#allocation14 + $0x7a0] sm:$0xff]
        %v4938 = vld [vmem:[#allocation14 + $0x7a8] sm:$0xff]
        %v4939 = vld [vmem:[#allocation14 + $0x7b0] sm:$0xff]
        %v4940 = vld [vmem:[#allocation14 + $0x7b8] sm:$0xff]
        %v4941 = vld [vmem:[#allocation14 + $0x7c0] sm:$0xff]
        %v4942 = vld [vmem:[#allocation14 + $0x7c8] sm:$0xff]
        %v4943 = vld [vmem:[#allocation14 + $0x7d0] sm:$0xff]
        %v4944 = vld [vmem:[#allocation14 + $0x7d8] sm:$0xff]
        %v4945 = vld [vmem:[#allocation14 + $0x7e0] sm:$0xff]
        %v4946 = vld [vmem:[#allocation14 + $0x7e8] sm:$0xff]
        %v4947 = vld [vmem:[#allocation14 + $0x7f0] sm:$0xff]
        %v4948 = vld [vmem:[#allocation14 + $0x7f8] sm:$0xff]
        %v4949 = vld [vmem:[#allocation14 + $0x800] sm:$0xff]
        %v4950 = vld [vmem:[#allocation14 + $0x808] sm:$0xff]
        %v4951 = vld [vmem:[#allocation14 + $0x810] sm:$0xff]
        %v4952 = vld [vmem:[#allocation14 + $0x818] sm:$0xff]
        %v4953 = vld [vmem:[#allocation14 + $0x820] sm:$0xff]
        %v4954 = vld [vmem:[#allocation14 + $0x828] sm:$0xff]
        %v4955 = vld [vmem:[#allocation14 + $0x830] sm:$0xff]
        %v4956 = vld [vmem:[#allocation14 + $0x838] sm:$0xff]
        %v4957 = vld [vmem:[#allocation14 + $0x840] sm:$0xff]
        %v4958 = vld [vmem:[#allocation14 + $0x848] sm:$0xff]
        %v4959 = vld [vmem:[#allocation14 + $0x850] sm:$0xff]
        %v4960 = vld [vmem:[#allocation14 + $0x858] sm:$0xff]
        %v4961 = vld [vmem:[#allocation14 + $0x860] sm:$0xff]
        %v4962 = vld [vmem:[#allocation14 + $0x868] sm:$0xff]
        %v4963 = vld [vmem:[#allocation14 + $0x870] sm:$0xff]
        %v4964 = vld [vmem:[#allocation14 + $0x878] sm:$0xff]
        %v4965 = vld [vmem:[#allocation14 + $0x880] sm:$0xff]
        %v4966 = vld [vmem:[#allocation14 + $0x888] sm:$0xff]
        %v4967 = vld [vmem:[#allocation14 + $0x890] sm:$0xff]
        %v4968 = vld [vmem:[#allocation14 + $0x898] sm:$0xff]
        %v4969 = vld [vmem:[#allocation14 + $0x8a0] sm:$0xff]
        %v4970 = vld [vmem:[#allocation14 + $0x8a8] sm:$0xff]
        %v4971 = vld [vmem:[#allocation14 + $0x8b0] sm:$0xff]
        %v4972 = vld [vmem:[#allocation14 + $0x8b8] sm:$0xff]
        %v4973 = vld [vmem:[#allocation14 + $0x8c0] sm:$0xff]
        %v4974 = vld [vmem:[#allocation14 + $0x8c8] sm:$0xff]
        %v4975 = vld [vmem:[#allocation14 + $0x8d0] sm:$0xff]
        %v4976 = vld [vmem:[#allocation14 + $0x8d8] sm:$0xff]
        %v4977 = vld [vmem:[#allocation14 + $0x8e0] sm:$0xff]
        %v4978 = vld [vmem:[#allocation14 + $0x8e8] sm:$0xff]
        %v4979 = vld [vmem:[#allocation14 + $0x8f0] sm:$0xff]
        %v4980 = vld [vmem:[#allocation14 + $0x8f8] sm:$0xff]
        %v4981 = vld [vmem:[#allocation14 + $0x900] sm:$0xff]
        %v4982 = vld [vmem:[#allocation14 + $0x908] sm:$0xff]
        %v4983 = vld [vmem:[#allocation14 + $0x910] sm:$0xff]
        %v4984 = vld [vmem:[#allocation14 + $0x918] sm:$0xff]
        %v4985 = vld [vmem:[#allocation14 + $0x920] sm:$0xff]
        %v4986 = vld [vmem:[#allocation14 + $0x928] sm:$0xff]
        %v4987 = vld [vmem:[#allocation14 + $0x930] sm:$0xff]
        %v4988 = vld [vmem:[#allocation14 + $0x938] sm:$0xff]
        %v4989 = vld [vmem:[#allocation14 + $0x940] sm:$0xff]
        %v4990 = vld [vmem:[#allocation14 + $0x948] sm:$0xff]
        %v4991 = vld [vmem:[#allocation14 + $0x950] sm:$0xff]
        %v4992 = vld [vmem:[#allocation14 + $0x958] sm:$0xff]
        %v4993 = vld [vmem:[#allocation14 + $0x960] sm:$0xff]
        %v4994 = vld [vmem:[#allocation14 + $0x968] sm:$0xff]
        %v4995 = vld [vmem:[#allocation14 + $0x970] sm:$0xff]
        %v4996 = vld [vmem:[#allocation14 + $0x978] sm:$0xff]
        %v4997 = vld [vmem:[#allocation14 + $0x980] sm:$0xff]
        %v4998 = vld [vmem:[#allocation14 + $0x988] sm:$0xff]
        %v4999 = vld [vmem:[#allocation14 + $0x990] sm:$0xff]
        %v5000 = vld [vmem:[#allocation14 + $0x998] sm:$0xff]
        %v5001 = vld [vmem:[#allocation14 + $0x9a0] sm:$0xff]
        %v5002 = vld [vmem:[#allocation14 + $0x9a8] sm:$0xff]
        %v5003 = vld [vmem:[#allocation14 + $0x9b0] sm:$0xff]
        %v5004 = vld [vmem:[#allocation14 + $0x9b8] sm:$0xff]
        %v5005 = vld [vmem:[#allocation14 + $0x9c0] sm:$0xff]
        %v5006 = vld [vmem:[#allocation14 + $0x9c8] sm:$0xff]
        %v5007 = vld [vmem:[#allocation14 + $0x9d0] sm:$0xff]
        %v5008 = vld [vmem:[#allocation14 + $0x9d8] sm:$0xff]
        %v5009 = vld [vmem:[#allocation14 + $0x9e0] sm:$0xff]
        %v5010 = vld [vmem:[#allocation14 + $0x9e8] sm:$0xff]
        %v5011 = vld [vmem:[#allocation14 + $0x9f0] sm:$0xff]
        %v5012 = vld [vmem:[#allocation14 + $0x9f8] sm:$0xff]
        %v5013 = vld [vmem:[#allocation14 + $0xa00] sm:$0xff]
        %v5014 = vld [vmem:[#allocation14 + $0xa08] sm:$0xff]
        %v5015 = vld [vmem:[#allocation14 + $0xa10] sm:$0xff]
        %v5016 = vld [vmem:[#allocation14 + $0xa18] sm:$0xff]
        %v5017 = vld [vmem:[#allocation14 + $0xa20] sm:$0xff]
        %v5018 = vld [vmem:[#allocation14 + $0xa28] sm:$0xff]
        %v5019 = vld [vmem:[#allocation14 + $0xa30] sm:$0xff]
        %v5020 = vld [vmem:[#allocation14 + $0xa38] sm:$0xff]
        %v5021 = vld [vmem:[#allocation14 + $0xa40] sm:$0xff]
        %v5022 = vld [vmem:[#allocation14 + $0xa48] sm:$0xff]
        %v5023 = vld [vmem:[#allocation14 + $0xa50] sm:$0xff]
        %v5024 = vld [vmem:[#allocation14 + $0xa58] sm:$0xff]
        %v5025 = vld [vmem:[#allocation14 + $0xa60] sm:$0xff]
        %v5026 = vld [vmem:[#allocation14 + $0xa68] sm:$0xff]
        %v5027 = vld [vmem:[#allocation14 + $0xa70] sm:$0xff]
        %v5028 = vld [vmem:[#allocation14 + $0xa78] sm:$0xff]
        %v5029 = vld [vmem:[#allocation14 + $0xa80] sm:$0xff]
        %v5030 = vld [vmem:[#allocation14 + $0xa88] sm:$0xff]
        %v5031 = vld [vmem:[#allocation14 + $0xa90] sm:$0xff]
        %v5032 = vld [vmem:[#allocation14 + $0xa98] sm:$0xff]
        %v5033 = vld [vmem:[#allocation14 + $0xaa0] sm:$0xff]
        %v5034 = vld [vmem:[#allocation14 + $0xaa8] sm:$0xff]
        %v5035 = vld [vmem:[#allocation14 + $0xab0] sm:$0xff]
        %v5036 = vld [vmem:[#allocation14 + $0xab8] sm:$0xff]
        %v5037 = vld [vmem:[#allocation14 + $0xac0] sm:$0xff]
        %v5038 = vld [vmem:[#allocation14 + $0xac8] sm:$0xff]
        %v5039 = vld [vmem:[#allocation14 + $0xad0] sm:$0xff]
        %v5040 = vld [vmem:[#allocation14 + $0xad8] sm:$0xff]
        %v5041 = vld [vmem:[#allocation14 + $0xae0] sm:$0xff]
        %v5042 = vld [vmem:[#allocation14 + $0xae8] sm:$0xff]
        %v5043 = vld [vmem:[#allocation14 + $0xaf0] sm:$0xff]
        %v5044 = vld [vmem:[#allocation14 + $0xaf8] sm:$0xff]
        %v5045 = vld [vmem:[#allocation14 + $0xb00] sm:$0xff]
        %v5046 = vld [vmem:[#allocation14 + $0xb08] sm:$0xff]
        %v5047 = vld [vmem:[#allocation14 + $0xb10] sm:$0xff]
        %v5048 = vld [vmem:[#allocation14 + $0xb18] sm:$0xff]
        %v5049 = vld [vmem:[#allocation14 + $0xb20] sm:$0xff]
        %v5050 = vld [vmem:[#allocation14 + $0xb28] sm:$0xff]
        %v5051 = vld [vmem:[#allocation14 + $0xb30] sm:$0xff]
        %v5052 = vld [vmem:[#allocation14 + $0xb38] sm:$0xff]
        %v5053 = vld [vmem:[#allocation14 + $0xb40] sm:$0xff]
        %v5054 = vld [vmem:[#allocation14 + $0xb48] sm:$0xff]
        %v5055 = vld [vmem:[#allocation14 + $0xb50] sm:$0xff]
        %v5056 = vld [vmem:[#allocation14 + $0xb58] sm:$0xff]
        %v5057 = vld [vmem:[#allocation14 + $0xb60] sm:$0xff]
        %v5058 = vld [vmem:[#allocation14 + $0xb68] sm:$0xff]
        %v5059 = vld [vmem:[#allocation14 + $0xb70] sm:$0xff]
        %v5060 = vld [vmem:[#allocation14 + $0xb78] sm:$0xff]
        %v5061 = vld [vmem:[#allocation14 + $0xb80] sm:$0xff]
        %v5062 = vld [vmem:[#allocation14 + $0xb88] sm:$0xff]
        %v5063 = vld [vmem:[#allocation14 + $0xb90] sm:$0xff]
        %v5064 = vld [vmem:[#allocation14 + $0xb98] sm:$0xff]
        %v5065 = vld [vmem:[#allocation14 + $0xba0] sm:$0xff]
        %v5066 = vld [vmem:[#allocation14 + $0xba8] sm:$0xff]
        %v5067 = vld [vmem:[#allocation14 + $0xbb0] sm:$0xff]
        %v5068 = vld [vmem:[#allocation14 + $0xbb8] sm:$0xff]
        %v5069 = vld [vmem:[#allocation14 + $0xbc0] sm:$0xff]
        %v5070 = vld [vmem:[#allocation14 + $0xbc8] sm:$0xff]
        %v5071 = vld [vmem:[#allocation14 + $0xbd0] sm:$0xff]
        %v5072 = vld [vmem:[#allocation14 + $0xbd8] sm:$0xff]
        %v5073 = vld [vmem:[#allocation14 + $0xbe0] sm:$0xff]
        %v5074 = vld [vmem:[#allocation14 + $0xbe8] sm:$0xff]
        %v5075 = vld [vmem:[#allocation14 + $0xbf0] sm:$0xff]
        %v5076 = vld [vmem:[#allocation14 + $0xbf8] sm:$0xff]
        %v5077 = vld [vmem:[#allocation14 + $0xc00] sm:$0xff]
        %v5078 = vld [vmem:[#allocation14 + $0xc08] sm:$0xff]
        %v5079 = vld [vmem:[#allocation14 + $0xc10] sm:$0xff]
        %v5080 = vld [vmem:[#allocation14 + $0xc18] sm:$0xff]
        %v5081 = vld [vmem:[#allocation14 + $0xc20] sm:$0xff]
        %v5082 = vld [vmem:[#allocation14 + $0xc28] sm:$0xff]
        %v5083 = vld [vmem:[#allocation14 + $0xc30] sm:$0xff]
        %v5084 = vld [vmem:[#allocation14 + $0xc38] sm:$0xff]
        %v5085 = vld [vmem:[#allocation14 + $0xc40] sm:$0xff]
        %v5086 = vld [vmem:[#allocation14 + $0xc48] sm:$0xff]
        %v5087 = vld [vmem:[#allocation14 + $0xc50] sm:$0xff]
        %v5088 = vld [vmem:[#allocation14 + $0xc58] sm:$0xff]
        %v5089 = vld [vmem:[#allocation14 + $0xc60] sm:$0xff]
        %v5090 = vld [vmem:[#allocation14 + $0xc68] sm:$0xff]
        %v5091 = vld [vmem:[#allocation14 + $0xc70] sm:$0xff]
        %v5092 = vld [vmem:[#allocation14 + $0xc78] sm:$0xff]
        %v5093 = vld [vmem:[#allocation14 + $0xc80] sm:$0xff]
        %v5094 = vld [vmem:[#allocation14 + $0xc88] sm:$0xff]
        %v5095 = vld [vmem:[#allocation14 + $0xc90] sm:$0xff]
        %v5096 = vld [vmem:[#allocation14 + $0xc98] sm:$0xff]
        %v5097 = vld [vmem:[#allocation14 + $0xca0] sm:$0xff]
        %v5098 = vld [vmem:[#allocation14 + $0xca8] sm:$0xff]
        %v5099 = vld [vmem:[#allocation14 + $0xcb0] sm:$0xff]
        %v5100 = vld [vmem:[#allocation14 + $0xcb8] sm:$0xff]
        %v5101 = vld [vmem:[#allocation14 + $0xcc0] sm:$0xff]
        %v5102 = vld [vmem:[#allocation14 + $0xcc8] sm:$0xff]
        %v5103 = vld [vmem:[#allocation14 + $0xcd0] sm:$0xff]
        %v5104 = vld [vmem:[#allocation14 + $0xcd8] sm:$0xff]
        %v5105 = vld [vmem:[#allocation14 + $0xce0] sm:$0xff]
        %v5106 = vld [vmem:[#allocation14 + $0xce8] sm:$0xff]
        %v5107 = vld [vmem:[#allocation14 + $0xcf0] sm:$0xff]
        %v5108 = vld [vmem:[#allocation14 + $0xcf8] sm:$0xff]
        %v5109 = vld [vmem:[#allocation14 + $0xd00] sm:$0xff]
        %v5110 = vld [vmem:[#allocation14 + $0xd08] sm:$0xff]
        %v5111 = vld [vmem:[#allocation14 + $0xd10] sm:$0xff]
        %v5112 = vld [vmem:[#allocation14 + $0xd18] sm:$0xff]
        %v5113 = vld [vmem:[#allocation14 + $0xd20] sm:$0xff]
        %v5114 = vld [vmem:[#allocation14 + $0xd28] sm:$0xff]
        %v5115 = vld [vmem:[#allocation14 + $0xd30] sm:$0xff]
        %v5116 = vld [vmem:[#allocation14 + $0xd38] sm:$0xff]
        %v5117 = vld [vmem:[#allocation14 + $0xd40] sm:$0xff]
        %v5118 = vld [vmem:[#allocation14 + $0xd48] sm:$0xff]
        %v5119 = vld [vmem:[#allocation14 + $0xd50] sm:$0xff]
        %v5120 = vld [vmem:[#allocation14 + $0xd58] sm:$0xff]
        %v5121 = vld [vmem:[#allocation14 + $0xd60] sm:$0xff]
        %v5122 = vld [vmem:[#allocation14 + $0xd68] sm:$0xff]
        %v5123 = vld [vmem:[#allocation14 + $0xd70] sm:$0xff]
        %v5124 = vld [vmem:[#allocation14 + $0xd78] sm:$0xff]
        %v5125 = vld [vmem:[#allocation14 + $0xd80] sm:$0xff]
        %v5126 = vld [vmem:[#allocation14 + $0xd88] sm:$0xff]
        %v5127 = vld [vmem:[#allocation14 + $0xd90] sm:$0xff]
        %v5128 = vld [vmem:[#allocation14 + $0xd98] sm:$0xff]
        %v5129 = vld [vmem:[#allocation14 + $0xda0] sm:$0xff]
        %v5130 = vld [vmem:[#allocation14 + $0xda8] sm:$0xff]
        %v5131 = vld [vmem:[#allocation14 + $0xdb0] sm:$0xff]
        %v5132 = vld [vmem:[#allocation14 + $0xdb8] sm:$0xff]
        %v5133 = vld [vmem:[#allocation14 + $0xdc0] sm:$0xff]
        %v5134 = vld [vmem:[#allocation14 + $0xdc8] sm:$0xff]
        %v5135 = vld [vmem:[#allocation14 + $0xdd0] sm:$0xff]
        %v5136 = vld [vmem:[#allocation14 + $0xdd8] sm:$0xff]
        %v5137 = vld [vmem:[#allocation14 + $0xde0] sm:$0xff]
        %v5138 = vld [vmem:[#allocation14 + $0xde8] sm:$0xff]
        %v5139 = vld [vmem:[#allocation14 + $0xdf0] sm:$0xff]
        %v5140 = vld [vmem:[#allocation14 + $0xdf8] sm:$0xff]
        %v5141 = vld [vmem:[#allocation14 + $0xe00] sm:$0xff]
        %v5142 = vld [vmem:[#allocation14 + $0xe08] sm:$0xff]
        %v5143 = vld [vmem:[#allocation14 + $0xe10] sm:$0xff]
        %v5144 = vld [vmem:[#allocation14 + $0xe18] sm:$0xff]
        %v5145 = vld [vmem:[#allocation14 + $0xe20] sm:$0xff]
        %v5146 = vld [vmem:[#allocation14 + $0xe28] sm:$0xff]
        %v5147 = vld [vmem:[#allocation14 + $0xe30] sm:$0xff]
        %v5148 = vld [vmem:[#allocation14 + $0xe38] sm:$0xff]
        %v5149 = vld [vmem:[#allocation14 + $0xe40] sm:$0xff]
        %v5150 = vld [vmem:[#allocation14 + $0xe48] sm:$0xff]
        %v5151 = vld [vmem:[#allocation14 + $0xe50] sm:$0xff]
        %v5152 = vld [vmem:[#allocation14 + $0xe58] sm:$0xff]
        %v5153 = vld [vmem:[#allocation14 + $0xe60] sm:$0xff]
        %v5154 = vld [vmem:[#allocation14 + $0xe68] sm:$0xff]
        %v5155 = vld [vmem:[#allocation14 + $0xe70] sm:$0xff]
        %v5156 = vld [vmem:[#allocation14 + $0xe78] sm:$0xff]
        %v5157 = vld [vmem:[#allocation14 + $0xe80] sm:$0xff]
        %v5158 = vld [vmem:[#allocation14 + $0xe88] sm:$0xff]
        %v5159 = vld [vmem:[#allocation14 + $0xe90] sm:$0xff]
        %v5160 = vld [vmem:[#allocation14 + $0xe98] sm:$0xff]
        %v5161 = vld [vmem:[#allocation14 + $0xea0] sm:$0xff]
        %v5162 = vld [vmem:[#allocation14 + $0xea8] sm:$0xff]
        %v5163 = vld [vmem:[#allocation14 + $0xeb0] sm:$0xff]
        %v5164 = vld [vmem:[#allocation14 + $0xeb8] sm:$0xff]
        %v5165 = vld [vmem:[#allocation14 + $0xec0] sm:$0xff]
        %v5166 = vld [vmem:[#allocation14 + $0xec8] sm:$0xff]
        %v5167 = vld [vmem:[#allocation14 + $0xed0] sm:$0xff]
        %v5168 = vld [vmem:[#allocation14 + $0xed8] sm:$0xff]
        %v5169 = vld [vmem:[#allocation14 + $0xee0] sm:$0xff]
        %v5170 = vld [vmem:[#allocation14 + $0xee8] sm:$0xff]
        %v5171 = vld [vmem:[#allocation14 + $0xef0] sm:$0xff]
        %v5172 = vld [vmem:[#allocation14 + $0xef8] sm:$0xff]
        %v5173 = vld [vmem:[#allocation14 + $0xf00] sm:$0xff]
        %v5174 = vld [vmem:[#allocation14 + $0xf08] sm:$0xff]
        %v5175 = vld [vmem:[#allocation14 + $0xf10] sm:$0xff]
        %v5176 = vld [vmem:[#allocation14 + $0xf18] sm:$0xff]
        %v5177 = vld [vmem:[#allocation14 + $0xf20] sm:$0xff]
        %v5178 = vld [vmem:[#allocation14 + $0xf28] sm:$0xff]
        %v5179 = vld [vmem:[#allocation14 + $0xf30] sm:$0xff]
        %v5180 = vld [vmem:[#allocation14 + $0xf38] sm:$0xff]
        %v5181 = vld [vmem:[#allocation14 + $0xf40] sm:$0xff]
        %v5182 = vld [vmem:[#allocation14 + $0xf48] sm:$0xff]
        %v5183 = vld [vmem:[#allocation14 + $0xf50] sm:$0xff]
        %v5184 = vld [vmem:[#allocation14 + $0xf58] sm:$0xff]
        %v5185 = vld [vmem:[#allocation14 + $0xf60] sm:$0xff]
        %v5186 = vld [vmem:[#allocation14 + $0xf68] sm:$0xff]
        %v5187 = vld [vmem:[#allocation14 + $0xf70] sm:$0xff]
        %v5188 = vld [vmem:[#allocation14 + $0xf78] sm:$0xff]
        %v5189 = vld [vmem:[#allocation14 + $0xf80] sm:$0xff]
        %v5190 = vld [vmem:[#allocation14 + $0xf88] sm:$0xff]
        %v5191 = vld [vmem:[#allocation14 + $0xf90] sm:$0xff]
        %v5192 = vld [vmem:[#allocation14 + $0xf98] sm:$0xff]
        %v5193 = vld [vmem:[#allocation14 + $0xfa0] sm:$0xff]
        %v5194 = vld [vmem:[#allocation14 + $0xfa8] sm:$0xff]
        %v5195 = vld [vmem:[#allocation14 + $0xfb0] sm:$0xff]
        %v5196 = vld [vmem:[#allocation14 + $0xfb8] sm:$0xff]
        %v5197 = vld [vmem:[#allocation14 + $0xfc0] sm:$0xff]
        %v5198 = vld [vmem:[#allocation14 + $0xfc8] sm:$0xff]
        %v5199 = vld [vmem:[#allocation14 + $0xfd0] sm:$0xff]
        %v5200 = vld [vmem:[#allocation14 + $0xfd8] sm:$0xff]
        %v5201 = vld [vmem:[#allocation14 + $0xfe0] sm:$0xff]
        %v5202 = vld [vmem:[#allocation14 + $0xfe8] sm:$0xff]
        %v5203 = vld [vmem:[#allocation14 + $0xff0] sm:$0xff]
        %v5204 = vld [vmem:[#allocation14 + $0xff8] sm:$0xff]
        %v5205 = vld [vmem:[#allocation15] sm:$0xff]
        %v5206 = vld [vmem:[#allocation15 + $0x8] sm:$0xff]
        %v5209 = vperm.slane %v5205, 0
        %v5210 = vperm.slane %v5205, 1
        %v5211 = vperm.slane %v5205, 2
        %v5212 = vperm.slane %v5205, 3
        %v5213 = vperm.slane %v5205, 4
        %v5214 = vperm.slane %v5205, 5
        %v5215 = vperm.slane %v5205, 6
        %v5216 = vperm.slane %v5205, 7
        %v5217 = vperm.slane %v5206, 0
        %v5218 = vperm.slane %v5206, 1
        %v5219 = vperm.slane %v5206, 2
        %v5220 = vperm.slane %v5206, 3
        %v5221 = vperm.slane %v5206, 4
        %v5222 = vperm.slane %v5206, 5
        %v5223 = vperm.slane %v5206, 6
        %v5224 = vperm.slane %v5206, 7
        %v5753 = vunpack.c.l.b16 %v4693
        %v5754 = vunpack.c.h.b16 %v4693
        %v5755 = vunpack.c.l.b16 %v4694
        %v5756 = vunpack.c.h.b16 %v4694
        %v5757 = vunpack.c.l.b16 %v4695
        %v5758 = vunpack.c.h.b16 %v4695
        %v5759 = vunpack.c.l.b16 %v4696
        %v5760 = vunpack.c.h.b16 %v4696
        %v5761 = vunpack.c.l.b16 %v4697
        %v5762 = vunpack.c.h.b16 %v4697
        %v5763 = vunpack.c.l.b16 %v4698
        %v5764 = vunpack.c.h.b16 %v4698
        %v5765 = vunpack.c.l.b16 %v4699
        %v5766 = vunpack.c.h.b16 %v4699
        %v5767 = vunpack.c.l.b16 %v4700
        %v5768 = vunpack.c.h.b16 %v4700
        %v5769 = vunpack.c.l.b16 %v4701
        %v5770 = vunpack.c.h.b16 %v4701
        %v5771 = vunpack.c.l.b16 %v4702
        %v5772 = vunpack.c.h.b16 %v4702
        %v5773 = vunpack.c.l.b16 %v4703
        %v5774 = vunpack.c.h.b16 %v4703
        %v5775 = vunpack.c.l.b16 %v4704
        %v5776 = vunpack.c.h.b16 %v4704
        %v5777 = vunpack.c.l.b16 %v4705
        %v5778 = vunpack.c.h.b16 %v4705
        %v5779 = vunpack.c.l.b16 %v4706
        %v5780 = vunpack.c.h.b16 %v4706
        %v5781 = vunpack.c.l.b16 %v4707
        %v5782 = vunpack.c.h.b16 %v4707
        %v5783 = vunpack.c.l.b16 %v4708
        %v5784 = vunpack.c.h.b16 %v4708
        %v5785 = vunpack.c.l.b16 %v4709
        %v5786 = vunpack.c.h.b16 %v4709
        %v5787 = vunpack.c.l.b16 %v4710
        %v5788 = vunpack.c.h.b16 %v4710
        %v5789 = vunpack.c.l.b16 %v4711
        %v5790 = vunpack.c.h.b16 %v4711
        %v5791 = vunpack.c.l.b16 %v4712
        %v5792 = vunpack.c.h.b16 %v4712
        %v5793 = vunpack.c.l.b16 %v4713
        %v5794 = vunpack.c.h.b16 %v4713
        %v5795 = vunpack.c.l.b16 %v4714
        %v5796 = vunpack.c.h.b16 %v4714
        %v5797 = vunpack.c.l.b16 %v4715
        %v5798 = vunpack.c.h.b16 %v4715
        %v5799 = vunpack.c.l.b16 %v4716
        %v5800 = vunpack.c.h.b16 %v4716
        %v5801 = vunpack.c.l.b16 %v4717
        %v5802 = vunpack.c.h.b16 %v4717
        %v5803 = vunpack.c.l.b16 %v4718
        %v5804 = vunpack.c.h.b16 %v4718
        %v5805 = vunpack.c.l.b16 %v4719
        %v5806 = vunpack.c.h.b16 %v4719
        %v5807 = vunpack.c.l.b16 %v4720
        %v5808 = vunpack.c.h.b16 %v4720
        %v5809 = vunpack.c.l.b16 %v4721
        %v5810 = vunpack.c.h.b16 %v4721
        %v5811 = vunpack.c.l.b16 %v4722
        %v5812 = vunpack.c.h.b16 %v4722
        %v5813 = vunpack.c.l.b16 %v4723
        %v5814 = vunpack.c.h.b16 %v4723
        %v5815 = vunpack.c.l.b16 %v4724
        %v5816 = vunpack.c.h.b16 %v4724
        %v5817 = vunpack.c.l.b16 %v4725
        %v5818 = vunpack.c.h.b16 %v4725
        %v5819 = vunpack.c.l.b16 %v4726
        %v5820 = vunpack.c.h.b16 %v4726
        %v5821 = vunpack.c.l.b16 %v4727
        %v5822 = vunpack.c.h.b16 %v4727
        %v5823 = vunpack.c.l.b16 %v4728
        %v5824 = vunpack.c.h.b16 %v4728
        %v5825 = vunpack.c.l.b16 %v4729
        %v5826 = vunpack.c.h.b16 %v4729
        %v5827 = vunpack.c.l.b16 %v4730
        %v5828 = vunpack.c.h.b16 %v4730
        %v5829 = vunpack.c.l.b16 %v4731
        %v5830 = vunpack.c.h.b16 %v4731
        %v5831 = vunpack.c.l.b16 %v4732
        %v5832 = vunpack.c.h.b16 %v4732
        %v5833 = vunpack.c.l.b16 %v4733
        %v5834 = vunpack.c.h.b16 %v4733
        %v5835 = vunpack.c.l.b16 %v4734
        %v5836 = vunpack.c.h.b16 %v4734
        %v5837 = vunpack.c.l.b16 %v4735
        %v5838 = vunpack.c.h.b16 %v4735
        %v5839 = vunpack.c.l.b16 %v4736
        %v5840 = vunpack.c.h.b16 %v4736
        %v5841 = vunpack.c.l.b16 %v4737
        %v5842 = vunpack.c.h.b16 %v4737
        %v5843 = vunpack.c.l.b16 %v4738
        %v5844 = vunpack.c.h.b16 %v4738
        %v5845 = vunpack.c.l.b16 %v4739
        %v5846 = vunpack.c.h.b16 %v4739
        %v5847 = vunpack.c.l.b16 %v4740
        %v5848 = vunpack.c.h.b16 %v4740
        %v5849 = vunpack.c.l.b16 %v4741
        %v5850 = vunpack.c.h.b16 %v4741
        %v5851 = vunpack.c.l.b16 %v4742
        %v5852 = vunpack.c.h.b16 %v4742
        %v5853 = vunpack.c.l.b16 %v4743
        %v5854 = vunpack.c.h.b16 %v4743
        %v5855 = vunpack.c.l.b16 %v4744
        %v5856 = vunpack.c.h.b16 %v4744
        %v5857 = vunpack.c.l.b16 %v4745
        %v5858 = vunpack.c.h.b16 %v4745
        %v5859 = vunpack.c.l.b16 %v4746
        %v5860 = vunpack.c.h.b16 %v4746
        %v5861 = vunpack.c.l.b16 %v4747
        %v5862 = vunpack.c.h.b16 %v4747
        %v5863 = vunpack.c.l.b16 %v4748
        %v5864 = vunpack.c.h.b16 %v4748
        %v5865 = vunpack.c.l.b16 %v4749
        %v5866 = vunpack.c.h.b16 %v4749
        %v5867 = vunpack.c.l.b16 %v4750
        %v5868 = vunpack.c.h.b16 %v4750
        %v5869 = vunpack.c.l.b16 %v4751
        %v5870 = vunpack.c.h.b16 %v4751
        %v5871 = vunpack.c.l.b16 %v4752
        %v5872 = vunpack.c.h.b16 %v4752
        %v5873 = vunpack.c.l.b16 %v4753
        %v5874 = vunpack.c.h.b16 %v4753
        %v5875 = vunpack.c.l.b16 %v4754
        %v5876 = vunpack.c.h.b16 %v4754
        %v5877 = vunpack.c.l.b16 %v4755
        %v5878 = vunpack.c.h.b16 %v4755
        %v5879 = vunpack.c.l.b16 %v4756
        %v5880 = vunpack.c.h.b16 %v4756
        %v5881 = vunpack.c.l.b16 %v4757
        %v5882 = vunpack.c.h.b16 %v4757
        %v5883 = vunpack.c.l.b16 %v4758
        %v5884 = vunpack.c.h.b16 %v4758
        %v5885 = vunpack.c.l.b16 %v4759
        %v5886 = vunpack.c.h.b16 %v4759
        %v5887 = vunpack.c.l.b16 %v4760
        %v5888 = vunpack.c.h.b16 %v4760
        %v5889 = vunpack.c.l.b16 %v4761
        %v5890 = vunpack.c.h.b16 %v4761
        %v5891 = vunpack.c.l.b16 %v4762
        %v5892 = vunpack.c.h.b16 %v4762
        %v5893 = vunpack.c.l.b16 %v4763
        %v5894 = vunpack.c.h.b16 %v4763
        %v5895 = vunpack.c.l.b16 %v4764
        %v5896 = vunpack.c.h.b16 %v4764
        %v5897 = vunpack.c.l.b16 %v4765
        %v5898 = vunpack.c.h.b16 %v4765
        %v5899 = vunpack.c.l.b16 %v4766
        %v5900 = vunpack.c.h.b16 %v4766
        %v5901 = vunpack.c.l.b16 %v4767
        %v5902 = vunpack.c.h.b16 %v4767
        %v5903 = vunpack.c.l.b16 %v4768
        %v5904 = vunpack.c.h.b16 %v4768
        %v5905 = vunpack.c.l.b16 %v4769
        %v5906 = vunpack.c.h.b16 %v4769
        %v5907 = vunpack.c.l.b16 %v4770
        %v5908 = vunpack.c.h.b16 %v4770
        %v5909 = vunpack.c.l.b16 %v4771
        %v5910 = vunpack.c.h.b16 %v4771
        %v5911 = vunpack.c.l.b16 %v4772
        %v5912 = vunpack.c.h.b16 %v4772
        %v5913 = vunpack.c.l.b16 %v4773
        %v5914 = vunpack.c.h.b16 %v4773
        %v5915 = vunpack.c.l.b16 %v4774
        %v5916 = vunpack.c.h.b16 %v4774
        %v5917 = vunpack.c.l.b16 %v4775
        %v5918 = vunpack.c.h.b16 %v4775
        %v5919 = vunpack.c.l.b16 %v4776
        %v5920 = vunpack.c.h.b16 %v4776
        %v5921 = vunpack.c.l.b16 %v4777
        %v5922 = vunpack.c.h.b16 %v4777
        %v5923 = vunpack.c.l.b16 %v4778
        %v5924 = vunpack.c.h.b16 %v4778
        %v5925 = vunpack.c.l.b16 %v4779
        %v5926 = vunpack.c.h.b16 %v4779
        %v5927 = vunpack.c.l.b16 %v4780
        %v5928 = vunpack.c.h.b16 %v4780
        %v5929 = vunpack.c.l.b16 %v4781
        %v5930 = vunpack.c.h.b16 %v4781
        %v5931 = vunpack.c.l.b16 %v4782
        %v5932 = vunpack.c.h.b16 %v4782
        %v5933 = vunpack.c.l.b16 %v4783
        %v5934 = vunpack.c.h.b16 %v4783
        %v5935 = vunpack.c.l.b16 %v4784
        %v5936 = vunpack.c.h.b16 %v4784
        %v5937 = vunpack.c.l.b16 %v4785
        %v5938 = vunpack.c.h.b16 %v4785
        %v5939 = vunpack.c.l.b16 %v4786
        %v5940 = vunpack.c.h.b16 %v4786
        %v5941 = vunpack.c.l.b16 %v4787
        %v5942 = vunpack.c.h.b16 %v4787
        %v5943 = vunpack.c.l.b16 %v4788
        %v5944 = vunpack.c.h.b16 %v4788
        %v5945 = vunpack.c.l.b16 %v4789
        %v5946 = vunpack.c.h.b16 %v4789
        %v5947 = vunpack.c.l.b16 %v4790
        %v5948 = vunpack.c.h.b16 %v4790
        %v5949 = vunpack.c.l.b16 %v4791
        %v5950 = vunpack.c.h.b16 %v4791
        %v5951 = vunpack.c.l.b16 %v4792
        %v5952 = vunpack.c.h.b16 %v4792
        %v5953 = vunpack.c.l.b16 %v4793
        %v5954 = vunpack.c.h.b16 %v4793
        %v5955 = vunpack.c.l.b16 %v4794
        %v5956 = vunpack.c.h.b16 %v4794
        %v5957 = vunpack.c.l.b16 %v4795
        %v5958 = vunpack.c.h.b16 %v4795
        %v5959 = vunpack.c.l.b16 %v4796
        %v5960 = vunpack.c.h.b16 %v4796
        %v5961 = vunpack.c.l.b16 %v4797
        %v5962 = vunpack.c.h.b16 %v4797
        %v5963 = vunpack.c.l.b16 %v4798
        %v5964 = vunpack.c.h.b16 %v4798
        %v5965 = vunpack.c.l.b16 %v4799
        %v5966 = vunpack.c.h.b16 %v4799
        %v5967 = vunpack.c.l.b16 %v4800
        %v5968 = vunpack.c.h.b16 %v4800
        %v5969 = vunpack.c.l.b16 %v4801
        %v5970 = vunpack.c.h.b16 %v4801
        %v5971 = vunpack.c.l.b16 %v4802
        %v5972 = vunpack.c.h.b16 %v4802
        %v5973 = vunpack.c.l.b16 %v4803
        %v5974 = vunpack.c.h.b16 %v4803
        %v5975 = vunpack.c.l.b16 %v4804
        %v5976 = vunpack.c.h.b16 %v4804
        %v5977 = vunpack.c.l.b16 %v4805
        %v5978 = vunpack.c.h.b16 %v4805
        %v5979 = vunpack.c.l.b16 %v4806
        %v5980 = vunpack.c.h.b16 %v4806
        %v5981 = vunpack.c.l.b16 %v4807
        %v5982 = vunpack.c.h.b16 %v4807
        %v5983 = vunpack.c.l.b16 %v4808
        %v5984 = vunpack.c.h.b16 %v4808
        %v5985 = vunpack.c.l.b16 %v4809
        %v5986 = vunpack.c.h.b16 %v4809
        %v5987 = vunpack.c.l.b16 %v4810
        %v5988 = vunpack.c.h.b16 %v4810
        %v5989 = vunpack.c.l.b16 %v4811
        %v5990 = vunpack.c.h.b16 %v4811
        %v5991 = vunpack.c.l.b16 %v4812
        %v5992 = vunpack.c.h.b16 %v4812
        %v5993 = vunpack.c.l.b16 %v4813
        %v5994 = vunpack.c.h.b16 %v4813
        %v5995 = vunpack.c.l.b16 %v4814
        %v5996 = vunpack.c.h.b16 %v4814
        %v5997 = vunpack.c.l.b16 %v4815
        %v5998 = vunpack.c.h.b16 %v4815
        %v5999 = vunpack.c.l.b16 %v4816
        %v6000 = vunpack.c.h.b16 %v4816
        %v6001 = vunpack.c.l.b16 %v4817
        %v6002 = vunpack.c.h.b16 %v4817
        %v6003 = vunpack.c.l.b16 %v4818
        %v6004 = vunpack.c.h.b16 %v4818
        %v6005 = vunpack.c.l.b16 %v4819
        %v6006 = vunpack.c.h.b16 %v4819
        %v6007 = vunpack.c.l.b16 %v4820
        %v6008 = vunpack.c.h.b16 %v4820
        %v6009 = vunpack.c.l.b16 %v4821
        %v6010 = vunpack.c.h.b16 %v4821
        %v6011 = vunpack.c.l.b16 %v4822
        %v6012 = vunpack.c.h.b16 %v4822
        %v6013 = vunpack.c.l.b16 %v4823
        %v6014 = vunpack.c.h.b16 %v4823
        %v6015 = vunpack.c.l.b16 %v4824
        %v6016 = vunpack.c.h.b16 %v4824
        %v6017 = vunpack.c.l.b16 %v4825
        %v6018 = vunpack.c.h.b16 %v4825
        %v6019 = vunpack.c.l.b16 %v4826
        %v6020 = vunpack.c.h.b16 %v4826
        %v6021 = vunpack.c.l.b16 %v4827
        %v6022 = vunpack.c.h.b16 %v4827
        %v6023 = vunpack.c.l.b16 %v4828
        %v6024 = vunpack.c.h.b16 %v4828
        %v6025 = vunpack.c.l.b16 %v4829
        %v6026 = vunpack.c.h.b16 %v4829
        %v6027 = vunpack.c.l.b16 %v4830
        %v6028 = vunpack.c.h.b16 %v4830
        %v6029 = vunpack.c.l.b16 %v4831
        %v6030 = vunpack.c.h.b16 %v4831
        %v6031 = vunpack.c.l.b16 %v4832
        %v6032 = vunpack.c.h.b16 %v4832
        %v6033 = vunpack.c.l.b16 %v4833
        %v6034 = vunpack.c.h.b16 %v4833
        %v6035 = vunpack.c.l.b16 %v4834
        %v6036 = vunpack.c.h.b16 %v4834
        %v6037 = vunpack.c.l.b16 %v4835
        %v6038 = vunpack.c.h.b16 %v4835
        %v6039 = vunpack.c.l.b16 %v4836
        %v6040 = vunpack.c.h.b16 %v4836
        %v6041 = vunpack.c.l.b16 %v4837
        %v6042 = vunpack.c.h.b16 %v4837
        %v6043 = vunpack.c.l.b16 %v4838
        %v6044 = vunpack.c.h.b16 %v4838
        %v6045 = vunpack.c.l.b16 %v4839
        %v6046 = vunpack.c.h.b16 %v4839
        %v6047 = vunpack.c.l.b16 %v4840
        %v6048 = vunpack.c.h.b16 %v4840
        %v6049 = vunpack.c.l.b16 %v4841
        %v6050 = vunpack.c.h.b16 %v4841
        %v6051 = vunpack.c.l.b16 %v4842
        %v6052 = vunpack.c.h.b16 %v4842
        %v6053 = vunpack.c.l.b16 %v4843
        %v6054 = vunpack.c.h.b16 %v4843
        %v6055 = vunpack.c.l.b16 %v4844
        %v6056 = vunpack.c.h.b16 %v4844
        %v6057 = vunpack.c.l.b16 %v4845
        %v6058 = vunpack.c.h.b16 %v4845
        %v6059 = vunpack.c.l.b16 %v4846
        %v6060 = vunpack.c.h.b16 %v4846
        %v6061 = vunpack.c.l.b16 %v4847
        %v6062 = vunpack.c.h.b16 %v4847
        %v6063 = vunpack.c.l.b16 %v4848
        %v6064 = vunpack.c.h.b16 %v4848
        %v6065 = vunpack.c.l.b16 %v4849
        %v6066 = vunpack.c.h.b16 %v4849
        %v6067 = vunpack.c.l.b16 %v4850
        %v6068 = vunpack.c.h.b16 %v4850
        %v6069 = vunpack.c.l.b16 %v4851
        %v6070 = vunpack.c.h.b16 %v4851
        %v6071 = vunpack.c.l.b16 %v4852
        %v6072 = vunpack.c.h.b16 %v4852
        %v6073 = vunpack.c.l.b16 %v4853
        %v6074 = vunpack.c.h.b16 %v4853
        %v6075 = vunpack.c.l.b16 %v4854
        %v6076 = vunpack.c.h.b16 %v4854
        %v6077 = vunpack.c.l.b16 %v4855
        %v6078 = vunpack.c.h.b16 %v4855
        %v6079 = vunpack.c.l.b16 %v4856
        %v6080 = vunpack.c.h.b16 %v4856
        %v6081 = vunpack.c.l.b16 %v4857
        %v6082 = vunpack.c.h.b16 %v4857
        %v6083 = vunpack.c.l.b16 %v4858
        %v6084 = vunpack.c.h.b16 %v4858
        %v6085 = vunpack.c.l.b16 %v4859
        %v6086 = vunpack.c.h.b16 %v4859
        %v6087 = vunpack.c.l.b16 %v4860
        %v6088 = vunpack.c.h.b16 %v4860
        %v6089 = vunpack.c.l.b16 %v4861
        %v6090 = vunpack.c.h.b16 %v4861
        %v6091 = vunpack.c.l.b16 %v4862
        %v6092 = vunpack.c.h.b16 %v4862
        %v6093 = vunpack.c.l.b16 %v4863
        %v6094 = vunpack.c.h.b16 %v4863
        %v6095 = vunpack.c.l.b16 %v4864
        %v6096 = vunpack.c.h.b16 %v4864
        %v6097 = vunpack.c.l.b16 %v4865
        %v6098 = vunpack.c.h.b16 %v4865
        %v6099 = vunpack.c.l.b16 %v4866
        %v6100 = vunpack.c.h.b16 %v4866
        %v6101 = vunpack.c.l.b16 %v4867
        %v6102 = vunpack.c.h.b16 %v4867
        %v6103 = vunpack.c.l.b16 %v4868
        %v6104 = vunpack.c.h.b16 %v4868
        %v6105 = vunpack.c.l.b16 %v4869
        %v6106 = vunpack.c.h.b16 %v4869
        %v6107 = vunpack.c.l.b16 %v4870
        %v6108 = vunpack.c.h.b16 %v4870
        %v6109 = vunpack.c.l.b16 %v4871
        %v6110 = vunpack.c.h.b16 %v4871
        %v6111 = vunpack.c.l.b16 %v4872
        %v6112 = vunpack.c.h.b16 %v4872
        %v6113 = vunpack.c.l.b16 %v4873
        %v6114 = vunpack.c.h.b16 %v4873
        %v6115 = vunpack.c.l.b16 %v4874
        %v6116 = vunpack.c.h.b16 %v4874
        %v6117 = vunpack.c.l.b16 %v4875
        %v6118 = vunpack.c.h.b16 %v4875
        %v6119 = vunpack.c.l.b16 %v4876
        %v6120 = vunpack.c.h.b16 %v4876
        %v6121 = vunpack.c.l.b16 %v4877
        %v6122 = vunpack.c.h.b16 %v4877
        %v6123 = vunpack.c.l.b16 %v4878
        %v6124 = vunpack.c.h.b16 %v4878
        %v6125 = vunpack.c.l.b16 %v4879
        %v6126 = vunpack.c.h.b16 %v4879
        %v6127 = vunpack.c.l.b16 %v4880
        %v6128 = vunpack.c.h.b16 %v4880
        %v6129 = vunpack.c.l.b16 %v4881
        %v6130 = vunpack.c.h.b16 %v4881
        %v6131 = vunpack.c.l.b16 %v4882
        %v6132 = vunpack.c.h.b16 %v4882
        %v6133 = vunpack.c.l.b16 %v4883
        %v6134 = vunpack.c.h.b16 %v4883
        %v6135 = vunpack.c.l.b16 %v4884
        %v6136 = vunpack.c.h.b16 %v4884
        %v6137 = vunpack.c.l.b16 %v4885
        %v6138 = vunpack.c.h.b16 %v4885
        %v6139 = vunpack.c.l.b16 %v4886
        %v6140 = vunpack.c.h.b16 %v4886
        %v6141 = vunpack.c.l.b16 %v4887
        %v6142 = vunpack.c.h.b16 %v4887
        %v6143 = vunpack.c.l.b16 %v4888
        %v6144 = vunpack.c.h.b16 %v4888
        %v6145 = vunpack.c.l.b16 %v4889
        %v6146 = vunpack.c.h.b16 %v4889
        %v6147 = vunpack.c.l.b16 %v4890
        %v6148 = vunpack.c.h.b16 %v4890
        %v6149 = vunpack.c.l.b16 %v4891
        %v6150 = vunpack.c.h.b16 %v4891
        %v6151 = vunpack.c.l.b16 %v4892
        %v6152 = vunpack.c.h.b16 %v4892
        %v6153 = vunpack.c.l.b16 %v4893
        %v6154 = vunpack.c.h.b16 %v4893
        %v6155 = vunpack.c.l.b16 %v4894
        %v6156 = vunpack.c.h.b16 %v4894
        %v6157 = vunpack.c.l.b16 %v4895
        %v6158 = vunpack.c.h.b16 %v4895
        %v6159 = vunpack.c.l.b16 %v4896
        %v6160 = vunpack.c.h.b16 %v4896
        %v6161 = vunpack.c.l.b16 %v4897
        %v6162 = vunpack.c.h.b16 %v4897
        %v6163 = vunpack.c.l.b16 %v4898
        %v6164 = vunpack.c.h.b16 %v4898
        %v6165 = vunpack.c.l.b16 %v4899
        %v6166 = vunpack.c.h.b16 %v4899
        %v6167 = vunpack.c.l.b16 %v4900
        %v6168 = vunpack.c.h.b16 %v4900
        %v6169 = vunpack.c.l.b16 %v4901
        %v6170 = vunpack.c.h.b16 %v4901
        %v6171 = vunpack.c.l.b16 %v4902
        %v6172 = vunpack.c.h.b16 %v4902
        %v6173 = vunpack.c.l.b16 %v4903
        %v6174 = vunpack.c.h.b16 %v4903
        %v6175 = vunpack.c.l.b16 %v4904
        %v6176 = vunpack.c.h.b16 %v4904
        %v6177 = vunpack.c.l.b16 %v4905
        %v6178 = vunpack.c.h.b16 %v4905
        %v6179 = vunpack.c.l.b16 %v4906
        %v6180 = vunpack.c.h.b16 %v4906
        %v6181 = vunpack.c.l.b16 %v4907
        %v6182 = vunpack.c.h.b16 %v4907
        %v6183 = vunpack.c.l.b16 %v4908
        %v6184 = vunpack.c.h.b16 %v4908
        %v6185 = vunpack.c.l.b16 %v4909
        %v6186 = vunpack.c.h.b16 %v4909
        %v6187 = vunpack.c.l.b16 %v4910
        %v6188 = vunpack.c.h.b16 %v4910
        %v6189 = vunpack.c.l.b16 %v4911
        %v6190 = vunpack.c.h.b16 %v4911
        %v6191 = vunpack.c.l.b16 %v4912
        %v6192 = vunpack.c.h.b16 %v4912
        %v6193 = vunpack.c.l.b16 %v4913
        %v6194 = vunpack.c.h.b16 %v4913
        %v6195 = vunpack.c.l.b16 %v4914
        %v6196 = vunpack.c.h.b16 %v4914
        %v6197 = vunpack.c.l.b16 %v4915
        %v6198 = vunpack.c.h.b16 %v4915
        %v6199 = vunpack.c.l.b16 %v4916
        %v6200 = vunpack.c.h.b16 %v4916
        %v6201 = vunpack.c.l.b16 %v4917
        %v6202 = vunpack.c.h.b16 %v4917
        %v6203 = vunpack.c.l.b16 %v4918
        %v6204 = vunpack.c.h.b16 %v4918
        %v6205 = vunpack.c.l.b16 %v4919
        %v6206 = vunpack.c.h.b16 %v4919
        %v6207 = vunpack.c.l.b16 %v4920
        %v6208 = vunpack.c.h.b16 %v4920
        %v6209 = vunpack.c.l.b16 %v4921
        %v6210 = vunpack.c.h.b16 %v4921
        %v6211 = vunpack.c.l.b16 %v4922
        %v6212 = vunpack.c.h.b16 %v4922
        %v6213 = vunpack.c.l.b16 %v4923
        %v6214 = vunpack.c.h.b16 %v4923
        %v6215 = vunpack.c.l.b16 %v4924
        %v6216 = vunpack.c.h.b16 %v4924
        %v6217 = vunpack.c.l.b16 %v4925
        %v6218 = vunpack.c.h.b16 %v4925
        %v6219 = vunpack.c.l.b16 %v4926
        %v6220 = vunpack.c.h.b16 %v4926
        %v6221 = vunpack.c.l.b16 %v4927
        %v6222 = vunpack.c.h.b16 %v4927
        %v6223 = vunpack.c.l.b16 %v4928
        %v6224 = vunpack.c.h.b16 %v4928
        %v6225 = vunpack.c.l.b16 %v4929
        %v6226 = vunpack.c.h.b16 %v4929
        %v6227 = vunpack.c.l.b16 %v4930
        %v6228 = vunpack.c.h.b16 %v4930
        %v6229 = vunpack.c.l.b16 %v4931
        %v6230 = vunpack.c.h.b16 %v4931
        %v6231 = vunpack.c.l.b16 %v4932
        %v6232 = vunpack.c.h.b16 %v4932
        %v6233 = vunpack.c.l.b16 %v4933
        %v6234 = vunpack.c.h.b16 %v4933
        %v6235 = vunpack.c.l.b16 %v4934
        %v6236 = vunpack.c.h.b16 %v4934
        %v6237 = vunpack.c.l.b16 %v4935
        %v6238 = vunpack.c.h.b16 %v4935
        %v6239 = vunpack.c.l.b16 %v4936
        %v6240 = vunpack.c.h.b16 %v4936
        %v6241 = vunpack.c.l.b16 %v4937
        %v6242 = vunpack.c.h.b16 %v4937
        %v6243 = vunpack.c.l.b16 %v4938
        %v6244 = vunpack.c.h.b16 %v4938
        %v6245 = vunpack.c.l.b16 %v4939
        %v6246 = vunpack.c.h.b16 %v4939
        %v6247 = vunpack.c.l.b16 %v4940
        %v6248 = vunpack.c.h.b16 %v4940
        %v6249 = vunpack.c.l.b16 %v4941
        %v6250 = vunpack.c.h.b16 %v4941
        %v6251 = vunpack.c.l.b16 %v4942
        %v6252 = vunpack.c.h.b16 %v4942
        %v6253 = vunpack.c.l.b16 %v4943
        %v6254 = vunpack.c.h.b16 %v4943
        %v6255 = vunpack.c.l.b16 %v4944
        %v6256 = vunpack.c.h.b16 %v4944
        %v6257 = vunpack.c.l.b16 %v4945
        %v6258 = vunpack.c.h.b16 %v4945
        %v6259 = vunpack.c.l.b16 %v4946
        %v6260 = vunpack.c.h.b16 %v4946
        %v6261 = vunpack.c.l.b16 %v4947
        %v6262 = vunpack.c.h.b16 %v4947
        %v6263 = vunpack.c.l.b16 %v4948
        %v6264 = vunpack.c.h.b16 %v4948
        %v6265 = vunpack.c.l.b16 %v4949
        %v6266 = vunpack.c.h.b16 %v4949
        %v6267 = vunpack.c.l.b16 %v4950
        %v6268 = vunpack.c.h.b16 %v4950
        %v6269 = vunpack.c.l.b16 %v4951
        %v6270 = vunpack.c.h.b16 %v4951
        %v6271 = vunpack.c.l.b16 %v4952
        %v6272 = vunpack.c.h.b16 %v4952
        %v6273 = vunpack.c.l.b16 %v4953
        %v6274 = vunpack.c.h.b16 %v4953
        %v6275 = vunpack.c.l.b16 %v4954
        %v6276 = vunpack.c.h.b16 %v4954
        %v6277 = vunpack.c.l.b16 %v4955
        %v6278 = vunpack.c.h.b16 %v4955
        %v6279 = vunpack.c.l.b16 %v4956
        %v6280 = vunpack.c.h.b16 %v4956
        %v6281 = vunpack.c.l.b16 %v4957
        %v6282 = vunpack.c.h.b16 %v4957
        %v6283 = vunpack.c.l.b16 %v4958
        %v6284 = vunpack.c.h.b16 %v4958
        %v6285 = vunpack.c.l.b16 %v4959
        %v6286 = vunpack.c.h.b16 %v4959
        %v6287 = vunpack.c.l.b16 %v4960
        %v6288 = vunpack.c.h.b16 %v4960
        %v6289 = vunpack.c.l.b16 %v4961
        %v6290 = vunpack.c.h.b16 %v4961
        %v6291 = vunpack.c.l.b16 %v4962
        %v6292 = vunpack.c.h.b16 %v4962
        %v6293 = vunpack.c.l.b16 %v4963
        %v6294 = vunpack.c.h.b16 %v4963
        %v6295 = vunpack.c.l.b16 %v4964
        %v6296 = vunpack.c.h.b16 %v4964
        %v6297 = vunpack.c.l.b16 %v4965
        %v6298 = vunpack.c.h.b16 %v4965
        %v6299 = vunpack.c.l.b16 %v4966
        %v6300 = vunpack.c.h.b16 %v4966
        %v6301 = vunpack.c.l.b16 %v4967
        %v6302 = vunpack.c.h.b16 %v4967
        %v6303 = vunpack.c.l.b16 %v4968
        %v6304 = vunpack.c.h.b16 %v4968
        %v6305 = vunpack.c.l.b16 %v4969
        %v6306 = vunpack.c.h.b16 %v4969
        %v6307 = vunpack.c.l.b16 %v4970
        %v6308 = vunpack.c.h.b16 %v4970
        %v6309 = vunpack.c.l.b16 %v4971
        %v6310 = vunpack.c.h.b16 %v4971
        %v6311 = vunpack.c.l.b16 %v4972
        %v6312 = vunpack.c.h.b16 %v4972
        %v6313 = vunpack.c.l.b16 %v4973
        %v6314 = vunpack.c.h.b16 %v4973
        %v6315 = vunpack.c.l.b16 %v4974
        %v6316 = vunpack.c.h.b16 %v4974
        %v6317 = vunpack.c.l.b16 %v4975
        %v6318 = vunpack.c.h.b16 %v4975
        %v6319 = vunpack.c.l.b16 %v4976
        %v6320 = vunpack.c.h.b16 %v4976
        %v6321 = vunpack.c.l.b16 %v4977
        %v6322 = vunpack.c.h.b16 %v4977
        %v6323 = vunpack.c.l.b16 %v4978
        %v6324 = vunpack.c.h.b16 %v4978
        %v6325 = vunpack.c.l.b16 %v4979
        %v6326 = vunpack.c.h.b16 %v4979
        %v6327 = vunpack.c.l.b16 %v4980
        %v6328 = vunpack.c.h.b16 %v4980
        %v6329 = vunpack.c.l.b16 %v4981
        %v6330 = vunpack.c.h.b16 %v4981
        %v6331 = vunpack.c.l.b16 %v4982
        %v6332 = vunpack.c.h.b16 %v4982
        %v6333 = vunpack.c.l.b16 %v4983
        %v6334 = vunpack.c.h.b16 %v4983
        %v6335 = vunpack.c.l.b16 %v4984
        %v6336 = vunpack.c.h.b16 %v4984
        %v6337 = vunpack.c.l.b16 %v4985
        %v6338 = vunpack.c.h.b16 %v4985
        %v6339 = vunpack.c.l.b16 %v4986
        %v6340 = vunpack.c.h.b16 %v4986
        %v6341 = vunpack.c.l.b16 %v4987
        %v6342 = vunpack.c.h.b16 %v4987
        %v6343 = vunpack.c.l.b16 %v4988
        %v6344 = vunpack.c.h.b16 %v4988
        %v6345 = vunpack.c.l.b16 %v4989
        %v6346 = vunpack.c.h.b16 %v4989
        %v6347 = vunpack.c.l.b16 %v4990
        %v6348 = vunpack.c.h.b16 %v4990
        %v6349 = vunpack.c.l.b16 %v4991
        %v6350 = vunpack.c.h.b16 %v4991
        %v6351 = vunpack.c.l.b16 %v4992
        %v6352 = vunpack.c.h.b16 %v4992
        %v6353 = vunpack.c.l.b16 %v4993
        %v6354 = vunpack.c.h.b16 %v4993
        %v6355 = vunpack.c.l.b16 %v4994
        %v6356 = vunpack.c.h.b16 %v4994
        %v6357 = vunpack.c.l.b16 %v4995
        %v6358 = vunpack.c.h.b16 %v4995
        %v6359 = vunpack.c.l.b16 %v4996
        %v6360 = vunpack.c.h.b16 %v4996
        %v6361 = vunpack.c.l.b16 %v4997
        %v6362 = vunpack.c.h.b16 %v4997
        %v6363 = vunpack.c.l.b16 %v4998
        %v6364 = vunpack.c.h.b16 %v4998
        %v6365 = vunpack.c.l.b16 %v4999
        %v6366 = vunpack.c.h.b16 %v4999
        %v6367 = vunpack.c.l.b16 %v5000
        %v6368 = vunpack.c.h.b16 %v5000
        %v6369 = vunpack.c.l.b16 %v5001
        %v6370 = vunpack.c.h.b16 %v5001
        %v6371 = vunpack.c.l.b16 %v5002
        %v6372 = vunpack.c.h.b16 %v5002
        %v6373 = vunpack.c.l.b16 %v5003
        %v6374 = vunpack.c.h.b16 %v5003
        %v6375 = vunpack.c.l.b16 %v5004
        %v6376 = vunpack.c.h.b16 %v5004
        %v6377 = vunpack.c.l.b16 %v5005
        %v6378 = vunpack.c.h.b16 %v5005
        %v6379 = vunpack.c.l.b16 %v5006
        %v6380 = vunpack.c.h.b16 %v5006
        %v6381 = vunpack.c.l.b16 %v5007
        %v6382 = vunpack.c.h.b16 %v5007
        %v6383 = vunpack.c.l.b16 %v5008
        %v6384 = vunpack.c.h.b16 %v5008
        %v6385 = vunpack.c.l.b16 %v5009
        %v6386 = vunpack.c.h.b16 %v5009
        %v6387 = vunpack.c.l.b16 %v5010
        %v6388 = vunpack.c.h.b16 %v5010
        %v6389 = vunpack.c.l.b16 %v5011
        %v6390 = vunpack.c.h.b16 %v5011
        %v6391 = vunpack.c.l.b16 %v5012
        %v6392 = vunpack.c.h.b16 %v5012
        %v6393 = vunpack.c.l.b16 %v5013
        %v6394 = vunpack.c.h.b16 %v5013
        %v6395 = vunpack.c.l.b16 %v5014
        %v6396 = vunpack.c.h.b16 %v5014
        %v6397 = vunpack.c.l.b16 %v5015
        %v6398 = vunpack.c.h.b16 %v5015
        %v6399 = vunpack.c.l.b16 %v5016
        %v6400 = vunpack.c.h.b16 %v5016
        %v6401 = vunpack.c.l.b16 %v5017
        %v6402 = vunpack.c.h.b16 %v5017
        %v6403 = vunpack.c.l.b16 %v5018
        %v6404 = vunpack.c.h.b16 %v5018
        %v6405 = vunpack.c.l.b16 %v5019
        %v6406 = vunpack.c.h.b16 %v5019
        %v6407 = vunpack.c.l.b16 %v5020
        %v6408 = vunpack.c.h.b16 %v5020
        %v6409 = vunpack.c.l.b16 %v5021
        %v6410 = vunpack.c.h.b16 %v5021
        %v6411 = vunpack.c.l.b16 %v5022
        %v6412 = vunpack.c.h.b16 %v5022
        %v6413 = vunpack.c.l.b16 %v5023
        %v6414 = vunpack.c.h.b16 %v5023
        %v6415 = vunpack.c.l.b16 %v5024
        %v6416 = vunpack.c.h.b16 %v5024
        %v6417 = vunpack.c.l.b16 %v5025
        %v6418 = vunpack.c.h.b16 %v5025
        %v6419 = vunpack.c.l.b16 %v5026
        %v6420 = vunpack.c.h.b16 %v5026
        %v6421 = vunpack.c.l.b16 %v5027
        %v6422 = vunpack.c.h.b16 %v5027
        %v6423 = vunpack.c.l.b16 %v5028
        %v6424 = vunpack.c.h.b16 %v5028
        %v6425 = vunpack.c.l.b16 %v5029
        %v6426 = vunpack.c.h.b16 %v5029
        %v6427 = vunpack.c.l.b16 %v5030
        %v6428 = vunpack.c.h.b16 %v5030
        %v6429 = vunpack.c.l.b16 %v5031
        %v6430 = vunpack.c.h.b16 %v5031
        %v6431 = vunpack.c.l.b16 %v5032
        %v6432 = vunpack.c.h.b16 %v5032
        %v6433 = vunpack.c.l.b16 %v5033
        %v6434 = vunpack.c.h.b16 %v5033
        %v6435 = vunpack.c.l.b16 %v5034
        %v6436 = vunpack.c.h.b16 %v5034
        %v6437 = vunpack.c.l.b16 %v5035
        %v6438 = vunpack.c.h.b16 %v5035
        %v6439 = vunpack.c.l.b16 %v5036
        %v6440 = vunpack.c.h.b16 %v5036
        %v6441 = vunpack.c.l.b16 %v5037
        %v6442 = vunpack.c.h.b16 %v5037
        %v6443 = vunpack.c.l.b16 %v5038
        %v6444 = vunpack.c.h.b16 %v5038
        %v6445 = vunpack.c.l.b16 %v5039
        %v6446 = vunpack.c.h.b16 %v5039
        %v6447 = vunpack.c.l.b16 %v5040
        %v6448 = vunpack.c.h.b16 %v5040
        %v6449 = vunpack.c.l.b16 %v5041
        %v6450 = vunpack.c.h.b16 %v5041
        %v6451 = vunpack.c.l.b16 %v5042
        %v6452 = vunpack.c.h.b16 %v5042
        %v6453 = vunpack.c.l.b16 %v5043
        %v6454 = vunpack.c.h.b16 %v5043
        %v6455 = vunpack.c.l.b16 %v5044
        %v6456 = vunpack.c.h.b16 %v5044
        %v6457 = vunpack.c.l.b16 %v5045
        %v6458 = vunpack.c.h.b16 %v5045
        %v6459 = vunpack.c.l.b16 %v5046
        %v6460 = vunpack.c.h.b16 %v5046
        %v6461 = vunpack.c.l.b16 %v5047
        %v6462 = vunpack.c.h.b16 %v5047
        %v6463 = vunpack.c.l.b16 %v5048
        %v6464 = vunpack.c.h.b16 %v5048
        %v6465 = vunpack.c.l.b16 %v5049
        %v6466 = vunpack.c.h.b16 %v5049
        %v6467 = vunpack.c.l.b16 %v5050
        %v6468 = vunpack.c.h.b16 %v5050
        %v6469 = vunpack.c.l.b16 %v5051
        %v6470 = vunpack.c.h.b16 %v5051
        %v6471 = vunpack.c.l.b16 %v5052
        %v6472 = vunpack.c.h.b16 %v5052
        %v6473 = vunpack.c.l.b16 %v5053
        %v6474 = vunpack.c.h.b16 %v5053
        %v6475 = vunpack.c.l.b16 %v5054
        %v6476 = vunpack.c.h.b16 %v5054
        %v6477 = vunpack.c.l.b16 %v5055
        %v6478 = vunpack.c.h.b16 %v5055
        %v6479 = vunpack.c.l.b16 %v5056
        %v6480 = vunpack.c.h.b16 %v5056
        %v6481 = vunpack.c.l.b16 %v5057
        %v6482 = vunpack.c.h.b16 %v5057
        %v6483 = vunpack.c.l.b16 %v5058
        %v6484 = vunpack.c.h.b16 %v5058
        %v6485 = vunpack.c.l.b16 %v5059
        %v6486 = vunpack.c.h.b16 %v5059
        %v6487 = vunpack.c.l.b16 %v5060
        %v6488 = vunpack.c.h.b16 %v5060
        %v6489 = vunpack.c.l.b16 %v5061
        %v6490 = vunpack.c.h.b16 %v5061
        %v6491 = vunpack.c.l.b16 %v5062
        %v6492 = vunpack.c.h.b16 %v5062
        %v6493 = vunpack.c.l.b16 %v5063
        %v6494 = vunpack.c.h.b16 %v5063
        %v6495 = vunpack.c.l.b16 %v5064
        %v6496 = vunpack.c.h.b16 %v5064
        %v6497 = vunpack.c.l.b16 %v5065
        %v6498 = vunpack.c.h.b16 %v5065
        %v6499 = vunpack.c.l.b16 %v5066
        %v6500 = vunpack.c.h.b16 %v5066
        %v6501 = vunpack.c.l.b16 %v5067
        %v6502 = vunpack.c.h.b16 %v5067
        %v6503 = vunpack.c.l.b16 %v5068
        %v6504 = vunpack.c.h.b16 %v5068
        %v6505 = vunpack.c.l.b16 %v5069
        %v6506 = vunpack.c.h.b16 %v5069
        %v6507 = vunpack.c.l.b16 %v5070
        %v6508 = vunpack.c.h.b16 %v5070
        %v6509 = vunpack.c.l.b16 %v5071
        %v6510 = vunpack.c.h.b16 %v5071
        %v6511 = vunpack.c.l.b16 %v5072
        %v6512 = vunpack.c.h.b16 %v5072
        %v6513 = vunpack.c.l.b16 %v5073
        %v6514 = vunpack.c.h.b16 %v5073
        %v6515 = vunpack.c.l.b16 %v5074
        %v6516 = vunpack.c.h.b16 %v5074
        %v6517 = vunpack.c.l.b16 %v5075
        %v6518 = vunpack.c.h.b16 %v5075
        %v6519 = vunpack.c.l.b16 %v5076
        %v6520 = vunpack.c.h.b16 %v5076
        %v6521 = vunpack.c.l.b16 %v5077
        %v6522 = vunpack.c.h.b16 %v5077
        %v6523 = vunpack.c.l.b16 %v5078
        %v6524 = vunpack.c.h.b16 %v5078
        %v6525 = vunpack.c.l.b16 %v5079
        %v6526 = vunpack.c.h.b16 %v5079
        %v6527 = vunpack.c.l.b16 %v5080
        %v6528 = vunpack.c.h.b16 %v5080
        %v6529 = vunpack.c.l.b16 %v5081
        %v6530 = vunpack.c.h.b16 %v5081
        %v6531 = vunpack.c.l.b16 %v5082
        %v6532 = vunpack.c.h.b16 %v5082
        %v6533 = vunpack.c.l.b16 %v5083
        %v6534 = vunpack.c.h.b16 %v5083
        %v6535 = vunpack.c.l.b16 %v5084
        %v6536 = vunpack.c.h.b16 %v5084
        %v6537 = vunpack.c.l.b16 %v5085
        %v6538 = vunpack.c.h.b16 %v5085
        %v6539 = vunpack.c.l.b16 %v5086
        %v6540 = vunpack.c.h.b16 %v5086
        %v6541 = vunpack.c.l.b16 %v5087
        %v6542 = vunpack.c.h.b16 %v5087
        %v6543 = vunpack.c.l.b16 %v5088
        %v6544 = vunpack.c.h.b16 %v5088
        %v6545 = vunpack.c.l.b16 %v5089
        %v6546 = vunpack.c.h.b16 %v5089
        %v6547 = vunpack.c.l.b16 %v5090
        %v6548 = vunpack.c.h.b16 %v5090
        %v6549 = vunpack.c.l.b16 %v5091
        %v6550 = vunpack.c.h.b16 %v5091
        %v6551 = vunpack.c.l.b16 %v5092
        %v6552 = vunpack.c.h.b16 %v5092
        %v6553 = vunpack.c.l.b16 %v5093
        %v6554 = vunpack.c.h.b16 %v5093
        %v6555 = vunpack.c.l.b16 %v5094
        %v6556 = vunpack.c.h.b16 %v5094
        %v6557 = vunpack.c.l.b16 %v5095
        %v6558 = vunpack.c.h.b16 %v5095
        %v6559 = vunpack.c.l.b16 %v5096
        %v6560 = vunpack.c.h.b16 %v5096
        %v6561 = vunpack.c.l.b16 %v5097
        %v6562 = vunpack.c.h.b16 %v5097
        %v6563 = vunpack.c.l.b16 %v5098
        %v6564 = vunpack.c.h.b16 %v5098
        %v6565 = vunpack.c.l.b16 %v5099
        %v6566 = vunpack.c.h.b16 %v5099
        %v6567 = vunpack.c.l.b16 %v5100
        %v6568 = vunpack.c.h.b16 %v5100
        %v6569 = vunpack.c.l.b16 %v5101
        %v6570 = vunpack.c.h.b16 %v5101
        %v6571 = vunpack.c.l.b16 %v5102
        %v6572 = vunpack.c.h.b16 %v5102
        %v6573 = vunpack.c.l.b16 %v5103
        %v6574 = vunpack.c.h.b16 %v5103
        %v6575 = vunpack.c.l.b16 %v5104
        %v6576 = vunpack.c.h.b16 %v5104
        %v6577 = vunpack.c.l.b16 %v5105
        %v6578 = vunpack.c.h.b16 %v5105
        %v6579 = vunpack.c.l.b16 %v5106
        %v6580 = vunpack.c.h.b16 %v5106
        %v6581 = vunpack.c.l.b16 %v5107
        %v6582 = vunpack.c.h.b16 %v5107
        %v6583 = vunpack.c.l.b16 %v5108
        %v6584 = vunpack.c.h.b16 %v5108
        %v6585 = vunpack.c.l.b16 %v5109
        %v6586 = vunpack.c.h.b16 %v5109
        %v6587 = vunpack.c.l.b16 %v5110
        %v6588 = vunpack.c.h.b16 %v5110
        %v6589 = vunpack.c.l.b16 %v5111
        %v6590 = vunpack.c.h.b16 %v5111
        %v6591 = vunpack.c.l.b16 %v5112
        %v6592 = vunpack.c.h.b16 %v5112
        %v6593 = vunpack.c.l.b16 %v5113
        %v6594 = vunpack.c.h.b16 %v5113
        %v6595 = vunpack.c.l.b16 %v5114
        %v6596 = vunpack.c.h.b16 %v5114
        %v6597 = vunpack.c.l.b16 %v5115
        %v6598 = vunpack.c.h.b16 %v5115
        %v6599 = vunpack.c.l.b16 %v5116
        %v6600 = vunpack.c.h.b16 %v5116
        %v6601 = vunpack.c.l.b16 %v5117
        %v6602 = vunpack.c.h.b16 %v5117
        %v6603 = vunpack.c.l.b16 %v5118
        %v6604 = vunpack.c.h.b16 %v5118
        %v6605 = vunpack.c.l.b16 %v5119
        %v6606 = vunpack.c.h.b16 %v5119
        %v6607 = vunpack.c.l.b16 %v5120
        %v6608 = vunpack.c.h.b16 %v5120
        %v6609 = vunpack.c.l.b16 %v5121
        %v6610 = vunpack.c.h.b16 %v5121
        %v6611 = vunpack.c.l.b16 %v5122
        %v6612 = vunpack.c.h.b16 %v5122
        %v6613 = vunpack.c.l.b16 %v5123
        %v6614 = vunpack.c.h.b16 %v5123
        %v6615 = vunpack.c.l.b16 %v5124
        %v6616 = vunpack.c.h.b16 %v5124
        %v6617 = vunpack.c.l.b16 %v5125
        %v6618 = vunpack.c.h.b16 %v5125
        %v6619 = vunpack.c.l.b16 %v5126
        %v6620 = vunpack.c.h.b16 %v5126
        %v6621 = vunpack.c.l.b16 %v5127
        %v6622 = vunpack.c.h.b16 %v5127
        %v6623 = vunpack.c.l.b16 %v5128
        %v6624 = vunpack.c.h.b16 %v5128
        %v6625 = vunpack.c.l.b16 %v5129
        %v6626 = vunpack.c.h.b16 %v5129
        %v6627 = vunpack.c.l.b16 %v5130
        %v6628 = vunpack.c.h.b16 %v5130
        %v6629 = vunpack.c.l.b16 %v5131
        %v6630 = vunpack.c.h.b16 %v5131
        %v6631 = vunpack.c.l.b16 %v5132
        %v6632 = vunpack.c.h.b16 %v5132
        %v6633 = vunpack.c.l.b16 %v5133
        %v6634 = vunpack.c.h.b16 %v5133
        %v6635 = vunpack.c.l.b16 %v5134
        %v6636 = vunpack.c.h.b16 %v5134
        %v6637 = vunpack.c.l.b16 %v5135
        %v6638 = vunpack.c.h.b16 %v5135
        %v6639 = vunpack.c.l.b16 %v5136
        %v6640 = vunpack.c.h.b16 %v5136
        %v6641 = vunpack.c.l.b16 %v5137
        %v6642 = vunpack.c.h.b16 %v5137
        %v6643 = vunpack.c.l.b16 %v5138
        %v6644 = vunpack.c.h.b16 %v5138
        %v6645 = vunpack.c.l.b16 %v5139
        %v6646 = vunpack.c.h.b16 %v5139
        %v6647 = vunpack.c.l.b16 %v5140
        %v6648 = vunpack.c.h.b16 %v5140
        %v6649 = vunpack.c.l.b16 %v5141
        %v6650 = vunpack.c.h.b16 %v5141
        %v6651 = vunpack.c.l.b16 %v5142
        %v6652 = vunpack.c.h.b16 %v5142
        %v6653 = vunpack.c.l.b16 %v5143
        %v6654 = vunpack.c.h.b16 %v5143
        %v6655 = vunpack.c.l.b16 %v5144
        %v6656 = vunpack.c.h.b16 %v5144
        %v6657 = vunpack.c.l.b16 %v5145
        %v6658 = vunpack.c.h.b16 %v5145
        %v6659 = vunpack.c.l.b16 %v5146
        %v6660 = vunpack.c.h.b16 %v5146
        %v6661 = vunpack.c.l.b16 %v5147
        %v6662 = vunpack.c.h.b16 %v5147
        %v6663 = vunpack.c.l.b16 %v5148
        %v6664 = vunpack.c.h.b16 %v5148
        %v6665 = vunpack.c.l.b16 %v5149
        %v6666 = vunpack.c.h.b16 %v5149
        %v6667 = vunpack.c.l.b16 %v5150
        %v6668 = vunpack.c.h.b16 %v5150
        %v6669 = vunpack.c.l.b16 %v5151
        %v6670 = vunpack.c.h.b16 %v5151
        %v6671 = vunpack.c.l.b16 %v5152
        %v6672 = vunpack.c.h.b16 %v5152
        %v6673 = vunpack.c.l.b16 %v5153
        %v6674 = vunpack.c.h.b16 %v5153
        %v6675 = vunpack.c.l.b16 %v5154
        %v6676 = vunpack.c.h.b16 %v5154
        %v6677 = vunpack.c.l.b16 %v5155
        %v6678 = vunpack.c.h.b16 %v5155
        %v6679 = vunpack.c.l.b16 %v5156
        %v6680 = vunpack.c.h.b16 %v5156
        %v6681 = vunpack.c.l.b16 %v5157
        %v6682 = vunpack.c.h.b16 %v5157
        %v6683 = vunpack.c.l.b16 %v5158
        %v6684 = vunpack.c.h.b16 %v5158
        %v6685 = vunpack.c.l.b16 %v5159
        %v6686 = vunpack.c.h.b16 %v5159
        %v6687 = vunpack.c.l.b16 %v5160
        %v6688 = vunpack.c.h.b16 %v5160
        %v6689 = vunpack.c.l.b16 %v5161
        %v6690 = vunpack.c.h.b16 %v5161
        %v6691 = vunpack.c.l.b16 %v5162
        %v6692 = vunpack.c.h.b16 %v5162
        %v6693 = vunpack.c.l.b16 %v5163
        %v6694 = vunpack.c.h.b16 %v5163
        %v6695 = vunpack.c.l.b16 %v5164
        %v6696 = vunpack.c.h.b16 %v5164
        %v6697 = vunpack.c.l.b16 %v5165
        %v6698 = vunpack.c.h.b16 %v5165
        %v6699 = vunpack.c.l.b16 %v5166
        %v6700 = vunpack.c.h.b16 %v5166
        %v6701 = vunpack.c.l.b16 %v5167
        %v6702 = vunpack.c.h.b16 %v5167
        %v6703 = vunpack.c.l.b16 %v5168
        %v6704 = vunpack.c.h.b16 %v5168
        %v6705 = vunpack.c.l.b16 %v5169
        %v6706 = vunpack.c.h.b16 %v5169
        %v6707 = vunpack.c.l.b16 %v5170
        %v6708 = vunpack.c.h.b16 %v5170
        %v6709 = vunpack.c.l.b16 %v5171
        %v6710 = vunpack.c.h.b16 %v5171
        %v6711 = vunpack.c.l.b16 %v5172
        %v6712 = vunpack.c.h.b16 %v5172
        %v6713 = vunpack.c.l.b16 %v5173
        %v6714 = vunpack.c.h.b16 %v5173
        %v6715 = vunpack.c.l.b16 %v5174
        %v6716 = vunpack.c.h.b16 %v5174
        %v6717 = vunpack.c.l.b16 %v5175
        %v6718 = vunpack.c.h.b16 %v5175
        %v6719 = vunpack.c.l.b16 %v5176
        %v6720 = vunpack.c.h.b16 %v5176
        %v6721 = vunpack.c.l.b16 %v5177
        %v6722 = vunpack.c.h.b16 %v5177
        %v6723 = vunpack.c.l.b16 %v5178
        %v6724 = vunpack.c.h.b16 %v5178
        %v6725 = vunpack.c.l.b16 %v5179
        %v6726 = vunpack.c.h.b16 %v5179
        %v6727 = vunpack.c.l.b16 %v5180
        %v6728 = vunpack.c.h.b16 %v5180
        %v6729 = vunpack.c.l.b16 %v5181
        %v6730 = vunpack.c.h.b16 %v5181
        %v6731 = vunpack.c.l.b16 %v5182
        %v6732 = vunpack.c.h.b16 %v5182
        %v6733 = vunpack.c.l.b16 %v5183
        %v6734 = vunpack.c.h.b16 %v5183
        %v6735 = vunpack.c.l.b16 %v5184
        %v6736 = vunpack.c.h.b16 %v5184
        %v6737 = vunpack.c.l.b16 %v5185
        %v6738 = vunpack.c.h.b16 %v5185
        %v6739 = vunpack.c.l.b16 %v5186
        %v6740 = vunpack.c.h.b16 %v5186
        %v6741 = vunpack.c.l.b16 %v5187
        %v6742 = vunpack.c.h.b16 %v5187
        %v6743 = vunpack.c.l.b16 %v5188
        %v6744 = vunpack.c.h.b16 %v5188
        %v6745 = vunpack.c.l.b16 %v5189
        %v6746 = vunpack.c.h.b16 %v5189
        %v6747 = vunpack.c.l.b16 %v5190
        %v6748 = vunpack.c.h.b16 %v5190
        %v6749 = vunpack.c.l.b16 %v5191
        %v6750 = vunpack.c.h.b16 %v5191
        %v6751 = vunpack.c.l.b16 %v5192
        %v6752 = vunpack.c.h.b16 %v5192
        %v6753 = vunpack.c.l.b16 %v5193
        %v6754 = vunpack.c.h.b16 %v5193
        %v6755 = vunpack.c.l.b16 %v5194
        %v6756 = vunpack.c.h.b16 %v5194
        %v6757 = vunpack.c.l.b16 %v5195
        %v6758 = vunpack.c.h.b16 %v5195
        %v6759 = vunpack.c.l.b16 %v5196
        %v6760 = vunpack.c.h.b16 %v5196
        %v6761 = vunpack.c.l.b16 %v5197
        %v6762 = vunpack.c.h.b16 %v5197
        %v6763 = vunpack.c.l.b16 %v5198
        %v6764 = vunpack.c.h.b16 %v5198
        %v6765 = vunpack.c.l.b16 %v5199
        %v6766 = vunpack.c.h.b16 %v5199
        %v6767 = vunpack.c.l.b16 %v5200
        %v6768 = vunpack.c.h.b16 %v5200
        %v6769 = vunpack.c.l.b16 %v5201
        %v6770 = vunpack.c.h.b16 %v5201
        %v6771 = vunpack.c.l.b16 %v5202
        %v6772 = vunpack.c.h.b16 %v5202
        %v6773 = vunpack.c.l.b16 %v5203
        %v6774 = vunpack.c.h.b16 %v5203
        %v6775 = vunpack.c.l.b16 %v5204
        %v6776 = vunpack.c.h.b16 %v5204
        %v6777 = vpack.c.b16 %v5769, %v5753
        %v6778 = vpack.c.b16 %v5770, %v5754
        %v6779 = vpack.c.b16 %v5771, %v5755
        %v6780 = vpack.c.b16 %v5772, %v5756
        %v6781 = vpack.c.b16 %v5773, %v5757
        %v6782 = vpack.c.b16 %v5774, %v5758
        %v6783 = vpack.c.b16 %v5775, %v5759
        %v6784 = vpack.c.b16 %v5776, %v5760
        %v6785 = vpack.c.b16 %v5777, %v5761
        %v6786 = vpack.c.b16 %v5778, %v5762
        %v6787 = vpack.c.b16 %v5779, %v5763
        %v6788 = vpack.c.b16 %v5780, %v5764
        %v6789 = vpack.c.b16 %v5781, %v5765
        %v6790 = vpack.c.b16 %v5782, %v5766
        %v6791 = vpack.c.b16 %v5783, %v5767
        %v6792 = vpack.c.b16 %v5784, %v5768
        %v6793 = vpack.c.b16 %v5801, %v5785
        %v6794 = vpack.c.b16 %v5802, %v5786
        %v6795 = vpack.c.b16 %v5803, %v5787
        %v6796 = vpack.c.b16 %v5804, %v5788
        %v6797 = vpack.c.b16 %v5805, %v5789
        %v6798 = vpack.c.b16 %v5806, %v5790
        %v6799 = vpack.c.b16 %v5807, %v5791
        %v6800 = vpack.c.b16 %v5808, %v5792
        %v6801 = vpack.c.b16 %v5809, %v5793
        %v6802 = vpack.c.b16 %v5810, %v5794
        %v6803 = vpack.c.b16 %v5811, %v5795
        %v6804 = vpack.c.b16 %v5812, %v5796
        %v6805 = vpack.c.b16 %v5813, %v5797
        %v6806 = vpack.c.b16 %v5814, %v5798
        %v6807 = vpack.c.b16 %v5815, %v5799
        %v6808 = vpack.c.b16 %v5816, %v5800
        %v6809 = vpack.c.b16 %v5833, %v5817
        %v6810 = vpack.c.b16 %v5834, %v5818
        %v6811 = vpack.c.b16 %v5835, %v5819
        %v6812 = vpack.c.b16 %v5836, %v5820
        %v6813 = vpack.c.b16 %v5837, %v5821
        %v6814 = vpack.c.b16 %v5838, %v5822
        %v6815 = vpack.c.b16 %v5839, %v5823
        %v6816 = vpack.c.b16 %v5840, %v5824
        %v6817 = vpack.c.b16 %v5841, %v5825
        %v6818 = vpack.c.b16 %v5842, %v5826
        %v6819 = vpack.c.b16 %v5843, %v5827
        %v6820 = vpack.c.b16 %v5844, %v5828
        %v6821 = vpack.c.b16 %v5845, %v5829
        %v6822 = vpack.c.b16 %v5846, %v5830
        %v6823 = vpack.c.b16 %v5847, %v5831
        %v6824 = vpack.c.b16 %v5848, %v5832
        %v6825 = vpack.c.b16 %v5865, %v5849
        %v6826 = vpack.c.b16 %v5866, %v5850
        %v6827 = vpack.c.b16 %v5867, %v5851
        %v6828 = vpack.c.b16 %v5868, %v5852
        %v6829 = vpack.c.b16 %v5869, %v5853
        %v6830 = vpack.c.b16 %v5870, %v5854
        %v6831 = vpack.c.b16 %v5871, %v5855
        %v6832 = vpack.c.b16 %v5872, %v5856
        %v6833 = vpack.c.b16 %v5873, %v5857
        %v6834 = vpack.c.b16 %v5874, %v5858
        %v6835 = vpack.c.b16 %v5875, %v5859
        %v6836 = vpack.c.b16 %v5876, %v5860
        %v6837 = vpack.c.b16 %v5877, %v5861
        %v6838 = vpack.c.b16 %v5878, %v5862
        %v6839 = vpack.c.b16 %v5879, %v5863
        %v6840 = vpack.c.b16 %v5880, %v5864
        %v6841 = vpack.c.b16 %v5897, %v5881
        %v6842 = vpack.c.b16 %v5898, %v5882
        %v6843 = vpack.c.b16 %v5899, %v5883
        %v6844 = vpack.c.b16 %v5900, %v5884
        %v6845 = vpack.c.b16 %v5901, %v5885
        %v6846 = vpack.c.b16 %v5902, %v5886
        %v6847 = vpack.c.b16 %v5903, %v5887
        %v6848 = vpack.c.b16 %v5904, %v5888
        %v6849 = vpack.c.b16 %v5905, %v5889
        %v6850 = vpack.c.b16 %v5906, %v5890
        %v6851 = vpack.c.b16 %v5907, %v5891
        %v6852 = vpack.c.b16 %v5908, %v5892
        %v6853 = vpack.c.b16 %v5909, %v5893
        %v6854 = vpack.c.b16 %v5910, %v5894
        %v6855 = vpack.c.b16 %v5911, %v5895
        %v6856 = vpack.c.b16 %v5912, %v5896
        %v6857 = vpack.c.b16 %v5929, %v5913
        %v6858 = vpack.c.b16 %v5930, %v5914
        %v6859 = vpack.c.b16 %v5931, %v5915
        %v6860 = vpack.c.b16 %v5932, %v5916
        %v6861 = vpack.c.b16 %v5933, %v5917
        %v6862 = vpack.c.b16 %v5934, %v5918
        %v6863 = vpack.c.b16 %v5935, %v5919
        %v6864 = vpack.c.b16 %v5936, %v5920
        %v6865 = vpack.c.b16 %v5937, %v5921
        %v6866 = vpack.c.b16 %v5938, %v5922
        %v6867 = vpack.c.b16 %v5939, %v5923
        %v6868 = vpack.c.b16 %v5940, %v5924
        %v6869 = vpack.c.b16 %v5941, %v5925
        %v6870 = vpack.c.b16 %v5942, %v5926
        %v6871 = vpack.c.b16 %v5943, %v5927
        %v6872 = vpack.c.b16 %v5944, %v5928
        %v6873 = vpack.c.b16 %v5961, %v5945
        %v6874 = vpack.c.b16 %v5962, %v5946
        %v6875 = vpack.c.b16 %v5963, %v5947
        %v6876 = vpack.c.b16 %v5964, %v5948
        %v6877 = vpack.c.b16 %v5965, %v5949
        %v6878 = vpack.c.b16 %v5966, %v5950
        %v6879 = vpack.c.b16 %v5967, %v5951
        %v6880 = vpack.c.b16 %v5968, %v5952
        %v6881 = vpack.c.b16 %v5969, %v5953
        %v6882 = vpack.c.b16 %v5970, %v5954
        %v6883 = vpack.c.b16 %v5971, %v5955
        %v6884 = vpack.c.b16 %v5972, %v5956
        %v6885 = vpack.c.b16 %v5973, %v5957
        %v6886 = vpack.c.b16 %v5974, %v5958
        %v6887 = vpack.c.b16 %v5975, %v5959
        %v6888 = vpack.c.b16 %v5976, %v5960
        %v6889 = vpack.c.b16 %v5993, %v5977
        %v6890 = vpack.c.b16 %v5994, %v5978
        %v6891 = vpack.c.b16 %v5995, %v5979
        %v6892 = vpack.c.b16 %v5996, %v5980
        %v6893 = vpack.c.b16 %v5997, %v5981
        %v6894 = vpack.c.b16 %v5998, %v5982
        %v6895 = vpack.c.b16 %v5999, %v5983
        %v6896 = vpack.c.b16 %v6000, %v5984
        %v6897 = vpack.c.b16 %v6001, %v5985
        %v6898 = vpack.c.b16 %v6002, %v5986
        %v6899 = vpack.c.b16 %v6003, %v5987
        %v6900 = vpack.c.b16 %v6004, %v5988
        %v6901 = vpack.c.b16 %v6005, %v5989
        %v6902 = vpack.c.b16 %v6006, %v5990
        %v6903 = vpack.c.b16 %v6007, %v5991
        %v6904 = vpack.c.b16 %v6008, %v5992
        %v6905 = vpack.c.b16 %v6025, %v6009
        %v6906 = vpack.c.b16 %v6026, %v6010
        %v6907 = vpack.c.b16 %v6027, %v6011
        %v6908 = vpack.c.b16 %v6028, %v6012
        %v6909 = vpack.c.b16 %v6029, %v6013
        %v6910 = vpack.c.b16 %v6030, %v6014
        %v6911 = vpack.c.b16 %v6031, %v6015
        %v6912 = vpack.c.b16 %v6032, %v6016
        %v6913 = vpack.c.b16 %v6033, %v6017
        %v6914 = vpack.c.b16 %v6034, %v6018
        %v6915 = vpack.c.b16 %v6035, %v6019
        %v6916 = vpack.c.b16 %v6036, %v6020
        %v6917 = vpack.c.b16 %v6037, %v6021
        %v6918 = vpack.c.b16 %v6038, %v6022
        %v6919 = vpack.c.b16 %v6039, %v6023
        %v6920 = vpack.c.b16 %v6040, %v6024
        %v6921 = vpack.c.b16 %v6057, %v6041
        %v6922 = vpack.c.b16 %v6058, %v6042
        %v6923 = vpack.c.b16 %v6059, %v6043
        %v6924 = vpack.c.b16 %v6060, %v6044
        %v6925 = vpack.c.b16 %v6061, %v6045
        %v6926 = vpack.c.b16 %v6062, %v6046
        %v6927 = vpack.c.b16 %v6063, %v6047
        %v6928 = vpack.c.b16 %v6064, %v6048
        %v6929 = vpack.c.b16 %v6065, %v6049
        %v6930 = vpack.c.b16 %v6066, %v6050
        %v6931 = vpack.c.b16 %v6067, %v6051
        %v6932 = vpack.c.b16 %v6068, %v6052
        %v6933 = vpack.c.b16 %v6069, %v6053
        %v6934 = vpack.c.b16 %v6070, %v6054
        %v6935 = vpack.c.b16 %v6071, %v6055
        %v6936 = vpack.c.b16 %v6072, %v6056
        %v6937 = vpack.c.b16 %v6089, %v6073
        %v6938 = vpack.c.b16 %v6090, %v6074
        %v6939 = vpack.c.b16 %v6091, %v6075
        %v6940 = vpack.c.b16 %v6092, %v6076
        %v6941 = vpack.c.b16 %v6093, %v6077
        %v6942 = vpack.c.b16 %v6094, %v6078
        %v6943 = vpack.c.b16 %v6095, %v6079
        %v6944 = vpack.c.b16 %v6096, %v6080
        %v6945 = vpack.c.b16 %v6097, %v6081
        %v6946 = vpack.c.b16 %v6098, %v6082
        %v6947 = vpack.c.b16 %v6099, %v6083
        %v6948 = vpack.c.b16 %v6100, %v6084
        %v6949 = vpack.c.b16 %v6101, %v6085
        %v6950 = vpack.c.b16 %v6102, %v6086
        %v6951 = vpack.c.b16 %v6103, %v6087
        %v6952 = vpack.c.b16 %v6104, %v6088
        %v6953 = vpack.c.b16 %v6121, %v6105
        %v6954 = vpack.c.b16 %v6122, %v6106
        %v6955 = vpack.c.b16 %v6123, %v6107
        %v6956 = vpack.c.b16 %v6124, %v6108
        %v6957 = vpack.c.b16 %v6125, %v6109
        %v6958 = vpack.c.b16 %v6126, %v6110
        %v6959 = vpack.c.b16 %v6127, %v6111
        %v6960 = vpack.c.b16 %v6128, %v6112
        %v6961 = vpack.c.b16 %v6129, %v6113
        %v6962 = vpack.c.b16 %v6130, %v6114
        %v6963 = vpack.c.b16 %v6131, %v6115
        %v6964 = vpack.c.b16 %v6132, %v6116
        %v6965 = vpack.c.b16 %v6133, %v6117
        %v6966 = vpack.c.b16 %v6134, %v6118
        %v6967 = vpack.c.b16 %v6135, %v6119
        %v6968 = vpack.c.b16 %v6136, %v6120
        %v6969 = vpack.c.b16 %v6153, %v6137
        %v6970 = vpack.c.b16 %v6154, %v6138
        %v6971 = vpack.c.b16 %v6155, %v6139
        %v6972 = vpack.c.b16 %v6156, %v6140
        %v6973 = vpack.c.b16 %v6157, %v6141
        %v6974 = vpack.c.b16 %v6158, %v6142
        %v6975 = vpack.c.b16 %v6159, %v6143
        %v6976 = vpack.c.b16 %v6160, %v6144
        %v6977 = vpack.c.b16 %v6161, %v6145
        %v6978 = vpack.c.b16 %v6162, %v6146
        %v6979 = vpack.c.b16 %v6163, %v6147
        %v6980 = vpack.c.b16 %v6164, %v6148
        %v6981 = vpack.c.b16 %v6165, %v6149
        %v6982 = vpack.c.b16 %v6166, %v6150
        %v6983 = vpack.c.b16 %v6167, %v6151
        %v6984 = vpack.c.b16 %v6168, %v6152
        %v6985 = vpack.c.b16 %v6185, %v6169
        %v6986 = vpack.c.b16 %v6186, %v6170
        %v6987 = vpack.c.b16 %v6187, %v6171
        %v6988 = vpack.c.b16 %v6188, %v6172
        %v6989 = vpack.c.b16 %v6189, %v6173
        %v6990 = vpack.c.b16 %v6190, %v6174
        %v6991 = vpack.c.b16 %v6191, %v6175
        %v6992 = vpack.c.b16 %v6192, %v6176
        %v6993 = vpack.c.b16 %v6193, %v6177
        %v6994 = vpack.c.b16 %v6194, %v6178
        %v6995 = vpack.c.b16 %v6195, %v6179
        %v6996 = vpack.c.b16 %v6196, %v6180
        %v6997 = vpack.c.b16 %v6197, %v6181
        %v6998 = vpack.c.b16 %v6198, %v6182
        %v6999 = vpack.c.b16 %v6199, %v6183
        %v7000 = vpack.c.b16 %v6200, %v6184
        %v7001 = vpack.c.b16 %v6217, %v6201
        %v7002 = vpack.c.b16 %v6218, %v6202
        %v7003 = vpack.c.b16 %v6219, %v6203
        %v7004 = vpack.c.b16 %v6220, %v6204
        %v7005 = vpack.c.b16 %v6221, %v6205
        %v7006 = vpack.c.b16 %v6222, %v6206
        %v7007 = vpack.c.b16 %v6223, %v6207
        %v7008 = vpack.c.b16 %v6224, %v6208
        %v7009 = vpack.c.b16 %v6225, %v6209
        %v7010 = vpack.c.b16 %v6226, %v6210
        %v7011 = vpack.c.b16 %v6227, %v6211
        %v7012 = vpack.c.b16 %v6228, %v6212
        %v7013 = vpack.c.b16 %v6229, %v6213
        %v7014 = vpack.c.b16 %v6230, %v6214
        %v7015 = vpack.c.b16 %v6231, %v6215
        %v7016 = vpack.c.b16 %v6232, %v6216
        %v7017 = vpack.c.b16 %v6249, %v6233
        %v7018 = vpack.c.b16 %v6250, %v6234
        %v7019 = vpack.c.b16 %v6251, %v6235
        %v7020 = vpack.c.b16 %v6252, %v6236
        %v7021 = vpack.c.b16 %v6253, %v6237
        %v7022 = vpack.c.b16 %v6254, %v6238
        %v7023 = vpack.c.b16 %v6255, %v6239
        %v7024 = vpack.c.b16 %v6256, %v6240
        %v7025 = vpack.c.b16 %v6257, %v6241
        %v7026 = vpack.c.b16 %v6258, %v6242
        %v7027 = vpack.c.b16 %v6259, %v6243
        %v7028 = vpack.c.b16 %v6260, %v6244
        %v7029 = vpack.c.b16 %v6261, %v6245
        %v7030 = vpack.c.b16 %v6262, %v6246
        %v7031 = vpack.c.b16 %v6263, %v6247
        %v7032 = vpack.c.b16 %v6264, %v6248
        %v7033 = vpack.c.b16 %v6281, %v6265
        %v7034 = vpack.c.b16 %v6282, %v6266
        %v7035 = vpack.c.b16 %v6283, %v6267
        %v7036 = vpack.c.b16 %v6284, %v6268
        %v7037 = vpack.c.b16 %v6285, %v6269
        %v7038 = vpack.c.b16 %v6286, %v6270
        %v7039 = vpack.c.b16 %v6287, %v6271
        %v7040 = vpack.c.b16 %v6288, %v6272
        %v7041 = vpack.c.b16 %v6289, %v6273
        %v7042 = vpack.c.b16 %v6290, %v6274
        %v7043 = vpack.c.b16 %v6291, %v6275
        %v7044 = vpack.c.b16 %v6292, %v6276
        %v7045 = vpack.c.b16 %v6293, %v6277
        %v7046 = vpack.c.b16 %v6294, %v6278
        %v7047 = vpack.c.b16 %v6295, %v6279
        %v7048 = vpack.c.b16 %v6296, %v6280
        %v7049 = vpack.c.b16 %v6313, %v6297
        %v7050 = vpack.c.b16 %v6314, %v6298
        %v7051 = vpack.c.b16 %v6315, %v6299
        %v7052 = vpack.c.b16 %v6316, %v6300
        %v7053 = vpack.c.b16 %v6317, %v6301
        %v7054 = vpack.c.b16 %v6318, %v6302
        %v7055 = vpack.c.b16 %v6319, %v6303
        %v7056 = vpack.c.b16 %v6320, %v6304
        %v7057 = vpack.c.b16 %v6321, %v6305
        %v7058 = vpack.c.b16 %v6322, %v6306
        %v7059 = vpack.c.b16 %v6323, %v6307
        %v7060 = vpack.c.b16 %v6324, %v6308
        %v7061 = vpack.c.b16 %v6325, %v6309
        %v7062 = vpack.c.b16 %v6326, %v6310
        %v7063 = vpack.c.b16 %v6327, %v6311
        %v7064 = vpack.c.b16 %v6328, %v6312
        %v7065 = vpack.c.b16 %v6345, %v6329
        %v7066 = vpack.c.b16 %v6346, %v6330
        %v7067 = vpack.c.b16 %v6347, %v6331
        %v7068 = vpack.c.b16 %v6348, %v6332
        %v7069 = vpack.c.b16 %v6349, %v6333
        %v7070 = vpack.c.b16 %v6350, %v6334
        %v7071 = vpack.c.b16 %v6351, %v6335
        %v7072 = vpack.c.b16 %v6352, %v6336
        %v7073 = vpack.c.b16 %v6353, %v6337
        %v7074 = vpack.c.b16 %v6354, %v6338
        %v7075 = vpack.c.b16 %v6355, %v6339
        %v7076 = vpack.c.b16 %v6356, %v6340
        %v7077 = vpack.c.b16 %v6357, %v6341
        %v7078 = vpack.c.b16 %v6358, %v6342
        %v7079 = vpack.c.b16 %v6359, %v6343
        %v7080 = vpack.c.b16 %v6360, %v6344
        %v7081 = vpack.c.b16 %v6377, %v6361
        %v7082 = vpack.c.b16 %v6378, %v6362
        %v7083 = vpack.c.b16 %v6379, %v6363
        %v7084 = vpack.c.b16 %v6380, %v6364
        %v7085 = vpack.c.b16 %v6381, %v6365
        %v7086 = vpack.c.b16 %v6382, %v6366
        %v7087 = vpack.c.b16 %v6383, %v6367
        %v7088 = vpack.c.b16 %v6384, %v6368
        %v7089 = vpack.c.b16 %v6385, %v6369
        %v7090 = vpack.c.b16 %v6386, %v6370
        %v7091 = vpack.c.b16 %v6387, %v6371
        %v7092 = vpack.c.b16 %v6388, %v6372
        %v7093 = vpack.c.b16 %v6389, %v6373
        %v7094 = vpack.c.b16 %v6390, %v6374
        %v7095 = vpack.c.b16 %v6391, %v6375
        %v7096 = vpack.c.b16 %v6392, %v6376
        %v7097 = vpack.c.b16 %v6409, %v6393
        %v7098 = vpack.c.b16 %v6410, %v6394
        %v7099 = vpack.c.b16 %v6411, %v6395
        %v7100 = vpack.c.b16 %v6412, %v6396
        %v7101 = vpack.c.b16 %v6413, %v6397
        %v7102 = vpack.c.b16 %v6414, %v6398
        %v7103 = vpack.c.b16 %v6415, %v6399
        %v7104 = vpack.c.b16 %v6416, %v6400
        %v7105 = vpack.c.b16 %v6417, %v6401
        %v7106 = vpack.c.b16 %v6418, %v6402
        %v7107 = vpack.c.b16 %v6419, %v6403
        %v7108 = vpack.c.b16 %v6420, %v6404
        %v7109 = vpack.c.b16 %v6421, %v6405
        %v7110 = vpack.c.b16 %v6422, %v6406
        %v7111 = vpack.c.b16 %v6423, %v6407
        %v7112 = vpack.c.b16 %v6424, %v6408
        %v7113 = vpack.c.b16 %v6441, %v6425
        %v7114 = vpack.c.b16 %v6442, %v6426
        %v7115 = vpack.c.b16 %v6443, %v6427
        %v7116 = vpack.c.b16 %v6444, %v6428
        %v7117 = vpack.c.b16 %v6445, %v6429
        %v7118 = vpack.c.b16 %v6446, %v6430
        %v7119 = vpack.c.b16 %v6447, %v6431
        %v7120 = vpack.c.b16 %v6448, %v6432
        %v7121 = vpack.c.b16 %v6449, %v6433
        %v7122 = vpack.c.b16 %v6450, %v6434
        %v7123 = vpack.c.b16 %v6451, %v6435
        %v7124 = vpack.c.b16 %v6452, %v6436
        %v7125 = vpack.c.b16 %v6453, %v6437
        %v7126 = vpack.c.b16 %v6454, %v6438
        %v7127 = vpack.c.b16 %v6455, %v6439
        %v7128 = vpack.c.b16 %v6456, %v6440
        %v7129 = vpack.c.b16 %v6473, %v6457
        %v7130 = vpack.c.b16 %v6474, %v6458
        %v7131 = vpack.c.b16 %v6475, %v6459
        %v7132 = vpack.c.b16 %v6476, %v6460
        %v7133 = vpack.c.b16 %v6477, %v6461
        %v7134 = vpack.c.b16 %v6478, %v6462
        %v7135 = vpack.c.b16 %v6479, %v6463
        %v7136 = vpack.c.b16 %v6480, %v6464
        %v7137 = vpack.c.b16 %v6481, %v6465
        %v7138 = vpack.c.b16 %v6482, %v6466
        %v7139 = vpack.c.b16 %v6483, %v6467
        %v7140 = vpack.c.b16 %v6484, %v6468
        %v7141 = vpack.c.b16 %v6485, %v6469
        %v7142 = vpack.c.b16 %v6486, %v6470
        %v7143 = vpack.c.b16 %v6487, %v6471
        %v7144 = vpack.c.b16 %v6488, %v6472
        %v7145 = vpack.c.b16 %v6505, %v6489
        %v7146 = vpack.c.b16 %v6506, %v6490
        %v7147 = vpack.c.b16 %v6507, %v6491
        %v7148 = vpack.c.b16 %v6508, %v6492
        %v7149 = vpack.c.b16 %v6509, %v6493
        %v7150 = vpack.c.b16 %v6510, %v6494
        %v7151 = vpack.c.b16 %v6511, %v6495
        %v7152 = vpack.c.b16 %v6512, %v6496
        %v7153 = vpack.c.b16 %v6513, %v6497
        %v7154 = vpack.c.b16 %v6514, %v6498
        %v7155 = vpack.c.b16 %v6515, %v6499
        %v7156 = vpack.c.b16 %v6516, %v6500
        %v7157 = vpack.c.b16 %v6517, %v6501
        %v7158 = vpack.c.b16 %v6518, %v6502
        %v7159 = vpack.c.b16 %v6519, %v6503
        %v7160 = vpack.c.b16 %v6520, %v6504
        %v7161 = vpack.c.b16 %v6537, %v6521
        %v7162 = vpack.c.b16 %v6538, %v6522
        %v7163 = vpack.c.b16 %v6539, %v6523
        %v7164 = vpack.c.b16 %v6540, %v6524
        %v7165 = vpack.c.b16 %v6541, %v6525
        %v7166 = vpack.c.b16 %v6542, %v6526
        %v7167 = vpack.c.b16 %v6543, %v6527
        %v7168 = vpack.c.b16 %v6544, %v6528
        %v7169 = vpack.c.b16 %v6545, %v6529
        %v7170 = vpack.c.b16 %v6546, %v6530
        %v7171 = vpack.c.b16 %v6547, %v6531
        %v7172 = vpack.c.b16 %v6548, %v6532
        %v7173 = vpack.c.b16 %v6549, %v6533
        %v7174 = vpack.c.b16 %v6550, %v6534
        %v7175 = vpack.c.b16 %v6551, %v6535
        %v7176 = vpack.c.b16 %v6552, %v6536
        %v7177 = vpack.c.b16 %v6569, %v6553
        %v7178 = vpack.c.b16 %v6570, %v6554
        %v7179 = vpack.c.b16 %v6571, %v6555
        %v7180 = vpack.c.b16 %v6572, %v6556
        %v7181 = vpack.c.b16 %v6573, %v6557
        %v7182 = vpack.c.b16 %v6574, %v6558
        %v7183 = vpack.c.b16 %v6575, %v6559
        %v7184 = vpack.c.b16 %v6576, %v6560
        %v7185 = vpack.c.b16 %v6577, %v6561
        %v7186 = vpack.c.b16 %v6578, %v6562
        %v7187 = vpack.c.b16 %v6579, %v6563
        %v7188 = vpack.c.b16 %v6580, %v6564
        %v7189 = vpack.c.b16 %v6581, %v6565
        %v7190 = vpack.c.b16 %v6582, %v6566
        %v7191 = vpack.c.b16 %v6583, %v6567
        %v7192 = vpack.c.b16 %v6584, %v6568
        %v7193 = vpack.c.b16 %v6601, %v6585
        %v7194 = vpack.c.b16 %v6602, %v6586
        %v7195 = vpack.c.b16 %v6603, %v6587
        %v7196 = vpack.c.b16 %v6604, %v6588
        %v7197 = vpack.c.b16 %v6605, %v6589
        %v7198 = vpack.c.b16 %v6606, %v6590
        %v7199 = vpack.c.b16 %v6607, %v6591
        %v7200 = vpack.c.b16 %v6608, %v6592
        %v7201 = vpack.c.b16 %v6609, %v6593
        %v7202 = vpack.c.b16 %v6610, %v6594
        %v7203 = vpack.c.b16 %v6611, %v6595
        %v7204 = vpack.c.b16 %v6612, %v6596
        %v7205 = vpack.c.b16 %v6613, %v6597
        %v7206 = vpack.c.b16 %v6614, %v6598
        %v7207 = vpack.c.b16 %v6615, %v6599
        %v7208 = vpack.c.b16 %v6616, %v6600
        %v7209 = vpack.c.b16 %v6633, %v6617
        %v7210 = vpack.c.b16 %v6634, %v6618
        %v7211 = vpack.c.b16 %v6635, %v6619
        %v7212 = vpack.c.b16 %v6636, %v6620
        %v7213 = vpack.c.b16 %v6637, %v6621
        %v7214 = vpack.c.b16 %v6638, %v6622
        %v7215 = vpack.c.b16 %v6639, %v6623
        %v7216 = vpack.c.b16 %v6640, %v6624
        %v7217 = vpack.c.b16 %v6641, %v6625
        %v7218 = vpack.c.b16 %v6642, %v6626
        %v7219 = vpack.c.b16 %v6643, %v6627
        %v7220 = vpack.c.b16 %v6644, %v6628
        %v7221 = vpack.c.b16 %v6645, %v6629
        %v7222 = vpack.c.b16 %v6646, %v6630
        %v7223 = vpack.c.b16 %v6647, %v6631
        %v7224 = vpack.c.b16 %v6648, %v6632
        %v7225 = vpack.c.b16 %v6665, %v6649
        %v7226 = vpack.c.b16 %v6666, %v6650
        %v7227 = vpack.c.b16 %v6667, %v6651
        %v7228 = vpack.c.b16 %v6668, %v6652
        %v7229 = vpack.c.b16 %v6669, %v6653
        %v7230 = vpack.c.b16 %v6670, %v6654
        %v7231 = vpack.c.b16 %v6671, %v6655
        %v7232 = vpack.c.b16 %v6672, %v6656
        %v7233 = vpack.c.b16 %v6673, %v6657
        %v7234 = vpack.c.b16 %v6674, %v6658
        %v7235 = vpack.c.b16 %v6675, %v6659
        %v7236 = vpack.c.b16 %v6676, %v6660
        %v7237 = vpack.c.b16 %v6677, %v6661
        %v7238 = vpack.c.b16 %v6678, %v6662
        %v7239 = vpack.c.b16 %v6679, %v6663
        %v7240 = vpack.c.b16 %v6680, %v6664
        %v7241 = vpack.c.b16 %v6697, %v6681
        %v7242 = vpack.c.b16 %v6698, %v6682
        %v7243 = vpack.c.b16 %v6699, %v6683
        %v7244 = vpack.c.b16 %v6700, %v6684
        %v7245 = vpack.c.b16 %v6701, %v6685
        %v7246 = vpack.c.b16 %v6702, %v6686
        %v7247 = vpack.c.b16 %v6703, %v6687
        %v7248 = vpack.c.b16 %v6704, %v6688
        %v7249 = vpack.c.b16 %v6705, %v6689
        %v7250 = vpack.c.b16 %v6706, %v6690
        %v7251 = vpack.c.b16 %v6707, %v6691
        %v7252 = vpack.c.b16 %v6708, %v6692
        %v7253 = vpack.c.b16 %v6709, %v6693
        %v7254 = vpack.c.b16 %v6710, %v6694
        %v7255 = vpack.c.b16 %v6711, %v6695
        %v7256 = vpack.c.b16 %v6712, %v6696
        %v7257 = vpack.c.b16 %v6729, %v6713
        %v7258 = vpack.c.b16 %v6730, %v6714
        %v7259 = vpack.c.b16 %v6731, %v6715
        %v7260 = vpack.c.b16 %v6732, %v6716
        %v7261 = vpack.c.b16 %v6733, %v6717
        %v7262 = vpack.c.b16 %v6734, %v6718
        %v7263 = vpack.c.b16 %v6735, %v6719
        %v7264 = vpack.c.b16 %v6736, %v6720
        %v7265 = vpack.c.b16 %v6737, %v6721
        %v7266 = vpack.c.b16 %v6738, %v6722
        %v7267 = vpack.c.b16 %v6739, %v6723
        %v7268 = vpack.c.b16 %v6740, %v6724
        %v7269 = vpack.c.b16 %v6741, %v6725
        %v7270 = vpack.c.b16 %v6742, %v6726
        %v7271 = vpack.c.b16 %v6743, %v6727
        %v7272 = vpack.c.b16 %v6744, %v6728
        %v7273 = vpack.c.b16 %v6761, %v6745
        %v7274 = vpack.c.b16 %v6762, %v6746
        %v7275 = vpack.c.b16 %v6763, %v6747
        %v7276 = vpack.c.b16 %v6764, %v6748
        %v7277 = vpack.c.b16 %v6765, %v6749
        %v7278 = vpack.c.b16 %v6766, %v6750
        %v7279 = vpack.c.b16 %v6767, %v6751
        %v7280 = vpack.c.b16 %v6768, %v6752
        %v7281 = vpack.c.b16 %v6769, %v6753
        %v7282 = vpack.c.b16 %v6770, %v6754
        %v7283 = vpack.c.b16 %v6771, %v6755
        %v7284 = vpack.c.b16 %v6772, %v6756
        %v7285 = vpack.c.b16 %v6773, %v6757
        %v7286 = vpack.c.b16 %v6774, %v6758
        %v7287 = vpack.c.b16 %v6775, %v6759
        %v7288 = vpack.c.b16 %v6776, %v6760
        %7801 = vmatpush.bf16.msra.mxu0 %v6889
        %7802 = vmatpush.bf16.msra.mxu0 %v6873
        %7803 = vmatpush.bf16.msra.mxu0 %v6857
        %7804 = vmatpush.bf16.msra.mxu0 %v6841
        %7805 = vmatpush.bf16.msra.mxu0 %v6825
        %7806 = vmatpush.bf16.msra.mxu0 %v6809
        %7807 = vmatpush.bf16.msra.mxu0 %v6793
        %7808 = vmatpush.bf16.msra.mxu0 %v6777
        %7809 = vmatmul.bf16.gmra.mxu0 %v4689
        %v7810 = vpop.f32.mrf.mxu0
        %v7811 = vadd.f32 %v5209, %v7810
        %v7812 = vpop.f32.mrf.mxu0
        %7813 = vdwg.mxu0
        %7814 = vmatpush.bf16.msra.mxu0 %v7017
        %7815 = vmatpush.bf16.msra.mxu0 %v7001
        %7816 = vmatpush.bf16.msra.mxu0 %v6985
        %7817 = vmatpush.bf16.msra.mxu0 %v6969
        %7818 = vmatpush.bf16.msra.mxu0 %v6953
        %7819 = vmatpush.bf16.msra.mxu0 %v6937
        %7820 = vmatpush.bf16.msra.mxu0 %v6921
        %7821 = vmatpush.bf16.msra.mxu0 %v6905
        %7822 = vmatmul.bf16.gmra.mxu0 %v4690
        %v7823 = vpop.f32.mrf.mxu0
        %v7824 = vadd.f32 %v7811, %v7823
        %v7825 = vpop.f32.mrf.mxu0
        %7826 = vdwg.mxu0
        %7827 = vmatpush.bf16.msra.mxu0 %v7145
        %7828 = vmatpush.bf16.msra.mxu0 %v7129
        %7829 = vmatpush.bf16.msra.mxu0 %v7113
        %7830 = vmatpush.bf16.msra.mxu0 %v7097
        %7831 = vmatpush.bf16.msra.mxu0 %v7081
        %7832 = vmatpush.bf16.msra.mxu0 %v7065
        %7833 = vmatpush.bf16.msra.mxu0 %v7049
        %7834 = vmatpush.bf16.msra.mxu0 %v7033
        %7835 = vmatmul.bf16.gmra.mxu0 %v4691
        %v7836 = vpop.f32.mrf.mxu0
        %v7837 = vadd.f32 %v7824, %v7836
        %v7838 = vpop.f32.mrf.mxu0
        %7839 = vdwg.mxu0
        %7840 = vmatpush.bf16.msra.mxu0 %v7273
        %7841 = vmatpush.bf16.msra.mxu0 %v7257
        %7842 = vmatpush.bf16.msra.mxu0 %v7241
        %7843 = vmatpush.bf16.msra.mxu0 %v7225
        %7844 = vmatpush.bf16.msra.mxu0 %v7209
        %7845 = vmatpush.bf16.msra.mxu0 %v7193
        %7846 = vmatpush.bf16.msra.mxu0 %v7177
        %7847 = vmatpush.bf16.msra.mxu0 %v7161
        %7848 = vmatmul.bf16.gmra.mxu0 %v4692
        %v7849 = vpop.f32.mrf.mxu0
        %v7850 = vadd.f32 %v7837, %v7849
        %v7851 = vpop.f32.mrf.mxu0
        %7852 = vdwg.mxu0
        %7853 = vmatpush.bf16.msra.mxu0 %v6890
        %7854 = vmatpush.bf16.msra.mxu0 %v6874
        %7855 = vmatpush.bf16.msra.mxu0 %v6858
        %7856 = vmatpush.bf16.msra.mxu0 %v6842
        %7857 = vmatpush.bf16.msra.mxu0 %v6826
        %7858 = vmatpush.bf16.msra.mxu0 %v6810
        %7859 = vmatpush.bf16.msra.mxu0 %v6794
        %7860 = vmatpush.bf16.msra.mxu0 %v6778
        %7861 = vmatmul.bf16.gmra.mxu0 %v4689
        %v7862 = vpop.f32.mrf.mxu0
        %v7863 = vadd.f32 %v5210, %v7862
        %v7864 = vpop.f32.mrf.mxu0
        %7865 = vdwg.mxu0
        %7866 = vmatpush.bf16.msra.mxu0 %v7018
        %7867 = vmatpush.bf16.msra.mxu0 %v7002
        %7868 = vmatpush.bf16.msra.mxu0 %v6986
        %7869 = vmatpush.bf16.msra.mxu0 %v6970
        %7870 = vmatpush.bf16.msra.mxu0 %v6954
        %7871 = vmatpush.bf16.msra.mxu0 %v6938
        %7872 = vmatpush.bf16.msra.mxu0 %v6922
        %7873 = vmatpush.bf16.msra.mxu0 %v6906
        %7874 = vmatmul.bf16.gmra.mxu0 %v4690
        %v7875 = vpop.f32.mrf.mxu0
        %v7876 = vadd.f32 %v7863, %v7875
        %v7877 = vpop.f32.mrf.mxu0
        %7878 = vdwg.mxu0
        %7879 = vmatpush.bf16.msra.mxu0 %v7146
        %7880 = vmatpush.bf16.msra.mxu0 %v7130
        %7881 = vmatpush.bf16.msra.mxu0 %v7114
        %7882 = vmatpush.bf16.msra.mxu0 %v7098
        %7883 = vmatpush.bf16.msra.mxu0 %v7082
        %7884 = vmatpush.bf16.msra.mxu0 %v7066
        %7885 = vmatpush.bf16.msra.mxu0 %v7050
        %7886 = vmatpush.bf16.msra.mxu0 %v7034
        %7887 = vmatmul.bf16.gmra.mxu0 %v4691
        %v7888 = vpop.f32.mrf.mxu0
        %v7889 = vadd.f32 %v7876, %v7888
        %v7890 = vpop.f32.mrf.mxu0
        %7891 = vdwg.mxu0
        %7892 = vmatpush.bf16.msra.mxu0 %v7274
        %7893 = vmatpush.bf16.msra.mxu0 %v7258
        %7894 = vmatpush.bf16.msra.mxu0 %v7242
        %7895 = vmatpush.bf16.msra.mxu0 %v7226
        %7896 = vmatpush.bf16.msra.mxu0 %v7210
        %7897 = vmatpush.bf16.msra.mxu0 %v7194
        %7898 = vmatpush.bf16.msra.mxu0 %v7178
        %7899 = vmatpush.bf16.msra.mxu0 %v7162
        %7900 = vmatmul.bf16.gmra.mxu0 %v4692
        %v7901 = vpop.f32.mrf.mxu0
        %v7902 = vadd.f32 %v7889, %v7901
        %v7903 = vpop.f32.mrf.mxu0
        %7904 = vdwg.mxu0
        %7905 = vmatpush.bf16.msra.mxu0 %v6891
        %7906 = vmatpush.bf16.msra.mxu0 %v6875
        %7907 = vmatpush.bf16.msra.mxu0 %v6859
        %7908 = vmatpush.bf16.msra.mxu0 %v6843
        %7909 = vmatpush.bf16.msra.mxu0 %v6827
        %7910 = vmatpush.bf16.msra.mxu0 %v6811
        %7911 = vmatpush.bf16.msra.mxu0 %v6795
        %7912 = vmatpush.bf16.msra.mxu0 %v6779
        %7913 = vmatmul.bf16.gmra.mxu0 %v4689
        %v7914 = vpop.f32.mrf.mxu0
        %v7915 = vadd.f32 %v5211, %v7914
        %v7916 = vpop.f32.mrf.mxu0
        %7917 = vdwg.mxu0
        %7918 = vmatpush.bf16.msra.mxu0 %v7019
        %7919 = vmatpush.bf16.msra.mxu0 %v7003
        %7920 = vmatpush.bf16.msra.mxu0 %v6987
        %7921 = vmatpush.bf16.msra.mxu0 %v6971
        %7922 = vmatpush.bf16.msra.mxu0 %v6955
        %7923 = vmatpush.bf16.msra.mxu0 %v6939
        %7924 = vmatpush.bf16.msra.mxu0 %v6923
        %7925 = vmatpush.bf16.msra.mxu0 %v6907
        %7926 = vmatmul.bf16.gmra.mxu0 %v4690
        %v7927 = vpop.f32.mrf.mxu0
        %v7928 = vadd.f32 %v7915, %v7927
        %v7929 = vpop.f32.mrf.mxu0
        %7930 = vdwg.mxu0
        %7931 = vmatpush.bf16.msra.mxu0 %v7147
        %7932 = vmatpush.bf16.msra.mxu0 %v7131
        %7933 = vmatpush.bf16.msra.mxu0 %v7115
        %7934 = vmatpush.bf16.msra.mxu0 %v7099
        %7935 = vmatpush.bf16.msra.mxu0 %v7083
        %7936 = vmatpush.bf16.msra.mxu0 %v7067
        %7937 = vmatpush.bf16.msra.mxu0 %v7051
        %7938 = vmatpush.bf16.msra.mxu0 %v7035
        %7939 = vmatmul.bf16.gmra.mxu0 %v4691
        %v7940 = vpop.f32.mrf.mxu0
        %v7941 = vadd.f32 %v7928, %v7940
        %v7942 = vpop.f32.mrf.mxu0
        %7943 = vdwg.mxu0
        %7944 = vmatpush.bf16.msra.mxu0 %v7275
        %7945 = vmatpush.bf16.msra.mxu0 %v7259
        %7946 = vmatpush.bf16.msra.mxu0 %v7243
        %7947 = vmatpush.bf16.msra.mxu0 %v7227
        %7948 = vmatpush.bf16.msra.mxu0 %v7211
        %7949 = vmatpush.bf16.msra.mxu0 %v7195
        %7950 = vmatpush.bf16.msra.mxu0 %v7179
        %7951 = vmatpush.bf16.msra.mxu0 %v7163
        %7952 = vmatmul.bf16.gmra.mxu0 %v4692
        %v7953 = vpop.f32.mrf.mxu0
        %v7954 = vadd.f32 %v7941, %v7953
        %v7955 = vpop.f32.mrf.mxu0
        %7956 = vdwg.mxu0
        %7957 = vmatpush.bf16.msra.mxu0 %v6892
        %7958 = vmatpush.bf16.msra.mxu0 %v6876
        %7959 = vmatpush.bf16.msra.mxu0 %v6860
        %7960 = vmatpush.bf16.msra.mxu0 %v6844
        %7961 = vmatpush.bf16.msra.mxu0 %v6828
        %7962 = vmatpush.bf16.msra.mxu0 %v6812
        %7963 = vmatpush.bf16.msra.mxu0 %v6796
        %7964 = vmatpush.bf16.msra.mxu0 %v6780
        %7965 = vmatmul.bf16.gmra.mxu0 %v4689
        %v7966 = vpop.f32.mrf.mxu0
        %v7967 = vadd.f32 %v5212, %v7966
        %v7968 = vpop.f32.mrf.mxu0
        %7969 = vdwg.mxu0
        %7970 = vmatpush.bf16.msra.mxu0 %v7020
        %7971 = vmatpush.bf16.msra.mxu0 %v7004
        %7972 = vmatpush.bf16.msra.mxu0 %v6988
        %7973 = vmatpush.bf16.msra.mxu0 %v6972
        %7974 = vmatpush.bf16.msra.mxu0 %v6956
        %7975 = vmatpush.bf16.msra.mxu0 %v6940
        %7976 = vmatpush.bf16.msra.mxu0 %v6924
        %7977 = vmatpush.bf16.msra.mxu0 %v6908
        %7978 = vmatmul.bf16.gmra.mxu0 %v4690
        %v7979 = vpop.f32.mrf.mxu0
        %v7980 = vadd.f32 %v7967, %v7979
        %v7981 = vpop.f32.mrf.mxu0
        %7982 = vdwg.mxu0
        %7983 = vmatpush.bf16.msra.mxu0 %v7148
        %7984 = vmatpush.bf16.msra.mxu0 %v7132
        %7985 = vmatpush.bf16.msra.mxu0 %v7116
        %7986 = vmatpush.bf16.msra.mxu0 %v7100
        %7987 = vmatpush.bf16.msra.mxu0 %v7084
        %7988 = vmatpush.bf16.msra.mxu0 %v7068
        %7989 = vmatpush.bf16.msra.mxu0 %v7052
        %7990 = vmatpush.bf16.msra.mxu0 %v7036
        %7991 = vmatmul.bf16.gmra.mxu0 %v4691
        %v7992 = vpop.f32.mrf.mxu0
        %v7993 = vadd.f32 %v7980, %v7992
        %v7994 = vpop.f32.mrf.mxu0
        %7995 = vdwg.mxu0
        %7996 = vmatpush.bf16.msra.mxu0 %v7276
        %7997 = vmatpush.bf16.msra.mxu0 %v7260
        %7998 = vmatpush.bf16.msra.mxu0 %v7244
        %7999 = vmatpush.bf16.msra.mxu0 %v7228
        %8000 = vmatpush.bf16.msra.mxu0 %v7212
        %8001 = vmatpush.bf16.msra.mxu0 %v7196
        %8002 = vmatpush.bf16.msra.mxu0 %v7180
        %8003 = vmatpush.bf16.msra.mxu0 %v7164
        %8004 = vmatmul.bf16.gmra.mxu0 %v4692
        %v8005 = vpop.f32.mrf.mxu0
        %v8006 = vadd.f32 %v7993, %v8005
        %v8007 = vpop.f32.mrf.mxu0
        %8008 = vdwg.mxu0
        %8009 = vmatpush.bf16.msra.mxu0 %v6893
        %8010 = vmatpush.bf16.msra.mxu0 %v6877
        %8011 = vmatpush.bf16.msra.mxu0 %v6861
        %8012 = vmatpush.bf16.msra.mxu0 %v6845
        %8013 = vmatpush.bf16.msra.mxu0 %v6829
        %8014 = vmatpush.bf16.msra.mxu0 %v6813
        %8015 = vmatpush.bf16.msra.mxu0 %v6797
        %8016 = vmatpush.bf16.msra.mxu0 %v6781
        %8017 = vmatmul.bf16.gmra.mxu0 %v4689
        %v8018 = vpop.f32.mrf.mxu0
        %v8019 = vadd.f32 %v5213, %v8018
        %v8020 = vpop.f32.mrf.mxu0
        %8021 = vdwg.mxu0
        %8022 = vmatpush.bf16.msra.mxu0 %v7021
        %8023 = vmatpush.bf16.msra.mxu0 %v7005
        %8024 = vmatpush.bf16.msra.mxu0 %v6989
        %8025 = vmatpush.bf16.msra.mxu0 %v6973
        %8026 = vmatpush.bf16.msra.mxu0 %v6957
        %8027 = vmatpush.bf16.msra.mxu0 %v6941
        %8028 = vmatpush.bf16.msra.mxu0 %v6925
        %8029 = vmatpush.bf16.msra.mxu0 %v6909
        %8030 = vmatmul.bf16.gmra.mxu0 %v4690
        %v8031 = vpop.f32.mrf.mxu0
        %v8032 = vadd.f32 %v8019, %v8031
        %v8033 = vpop.f32.mrf.mxu0
        %8034 = vdwg.mxu0
        %8035 = vmatpush.bf16.msra.mxu0 %v7149
        %8036 = vmatpush.bf16.msra.mxu0 %v7133
        %8037 = vmatpush.bf16.msra.mxu0 %v7117
        %8038 = vmatpush.bf16.msra.mxu0 %v7101
        %8039 = vmatpush.bf16.msra.mxu0 %v7085
        %8040 = vmatpush.bf16.msra.mxu0 %v7069
        %8041 = vmatpush.bf16.msra.mxu0 %v7053
        %8042 = vmatpush.bf16.msra.mxu0 %v7037
        %8043 = vmatmul.bf16.gmra.mxu0 %v4691
        %v8044 = vpop.f32.mrf.mxu0
        %v8045 = vadd.f32 %v8032, %v8044
        %v8046 = vpop.f32.mrf.mxu0
        %8047 = vdwg.mxu0
        %8048 = vmatpush.bf16.msra.mxu0 %v7277
        %8049 = vmatpush.bf16.msra.mxu0 %v7261
        %8050 = vmatpush.bf16.msra.mxu0 %v7245
        %8051 = vmatpush.bf16.msra.mxu0 %v7229
        %8052 = vmatpush.bf16.msra.mxu0 %v7213
        %8053 = vmatpush.bf16.msra.mxu0 %v7197
        %8054 = vmatpush.bf16.msra.mxu0 %v7181
        %8055 = vmatpush.bf16.msra.mxu0 %v7165
        %8056 = vmatmul.bf16.gmra.mxu0 %v4692
        %v8057 = vpop.f32.mrf.mxu0
        %v8058 = vadd.f32 %v8045, %v8057
        %v8059 = vpop.f32.mrf.mxu0
        %8060 = vdwg.mxu0
        %8061 = vmatpush.bf16.msra.mxu0 %v6894
        %8062 = vmatpush.bf16.msra.mxu0 %v6878
        %8063 = vmatpush.bf16.msra.mxu0 %v6862
        %8064 = vmatpush.bf16.msra.mxu0 %v6846
        %8065 = vmatpush.bf16.msra.mxu0 %v6830
        %8066 = vmatpush.bf16.msra.mxu0 %v6814
        %8067 = vmatpush.bf16.msra.mxu0 %v6798
        %8068 = vmatpush.bf16.msra.mxu0 %v6782
        %8069 = vmatmul.bf16.gmra.mxu0 %v4689
        %v8070 = vpop.f32.mrf.mxu0
        %v8071 = vadd.f32 %v5214, %v8070
        %v8072 = vpop.f32.mrf.mxu0
        %8073 = vdwg.mxu0
        %8074 = vmatpush.bf16.msra.mxu0 %v7022
        %8075 = vmatpush.bf16.msra.mxu0 %v7006
        %8076 = vmatpush.bf16.msra.mxu0 %v6990
        %8077 = vmatpush.bf16.msra.mxu0 %v6974
        %8078 = vmatpush.bf16.msra.mxu0 %v6958
        %8079 = vmatpush.bf16.msra.mxu0 %v6942
        %8080 = vmatpush.bf16.msra.mxu0 %v6926
        %8081 = vmatpush.bf16.msra.mxu0 %v6910
        %8082 = vmatmul.bf16.gmra.mxu0 %v4690
        %v8083 = vpop.f32.mrf.mxu0
        %v8084 = vadd.f32 %v8071, %v8083
        %v8085 = vpop.f32.mrf.mxu0
        %8086 = vdwg.mxu0
        %8087 = vmatpush.bf16.msra.mxu0 %v7150
        %8088 = vmatpush.bf16.msra.mxu0 %v7134
        %8089 = vmatpush.bf16.msra.mxu0 %v7118
        %8090 = vmatpush.bf16.msra.mxu0 %v7102
        %8091 = vmatpush.bf16.msra.mxu0 %v7086
        %8092 = vmatpush.bf16.msra.mxu0 %v7070
        %8093 = vmatpush.bf16.msra.mxu0 %v7054
        %8094 = vmatpush.bf16.msra.mxu0 %v7038
        %8095 = vmatmul.bf16.gmra.mxu0 %v4691
        %v8096 = vpop.f32.mrf.mxu0
        %v8097 = vadd.f32 %v8084, %v8096
        %v8098 = vpop.f32.mrf.mxu0
        %8099 = vdwg.mxu0
        %8100 = vmatpush.bf16.msra.mxu0 %v7278
        %8101 = vmatpush.bf16.msra.mxu0 %v7262
        %8102 = vmatpush.bf16.msra.mxu0 %v7246
        %8103 = vmatpush.bf16.msra.mxu0 %v7230
        %8104 = vmatpush.bf16.msra.mxu0 %v7214
        %8105 = vmatpush.bf16.msra.mxu0 %v7198
        %8106 = vmatpush.bf16.msra.mxu0 %v7182
        %8107 = vmatpush.bf16.msra.mxu0 %v7166
        %8108 = vmatmul.bf16.gmra.mxu0 %v4692
        %v8109 = vpop.f32.mrf.mxu0
        %v8110 = vadd.f32 %v8097, %v8109
        %v8111 = vpop.f32.mrf.mxu0
        %8112 = vdwg.mxu0
        %8113 = vmatpush.bf16.msra.mxu0 %v6895
        %8114 = vmatpush.bf16.msra.mxu0 %v6879
        %8115 = vmatpush.bf16.msra.mxu0 %v6863
        %8116 = vmatpush.bf16.msra.mxu0 %v6847
        %8117 = vmatpush.bf16.msra.mxu0 %v6831
        %8118 = vmatpush.bf16.msra.mxu0 %v6815
        %8119 = vmatpush.bf16.msra.mxu0 %v6799
        %8120 = vmatpush.bf16.msra.mxu0 %v6783
        %8121 = vmatmul.bf16.gmra.mxu0 %v4689
        %v8122 = vpop.f32.mrf.mxu0
        %v8123 = vadd.f32 %v5215, %v8122
        %v8124 = vpop.f32.mrf.mxu0
        %8125 = vdwg.mxu0
        %8126 = vmatpush.bf16.msra.mxu0 %v7023
        %8127 = vmatpush.bf16.msra.mxu0 %v7007
        %8128 = vmatpush.bf16.msra.mxu0 %v6991
        %8129 = vmatpush.bf16.msra.mxu0 %v6975
        %8130 = vmatpush.bf16.msra.mxu0 %v6959
        %8131 = vmatpush.bf16.msra.mxu0 %v6943
        %8132 = vmatpush.bf16.msra.mxu0 %v6927
        %8133 = vmatpush.bf16.msra.mxu0 %v6911
        %8134 = vmatmul.bf16.gmra.mxu0 %v4690
        %v8135 = vpop.f32.mrf.mxu0
        %v8136 = vadd.f32 %v8123, %v8135
        %v8137 = vpop.f32.mrf.mxu0
        %8138 = vdwg.mxu0
        %8139 = vmatpush.bf16.msra.mxu0 %v7151
        %8140 = vmatpush.bf16.msra.mxu0 %v7135
        %8141 = vmatpush.bf16.msra.mxu0 %v7119
        %8142 = vmatpush.bf16.msra.mxu0 %v7103
        %8143 = vmatpush.bf16.msra.mxu0 %v7087
        %8144 = vmatpush.bf16.msra.mxu0 %v7071
        %8145 = vmatpush.bf16.msra.mxu0 %v7055
        %8146 = vmatpush.bf16.msra.mxu0 %v7039
        %8147 = vmatmul.bf16.gmra.mxu0 %v4691
        %v8148 = vpop.f32.mrf.mxu0
        %v8149 = vadd.f32 %v8136, %v8148
        %v8150 = vpop.f32.mrf.mxu0
        %8151 = vdwg.mxu0
        %8152 = vmatpush.bf16.msra.mxu0 %v7279
        %8153 = vmatpush.bf16.msra.mxu0 %v7263
        %8154 = vmatpush.bf16.msra.mxu0 %v7247
        %8155 = vmatpush.bf16.msra.mxu0 %v7231
        %8156 = vmatpush.bf16.msra.mxu0 %v7215
        %8157 = vmatpush.bf16.msra.mxu0 %v7199
        %8158 = vmatpush.bf16.msra.mxu0 %v7183
        %8159 = vmatpush.bf16.msra.mxu0 %v7167
        %8160 = vmatmul.bf16.gmra.mxu0 %v4692
        %v8161 = vpop.f32.mrf.mxu0
        %v8162 = vadd.f32 %v8149, %v8161
        %v8163 = vpop.f32.mrf.mxu0
        %8164 = vdwg.mxu0
        %8165 = vmatpush.bf16.msra.mxu0 %v6896
        %8166 = vmatpush.bf16.msra.mxu0 %v6880
        %8167 = vmatpush.bf16.msra.mxu0 %v6864
        %8168 = vmatpush.bf16.msra.mxu0 %v6848
        %8169 = vmatpush.bf16.msra.mxu0 %v6832
        %8170 = vmatpush.bf16.msra.mxu0 %v6816
        %8171 = vmatpush.bf16.msra.mxu0 %v6800
        %8172 = vmatpush.bf16.msra.mxu0 %v6784
        %8173 = vmatmul.bf16.gmra.mxu0 %v4689
        %v8174 = vpop.f32.mrf.mxu0
        %v8175 = vadd.f32 %v5216, %v8174
        %v8176 = vpop.f32.mrf.mxu0
        %8177 = vdwg.mxu0
        %8178 = vmatpush.bf16.msra.mxu0 %v7024
        %8179 = vmatpush.bf16.msra.mxu0 %v7008
        %8180 = vmatpush.bf16.msra.mxu0 %v6992
        %8181 = vmatpush.bf16.msra.mxu0 %v6976
        %8182 = vmatpush.bf16.msra.mxu0 %v6960
        %8183 = vmatpush.bf16.msra.mxu0 %v6944
        %8184 = vmatpush.bf16.msra.mxu0 %v6928
        %8185 = vmatpush.bf16.msra.mxu0 %v6912
        %8186 = vmatmul.bf16.gmra.mxu0 %v4690
        %v8187 = vpop.f32.mrf.mxu0
        %v8188 = vadd.f32 %v8175, %v8187
        %v8189 = vpop.f32.mrf.mxu0
        %8190 = vdwg.mxu0
        %8191 = vmatpush.bf16.msra.mxu0 %v7152
        %8192 = vmatpush.bf16.msra.mxu0 %v7136
        %8193 = vmatpush.bf16.msra.mxu0 %v7120
        %8194 = vmatpush.bf16.msra.mxu0 %v7104
        %8195 = vmatpush.bf16.msra.mxu0 %v7088
        %8196 = vmatpush.bf16.msra.mxu0 %v7072
        %8197 = vmatpush.bf16.msra.mxu0 %v7056
        %8198 = vmatpush.bf16.msra.mxu0 %v7040
        %8199 = vmatmul.bf16.gmra.mxu0 %v4691
        %v8200 = vpop.f32.mrf.mxu0
        %v8201 = vadd.f32 %v8188, %v8200
        %v8202 = vpop.f32.mrf.mxu0
        %8203 = vdwg.mxu0
        %8204 = vmatpush.bf16.msra.mxu0 %v7280
        %8205 = vmatpush.bf16.msra.mxu0 %v7264
        %8206 = vmatpush.bf16.msra.mxu0 %v7248
        %8207 = vmatpush.bf16.msra.mxu0 %v7232
        %8208 = vmatpush.bf16.msra.mxu0 %v7216
        %8209 = vmatpush.bf16.msra.mxu0 %v7200
        %8210 = vmatpush.bf16.msra.mxu0 %v7184
        %8211 = vmatpush.bf16.msra.mxu0 %v7168
        %8212 = vmatmul.bf16.gmra.mxu0 %v4692
        %v8213 = vpop.f32.mrf.mxu0
        %v8214 = vadd.f32 %v8201, %v8213
        %v8215 = vpop.f32.mrf.mxu0
        %8216 = vdwg.mxu0
        %8217 = vmatpush.bf16.msra.mxu0 %v6897
        %8218 = vmatpush.bf16.msra.mxu0 %v6881
        %8219 = vmatpush.bf16.msra.mxu0 %v6865
        %8220 = vmatpush.bf16.msra.mxu0 %v6849
        %8221 = vmatpush.bf16.msra.mxu0 %v6833
        %8222 = vmatpush.bf16.msra.mxu0 %v6817
        %8223 = vmatpush.bf16.msra.mxu0 %v6801
        %8224 = vmatpush.bf16.msra.mxu0 %v6785
        %8225 = vmatmul.bf16.gmra.mxu0 %v4689
        %v8226 = vpop.f32.mrf.mxu0
        %v8227 = vadd.f32 %v5217, %v8226
        %v8228 = vpop.f32.mrf.mxu0
        %8229 = vdwg.mxu0
        %8230 = vmatpush.bf16.msra.mxu0 %v7025
        %8231 = vmatpush.bf16.msra.mxu0 %v7009
        %8232 = vmatpush.bf16.msra.mxu0 %v6993
        %8233 = vmatpush.bf16.msra.mxu0 %v6977
        %8234 = vmatpush.bf16.msra.mxu0 %v6961
        %8235 = vmatpush.bf16.msra.mxu0 %v6945
        %8236 = vmatpush.bf16.msra.mxu0 %v6929
        %8237 = vmatpush.bf16.msra.mxu0 %v6913
        %8238 = vmatmul.bf16.gmra.mxu0 %v4690
        %v8239 = vpop.f32.mrf.mxu0
        %v8240 = vadd.f32 %v8227, %v8239
        %v8241 = vpop.f32.mrf.mxu0
        %8242 = vdwg.mxu0
        %8243 = vmatpush.bf16.msra.mxu0 %v7153
        %8244 = vmatpush.bf16.msra.mxu0 %v7137
        %8245 = vmatpush.bf16.msra.mxu0 %v7121
        %8246 = vmatpush.bf16.msra.mxu0 %v7105
        %8247 = vmatpush.bf16.msra.mxu0 %v7089
        %8248 = vmatpush.bf16.msra.mxu0 %v7073
        %8249 = vmatpush.bf16.msra.mxu0 %v7057
        %8250 = vmatpush.bf16.msra.mxu0 %v7041
        %8251 = vmatmul.bf16.gmra.mxu0 %v4691
        %v8252 = vpop.f32.mrf.mxu0
        %v8253 = vadd.f32 %v8240, %v8252
        %v8254 = vpop.f32.mrf.mxu0
        %8255 = vdwg.mxu0
        %8256 = vmatpush.bf16.msra.mxu0 %v7281
        %8257 = vmatpush.bf16.msra.mxu0 %v7265
        %8258 = vmatpush.bf16.msra.mxu0 %v7249
        %8259 = vmatpush.bf16.msra.mxu0 %v7233
        %8260 = vmatpush.bf16.msra.mxu0 %v7217
        %8261 = vmatpush.bf16.msra.mxu0 %v7201
        %8262 = vmatpush.bf16.msra.mxu0 %v7185
        %8263 = vmatpush.bf16.msra.mxu0 %v7169
        %8264 = vmatmul.bf16.gmra.mxu0 %v4692
        %v8265 = vpop.f32.mrf.mxu0
        %v8266 = vadd.f32 %v8253, %v8265
        %v8267 = vpop.f32.mrf.mxu0
        %8268 = vdwg.mxu0
        %8269 = vmatpush.bf16.msra.mxu0 %v6898
        %8270 = vmatpush.bf16.msra.mxu0 %v6882
        %8271 = vmatpush.bf16.msra.mxu0 %v6866
        %8272 = vmatpush.bf16.msra.mxu0 %v6850
        %8273 = vmatpush.bf16.msra.mxu0 %v6834
        %8274 = vmatpush.bf16.msra.mxu0 %v6818
        %8275 = vmatpush.bf16.msra.mxu0 %v6802
        %8276 = vmatpush.bf16.msra.mxu0 %v6786
        %8277 = vmatmul.bf16.gmra.mxu0 %v4689
        %v8278 = vpop.f32.mrf.mxu0
        %v8279 = vadd.f32 %v5218, %v8278
        %v8280 = vpop.f32.mrf.mxu0
        %8281 = vdwg.mxu0
        %8282 = vmatpush.bf16.msra.mxu0 %v7026
        %8283 = vmatpush.bf16.msra.mxu0 %v7010
        %8284 = vmatpush.bf16.msra.mxu0 %v6994
        %8285 = vmatpush.bf16.msra.mxu0 %v6978
        %8286 = vmatpush.bf16.msra.mxu0 %v6962
        %8287 = vmatpush.bf16.msra.mxu0 %v6946
        %8288 = vmatpush.bf16.msra.mxu0 %v6930
        %8289 = vmatpush.bf16.msra.mxu0 %v6914
        %8290 = vmatmul.bf16.gmra.mxu0 %v4690
        %v8291 = vpop.f32.mrf.mxu0
        %v8292 = vadd.f32 %v8279, %v8291
        %v8293 = vpop.f32.mrf.mxu0
        %8294 = vdwg.mxu0
        %8295 = vmatpush.bf16.msra.mxu0 %v7154
        %8296 = vmatpush.bf16.msra.mxu0 %v7138
        %8297 = vmatpush.bf16.msra.mxu0 %v7122
        %8298 = vmatpush.bf16.msra.mxu0 %v7106
        %8299 = vmatpush.bf16.msra.mxu0 %v7090
        %8300 = vmatpush.bf16.msra.mxu0 %v7074
        %8301 = vmatpush.bf16.msra.mxu0 %v7058
        %8302 = vmatpush.bf16.msra.mxu0 %v7042
        %8303 = vmatmul.bf16.gmra.mxu0 %v4691
        %v8304 = vpop.f32.mrf.mxu0
        %v8305 = vadd.f32 %v8292, %v8304
        %v8306 = vpop.f32.mrf.mxu0
        %8307 = vdwg.mxu0
        %8308 = vmatpush.bf16.msra.mxu0 %v7282
        %8309 = vmatpush.bf16.msra.mxu0 %v7266
        %8310 = vmatpush.bf16.msra.mxu0 %v7250
        %8311 = vmatpush.bf16.msra.mxu0 %v7234
        %8312 = vmatpush.bf16.msra.mxu0 %v7218
        %8313 = vmatpush.bf16.msra.mxu0 %v7202
        %8314 = vmatpush.bf16.msra.mxu0 %v7186
        %8315 = vmatpush.bf16.msra.mxu0 %v7170
        %8316 = vmatmul.bf16.gmra.mxu0 %v4692
        %v8317 = vpop.f32.mrf.mxu0
        %v8318 = vadd.f32 %v8305, %v8317
        %v8319 = vpop.f32.mrf.mxu0
        %8320 = vdwg.mxu0
        %8321 = vmatpush.bf16.msra.mxu0 %v6899
        %8322 = vmatpush.bf16.msra.mxu0 %v6883
        %8323 = vmatpush.bf16.msra.mxu0 %v6867
        %8324 = vmatpush.bf16.msra.mxu0 %v6851
        %8325 = vmatpush.bf16.msra.mxu0 %v6835
        %8326 = vmatpush.bf16.msra.mxu0 %v6819
        %8327 = vmatpush.bf16.msra.mxu0 %v6803
        %8328 = vmatpush.bf16.msra.mxu0 %v6787
        %8329 = vmatmul.bf16.gmra.mxu0 %v4689
        %v8330 = vpop.f32.mrf.mxu0
        %v8331 = vadd.f32 %v5219, %v8330
        %v8332 = vpop.f32.mrf.mxu0
        %8333 = vdwg.mxu0
        %8334 = vmatpush.bf16.msra.mxu0 %v7027
        %8335 = vmatpush.bf16.msra.mxu0 %v7011
        %8336 = vmatpush.bf16.msra.mxu0 %v6995
        %8337 = vmatpush.bf16.msra.mxu0 %v6979
        %8338 = vmatpush.bf16.msra.mxu0 %v6963
        %8339 = vmatpush.bf16.msra.mxu0 %v6947
        %8340 = vmatpush.bf16.msra.mxu0 %v6931
        %8341 = vmatpush.bf16.msra.mxu0 %v6915
        %8342 = vmatmul.bf16.gmra.mxu0 %v4690
        %v8343 = vpop.f32.mrf.mxu0
        %v8344 = vadd.f32 %v8331, %v8343
        %v8345 = vpop.f32.mrf.mxu0
        %8346 = vdwg.mxu0
        %8347 = vmatpush.bf16.msra.mxu0 %v7155
        %8348 = vmatpush.bf16.msra.mxu0 %v7139
        %8349 = vmatpush.bf16.msra.mxu0 %v7123
        %8350 = vmatpush.bf16.msra.mxu0 %v7107
        %8351 = vmatpush.bf16.msra.mxu0 %v7091
        %8352 = vmatpush.bf16.msra.mxu0 %v7075
        %8353 = vmatpush.bf16.msra.mxu0 %v7059
        %8354 = vmatpush.bf16.msra.mxu0 %v7043
        %8355 = vmatmul.bf16.gmra.mxu0 %v4691
        %v8356 = vpop.f32.mrf.mxu0
        %v8357 = vadd.f32 %v8344, %v8356
        %v8358 = vpop.f32.mrf.mxu0
        %8359 = vdwg.mxu0
        %8360 = vmatpush.bf16.msra.mxu0 %v7283
        %8361 = vmatpush.bf16.msra.mxu0 %v7267
        %8362 = vmatpush.bf16.msra.mxu0 %v7251
        %8363 = vmatpush.bf16.msra.mxu0 %v7235
        %8364 = vmatpush.bf16.msra.mxu0 %v7219
        %8365 = vmatpush.bf16.msra.mxu0 %v7203
        %8366 = vmatpush.bf16.msra.mxu0 %v7187
        %8367 = vmatpush.bf16.msra.mxu0 %v7171
        %8368 = vmatmul.bf16.gmra.mxu0 %v4692
        %v8369 = vpop.f32.mrf.mxu0
        %v8370 = vadd.f32 %v8357, %v8369
        %v8371 = vpop.f32.mrf.mxu0
        %8372 = vdwg.mxu0
        %8373 = vmatpush.bf16.msra.mxu0 %v6900
        %8374 = vmatpush.bf16.msra.mxu0 %v6884
        %8375 = vmatpush.bf16.msra.mxu0 %v6868
        %8376 = vmatpush.bf16.msra.mxu0 %v6852
        %8377 = vmatpush.bf16.msra.mxu0 %v6836
        %8378 = vmatpush.bf16.msra.mxu0 %v6820
        %8379 = vmatpush.bf16.msra.mxu0 %v6804
        %8380 = vmatpush.bf16.msra.mxu0 %v6788
        %8381 = vmatmul.bf16.gmra.mxu0 %v4689
        %v8382 = vpop.f32.mrf.mxu0
        %v8383 = vadd.f32 %v5220, %v8382
        %v8384 = vpop.f32.mrf.mxu0
        %8385 = vdwg.mxu0
        %8386 = vmatpush.bf16.msra.mxu0 %v7028
        %8387 = vmatpush.bf16.msra.mxu0 %v7012
        %8388 = vmatpush.bf16.msra.mxu0 %v6996
        %8389 = vmatpush.bf16.msra.mxu0 %v6980
        %8390 = vmatpush.bf16.msra.mxu0 %v6964
        %8391 = vmatpush.bf16.msra.mxu0 %v6948
        %8392 = vmatpush.bf16.msra.mxu0 %v6932
        %8393 = vmatpush.bf16.msra.mxu0 %v6916
        %8394 = vmatmul.bf16.gmra.mxu0 %v4690
        %v8395 = vpop.f32.mrf.mxu0
        %v8396 = vadd.f32 %v8383, %v8395
        %v8397 = vpop.f32.mrf.mxu0
        %8398 = vdwg.mxu0
        %8399 = vmatpush.bf16.msra.mxu0 %v7156
        %8400 = vmatpush.bf16.msra.mxu0 %v7140
        %8401 = vmatpush.bf16.msra.mxu0 %v7124
        %8402 = vmatpush.bf16.msra.mxu0 %v7108
        %8403 = vmatpush.bf16.msra.mxu0 %v7092
        %8404 = vmatpush.bf16.msra.mxu0 %v7076
        %8405 = vmatpush.bf16.msra.mxu0 %v7060
        %8406 = vmatpush.bf16.msra.mxu0 %v7044
        %8407 = vmatmul.bf16.gmra.mxu0 %v4691
        %v8408 = vpop.f32.mrf.mxu0
        %v8409 = vadd.f32 %v8396, %v8408
        %v8410 = vpop.f32.mrf.mxu0
        %8411 = vdwg.mxu0
        %8412 = vmatpush.bf16.msra.mxu0 %v7284
        %8413 = vmatpush.bf16.msra.mxu0 %v7268
        %8414 = vmatpush.bf16.msra.mxu0 %v7252
        %8415 = vmatpush.bf16.msra.mxu0 %v7236
        %8416 = vmatpush.bf16.msra.mxu0 %v7220
        %8417 = vmatpush.bf16.msra.mxu0 %v7204
        %8418 = vmatpush.bf16.msra.mxu0 %v7188
        %8419 = vmatpush.bf16.msra.mxu0 %v7172
        %8420 = vmatmul.bf16.gmra.mxu0 %v4692
        %v8421 = vpop.f32.mrf.mxu0
        %v8422 = vadd.f32 %v8409, %v8421
        %v8423 = vpop.f32.mrf.mxu0
        %8424 = vdwg.mxu0
        %8425 = vmatpush.bf16.msra.mxu0 %v6901
        %8426 = vmatpush.bf16.msra.mxu0 %v6885
        %8427 = vmatpush.bf16.msra.mxu0 %v6869
        %8428 = vmatpush.bf16.msra.mxu0 %v6853
        %8429 = vmatpush.bf16.msra.mxu0 %v6837
        %8430 = vmatpush.bf16.msra.mxu0 %v6821
        %8431 = vmatpush.bf16.msra.mxu0 %v6805
        %8432 = vmatpush.bf16.msra.mxu0 %v6789
        %8433 = vmatmul.bf16.gmra.mxu0 %v4689
        %v8434 = vpop.f32.mrf.mxu0
        %v8435 = vadd.f32 %v5221, %v8434
        %v8436 = vpop.f32.mrf.mxu0
        %8437 = vdwg.mxu0
        %8438 = vmatpush.bf16.msra.mxu0 %v7029
        %8439 = vmatpush.bf16.msra.mxu0 %v7013
        %8440 = vmatpush.bf16.msra.mxu0 %v6997
        %8441 = vmatpush.bf16.msra.mxu0 %v6981
        %8442 = vmatpush.bf16.msra.mxu0 %v6965
        %8443 = vmatpush.bf16.msra.mxu0 %v6949
        %8444 = vmatpush.bf16.msra.mxu0 %v6933
        %8445 = vmatpush.bf16.msra.mxu0 %v6917
        %8446 = vmatmul.bf16.gmra.mxu0 %v4690
        %v8447 = vpop.f32.mrf.mxu0
        %v8448 = vadd.f32 %v8435, %v8447
        %v8449 = vpop.f32.mrf.mxu0
        %8450 = vdwg.mxu0
        %8451 = vmatpush.bf16.msra.mxu0 %v7157
        %8452 = vmatpush.bf16.msra.mxu0 %v7141
        %8453 = vmatpush.bf16.msra.mxu0 %v7125
        %8454 = vmatpush.bf16.msra.mxu0 %v7109
        %8455 = vmatpush.bf16.msra.mxu0 %v7093
        %8456 = vmatpush.bf16.msra.mxu0 %v7077
        %8457 = vmatpush.bf16.msra.mxu0 %v7061
        %8458 = vmatpush.bf16.msra.mxu0 %v7045
        %8459 = vmatmul.bf16.gmra.mxu0 %v4691
        %v8460 = vpop.f32.mrf.mxu0
        %v8461 = vadd.f32 %v8448, %v8460
        %v8462 = vpop.f32.mrf.mxu0
        %8463 = vdwg.mxu0
        %8464 = vmatpush.bf16.msra.mxu0 %v7285
        %8465 = vmatpush.bf16.msra.mxu0 %v7269
        %8466 = vmatpush.bf16.msra.mxu0 %v7253
        %8467 = vmatpush.bf16.msra.mxu0 %v7237
        %8468 = vmatpush.bf16.msra.mxu0 %v7221
        %8469 = vmatpush.bf16.msra.mxu0 %v7205
        %8470 = vmatpush.bf16.msra.mxu0 %v7189
        %8471 = vmatpush.bf16.msra.mxu0 %v7173
        %8472 = vmatmul.bf16.gmra.mxu0 %v4692
        %v8473 = vpop.f32.mrf.mxu0
        %v8474 = vadd.f32 %v8461, %v8473
        %v8475 = vpop.f32.mrf.mxu0
        %8476 = vdwg.mxu0
        %8477 = vmatpush.bf16.msra.mxu0 %v6902
        %8478 = vmatpush.bf16.msra.mxu0 %v6886
        %8479 = vmatpush.bf16.msra.mxu0 %v6870
        %8480 = vmatpush.bf16.msra.mxu0 %v6854
        %8481 = vmatpush.bf16.msra.mxu0 %v6838
        %8482 = vmatpush.bf16.msra.mxu0 %v6822
        %8483 = vmatpush.bf16.msra.mxu0 %v6806
        %8484 = vmatpush.bf16.msra.mxu0 %v6790
        %8485 = vmatmul.bf16.gmra.mxu0 %v4689
        %v8486 = vpop.f32.mrf.mxu0
        %v8487 = vadd.f32 %v5222, %v8486
        %v8488 = vpop.f32.mrf.mxu0
        %8489 = vdwg.mxu0
        %8490 = vmatpush.bf16.msra.mxu0 %v7030
        %8491 = vmatpush.bf16.msra.mxu0 %v7014
        %8492 = vmatpush.bf16.msra.mxu0 %v6998
        %8493 = vmatpush.bf16.msra.mxu0 %v6982
        %8494 = vmatpush.bf16.msra.mxu0 %v6966
        %8495 = vmatpush.bf16.msra.mxu0 %v6950
        %8496 = vmatpush.bf16.msra.mxu0 %v6934
        %8497 = vmatpush.bf16.msra.mxu0 %v6918
        %8498 = vmatmul.bf16.gmra.mxu0 %v4690
        %v8499 = vpop.f32.mrf.mxu0
        %v8500 = vadd.f32 %v8487, %v8499
        %v8501 = vpop.f32.mrf.mxu0
        %8502 = vdwg.mxu0
        %8503 = vmatpush.bf16.msra.mxu0 %v7158
        %8504 = vmatpush.bf16.msra.mxu0 %v7142
        %8505 = vmatpush.bf16.msra.mxu0 %v7126
        %8506 = vmatpush.bf16.msra.mxu0 %v7110
        %8507 = vmatpush.bf16.msra.mxu0 %v7094
        %8508 = vmatpush.bf16.msra.mxu0 %v7078
        %8509 = vmatpush.bf16.msra.mxu0 %v7062
        %8510 = vmatpush.bf16.msra.mxu0 %v7046
        %8511 = vmatmul.bf16.gmra.mxu0 %v4691
        %v8512 = vpop.f32.mrf.mxu0
        %v8513 = vadd.f32 %v8500, %v8512
        %v8514 = vpop.f32.mrf.mxu0
        %8515 = vdwg.mxu0
        %8516 = vmatpush.bf16.msra.mxu0 %v7286
        %8517 = vmatpush.bf16.msra.mxu0 %v7270
        %8518 = vmatpush.bf16.msra.mxu0 %v7254
        %8519 = vmatpush.bf16.msra.mxu0 %v7238
        %8520 = vmatpush.bf16.msra.mxu0 %v7222
        %8521 = vmatpush.bf16.msra.mxu0 %v7206
        %8522 = vmatpush.bf16.msra.mxu0 %v7190
        %8523 = vmatpush.bf16.msra.mxu0 %v7174
        %8524 = vmatmul.bf16.gmra.mxu0 %v4692
        %v8525 = vpop.f32.mrf.mxu0
        %v8526 = vadd.f32 %v8513, %v8525
        %v8527 = vpop.f32.mrf.mxu0
        %8528 = vdwg.mxu0
        %8529 = vmatpush.bf16.msra.mxu0 %v6903
        %8530 = vmatpush.bf16.msra.mxu0 %v6887
        %8531 = vmatpush.bf16.msra.mxu0 %v6871
        %8532 = vmatpush.bf16.msra.mxu0 %v6855
        %8533 = vmatpush.bf16.msra.mxu0 %v6839
        %8534 = vmatpush.bf16.msra.mxu0 %v6823
        %8535 = vmatpush.bf16.msra.mxu0 %v6807
        %8536 = vmatpush.bf16.msra.mxu0 %v6791
        %8537 = vmatmul.bf16.gmra.mxu0 %v4689
        %v8538 = vpop.f32.mrf.mxu0
        %v8539 = vadd.f32 %v5223, %v8538
        %v8540 = vpop.f32.mrf.mxu0
        %8541 = vdwg.mxu0
        %8542 = vmatpush.bf16.msra.mxu0 %v7031
        %8543 = vmatpush.bf16.msra.mxu0 %v7015
        %8544 = vmatpush.bf16.msra.mxu0 %v6999
        %8545 = vmatpush.bf16.msra.mxu0 %v6983
        %8546 = vmatpush.bf16.msra.mxu0 %v6967
        %8547 = vmatpush.bf16.msra.mxu0 %v6951
        %8548 = vmatpush.bf16.msra.mxu0 %v6935
        %8549 = vmatpush.bf16.msra.mxu0 %v6919
        %8550 = vmatmul.bf16.gmra.mxu0 %v4690
        %v8551 = vpop.f32.mrf.mxu0
        %v8552 = vadd.f32 %v8539, %v8551
        %v8553 = vpop.f32.mrf.mxu0
        %8554 = vdwg.mxu0
        %8555 = vmatpush.bf16.msra.mxu0 %v7159
        %8556 = vmatpush.bf16.msra.mxu0 %v7143
        %8557 = vmatpush.bf16.msra.mxu0 %v7127
        %8558 = vmatpush.bf16.msra.mxu0 %v7111
        %8559 = vmatpush.bf16.msra.mxu0 %v7095
        %8560 = vmatpush.bf16.msra.mxu0 %v7079
        %8561 = vmatpush.bf16.msra.mxu0 %v7063
        %8562 = vmatpush.bf16.msra.mxu0 %v7047
        %8563 = vmatmul.bf16.gmra.mxu0 %v4691
        %v8564 = vpop.f32.mrf.mxu0
        %v8565 = vadd.f32 %v8552, %v8564
        %v8566 = vpop.f32.mrf.mxu0
        %8567 = vdwg.mxu0
        %8568 = vmatpush.bf16.msra.mxu0 %v7287
        %8569 = vmatpush.bf16.msra.mxu0 %v7271
        %8570 = vmatpush.bf16.msra.mxu0 %v7255
        %8571 = vmatpush.bf16.msra.mxu0 %v7239
        %8572 = vmatpush.bf16.msra.mxu0 %v7223
        %8573 = vmatpush.bf16.msra.mxu0 %v7207
        %8574 = vmatpush.bf16.msra.mxu0 %v7191
        %8575 = vmatpush.bf16.msra.mxu0 %v7175
        %8576 = vmatmul.bf16.gmra.mxu0 %v4692
        %v8577 = vpop.f32.mrf.mxu0
        %v8578 = vadd.f32 %v8565, %v8577
        %v8579 = vpop.f32.mrf.mxu0
        %8580 = vdwg.mxu0
        %8581 = vmatpush.bf16.msra.mxu0 %v6904
        %8582 = vmatpush.bf16.msra.mxu0 %v6888
        %8583 = vmatpush.bf16.msra.mxu0 %v6872
        %8584 = vmatpush.bf16.msra.mxu0 %v6856
        %8585 = vmatpush.bf16.msra.mxu0 %v6840
        %8586 = vmatpush.bf16.msra.mxu0 %v6824
        %8587 = vmatpush.bf16.msra.mxu0 %v6808
        %8588 = vmatpush.bf16.msra.mxu0 %v6792
        %8589 = vmatmul.bf16.gmra.mxu0 %v4689
        %v8590 = vpop.f32.mrf.mxu0
        %v8591 = vadd.f32 %v5224, %v8590
        %v8592 = vpop.f32.mrf.mxu0
        %8593 = vdwg.mxu0
        %8594 = vmatpush.bf16.msra.mxu0 %v7032
        %8595 = vmatpush.bf16.msra.mxu0 %v7016
        %8596 = vmatpush.bf16.msra.mxu0 %v7000
        %8597 = vmatpush.bf16.msra.mxu0 %v6984
        %8598 = vmatpush.bf16.msra.mxu0 %v6968
        %8599 = vmatpush.bf16.msra.mxu0 %v6952
        %8600 = vmatpush.bf16.msra.mxu0 %v6936
        %8601 = vmatpush.bf16.msra.mxu0 %v6920
        %8602 = vmatmul.bf16.gmra.mxu0 %v4690
        %v8603 = vpop.f32.mrf.mxu0
        %v8604 = vadd.f32 %v8591, %v8603
        %v8605 = vpop.f32.mrf.mxu0
        %8606 = vdwg.mxu0
        %8607 = vmatpush.bf16.msra.mxu0 %v7160
        %8608 = vmatpush.bf16.msra.mxu0 %v7144
        %8609 = vmatpush.bf16.msra.mxu0 %v7128
        %8610 = vmatpush.bf16.msra.mxu0 %v7112
        %8611 = vmatpush.bf16.msra.mxu0 %v7096
        %8612 = vmatpush.bf16.msra.mxu0 %v7080
        %8613 = vmatpush.bf16.msra.mxu0 %v7064
        %8614 = vmatpush.bf16.msra.mxu0 %v7048
        %8615 = vmatmul.bf16.gmra.mxu0 %v4691
        %v8616 = vpop.f32.mrf.mxu0
        %v8617 = vadd.f32 %v8604, %v8616
        %v8618 = vpop.f32.mrf.mxu0
        %8619 = vdwg.mxu0
        %8620 = vmatpush.bf16.msra.mxu0 %v7288
        %8621 = vmatpush.bf16.msra.mxu0 %v7272
        %8622 = vmatpush.bf16.msra.mxu0 %v7256
        %8623 = vmatpush.bf16.msra.mxu0 %v7240
        %8624 = vmatpush.bf16.msra.mxu0 %v7224
        %8625 = vmatpush.bf16.msra.mxu0 %v7208
        %8626 = vmatpush.bf16.msra.mxu0 %v7192
        %8627 = vmatpush.bf16.msra.mxu0 %v7176
        %8628 = vmatmul.bf16.gmra.mxu0 %v4692
        %v8629 = vpop.f32.mrf.mxu0
        %v8630 = vadd.f32 %v8617, %v8629
        %v8631 = vpop.f32.mrf.mxu0
        %8632 = vdwg.mxu0
        %v8633 = vmax.f32 %v7850, 0.0
        %v8634 = vmax.f32 %v7902, 0.0
        %v8635 = vmax.f32 %v7954, 0.0
        %v8636 = vmax.f32 %v8006, 0.0
        %v8637 = vmax.f32 %v8058, 0.0
        %v8638 = vmax.f32 %v8110, 0.0
        %v8639 = vmax.f32 %v8162, 0.0
        %v8640 = vmax.f32 %v8214, 0.0
        %v8641 = vmax.f32 %v8266, 0.0
        %v8642 = vmax.f32 %v8318, 0.0
        %v8643 = vmax.f32 %v8370, 0.0
        %v8644 = vmax.f32 %v8422, 0.0
        %v8645 = vmax.f32 %v8474, 0.0
        %v8646 = vmax.f32 %v8526, 0.0
        %v8647 = vmax.f32 %v8578, 0.0
        %v8648 = vmax.f32 %v8630, 0.0
        %v8649 = vpack.c.bf16 %v8633, %v8633
        %v8650 = vpack.c.bf16 %v8634, %v8634
        %v8651 = vpack.c.bf16 %v8635, %v8635
        %v8652 = vpack.c.bf16 %v8636, %v8636
        %v8653 = vpack.c.bf16 %v8637, %v8637
        %v8654 = vpack.c.bf16 %v8638, %v8638
        %v8655 = vpack.c.bf16 %v8639, %v8639
        %v8656 = vpack.c.bf16 %v8640, %v8640
        %v8657 = vpack.c.bf16 %v8641, %v8641
        %v8658 = vpack.c.bf16 %v8642, %v8642
        %v8659 = vpack.c.bf16 %v8643, %v8643
        %v8660 = vpack.c.bf16 %v8644, %v8644
        %v8661 = vpack.c.bf16 %v8645, %v8645
        %v8662 = vpack.c.bf16 %v8646, %v8646
        %v8663 = vpack.c.bf16 %v8647, %v8647
        %v8664 = vpack.c.bf16 %v8648, %v8648
        %v8665 = vld [vmem:[%s9] sm:$0xf]
        %v8666 = vld [vmem:[%s9 + $0x4] sm:$0xf]
        %v8667 = vld [vmem:[%s9 + $0x8] sm:$0xf]
        %v8668 = vld [vmem:[%s9 + $0xc] sm:$0xf]
        %v8669 = vld [vmem:[%s9 + $0x10] sm:$0xf]
        %v8670 = vld [vmem:[%s9 + $0x14] sm:$0xf]
        %v8671 = vld [vmem:[%s9 + $0x18] sm:$0xf]
        %v8672 = vld [vmem:[%s9 + $0x1c] sm:$0xf]
        %v8673 = vld [vmem:[%s9 + $0x20] sm:$0xf]
        %v8674 = vld [vmem:[%s9 + $0x24] sm:$0xf]
        %v8675 = vld [vmem:[%s9 + $0x28] sm:$0xf]
        %v8676 = vld [vmem:[%s9 + $0x2c] sm:$0xf]
        %v8677 = vld [vmem:[%s9 + $0x30] sm:$0xf]
        %v8678 = vld [vmem:[%s9 + $0x34] sm:$0xf]
        %v8679 = vld [vmem:[%s9 + $0x38] sm:$0xf]
        %v8680 = vld [vmem:[%s9 + $0x3c] sm:$0xf]
        %v8681 = vld [vmem:[%s9 + $0x40] sm:$0xf]
        %v8682 = vld [vmem:[%s9 + $0x44] sm:$0xf]
        %v8683 = vld [vmem:[%s9 + $0x48] sm:$0xf]
        %v8684 = vld [vmem:[%s9 + $0x4c] sm:$0xf]
        %v8685 = vld [vmem:[%s9 + $0x50] sm:$0xf]
        %v8686 = vld [vmem:[%s9 + $0x54] sm:$0xf]
        %v8687 = vld [vmem:[%s9 + $0x58] sm:$0xf]
        %v8688 = vld [vmem:[%s9 + $0x5c] sm:$0xf]
        %v8689 = vld [vmem:[%s9 + $0x60] sm:$0xf]
        %v8690 = vld [vmem:[%s9 + $0x64] sm:$0xf]
        %v8691 = vld [vmem:[%s9 + $0x68] sm:$0xf]
        %v8692 = vld [vmem:[%s9 + $0x6c] sm:$0xf]
        %v8693 = vld [vmem:[%s9 + $0x70] sm:$0xf]
        %v8694 = vld [vmem:[%s9 + $0x74] sm:$0xf]
        %v8695 = vld [vmem:[%s9 + $0x78] sm:$0xf]
        %v8696 = vld [vmem:[%s9 + $0x7c] sm:$0xf]
        %v8697 = vld [vmem:[%s9 + $0x80] sm:$0xf]
        %v8698 = vld [vmem:[%s9 + $0x84] sm:$0xf]
        %v8699 = vld [vmem:[%s9 + $0x88] sm:$0xf]
        %v8700 = vld [vmem:[%s9 + $0x8c] sm:$0xf]
        %v8701 = vld [vmem:[%s9 + $0x90] sm:$0xf]
        %v8702 = vld [vmem:[%s9 + $0x94] sm:$0xf]
        %v8703 = vld [vmem:[%s9 + $0x98] sm:$0xf]
        %v8704 = vld [vmem:[%s9 + $0x9c] sm:$0xf]
        %v8705 = vld [vmem:[%s9 + $0xa0] sm:$0xf]
        %v8706 = vld [vmem:[%s9 + $0xa4] sm:$0xf]
        %v8707 = vld [vmem:[%s9 + $0xa8] sm:$0xf]
        %v8708 = vld [vmem:[%s9 + $0xac] sm:$0xf]
        %v8709 = vld [vmem:[%s9 + $0xb0] sm:$0xf]
        %v8710 = vld [vmem:[%s9 + $0xb4] sm:$0xf]
        %v8711 = vld [vmem:[%s9 + $0xb8] sm:$0xf]
        %v8712 = vld [vmem:[%s9 + $0xbc] sm:$0xf]
        %v8713 = vld [vmem:[%s9 + $0xc0] sm:$0xf]
        %v8714 = vld [vmem:[%s9 + $0xc4] sm:$0xf]
        %v8715 = vld [vmem:[%s9 + $0xc8] sm:$0xf]
        %v8716 = vld [vmem:[%s9 + $0xcc] sm:$0xf]
        %v8717 = vld [vmem:[%s9 + $0xd0] sm:$0xf]
        %v8718 = vld [vmem:[%s9 + $0xd4] sm:$0xf]
        %v8719 = vld [vmem:[%s9 + $0xd8] sm:$0xf]
        %v8720 = vld [vmem:[%s9 + $0xdc] sm:$0xf]
        %v8721 = vld [vmem:[%s9 + $0xe0] sm:$0xf]
        %v8722 = vld [vmem:[%s9 + $0xe4] sm:$0xf]
        %v8723 = vld [vmem:[%s9 + $0xe8] sm:$0xf]
        %v8724 = vld [vmem:[%s9 + $0xec] sm:$0xf]
        %v8725 = vld [vmem:[%s9 + $0xf0] sm:$0xf]
        %v8726 = vld [vmem:[%s9 + $0xf4] sm:$0xf]
        %v8727 = vld [vmem:[%s9 + $0xf8] sm:$0xf]
        %v8728 = vld [vmem:[%s9 + $0xfc] sm:$0xf]
        %v8729 = vld [vmem:[%s9 + $0x100] sm:$0xf]
        %v8730 = vld [vmem:[%s9 + $0x104] sm:$0xf]
        %v8731 = vld [vmem:[%s9 + $0x108] sm:$0xf]
        %v8732 = vld [vmem:[%s9 + $0x10c] sm:$0xf]
        %v8733 = vld [vmem:[%s9 + $0x110] sm:$0xf]
        %v8734 = vld [vmem:[%s9 + $0x114] sm:$0xf]
        %v8735 = vld [vmem:[%s9 + $0x118] sm:$0xf]
        %v8736 = vld [vmem:[%s9 + $0x11c] sm:$0xf]
        %v8737 = vld [vmem:[%s9 + $0x120] sm:$0xf]
        %v8738 = vld [vmem:[%s9 + $0x124] sm:$0xf]
        %v8739 = vld [vmem:[%s9 + $0x128] sm:$0xf]
        %v8740 = vld [vmem:[%s9 + $0x12c] sm:$0xf]
        %v8741 = vld [vmem:[%s9 + $0x130] sm:$0xf]
        %v8742 = vld [vmem:[%s9 + $0x134] sm:$0xf]
        %v8743 = vld [vmem:[%s9 + $0x138] sm:$0xf]
        %v8744 = vld [vmem:[%s9 + $0x13c] sm:$0xf]
        %v8745 = vld [vmem:[%s9 + $0x140] sm:$0xf]
        %v8746 = vld [vmem:[%s9 + $0x144] sm:$0xf]
        %v8747 = vld [vmem:[%s9 + $0x148] sm:$0xf]
        %v8748 = vld [vmem:[%s9 + $0x14c] sm:$0xf]
        %v8749 = vld [vmem:[%s9 + $0x150] sm:$0xf]
        %v8750 = vld [vmem:[%s9 + $0x154] sm:$0xf]
        %v8751 = vld [vmem:[%s9 + $0x158] sm:$0xf]
        %v8752 = vld [vmem:[%s9 + $0x15c] sm:$0xf]
        %v8753 = vld [vmem:[%s9 + $0x160] sm:$0xf]
        %v8754 = vld [vmem:[%s9 + $0x164] sm:$0xf]
        %v8755 = vld [vmem:[%s9 + $0x168] sm:$0xf]
        %v8756 = vld [vmem:[%s9 + $0x16c] sm:$0xf]
        %v8757 = vld [vmem:[%s9 + $0x170] sm:$0xf]
        %v8758 = vld [vmem:[%s9 + $0x174] sm:$0xf]
        %v8759 = vld [vmem:[%s9 + $0x178] sm:$0xf]
        %v8760 = vld [vmem:[%s9 + $0x17c] sm:$0xf]
        %v8761 = vld [vmem:[%s9 + $0x180] sm:$0xf]
        %v8762 = vld [vmem:[%s9 + $0x184] sm:$0xf]
        %v8763 = vld [vmem:[%s9 + $0x188] sm:$0xf]
        %v8764 = vld [vmem:[%s9 + $0x18c] sm:$0xf]
        %v8765 = vld [vmem:[%s9 + $0x190] sm:$0xf]
        %v8766 = vld [vmem:[%s9 + $0x194] sm:$0xf]
        %v8767 = vld [vmem:[%s9 + $0x198] sm:$0xf]
        %v8768 = vld [vmem:[%s9 + $0x19c] sm:$0xf]
        %v8769 = vld [vmem:[%s9 + $0x1a0] sm:$0xf]
        %v8770 = vld [vmem:[%s9 + $0x1a4] sm:$0xf]
        %v8771 = vld [vmem:[%s9 + $0x1a8] sm:$0xf]
        %v8772 = vld [vmem:[%s9 + $0x1ac] sm:$0xf]
        %v8773 = vld [vmem:[%s9 + $0x1b0] sm:$0xf]
        %v8774 = vld [vmem:[%s9 + $0x1b4] sm:$0xf]
        %v8775 = vld [vmem:[%s9 + $0x1b8] sm:$0xf]
        %v8776 = vld [vmem:[%s9 + $0x1bc] sm:$0xf]
        %v8777 = vld [vmem:[%s9 + $0x1c0] sm:$0xf]
        %v8778 = vld [vmem:[%s9 + $0x1c4] sm:$0xf]
        %v8779 = vld [vmem:[%s9 + $0x1c8] sm:$0xf]
        %v8780 = vld [vmem:[%s9 + $0x1cc] sm:$0xf]
        %v8781 = vld [vmem:[%s9 + $0x1d0] sm:$0xf]
        %v8782 = vld [vmem:[%s9 + $0x1d4] sm:$0xf]
        %v8783 = vld [vmem:[%s9 + $0x1d8] sm:$0xf]
        %v8784 = vld [vmem:[%s9 + $0x1dc] sm:$0xf]
        %v8785 = vld [vmem:[%s9 + $0x1e0] sm:$0xf]
        %v8786 = vld [vmem:[%s9 + $0x1e4] sm:$0xf]
        %v8787 = vld [vmem:[%s9 + $0x1e8] sm:$0xf]
        %v8788 = vld [vmem:[%s9 + $0x1ec] sm:$0xf]
        %v8789 = vld [vmem:[%s9 + $0x1f0] sm:$0xf]
        %v8790 = vld [vmem:[%s9 + $0x1f4] sm:$0xf]
        %v8791 = vld [vmem:[%s9 + $0x1f8] sm:$0xf]
        %v8792 = vld [vmem:[%s9 + $0x1fc] sm:$0xf]
        %v8793 = vld [vmem:[%s9 + $0x200] sm:$0xf]
        %v8794 = vld [vmem:[%s9 + $0x204] sm:$0xf]
        %v8795 = vld [vmem:[%s9 + $0x208] sm:$0xf]
        %v8796 = vld [vmem:[%s9 + $0x20c] sm:$0xf]
        %v8797 = vld [vmem:[%s9 + $0x210] sm:$0xf]
        %v8798 = vld [vmem:[%s9 + $0x214] sm:$0xf]
        %v8799 = vld [vmem:[%s9 + $0x218] sm:$0xf]
        %v8800 = vld [vmem:[%s9 + $0x21c] sm:$0xf]
        %v8801 = vld [vmem:[%s9 + $0x220] sm:$0xf]
        %v8802 = vld [vmem:[%s9 + $0x224] sm:$0xf]
        %v8803 = vld [vmem:[%s9 + $0x228] sm:$0xf]
        %v8804 = vld [vmem:[%s9 + $0x22c] sm:$0xf]
        %v8805 = vld [vmem:[%s9 + $0x230] sm:$0xf]
        %v8806 = vld [vmem:[%s9 + $0x234] sm:$0xf]
        %v8807 = vld [vmem:[%s9 + $0x238] sm:$0xf]
        %v8808 = vld [vmem:[%s9 + $0x23c] sm:$0xf]
        %v8809 = vld [vmem:[%s9 + $0x240] sm:$0xf]
        %v8810 = vld [vmem:[%s9 + $0x244] sm:$0xf]
        %v8811 = vld [vmem:[%s9 + $0x248] sm:$0xf]
        %v8812 = vld [vmem:[%s9 + $0x24c] sm:$0xf]
        %v8813 = vld [vmem:[%s9 + $0x250] sm:$0xf]
        %v8814 = vld [vmem:[%s9 + $0x254] sm:$0xf]
        %v8815 = vld [vmem:[%s9 + $0x258] sm:$0xf]
        %v8816 = vld [vmem:[%s9 + $0x25c] sm:$0xf]
        %v8817 = vld [vmem:[%s9 + $0x260] sm:$0xf]
        %v8818 = vld [vmem:[%s9 + $0x264] sm:$0xf]
        %v8819 = vld [vmem:[%s9 + $0x268] sm:$0xf]
        %v8820 = vld [vmem:[%s9 + $0x26c] sm:$0xf]
        %v8821 = vld [vmem:[%s9 + $0x270] sm:$0xf]
        %v8822 = vld [vmem:[%s9 + $0x274] sm:$0xf]
        %v8823 = vld [vmem:[%s9 + $0x278] sm:$0xf]
        %v8824 = vld [vmem:[%s9 + $0x27c] sm:$0xf]
        %v8825 = vld [vmem:[%s9 + $0x280] sm:$0xf]
        %v8826 = vld [vmem:[%s9 + $0x284] sm:$0xf]
        %v8827 = vld [vmem:[%s9 + $0x288] sm:$0xf]
        %v8828 = vld [vmem:[%s9 + $0x28c] sm:$0xf]
        %v8829 = vld [vmem:[%s9 + $0x290] sm:$0xf]
        %v8830 = vld [vmem:[%s9 + $0x294] sm:$0xf]
        %v8831 = vld [vmem:[%s9 + $0x298] sm:$0xf]
        %v8832 = vld [vmem:[%s9 + $0x29c] sm:$0xf]
        %v8833 = vld [vmem:[%s9 + $0x2a0] sm:$0xf]
        %v8834 = vld [vmem:[%s9 + $0x2a4] sm:$0xf]
        %v8835 = vld [vmem:[%s9 + $0x2a8] sm:$0xf]
        %v8836 = vld [vmem:[%s9 + $0x2ac] sm:$0xf]
        %v8837 = vld [vmem:[%s9 + $0x2b0] sm:$0xf]
        %v8838 = vld [vmem:[%s9 + $0x2b4] sm:$0xf]
        %v8839 = vld [vmem:[%s9 + $0x2b8] sm:$0xf]
        %v8840 = vld [vmem:[%s9 + $0x2bc] sm:$0xf]
        %v8841 = vld [vmem:[%s9 + $0x2c0] sm:$0xf]
        %v8842 = vld [vmem:[%s9 + $0x2c4] sm:$0xf]
        %v8843 = vld [vmem:[%s9 + $0x2c8] sm:$0xf]
        %v8844 = vld [vmem:[%s9 + $0x2cc] sm:$0xf]
        %v8845 = vld [vmem:[%s9 + $0x2d0] sm:$0xf]
        %v8846 = vld [vmem:[%s9 + $0x2d4] sm:$0xf]
        %v8847 = vld [vmem:[%s9 + $0x2d8] sm:$0xf]
        %v8848 = vld [vmem:[%s9 + $0x2dc] sm:$0xf]
        %v8849 = vld [vmem:[%s9 + $0x2e0] sm:$0xf]
        %v8850 = vld [vmem:[%s9 + $0x2e4] sm:$0xf]
        %v8851 = vld [vmem:[%s9 + $0x2e8] sm:$0xf]
        %v8852 = vld [vmem:[%s9 + $0x2ec] sm:$0xf]
        %v8853 = vld [vmem:[%s9 + $0x2f0] sm:$0xf]
        %v8854 = vld [vmem:[%s9 + $0x2f4] sm:$0xf]
        %v8855 = vld [vmem:[%s9 + $0x2f8] sm:$0xf]
        %v8856 = vld [vmem:[%s9 + $0x2fc] sm:$0xf]
        %v8857 = vld [vmem:[%s9 + $0x300] sm:$0xf]
        %v8858 = vld [vmem:[%s9 + $0x304] sm:$0xf]
        %v8859 = vld [vmem:[%s9 + $0x308] sm:$0xf]
        %v8860 = vld [vmem:[%s9 + $0x30c] sm:$0xf]
        %v8861 = vld [vmem:[%s9 + $0x310] sm:$0xf]
        %v8862 = vld [vmem:[%s9 + $0x314] sm:$0xf]
        %v8863 = vld [vmem:[%s9 + $0x318] sm:$0xf]
        %v8864 = vld [vmem:[%s9 + $0x31c] sm:$0xf]
        %v8865 = vld [vmem:[%s9 + $0x320] sm:$0xf]
        %v8866 = vld [vmem:[%s9 + $0x324] sm:$0xf]
        %v8867 = vld [vmem:[%s9 + $0x328] sm:$0xf]
        %v8868 = vld [vmem:[%s9 + $0x32c] sm:$0xf]
        %v8869 = vld [vmem:[%s9 + $0x330] sm:$0xf]
        %v8870 = vld [vmem:[%s9 + $0x334] sm:$0xf]
        %v8871 = vld [vmem:[%s9 + $0x338] sm:$0xf]
        %v8872 = vld [vmem:[%s9 + $0x33c] sm:$0xf]
        %v8873 = vld [vmem:[%s9 + $0x340] sm:$0xf]
        %v8874 = vld [vmem:[%s9 + $0x344] sm:$0xf]
        %v8875 = vld [vmem:[%s9 + $0x348] sm:$0xf]
        %v8876 = vld [vmem:[%s9 + $0x34c] sm:$0xf]
        %v8877 = vld [vmem:[%s9 + $0x350] sm:$0xf]
        %v8878 = vld [vmem:[%s9 + $0x354] sm:$0xf]
        %v8879 = vld [vmem:[%s9 + $0x358] sm:$0xf]
        %v8880 = vld [vmem:[%s9 + $0x35c] sm:$0xf]
        %v8881 = vld [vmem:[%s9 + $0x360] sm:$0xf]
        %v8882 = vld [vmem:[%s9 + $0x364] sm:$0xf]
        %v8883 = vld [vmem:[%s9 + $0x368] sm:$0xf]
        %v8884 = vld [vmem:[%s9 + $0x36c] sm:$0xf]
        %v8885 = vld [vmem:[%s9 + $0x370] sm:$0xf]
        %v8886 = vld [vmem:[%s9 + $0x374] sm:$0xf]
        %v8887 = vld [vmem:[%s9 + $0x378] sm:$0xf]
        %v8888 = vld [vmem:[%s9 + $0x37c] sm:$0xf]
        %v8889 = vld [vmem:[%s9 + $0x380] sm:$0xf]
        %v8890 = vld [vmem:[%s9 + $0x384] sm:$0xf]
        %v8891 = vld [vmem:[%s9 + $0x388] sm:$0xf]
        %v8892 = vld [vmem:[%s9 + $0x38c] sm:$0xf]
        %v8893 = vld [vmem:[%s9 + $0x390] sm:$0xf]
        %v8894 = vld [vmem:[%s9 + $0x394] sm:$0xf]
        %v8895 = vld [vmem:[%s9 + $0x398] sm:$0xf]
        %v8896 = vld [vmem:[%s9 + $0x39c] sm:$0xf]
        %v8897 = vld [vmem:[%s9 + $0x3a0] sm:$0xf]
        %v8898 = vld [vmem:[%s9 + $0x3a4] sm:$0xf]
        %v8899 = vld [vmem:[%s9 + $0x3a8] sm:$0xf]
        %v8900 = vld [vmem:[%s9 + $0x3ac] sm:$0xf]
        %v8901 = vld [vmem:[%s9 + $0x3b0] sm:$0xf]
        %v8902 = vld [vmem:[%s9 + $0x3b4] sm:$0xf]
        %v8903 = vld [vmem:[%s9 + $0x3b8] sm:$0xf]
        %v8904 = vld [vmem:[%s9 + $0x3bc] sm:$0xf]
        %v8905 = vld [vmem:[%s9 + $0x3c0] sm:$0xf]
        %v8906 = vld [vmem:[%s9 + $0x3c4] sm:$0xf]
        %v8907 = vld [vmem:[%s9 + $0x3c8] sm:$0xf]
        %v8908 = vld [vmem:[%s9 + $0x3cc] sm:$0xf]
        %v8909 = vld [vmem:[%s9 + $0x3d0] sm:$0xf]
        %v8910 = vld [vmem:[%s9 + $0x3d4] sm:$0xf]
        %v8911 = vld [vmem:[%s9 + $0x3d8] sm:$0xf]
        %v8912 = vld [vmem:[%s9 + $0x3dc] sm:$0xf]
        %v8913 = vld [vmem:[%s9 + $0x3e0] sm:$0xf]
        %v8914 = vld [vmem:[%s9 + $0x3e4] sm:$0xf]
        %v8915 = vld [vmem:[%s9 + $0x3e8] sm:$0xf]
        %v8916 = vld [vmem:[%s9 + $0x3ec] sm:$0xf]
        %v8917 = vld [vmem:[%s9 + $0x3f0] sm:$0xf]
        %v8918 = vld [vmem:[%s9 + $0x3f4] sm:$0xf]
        %v8919 = vld [vmem:[%s9 + $0x3f8] sm:$0xf]
        %v8920 = vld [vmem:[%s9 + $0x3fc] sm:$0xf]
        %v8921 = vld [vmem:[#allocation2] sm:$0x1]
        %v8923 = vperm.slane %v8921, 0
        %8924 = vset.pattern.permute.xlu0 0
        %8925 = vperm.xlu0 %8924, %v8923
        %v8926 = vpop.permute.xlu0 %8925
        %v9184 = vunpack.c.l.b16 %v8665
        %v9185 = vunpack.c.l.b16 %v8666
        %v9186 = vunpack.c.l.b16 %v8667
        %v9187 = vunpack.c.l.b16 %v8668
        %v9188 = vunpack.c.l.b16 %v8669
        %v9189 = vunpack.c.l.b16 %v8670
        %v9190 = vunpack.c.l.b16 %v8671
        %v9191 = vunpack.c.l.b16 %v8672
        %v9192 = vunpack.c.l.b16 %v8673
        %v9193 = vunpack.c.l.b16 %v8674
        %v9194 = vunpack.c.l.b16 %v8675
        %v9195 = vunpack.c.l.b16 %v8676
        %v9196 = vunpack.c.l.b16 %v8677
        %v9197 = vunpack.c.l.b16 %v8678
        %v9198 = vunpack.c.l.b16 %v8679
        %v9199 = vunpack.c.l.b16 %v8680
        %v9200 = vunpack.c.l.b16 %v8681
        %v9201 = vunpack.c.l.b16 %v8682
        %v9202 = vunpack.c.l.b16 %v8683
        %v9203 = vunpack.c.l.b16 %v8684
        %v9204 = vunpack.c.l.b16 %v8685
        %v9205 = vunpack.c.l.b16 %v8686
        %v9206 = vunpack.c.l.b16 %v8687
        %v9207 = vunpack.c.l.b16 %v8688
        %v9208 = vunpack.c.l.b16 %v8689
        %v9209 = vunpack.c.l.b16 %v8690
        %v9210 = vunpack.c.l.b16 %v8691
        %v9211 = vunpack.c.l.b16 %v8692
        %v9212 = vunpack.c.l.b16 %v8693
        %v9213 = vunpack.c.l.b16 %v8694
        %v9214 = vunpack.c.l.b16 %v8695
        %v9215 = vunpack.c.l.b16 %v8696
        %v9216 = vunpack.c.l.b16 %v8697
        %v9217 = vunpack.c.l.b16 %v8698
        %v9218 = vunpack.c.l.b16 %v8699
        %v9219 = vunpack.c.l.b16 %v8700
        %v9220 = vunpack.c.l.b16 %v8701
        %v9221 = vunpack.c.l.b16 %v8702
        %v9222 = vunpack.c.l.b16 %v8703
        %v9223 = vunpack.c.l.b16 %v8704
        %v9224 = vunpack.c.l.b16 %v8705
        %v9225 = vunpack.c.l.b16 %v8706
        %v9226 = vunpack.c.l.b16 %v8707
        %v9227 = vunpack.c.l.b16 %v8708
        %v9228 = vunpack.c.l.b16 %v8709
        %v9229 = vunpack.c.l.b16 %v8710
        %v9230 = vunpack.c.l.b16 %v8711
        %v9231 = vunpack.c.l.b16 %v8712
        %v9232 = vunpack.c.l.b16 %v8713
        %v9233 = vunpack.c.l.b16 %v8714
        %v9234 = vunpack.c.l.b16 %v8715
        %v9235 = vunpack.c.l.b16 %v8716
        %v9236 = vunpack.c.l.b16 %v8717
        %v9237 = vunpack.c.l.b16 %v8718
        %v9238 = vunpack.c.l.b16 %v8719
        %v9239 = vunpack.c.l.b16 %v8720
        %v9240 = vunpack.c.l.b16 %v8721
        %v9241 = vunpack.c.l.b16 %v8722
        %v9242 = vunpack.c.l.b16 %v8723
        %v9243 = vunpack.c.l.b16 %v8724
        %v9244 = vunpack.c.l.b16 %v8725
        %v9245 = vunpack.c.l.b16 %v8726
        %v9246 = vunpack.c.l.b16 %v8727
        %v9247 = vunpack.c.l.b16 %v8728
        %v9248 = vunpack.c.l.b16 %v8729
        %v9249 = vunpack.c.l.b16 %v8730
        %v9250 = vunpack.c.l.b16 %v8731
        %v9251 = vunpack.c.l.b16 %v8732
        %v9252 = vunpack.c.l.b16 %v8733
        %v9253 = vunpack.c.l.b16 %v8734
        %v9254 = vunpack.c.l.b16 %v8735
        %v9255 = vunpack.c.l.b16 %v8736
        %v9256 = vunpack.c.l.b16 %v8737
        %v9257 = vunpack.c.l.b16 %v8738
        %v9258 = vunpack.c.l.b16 %v8739
        %v9259 = vunpack.c.l.b16 %v8740
        %v9260 = vunpack.c.l.b16 %v8741
        %v9261 = vunpack.c.l.b16 %v8742
        %v9262 = vunpack.c.l.b16 %v8743
        %v9263 = vunpack.c.l.b16 %v8744
        %v9264 = vunpack.c.l.b16 %v8745
        %v9265 = vunpack.c.l.b16 %v8746
        %v9266 = vunpack.c.l.b16 %v8747
        %v9267 = vunpack.c.l.b16 %v8748
        %v9268 = vunpack.c.l.b16 %v8749
        %v9269 = vunpack.c.l.b16 %v8750
        %v9270 = vunpack.c.l.b16 %v8751
        %v9271 = vunpack.c.l.b16 %v8752
        %v9272 = vunpack.c.l.b16 %v8753
        %v9273 = vunpack.c.l.b16 %v8754
        %v9274 = vunpack.c.l.b16 %v8755
        %v9275 = vunpack.c.l.b16 %v8756
        %v9276 = vunpack.c.l.b16 %v8757
        %v9277 = vunpack.c.l.b16 %v8758
        %v9278 = vunpack.c.l.b16 %v8759
        %v9279 = vunpack.c.l.b16 %v8760
        %v9280 = vunpack.c.l.b16 %v8761
        %v9281 = vunpack.c.l.b16 %v8762
        %v9282 = vunpack.c.l.b16 %v8763
        %v9283 = vunpack.c.l.b16 %v8764
        %v9284 = vunpack.c.l.b16 %v8765
        %v9285 = vunpack.c.l.b16 %v8766
        %v9286 = vunpack.c.l.b16 %v8767
        %v9287 = vunpack.c.l.b16 %v8768
        %v9288 = vunpack.c.l.b16 %v8769
        %v9289 = vunpack.c.l.b16 %v8770
        %v9290 = vunpack.c.l.b16 %v8771
        %v9291 = vunpack.c.l.b16 %v8772
        %v9292 = vunpack.c.l.b16 %v8773
        %v9293 = vunpack.c.l.b16 %v8774
        %v9294 = vunpack.c.l.b16 %v8775
        %v9295 = vunpack.c.l.b16 %v8776
        %v9296 = vunpack.c.l.b16 %v8777
        %v9297 = vunpack.c.l.b16 %v8778
        %v9298 = vunpack.c.l.b16 %v8779
        %v9299 = vunpack.c.l.b16 %v8780
        %v9300 = vunpack.c.l.b16 %v8781
        %v9301 = vunpack.c.l.b16 %v8782
        %v9302 = vunpack.c.l.b16 %v8783
        %v9303 = vunpack.c.l.b16 %v8784
        %v9304 = vunpack.c.l.b16 %v8785
        %v9305 = vunpack.c.l.b16 %v8786
        %v9306 = vunpack.c.l.b16 %v8787
        %v9307 = vunpack.c.l.b16 %v8788
        %v9308 = vunpack.c.l.b16 %v8789
        %v9309 = vunpack.c.l.b16 %v8790
        %v9310 = vunpack.c.l.b16 %v8791
        %v9311 = vunpack.c.l.b16 %v8792
        %v9312 = vunpack.c.l.b16 %v8793
        %v9313 = vunpack.c.l.b16 %v8794
        %v9314 = vunpack.c.l.b16 %v8795
        %v9315 = vunpack.c.l.b16 %v8796
        %v9316 = vunpack.c.l.b16 %v8797
        %v9317 = vunpack.c.l.b16 %v8798
        %v9318 = vunpack.c.l.b16 %v8799
        %v9319 = vunpack.c.l.b16 %v8800
        %v9320 = vunpack.c.l.b16 %v8801
        %v9321 = vunpack.c.l.b16 %v8802
        %v9322 = vunpack.c.l.b16 %v8803
        %v9323 = vunpack.c.l.b16 %v8804
        %v9324 = vunpack.c.l.b16 %v8805
        %v9325 = vunpack.c.l.b16 %v8806
        %v9326 = vunpack.c.l.b16 %v8807
        %v9327 = vunpack.c.l.b16 %v8808
        %v9328 = vunpack.c.l.b16 %v8809
        %v9329 = vunpack.c.l.b16 %v8810
        %v9330 = vunpack.c.l.b16 %v8811
        %v9331 = vunpack.c.l.b16 %v8812
        %v9332 = vunpack.c.l.b16 %v8813
        %v9333 = vunpack.c.l.b16 %v8814
        %v9334 = vunpack.c.l.b16 %v8815
        %v9335 = vunpack.c.l.b16 %v8816
        %v9336 = vunpack.c.l.b16 %v8817
        %v9337 = vunpack.c.l.b16 %v8818
        %v9338 = vunpack.c.l.b16 %v8819
        %v9339 = vunpack.c.l.b16 %v8820
        %v9340 = vunpack.c.l.b16 %v8821
        %v9341 = vunpack.c.l.b16 %v8822
        %v9342 = vunpack.c.l.b16 %v8823
        %v9343 = vunpack.c.l.b16 %v8824
        %v9344 = vunpack.c.l.b16 %v8825
        %v9345 = vunpack.c.l.b16 %v8826
        %v9346 = vunpack.c.l.b16 %v8827
        %v9347 = vunpack.c.l.b16 %v8828
        %v9348 = vunpack.c.l.b16 %v8829
        %v9349 = vunpack.c.l.b16 %v8830
        %v9350 = vunpack.c.l.b16 %v8831
        %v9351 = vunpack.c.l.b16 %v8832
        %v9352 = vunpack.c.l.b16 %v8833
        %v9353 = vunpack.c.l.b16 %v8834
        %v9354 = vunpack.c.l.b16 %v8835
        %v9355 = vunpack.c.l.b16 %v8836
        %v9356 = vunpack.c.l.b16 %v8837
        %v9357 = vunpack.c.l.b16 %v8838
        %v9358 = vunpack.c.l.b16 %v8839
        %v9359 = vunpack.c.l.b16 %v8840
        %v9360 = vunpack.c.l.b16 %v8841
        %v9361 = vunpack.c.l.b16 %v8842
        %v9362 = vunpack.c.l.b16 %v8843
        %v9363 = vunpack.c.l.b16 %v8844
        %v9364 = vunpack.c.l.b16 %v8845
        %v9365 = vunpack.c.l.b16 %v8846
        %v9366 = vunpack.c.l.b16 %v8847
        %v9367 = vunpack.c.l.b16 %v8848
        %v9368 = vunpack.c.l.b16 %v8849
        %v9369 = vunpack.c.l.b16 %v8850
        %v9370 = vunpack.c.l.b16 %v8851
        %v9371 = vunpack.c.l.b16 %v8852
        %v9372 = vunpack.c.l.b16 %v8853
        %v9373 = vunpack.c.l.b16 %v8854
        %v9374 = vunpack.c.l.b16 %v8855
        %v9375 = vunpack.c.l.b16 %v8856
        %v9376 = vunpack.c.l.b16 %v8857
        %v9377 = vunpack.c.l.b16 %v8858
        %v9378 = vunpack.c.l.b16 %v8859
        %v9379 = vunpack.c.l.b16 %v8860
        %v9380 = vunpack.c.l.b16 %v8861
        %v9381 = vunpack.c.l.b16 %v8862
        %v9382 = vunpack.c.l.b16 %v8863
        %v9383 = vunpack.c.l.b16 %v8864
        %v9384 = vunpack.c.l.b16 %v8865
        %v9385 = vunpack.c.l.b16 %v8866
        %v9386 = vunpack.c.l.b16 %v8867
        %v9387 = vunpack.c.l.b16 %v8868
        %v9388 = vunpack.c.l.b16 %v8869
        %v9389 = vunpack.c.l.b16 %v8870
        %v9390 = vunpack.c.l.b16 %v8871
        %v9391 = vunpack.c.l.b16 %v8872
        %v9392 = vunpack.c.l.b16 %v8873
        %v9393 = vunpack.c.l.b16 %v8874
        %v9394 = vunpack.c.l.b16 %v8875
        %v9395 = vunpack.c.l.b16 %v8876
        %v9396 = vunpack.c.l.b16 %v8877
        %v9397 = vunpack.c.l.b16 %v8878
        %v9398 = vunpack.c.l.b16 %v8879
        %v9399 = vunpack.c.l.b16 %v8880
        %v9400 = vunpack.c.l.b16 %v8881
        %v9401 = vunpack.c.l.b16 %v8882
        %v9402 = vunpack.c.l.b16 %v8883
        %v9403 = vunpack.c.l.b16 %v8884
        %v9404 = vunpack.c.l.b16 %v8885
        %v9405 = vunpack.c.l.b16 %v8886
        %v9406 = vunpack.c.l.b16 %v8887
        %v9407 = vunpack.c.l.b16 %v8888
        %v9408 = vunpack.c.l.b16 %v8889
        %v9409 = vunpack.c.l.b16 %v8890
        %v9410 = vunpack.c.l.b16 %v8891
        %v9411 = vunpack.c.l.b16 %v8892
        %v9412 = vunpack.c.l.b16 %v8893
        %v9413 = vunpack.c.l.b16 %v8894
        %v9414 = vunpack.c.l.b16 %v8895
        %v9415 = vunpack.c.l.b16 %v8896
        %v9416 = vunpack.c.l.b16 %v8897
        %v9417 = vunpack.c.l.b16 %v8898
        %v9418 = vunpack.c.l.b16 %v8899
        %v9419 = vunpack.c.l.b16 %v8900
        %v9420 = vunpack.c.l.b16 %v8901
        %v9421 = vunpack.c.l.b16 %v8902
        %v9422 = vunpack.c.l.b16 %v8903
        %v9423 = vunpack.c.l.b16 %v8904
        %v9424 = vunpack.c.l.b16 %v8905
        %v9425 = vunpack.c.l.b16 %v8906
        %v9426 = vunpack.c.l.b16 %v8907
        %v9427 = vunpack.c.l.b16 %v8908
        %v9428 = vunpack.c.l.b16 %v8909
        %v9429 = vunpack.c.l.b16 %v8910
        %v9430 = vunpack.c.l.b16 %v8911
        %v9431 = vunpack.c.l.b16 %v8912
        %v9432 = vunpack.c.l.b16 %v8913
        %v9433 = vunpack.c.l.b16 %v8914
        %v9434 = vunpack.c.l.b16 %v8915
        %v9435 = vunpack.c.l.b16 %v8916
        %v9436 = vunpack.c.l.b16 %v8917
        %v9437 = vunpack.c.l.b16 %v8918
        %v9438 = vunpack.c.l.b16 %v8919
        %v9439 = vunpack.c.l.b16 %v8920
        %v9440 = vpack.c.b16 %v9185, %v9184
        %v9441 = vpack.c.b16 %v9187, %v9186
        %v9442 = vpack.c.b16 %v9189, %v9188
        %v9443 = vpack.c.b16 %v9191, %v9190
        %v9444 = vpack.c.b16 %v9193, %v9192
        %v9445 = vpack.c.b16 %v9195, %v9194
        %v9446 = vpack.c.b16 %v9197, %v9196
        %v9447 = vpack.c.b16 %v9199, %v9198
        %v9448 = vpack.c.b16 %v9201, %v9200
        %v9449 = vpack.c.b16 %v9203, %v9202
        %v9450 = vpack.c.b16 %v9205, %v9204
        %v9451 = vpack.c.b16 %v9207, %v9206
        %v9452 = vpack.c.b16 %v9209, %v9208
        %v9453 = vpack.c.b16 %v9211, %v9210
        %v9454 = vpack.c.b16 %v9213, %v9212
        %v9455 = vpack.c.b16 %v9215, %v9214
        %v9456 = vpack.c.b16 %v9217, %v9216
        %v9457 = vpack.c.b16 %v9219, %v9218
        %v9458 = vpack.c.b16 %v9221, %v9220
        %v9459 = vpack.c.b16 %v9223, %v9222
        %v9460 = vpack.c.b16 %v9225, %v9224
        %v9461 = vpack.c.b16 %v9227, %v9226
        %v9462 = vpack.c.b16 %v9229, %v9228
        %v9463 = vpack.c.b16 %v9231, %v9230
        %v9464 = vpack.c.b16 %v9233, %v9232
        %v9465 = vpack.c.b16 %v9235, %v9234
        %v9466 = vpack.c.b16 %v9237, %v9236
        %v9467 = vpack.c.b16 %v9239, %v9238
        %v9468 = vpack.c.b16 %v9241, %v9240
        %v9469 = vpack.c.b16 %v9243, %v9242
        %v9470 = vpack.c.b16 %v9245, %v9244
        %v9471 = vpack.c.b16 %v9247, %v9246
        %v9472 = vpack.c.b16 %v9249, %v9248
        %v9473 = vpack.c.b16 %v9251, %v9250
        %v9474 = vpack.c.b16 %v9253, %v9252
        %v9475 = vpack.c.b16 %v9255, %v9254
        %v9476 = vpack.c.b16 %v9257, %v9256
        %v9477 = vpack.c.b16 %v9259, %v9258
        %v9478 = vpack.c.b16 %v9261, %v9260
        %v9479 = vpack.c.b16 %v9263, %v9262
        %v9480 = vpack.c.b16 %v9265, %v9264
        %v9481 = vpack.c.b16 %v9267, %v9266
        %v9482 = vpack.c.b16 %v9269, %v9268
        %v9483 = vpack.c.b16 %v9271, %v9270
        %v9484 = vpack.c.b16 %v9273, %v9272
        %v9485 = vpack.c.b16 %v9275, %v9274
        %v9486 = vpack.c.b16 %v9277, %v9276
        %v9487 = vpack.c.b16 %v9279, %v9278
        %v9488 = vpack.c.b16 %v9281, %v9280
        %v9489 = vpack.c.b16 %v9283, %v9282
        %v9490 = vpack.c.b16 %v9285, %v9284
        %v9491 = vpack.c.b16 %v9287, %v9286
        %v9492 = vpack.c.b16 %v9289, %v9288
        %v9493 = vpack.c.b16 %v9291, %v9290
        %v9494 = vpack.c.b16 %v9293, %v9292
        %v9495 = vpack.c.b16 %v9295, %v9294
        %v9496 = vpack.c.b16 %v9297, %v9296
        %v9497 = vpack.c.b16 %v9299, %v9298
        %v9498 = vpack.c.b16 %v9301, %v9300
        %v9499 = vpack.c.b16 %v9303, %v9302
        %v9500 = vpack.c.b16 %v9305, %v9304
        %v9501 = vpack.c.b16 %v9307, %v9306
        %v9502 = vpack.c.b16 %v9309, %v9308
        %v9503 = vpack.c.b16 %v9311, %v9310
        %v9504 = vpack.c.b16 %v9313, %v9312
        %v9505 = vpack.c.b16 %v9315, %v9314
        %v9506 = vpack.c.b16 %v9317, %v9316
        %v9507 = vpack.c.b16 %v9319, %v9318
        %v9508 = vpack.c.b16 %v9321, %v9320
        %v9509 = vpack.c.b16 %v9323, %v9322
        %v9510 = vpack.c.b16 %v9325, %v9324
        %v9511 = vpack.c.b16 %v9327, %v9326
        %v9512 = vpack.c.b16 %v9329, %v9328
        %v9513 = vpack.c.b16 %v9331, %v9330
        %v9514 = vpack.c.b16 %v9333, %v9332
        %v9515 = vpack.c.b16 %v9335, %v9334
        %v9516 = vpack.c.b16 %v9337, %v9336
        %v9517 = vpack.c.b16 %v9339, %v9338
        %v9518 = vpack.c.b16 %v9341, %v9340
        %v9519 = vpack.c.b16 %v9343, %v9342
        %v9520 = vpack.c.b16 %v9345, %v9344
        %v9521 = vpack.c.b16 %v9347, %v9346
        %v9522 = vpack.c.b16 %v9349, %v9348
        %v9523 = vpack.c.b16 %v9351, %v9350
        %v9524 = vpack.c.b16 %v9353, %v9352
        %v9525 = vpack.c.b16 %v9355, %v9354
        %v9526 = vpack.c.b16 %v9357, %v9356
        %v9527 = vpack.c.b16 %v9359, %v9358
        %v9528 = vpack.c.b16 %v9361, %v9360
        %v9529 = vpack.c.b16 %v9363, %v9362
        %v9530 = vpack.c.b16 %v9365, %v9364
        %v9531 = vpack.c.b16 %v9367, %v9366
        %v9532 = vpack.c.b16 %v9369, %v9368
        %v9533 = vpack.c.b16 %v9371, %v9370
        %v9534 = vpack.c.b16 %v9373, %v9372
        %v9535 = vpack.c.b16 %v9375, %v9374
        %v9536 = vpack.c.b16 %v9377, %v9376
        %v9537 = vpack.c.b16 %v9379, %v9378
        %v9538 = vpack.c.b16 %v9381, %v9380
        %v9539 = vpack.c.b16 %v9383, %v9382
        %v9540 = vpack.c.b16 %v9385, %v9384
        %v9541 = vpack.c.b16 %v9387, %v9386
        %v9542 = vpack.c.b16 %v9389, %v9388
        %v9543 = vpack.c.b16 %v9391, %v9390
        %v9544 = vpack.c.b16 %v9393, %v9392
        %v9545 = vpack.c.b16 %v9395, %v9394
        %v9546 = vpack.c.b16 %v9397, %v9396
        %v9547 = vpack.c.b16 %v9399, %v9398
        %v9548 = vpack.c.b16 %v9401, %v9400
        %v9549 = vpack.c.b16 %v9403, %v9402
        %v9550 = vpack.c.b16 %v9405, %v9404
        %v9551 = vpack.c.b16 %v9407, %v9406
        %v9552 = vpack.c.b16 %v9409, %v9408
        %v9553 = vpack.c.b16 %v9411, %v9410
        %v9554 = vpack.c.b16 %v9413, %v9412
        %v9555 = vpack.c.b16 %v9415, %v9414
        %v9556 = vpack.c.b16 %v9417, %v9416
        %v9557 = vpack.c.b16 %v9419, %v9418
        %v9558 = vpack.c.b16 %v9421, %v9420
        %v9559 = vpack.c.b16 %v9423, %v9422
        %v9560 = vpack.c.b16 %v9425, %v9424
        %v9561 = vpack.c.b16 %v9427, %v9426
        %v9562 = vpack.c.b16 %v9429, %v9428
        %v9563 = vpack.c.b16 %v9431, %v9430
        %v9564 = vpack.c.b16 %v9433, %v9432
        %v9565 = vpack.c.b16 %v9435, %v9434
        %v9566 = vpack.c.b16 %v9437, %v9436
        %v9567 = vpack.c.b16 %v9439, %v9438
        %9696 = vmatpush.bf16.msra.mxu0 %v9447
        %9697 = vmatpush.bf16.msra.mxu0 %v9446
        %9698 = vmatpush.bf16.msra.mxu0 %v9445
        %9699 = vmatpush.bf16.msra.mxu0 %v9444
        %9700 = vmatpush.bf16.msra.mxu0 %v9443
        %9701 = vmatpush.bf16.msra.mxu0 %v9442
        %9702 = vmatpush.bf16.msra.mxu0 %v9441
        %9703 = vmatpush.bf16.msra.mxu0 %v9440
        %9704 = vmatmul.bf16.gmra.mxu0 %v8649
        %v9705 = vpop.f32.mrf.mxu0
        %v9706 = vadd.f32 %v8926, %v9705
        %v9707 = vpop.f32.mrf.mxu0
        %9708 = vdwg.mxu0
        %9709 = vmatpush.bf16.msra.mxu0 %v9455
        %9710 = vmatpush.bf16.msra.mxu0 %v9454
        %9711 = vmatpush.bf16.msra.mxu0 %v9453
        %9712 = vmatpush.bf16.msra.mxu0 %v9452
        %9713 = vmatpush.bf16.msra.mxu0 %v9451
        %9714 = vmatpush.bf16.msra.mxu0 %v9450
        %9715 = vmatpush.bf16.msra.mxu0 %v9449
        %9716 = vmatpush.bf16.msra.mxu0 %v9448
        %9717 = vmatmul.bf16.gmra.mxu0 %v8650
        %v9718 = vpop.f32.mrf.mxu0
        %v9719 = vadd.f32 %v9706, %v9718
        %v9720 = vpop.f32.mrf.mxu0
        %9721 = vdwg.mxu0
        %9722 = vmatpush.bf16.msra.mxu0 %v9463
        %9723 = vmatpush.bf16.msra.mxu0 %v9462
        %9724 = vmatpush.bf16.msra.mxu0 %v9461
        %9725 = vmatpush.bf16.msra.mxu0 %v9460
        %9726 = vmatpush.bf16.msra.mxu0 %v9459
        %9727 = vmatpush.bf16.msra.mxu0 %v9458
        %9728 = vmatpush.bf16.msra.mxu0 %v9457
        %9729 = vmatpush.bf16.msra.mxu0 %v9456
        %9730 = vmatmul.bf16.gmra.mxu0 %v8651
        %v9731 = vpop.f32.mrf.mxu0
        %v9732 = vadd.f32 %v9719, %v9731
        %v9733 = vpop.f32.mrf.mxu0
        %9734 = vdwg.mxu0
        %9735 = vmatpush.bf16.msra.mxu0 %v9471
        %9736 = vmatpush.bf16.msra.mxu0 %v9470
        %9737 = vmatpush.bf16.msra.mxu0 %v9469
        %9738 = vmatpush.bf16.msra.mxu0 %v9468
        %9739 = vmatpush.bf16.msra.mxu0 %v9467
        %9740 = vmatpush.bf16.msra.mxu0 %v9466
        %9741 = vmatpush.bf16.msra.mxu0 %v9465
        %9742 = vmatpush.bf16.msra.mxu0 %v9464
        %9743 = vmatmul.bf16.gmra.mxu0 %v8652
        %v9744 = vpop.f32.mrf.mxu0
        %v9745 = vadd.f32 %v9732, %v9744
        %v9746 = vpop.f32.mrf.mxu0
        %9747 = vdwg.mxu0
        %9748 = vmatpush.bf16.msra.mxu0 %v9479
        %9749 = vmatpush.bf16.msra.mxu0 %v9478
        %9750 = vmatpush.bf16.msra.mxu0 %v9477
        %9751 = vmatpush.bf16.msra.mxu0 %v9476
        %9752 = vmatpush.bf16.msra.mxu0 %v9475
        %9753 = vmatpush.bf16.msra.mxu0 %v9474
        %9754 = vmatpush.bf16.msra.mxu0 %v9473
        %9755 = vmatpush.bf16.msra.mxu0 %v9472
        %9756 = vmatmul.bf16.gmra.mxu0 %v8653
        %v9757 = vpop.f32.mrf.mxu0
        %v9758 = vadd.f32 %v9745, %v9757
        %v9759 = vpop.f32.mrf.mxu0
        %9760 = vdwg.mxu0
        %9761 = vmatpush.bf16.msra.mxu0 %v9487
        %9762 = vmatpush.bf16.msra.mxu0 %v9486
        %9763 = vmatpush.bf16.msra.mxu0 %v9485
        %9764 = vmatpush.bf16.msra.mxu0 %v9484
        %9765 = vmatpush.bf16.msra.mxu0 %v9483
        %9766 = vmatpush.bf16.msra.mxu0 %v9482
        %9767 = vmatpush.bf16.msra.mxu0 %v9481
        %9768 = vmatpush.bf16.msra.mxu0 %v9480
        %9769 = vmatmul.bf16.gmra.mxu0 %v8654
        %v9770 = vpop.f32.mrf.mxu0
        %v9771 = vadd.f32 %v9758, %v9770
        %v9772 = vpop.f32.mrf.mxu0
        %9773 = vdwg.mxu0
        %9774 = vmatpush.bf16.msra.mxu0 %v9495
        %9775 = vmatpush.bf16.msra.mxu0 %v9494
        %9776 = vmatpush.bf16.msra.mxu0 %v9493
        %9777 = vmatpush.bf16.msra.mxu0 %v9492
        %9778 = vmatpush.bf16.msra.mxu0 %v9491
        %9779 = vmatpush.bf16.msra.mxu0 %v9490
        %9780 = vmatpush.bf16.msra.mxu0 %v9489
        %9781 = vmatpush.bf16.msra.mxu0 %v9488
        %9782 = vmatmul.bf16.gmra.mxu0 %v8655
        %v9783 = vpop.f32.mrf.mxu0
        %v9784 = vadd.f32 %v9771, %v9783
        %v9785 = vpop.f32.mrf.mxu0
        %9786 = vdwg.mxu0
        %9787 = vmatpush.bf16.msra.mxu0 %v9503
        %9788 = vmatpush.bf16.msra.mxu0 %v9502
        %9789 = vmatpush.bf16.msra.mxu0 %v9501
        %9790 = vmatpush.bf16.msra.mxu0 %v9500
        %9791 = vmatpush.bf16.msra.mxu0 %v9499
        %9792 = vmatpush.bf16.msra.mxu0 %v9498
        %9793 = vmatpush.bf16.msra.mxu0 %v9497
        %9794 = vmatpush.bf16.msra.mxu0 %v9496
        %9795 = vmatmul.bf16.gmra.mxu0 %v8656
        %v9796 = vpop.f32.mrf.mxu0
        %v9797 = vadd.f32 %v9784, %v9796
        %v9798 = vpop.f32.mrf.mxu0
        %9799 = vdwg.mxu0
        %9800 = vmatpush.bf16.msra.mxu0 %v9511
        %9801 = vmatpush.bf16.msra.mxu0 %v9510
        %9802 = vmatpush.bf16.msra.mxu0 %v9509
        %9803 = vmatpush.bf16.msra.mxu0 %v9508
        %9804 = vmatpush.bf16.msra.mxu0 %v9507
        %9805 = vmatpush.bf16.msra.mxu0 %v9506
        %9806 = vmatpush.bf16.msra.mxu0 %v9505
        %9807 = vmatpush.bf16.msra.mxu0 %v9504
        %9808 = vmatmul.bf16.gmra.mxu0 %v8657
        %v9809 = vpop.f32.mrf.mxu0
        %v9810 = vadd.f32 %v9797, %v9809
        %v9811 = vpop.f32.mrf.mxu0
        %9812 = vdwg.mxu0
        %9813 = vmatpush.bf16.msra.mxu0 %v9519
        %9814 = vmatpush.bf16.msra.mxu0 %v9518
        %9815 = vmatpush.bf16.msra.mxu0 %v9517
        %9816 = vmatpush.bf16.msra.mxu0 %v9516
        %9817 = vmatpush.bf16.msra.mxu0 %v9515
        %9818 = vmatpush.bf16.msra.mxu0 %v9514
        %9819 = vmatpush.bf16.msra.mxu0 %v9513
        %9820 = vmatpush.bf16.msra.mxu0 %v9512
        %9821 = vmatmul.bf16.gmra.mxu0 %v8658
        %v9822 = vpop.f32.mrf.mxu0
        %v9823 = vadd.f32 %v9810, %v9822
        %v9824 = vpop.f32.mrf.mxu0
        %9825 = vdwg.mxu0
        %9826 = vmatpush.bf16.msra.mxu0 %v9527
        %9827 = vmatpush.bf16.msra.mxu0 %v9526
        %9828 = vmatpush.bf16.msra.mxu0 %v9525
        %9829 = vmatpush.bf16.msra.mxu0 %v9524
        %9830 = vmatpush.bf16.msra.mxu0 %v9523
        %9831 = vmatpush.bf16.msra.mxu0 %v9522
        %9832 = vmatpush.bf16.msra.mxu0 %v9521
        %9833 = vmatpush.bf16.msra.mxu0 %v9520
        %9834 = vmatmul.bf16.gmra.mxu0 %v8659
        %v9835 = vpop.f32.mrf.mxu0
        %v9836 = vadd.f32 %v9823, %v9835
        %v9837 = vpop.f32.mrf.mxu0
        %9838 = vdwg.mxu0
        %9839 = vmatpush.bf16.msra.mxu0 %v9535
        %9840 = vmatpush.bf16.msra.mxu0 %v9534
        %9841 = vmatpush.bf16.msra.mxu0 %v9533
        %9842 = vmatpush.bf16.msra.mxu0 %v9532
        %9843 = vmatpush.bf16.msra.mxu0 %v9531
        %9844 = vmatpush.bf16.msra.mxu0 %v9530
        %9845 = vmatpush.bf16.msra.mxu0 %v9529
        %9846 = vmatpush.bf16.msra.mxu0 %v9528
        %9847 = vmatmul.bf16.gmra.mxu0 %v8660
        %v9848 = vpop.f32.mrf.mxu0
        %v9849 = vadd.f32 %v9836, %v9848
        %v9850 = vpop.f32.mrf.mxu0
        %9851 = vdwg.mxu0
        %9852 = vmatpush.bf16.msra.mxu0 %v9543
        %9853 = vmatpush.bf16.msra.mxu0 %v9542
        %9854 = vmatpush.bf16.msra.mxu0 %v9541
        %9855 = vmatpush.bf16.msra.mxu0 %v9540
        %9856 = vmatpush.bf16.msra.mxu0 %v9539
        %9857 = vmatpush.bf16.msra.mxu0 %v9538
        %9858 = vmatpush.bf16.msra.mxu0 %v9537
        %9859 = vmatpush.bf16.msra.mxu0 %v9536
        %9860 = vmatmul.bf16.gmra.mxu0 %v8661
        %v9861 = vpop.f32.mrf.mxu0
        %v9862 = vadd.f32 %v9849, %v9861
        %v9863 = vpop.f32.mrf.mxu0
        %9864 = vdwg.mxu0
        %9865 = vmatpush.bf16.msra.mxu0 %v9551
        %9866 = vmatpush.bf16.msra.mxu0 %v9550
        %9867 = vmatpush.bf16.msra.mxu0 %v9549
        %9868 = vmatpush.bf16.msra.mxu0 %v9548
        %9869 = vmatpush.bf16.msra.mxu0 %v9547
        %9870 = vmatpush.bf16.msra.mxu0 %v9546
        %9871 = vmatpush.bf16.msra.mxu0 %v9545
        %9872 = vmatpush.bf16.msra.mxu0 %v9544
        %9873 = vmatmul.bf16.gmra.mxu0 %v8662
        %v9874 = vpop.f32.mrf.mxu0
        %v9875 = vadd.f32 %v9862, %v9874
        %v9876 = vpop.f32.mrf.mxu0
        %9877 = vdwg.mxu0
        %9878 = vmatpush.bf16.msra.mxu0 %v9559
        %9879 = vmatpush.bf16.msra.mxu0 %v9558
        %9880 = vmatpush.bf16.msra.mxu0 %v9557
        %9881 = vmatpush.bf16.msra.mxu0 %v9556
        %9882 = vmatpush.bf16.msra.mxu0 %v9555
        %9883 = vmatpush.bf16.msra.mxu0 %v9554
        %9884 = vmatpush.bf16.msra.mxu0 %v9553
        %9885 = vmatpush.bf16.msra.mxu0 %v9552
        %9886 = vmatmul.bf16.gmra.mxu0 %v8663
        %v9887 = vpop.f32.mrf.mxu0
        %v9888 = vadd.f32 %v9875, %v9887
        %v9889 = vpop.f32.mrf.mxu0
        %9890 = vdwg.mxu0
        %9891 = vmatpush.bf16.msra.mxu0 %v9567
        %9892 = vmatpush.bf16.msra.mxu0 %v9566
        %9893 = vmatpush.bf16.msra.mxu0 %v9565
        %9894 = vmatpush.bf16.msra.mxu0 %v9564
        %9895 = vmatpush.bf16.msra.mxu0 %v9563
        %9896 = vmatpush.bf16.msra.mxu0 %v9562
        %9897 = vmatpush.bf16.msra.mxu0 %v9561
        %9898 = vmatpush.bf16.msra.mxu0 %v9560
        %9899 = vmatmul.bf16.gmra.mxu0 %v8664
        %v9900 = vpop.f32.mrf.mxu0
        %v9901 = vadd.f32 %v9888, %v9900
        %v9902 = vpop.f32.mrf.mxu0
        %9903 = vdwg.mxu0
        %vm9904 = vcmask 130048
        %9905 = vst.msk [vmem:[%s508] sm:$0xff] %vm9904, %v9901
        %s9906 = sand.u32 %s276, 1
        %s9907 = scalar_lea.sflag [#allocation5], %s9906
        %s9908 = sand.u32 %s276, 1
        %s9909 = smul.addr %s9908, 8
        %s9910 = scalar_lea.vmem [#allocation17], %s9909
        // Predicated region
        $region97: #{fno1d_forward.1} parent=63 // pred_check
          %p9911 = pneg %p286
        $region98: #{fno1d_forward.1} parent=63 // pred_check_branch
          %9913 = sbr.rel (%p9911) target = $region100
        $region99: #{fno1d_forward.1} parent=63 // pred_region
          %9915 = vsyncadd %s9907, 0
          %s9916 = smul.addr %s32, 8
          %s9917 = scalar_lea.hbm %s11, %s9916
          %s9919 = sshll.u32 %s9910, 4
          %s9920 = int_to_ptr.vmem [resolvable:$true] %s9919
          %s9921 = sshll.u32 %s9917, 4
          %s9922 = int_to_ptr.hbm [resolvable:$true] %s9921
          %9924 = dma.vmem_to_hbm [thread:$0]  %s9920, 128, %s9922, %s9907
        $region100: #{fno1d_forward.1} parent=63 // pred_fallthru
          _
      $region64: #{fno1d_forward.1} parent=5 // pred_fallthru
        _
      %p9925 = scmp.le.s32.totalorder 2, %s27
      // Predicated region
      $region101: #{fno1d_forward.1} parent=5 // pred_check
        %p9926 = pneg %p9925
      $region102: #{fno1d_forward.1} parent=5 // pred_check_branch
        %9928 = sbr.rel (%p9926) target = $region104
      $region103: #{fno1d_forward.1} parent=5 // pred_region
        %s9929 = ssub.s32 %s27, 2
        // Predicated region
        $region105: #{fno1d_forward.1} parent=103 // pred_check
          %p9930 = pneg %p292
        $region106: #{fno1d_forward.1} parent=103 // pred_check_branch
          %9932 = sbr.rel (%p9930) target = $region108
        $region107: #{fno1d_forward.1} parent=103 // pred_region
          %s9933 = sand.u32 %s277, 1
          %s9934 = scalar_lea.sflag [#allocation5], %s9933
          %s9935 = sand.u32 %s277, 1
          %s9936 = smul.addr %s9935, 8
          %s9937 = scalar_lea.vmem [#allocation17], %s9936
          %9939 = dma.done %s9934, 128
        $region108: #{fno1d_forward.1} parent=103 // pred_fallthru
          _
      $region104: #{fno1d_forward.1} parent=5 // pred_fallthru
        _
    $region6: #{fno1d_forward.1} parent=1 // loop_footer
      %s31 = sadd.s32 1, %s27
    $region7: #{fno1d_forward.1} parent=1 // loop_footer_branch
      %26 = sbr.rel target = $region3
    $region8: #{fno1d_forward.1} parent=1 // loop_exit
      _
    %9940 = vsyncpa [#allocation4], 1
    %s9941 = scalar_lea.sflag [#allocation4], 1
    %9942 = vsyncpa %s9941, 1
    %9943 = vsyncpa [#allocation7], 1
    %9944 = vsyncpa [#allocation10], 1
    %9945 = vsyncpa [#allocation13], 1
    %9946 = vsyncpa [#allocation16], 1
    %9947 = vsyncpa [#allocation5], 1
    %s9948 = scalar_lea.sflag [#allocation5], 1
    %9949 = vsyncpa %s9948, 1

</llo_original>
